<compile_context>
chip_gen: v7x
topology: tpu7x:2x2x1
jax: 0.10.0
libtpu: 0.0.40
codegen_flags: <defaults>
</compile_context>

<pallas_src>
import jax
import jax.numpy as jnp
from jax.experimental import pallas as pl
from jax.experimental.pallas import tpu as pltpu

# ---------------- model / example sizes (module defaults, small example graph) ------------
NODE_IN = 16      # node_in_feats
EDGE_IN = 10      # edge_in_feats
H = 64            # hidden_feats (module default 64)
T_MP = 3          # num_step_message_passing
S2S_ITERS = 3     # num_step_set2set
READOUT = 1024    # readout_feats
D2 = 2 * H        # Set2Set input dim (= hidden_feats * 2)
N_NODES = 8
N_EDGES = 16


def _sigmoid(x):
    return 1.0 / (1.0 + jnp.exp(-x))


# ---------------- kernel 1: node projection + FALayer + NNConv edge network ---------------

def _encode_kernel(x_ref, wp_ref, bp_ref, s_ref, d_ref, deg_ref,
                   wgd_ref, wgs_ref, bg_ref,
                   eattr_ref, wefa_ref, wefe_ref, bef_ref,
                   h0_ref, ew_ref):
    # project_node_feats: Linear + ReLU
    h0 = jnp.maximum(
        jnp.dot(x_ref[...], wp_ref[...], preferred_element_type=jnp.float32) + bp_ref[...],
        0.0)
    h0_ref[...] = h0

    # FALayer: per-edge gate (dropout p=0.5 -> eval-mode identity)
    s = s_ref[...]                       # (E, N) src one-hot
    d = d_ref[...]                       # (E, N) dst one-hot
    h_src = jnp.dot(s, h0, preferred_element_type=jnp.float32)   # (E, H)
    h_dst = jnp.dot(d, h0, preferred_element_type=jnp.float32)   # (E, H)
    t = jnp.tanh(jnp.dot(h_dst, wgd_ref[...], preferred_element_type=jnp.float32)
                 + jnp.dot(h_src, wgs_ref[...], preferred_element_type=jnp.float32)
                 + bg_ref[...])                                   # (E, 1)
    deg = deg_ref[...]                                            # (N, 1) in-degrees
    e = 0.3 + t * jnp.dot(d, deg, preferred_element_type=jnp.float32) \
              * jnp.dot(s, deg, preferred_element_type=jnp.float32)   # (E, 1)

    # NNConv edge network on cat([edge_attr, e], -1)  (concat folded into split weights)
    ew_ref[...] = (jnp.dot(eattr_ref[...], wefa_ref[...], preferred_element_type=jnp.float32)
                   + jnp.dot(e, wefe_ref[...], preferred_element_type=jnp.float32)
                   + bef_ref[...])                                # (E, H*H) lane-dense


# ---------------- kernel 2: NNConv(sum) + ReLU + GRU cell, all T_MP steps in one call -----

def _mp_gru_kernel(h0_ref, s_ref, dstT_ref, w2_ref, blk_ref, nnb_ref,
                   wir_ref, wiz_ref, win_ref, whr_ref, whz_ref, whn_ref,
                   br_ref, bz_ref, bin_ref, bhn_ref,
                   o_ref):
    t = pl.program_id(0)

    @pl.when(t == 0)
    def _():
        o_ref[...] = h0_ref[...]          # carry initialized from projected node feats

    h = o_ref[...]                        # (N, H)  VMEM-resident carry
    e_cnt = s_ref.shape[0]

    # NNConv messages: m_e = h_src_e @ W_e, via block-diagonal trick -> one MXU matmul
    h_src = jnp.dot(s_ref[...], h, preferred_element_type=jnp.float32)      # (E, H)
    bd = jnp.tile(h_src, (1, e_cnt)) * blk_ref[...]                          # (E, E*H)
    m = jnp.dot(bd, w2_ref[...], preferred_element_type=jnp.float32)         # (E, H)

    # sum-aggregate into destination nodes + NNConv bias, then ReLU
    neigh = jnp.dot(dstT_ref[...], m, preferred_element_type=jnp.float32) + nnb_ref[...]
    x = jnp.maximum(neigh, 0.0)

    # GRU cell (single layer, single time step; output == new hidden)
    r = _sigmoid(jnp.dot(x, wir_ref[...], preferred_element_type=jnp.float32)
                 + jnp.dot(h, whr_ref[...], preferred_element_type=jnp.float32)
                 + br_ref[...])
    z = _sigmoid(jnp.dot(x, wiz_ref[...], preferred_element_type=jnp.float32)
                 + jnp.dot(h, whz_ref[...], preferred_element_type=jnp.float32)
                 + bz_ref[...])
    n = jnp.tanh(jnp.dot(x, win_ref[...], preferred_element_type=jnp.float32) + bin_ref[...]
                 + r * (jnp.dot(h, whn_ref[...], preferred_element_type=jnp.float32)
                        + bhn_ref[...]))
    o_ref[...] = (1.0 - z) * n + z * h


# ---------------- kernel 3: Set2Set readout (LSTM + node softmax) + sparsify Linear+PReLU --

def _set2set_sparsify_kernel(feat_ref, wihq_ref, wihr_ref, whh_ref, bl_ref,
                             wsq_ref, wsr_ref, bs_ref, pa_ref, o_ref):
    feat = feat_ref[...]                                   # (N, 2H)
    q = jnp.zeros((1, D2), jnp.float32)                    # q_star = [q, readout] (both zero)
    r = jnp.zeros((1, D2), jnp.float32)
    hh = jnp.zeros((1, D2), jnp.float32)                   # LSTM hidden
    cc = jnp.zeros((1, D2), jnp.float32)                   # LSTM cell

    for _ in range(S2S_ITERS):
        g = (jnp.dot(q, wihq_ref[...], preferred_element_type=jnp.float32)
             + jnp.dot(r, wihr_ref[...], preferred_element_type=jnp.float32)
             + jnp.dot(hh, whh_ref[...], preferred_element_type=jnp.float32)
             + bl_ref[...])                                # (1, 4*D2), gates [i, f, g, o]
        i_g = _sigmoid(g[:, 0 * D2:1 * D2])
        f_g = _sigmoid(g[:, 1 * D2:2 * D2])
        g_g = jnp.tanh(g[:, 2 * D2:3 * D2])
        o_g = _sigmoid(g[:, 3 * D2:4 * D2])
        cc = f_g * cc + i_g * g_g
        hh = o_g * jnp.tanh(cc)
        q = hh                                             # (1, D2)

        # attention over nodes (single graph -> softmax over all nodes)
        e = jnp.sum(feat * q, axis=-1, keepdims=True)      # (N, 1)
        e = e - jnp.max(e, axis=0, keepdims=True)
        a = jnp.exp(e)
        a = a / jnp.sum(a, axis=0, keepdims=True)
        r = jnp.sum(a * feat, axis=0, keepdims=True)       # (1, D2)

    # sparsify: Linear(4H -> readout) on q_star=[q, r] (concat folded into split weights) + PReLU
    out = (jnp.dot(q, wsq_ref[...], preferred_element_type=jnp.float32)
           + jnp.dot(r, wsr_ref[...], preferred_element_type=jnp.float32)
           + bs_ref[...])                                  # (1, READOUT) lane-dense
    o_ref[...] = jnp.where(out >= 0.0, out, pa_ref[...] * out)


# ---------------- pallas_call wrappers -----------------------------------------------------

def _fs(shape):
    # full-array block (allowed even when not (8,128)-aligned because block == full dims)
    return pl.BlockSpec(shape, lambda i: (0,) * len(shape))


def encode(node_feats, edge_attr, src_oh, dst_oh, deg, p):
    args = (node_feats, p["wp"], p["bp"], src_oh, dst_oh, deg,
            p["wgd"], p["wgs"], p["bg"],
            edge_attr, p["wefa"], p["wefe"], p["bef"])
    return pl.pallas_call(
        _encode_kernel,
        out_shape=(jax.ShapeDtypeStruct((N_NODES, H), jnp.float32),
                   jax.ShapeDtypeStruct((N_EDGES, H * H), jnp.float32)),
        grid=(1,),
        in_specs=[_fs(a.shape) for a in args],
        out_specs=(_fs((N_NODES, H)), _fs((N_EDGES, H * H))),
        compiler_params=pltpu.CompilerParams(dimension_semantics=("arbitrary",)),
    )(*args)


def message_passing(h0, src_oh, dstT, w2, blkmask, p):
    args = (h0, src_oh, dstT, w2, blkmask, p["nn_b"],
            p["wir"], p["wiz"], p["win"], p["whr"], p["whz"], p["whn"],
            p["b_r"], p["b_z"], p["b_in"], p["b_hn"])
    return pl.pallas_call(
        _mp_gru_kernel,
        out_shape=jax.ShapeDtypeStruct((N_NODES, H), jnp.float32),
        grid=(T_MP,),                       # all message-passing steps inside one call
        in_specs=[_fs(a.shape) for a in args],
        out_specs=_fs((N_NODES, H)),
        compiler_params=pltpu.CompilerParams(dimension_semantics=("arbitrary",)),
    )(*args)


def set2set_sparsify(feat, p):
    args = (feat, p["wih_q"], p["wih_r"], p["whh"], p["b_lstm"],
            p["wsp_q"], p["wsp_r"], p["b_sp"], p["prelu_a"])
    return pl.pallas_call(
        _set2set_sparsify_kernel,
        out_shape=jax.ShapeDtypeStruct((1, READOUT), jnp.float32),
        grid=(1,),
        in_specs=[_fs(a.shape) for a in args],
        out_specs=_fs((1, READOUT)),
        compiler_params=pltpu.CompilerParams(dimension_semantics=("arbitrary",)),
    )(*args)


# ---------------- full forward (glue only: reshape / transpose / concat) -------------------

@jax.jit
def mpnn_forward(node_feats, edge_attr, src_oh, dst_oh, deg, blkmask, params):
    h0, ew_flat = encode(node_feats, edge_attr, src_oh, dst_oh, deg, params)
    w2 = ew_flat.reshape(N_EDGES * H, H)          # per-edge NNConv weights, stacked (E*H, H)
    dstT = jnp.transpose(dst_oh)                  # (N, E): scatter-sum into destination nodes
    h_final = message_passing(h0, src_oh, dstT, w2, blkmask, params)
    node_aggr = jnp.concatenate([h0, h_final], axis=1)    # torch.cat(node_aggr, 1) -> (N, 2H)
    return set2set_sparsify(node_aggr, params)             # (1, READOUT)


# ---------------- deterministic parameter init ---------------------------------------------

def init_params(key):
    ks = iter(jax.random.split(key, 32))

    def lin(k, fi, fo, scale=None):
        s = scale if scale is not None else (1.0 / fi) ** 0.5
        return (jax.random.normal(k, (fi, fo), jnp.float32) * s).astype(jnp.float32)

    p = {}
    # project_node_feats: Linear(node_in, H) + ReLU
    p["wp"] = lin(next(ks), NODE_IN, H)
    p["bp"] = jnp.zeros((1, H), jnp.float32)
    # FALayer gate: Linear(2H, 1) (xavier_normal, gain 1.414); split [dst | src]
    wg = jax.random.normal(next(ks), (2 * H, 1), jnp.float32) * (1.414 * (2.0 / (2 * H + 1)) ** 0.5)
    p["wgd"], p["wgs"] = wg[:H], wg[H:]
    p["bg"] = jnp.zeros((1, 1), jnp.float32)
    # NNConv edge network: Linear(EDGE_IN + 1, H*H); split [edge_attr rows | FALayer-e row]
    wef = lin(next(ks), EDGE_IN + 1, H * H)
    p["wefa"], p["wefe"] = wef[:EDGE_IN], wef[EDGE_IN:]
    p["bef"] = jnp.zeros((1, H * H), jnp.float32)
    p["nn_b"] = jnp.zeros((1, H), jnp.float32)            # NNConv output bias
    # GRU(H, H): per-gate weights stored pre-transposed (in, out)
    for name in ("wir", "wiz", "win", "whr", "whz", "whn"):
        p[name] = lin(next(ks), H, H)
    p["b_r"] = jnp.zeros((1, H), jnp.float32)             # b_ir + b_hr folded
    p["b_z"] = jnp.zeros((1, H), jnp.float32)             # b_iz + b_hz folded
    p["b_in"] = jnp.zeros((1, H), jnp.float32)            # b_in stays separate (r-gated term)
    p["b_hn"] = jnp.zeros((1, H), jnp.float32)
    # Set2Set LSTM(input=4H, hidden=2H): W_ih split for q / readout halves of q_star
    p["wih_q"] = lin(next(ks), D2, 4 * D2)
    p["wih_r"] = lin(next(ks), D2, 4 * D2)
    p["whh"] = lin(next(ks), D2, 4 * D2)
    p["b_lstm"] = jnp.zeros((1, 4 * D2), jnp.float32)     # b_ih + b_hh folded
    # sparsify: Linear(4H, readout) split for [q | readout] halves, + PReLU(init=0.25)
    p["wsp_q"] = lin(next(ks), D2, READOUT, (1.0 / (2 * D2)) ** 0.5)
    p["wsp_r"] = lin(next(ks), D2, READOUT, (1.0 / (2 * D2)) ** 0.5)
    p["b_sp"] = jnp.zeros((1, READOUT), jnp.float32)
    p["prelu_a"] = jnp.full((1, 1), 0.25, jnp.float32)
    return p


if __name__ == "__main__":
    key = jax.random.PRNGKey(0)
    k_param, k_node, k_edge, k_src, k_dst = jax.random.split(key, 5)

    params = init_params(k_param)

    # small deterministic graph: N_NODES nodes, N_EDGES directed edges
    node_feats = jax.random.normal(k_node, (N_NODES, NODE_IN), jnp.float32)
    edge_attr = jax.random.normal(k_edge, (N_EDGES, EDGE_IN), jnp.float32)
    src = jax.random.randint(k_src, (N_EDGES,), 0, N_NODES)
    dst = jax.random.randint(k_dst, (N_EDGES,), 0, N_NODES)

    src_oh = jax.nn.one_hot(src, N_NODES, dtype=jnp.float32)   # (E, N) gather src feats
    dst_oh = jax.nn.one_hot(dst, N_NODES, dtype=jnp.float32)   # (E, N) gather dst feats
    deg = jnp.sum(dst_oh, axis=0)[:, None]                     # (N, 1) in-degrees (float)
    # block-diagonal selector mask for per-edge matvec as one big MXU matmul
    blkmask = jnp.repeat(jnp.eye(N_EDGES, dtype=jnp.float32), H, axis=1)   # (E, E*H)

    out = mpnn_forward(node_feats, edge_attr, src_oh, dst_oh, deg, blkmask, params)
    jax.block_until_ready(out)
    assert out.shape == (1, READOUT)
    assert bool(jnp.all(jnp.isfinite(out)))
    print("KERNEL_OK")
</pallas_src>

<mosaic_0001>
module attributes {stable_mosaic.version = 11 : i64} {
  func.func @_encode_kernel(%arg0: i32, %arg1: memref<8x16xf32, #tpu.memory_space<vmem>>, %arg2: memref<16x64xf32, #tpu.memory_space<vmem>>, %arg3: memref<1x64xf32, #tpu.memory_space<vmem>>, %arg4: memref<16x8xf32, #tpu.memory_space<vmem>>, %arg5: memref<16x8xf32, #tpu.memory_space<vmem>>, %arg6: memref<8x1xf32, #tpu.memory_space<vmem>>, %arg7: memref<64x1xf32, #tpu.memory_space<vmem>>, %arg8: memref<64x1xf32, #tpu.memory_space<vmem>>, %arg9: memref<1x1xf32, #tpu.memory_space<vmem>>, %arg10: memref<16x10xf32, #tpu.memory_space<vmem>>, %arg11: memref<10x4096xf32, #tpu.memory_space<vmem>>, %arg12: memref<1x4096xf32, #tpu.memory_space<vmem>>, %arg13: memref<1x4096xf32, #tpu.memory_space<vmem>>, %arg14: memref<8x64xf32, #tpu.memory_space<vmem>>, %arg15: memref<16x4096xf32, #tpu.memory_space<vmem>>) attributes {dimension_semantics = [#tpu.dimension_semantics<arbitrary>], iteration_bounds = array<i64: 1>, scalar_prefetch = 0 : i64, scratch_operands = 0 : i64, tpu.core_type = #tpu.core_type<tc>, window_params = [{pipeline_mode = #tpu.pipeline_mode<synchronous>, transform_indices = @transform_0, window_bounds = array<i64: 8, 16>}, {pipeline_mode = #tpu.pipeline_mode<synchronous>, transform_indices = @transform_1, window_bounds = array<i64: 16, 64>}, {pipeline_mode = #tpu.pipeline_mode<synchronous>, transform_indices = @transform_2, window_bounds = array<i64: 1, 64>}, {pipeline_mode = #tpu.pipeline_mode<synchronous>, transform_indices = @transform_3, window_bounds = array<i64: 16, 8>}, {pipeline_mode = #tpu.pipeline_mode<synchronous>, transform_indices = @transform_4, window_bounds = array<i64: 16, 8>}, {pipeline_mode = #tpu.pipeline_mode<synchronous>, transform_indices = @transform_5, window_bounds = array<i64: 8, 1>}, {pipeline_mode = #tpu.pipeline_mode<synchronous>, transform_indices = @transform_6, window_bounds = array<i64: 64, 1>}, {pipeline_mode = #tpu.pipeline_mode<synchronous>, transform_indices = @transform_7, window_bounds = array<i64: 64, 1>}, {pipeline_mode = #tpu.pipeline_mode<synchronous>, transform_indices = @transform_8, window_bounds = array<i64: 1, 1>}, {pipeline_mode = #tpu.pipeline_mode<synchronous>, transform_indices = @transform_9, window_bounds = array<i64: 16, 10>}, {pipeline_mode = #tpu.pipeline_mode<synchronous>, transform_indices = @transform_10, window_bounds = array<i64: 10, 4096>}, {pipeline_mode = #tpu.pipeline_mode<synchronous>, transform_indices = @transform_11, window_bounds = array<i64: 1, 4096>}, {pipeline_mode = #tpu.pipeline_mode<synchronous>, transform_indices = @transform_12, window_bounds = array<i64: 1, 4096>}, {pipeline_mode = #tpu.pipeline_mode<synchronous>, transform_indices = @transform_13, window_bounds = array<i64: 8, 64>}, {pipeline_mode = #tpu.pipeline_mode<synchronous>, transform_indices = @transform_14, window_bounds = array<i64: 16, 4096>}]} {
    %c0 = arith.constant 0 : index
    %c0_0 = arith.constant 0 : index
    %0 = vector.load %arg1[%c0, %c0_0] : memref<8x16xf32, #tpu.memory_space<vmem>>, vector<8x16xf32>
    %c0_1 = arith.constant 0 : index
    %c0_2 = arith.constant 0 : index
    %1 = vector.load %arg2[%c0_1, %c0_2] : memref<16x64xf32, #tpu.memory_space<vmem>>, vector<16x64xf32>
    %cst = arith.constant dense<0.000000e+00> : vector<8x64xf32>
    %2 = tpu.matmul %0, %1, %cst {dimension_numbers = #tpu.dot_dimension_numbers<[1], [0], [0], [1], [0, 0, 1, 1], [], []>} : vector<8x16xf32>, vector<16x64xf32>, vector<8x64xf32> -> vector<8x64xf32>
    %c0_3 = arith.constant 0 : index
    %c0_4 = arith.constant 0 : index
    %3 = vector.load %arg3[%c0_3, %c0_4] : memref<1x64xf32, #tpu.memory_space<vmem>>, vector<1x64xf32>
    %4 = vector.broadcast %3 : vector<1x64xf32> to vector<8x64xf32>
    %5 = arith.addf %2, %4 : vector<8x64xf32>
    %cst_5 = arith.constant 0.000000e+00 : f32
    %6 = vector.broadcast %cst_5 : f32 to vector<8x64xf32>
    %7 = arith.maximumf %5, %6 : vector<8x64xf32>
    %c0_6 = arith.constant 0 : index
    %c0_7 = arith.constant 0 : index
    %8 = vector.load %arg14[%c0_6, %c0_7] : memref<8x64xf32, #tpu.memory_space<vmem>>, vector<8x64xf32>
    tpu.vector_store %arg14[%c0_6, %c0_7], %7 {strides = array<i32>} : memref<8x64xf32, #tpu.memory_space<vmem>>, vector<8x64xf32>,
    %c0_8 = arith.constant 0 : index
    %c0_9 = arith.constant 0 : index
    %9 = vector.load %arg4[%c0_8, %c0_9] : memref<16x8xf32, #tpu.memory_space<vmem>>, vector<16x8xf32>
    %c0_10 = arith.constant 0 : index
    %c0_11 = arith.constant 0 : index
    %10 = vector.load %arg5[%c0_10, %c0_11] : memref<16x8xf32, #tpu.memory_space<vmem>>, vector<16x8xf32>
    %cst_12 = arith.constant dense<0.000000e+00> : vector<16x64xf32>
    %11 = tpu.matmul %9, %7, %cst_12 {dimension_numbers = #tpu.dot_dimension_numbers<[1], [0], [0], [1], [0, 0, 1, 1], [], []>} : vector<16x8xf32>, vector<8x64xf32>, vector<16x64xf32> -> vector<16x64xf32>
    %cst_13 = arith.constant dense<0.000000e+00> : vector<16x64xf32>
    %12 = tpu.matmul %10, %7, %cst_13 {dimension_numbers = #tpu.dot_dimension_numbers<[1], [0], [0], [1], [0, 0, 1, 1], [], []>} : vector<16x8xf32>, vector<8x64xf32>, vector<16x64xf32> -> vector<16x64xf32>
    %c0_14 = arith.constant 0 : index
    %c0_15 = arith.constant 0 : index
    %13 = vector.load %arg7[%c0_14, %c0_15] : memref<64x1xf32, #tpu.memory_space<vmem>>, vector<64x1xf32>
    %cst_16 = arith.constant dense<0.000000e+00> : vector<16x1xf32>
    %14 = tpu.matmul %12, %13, %cst_16 {dimension_numbers = #tpu.dot_dimension_numbers<[1], [0], [0], [1], [0, 0, 1, 1], [], []>} : vector<16x64xf32>, vector<64x1xf32>, vector<16x1xf32> -> vector<16x1xf32>
    %c0_17 = arith.constant 0 : index
    %c0_18 = arith.constant 0 : index
    %15 = vector.load %arg8[%c0_17, %c0_18] : memref<64x1xf32, #tpu.memory_space<vmem>>, vector<64x1xf32>
    %cst_19 = arith.constant dense<0.000000e+00> : vector<16x1xf32>
    %16 = tpu.matmul %11, %15, %cst_19 {dimension_numbers = #tpu.dot_dimension_numbers<[1], [0], [0], [1], [0, 0, 1, 1], [], []>} : vector<16x64xf32>, vector<64x1xf32>, vector<16x1xf32> -> vector<16x1xf32>
    %17 = arith.addf %14, %16 : vector<16x1xf32>
    %c0_20 = arith.constant 0 : index
    %c0_21 = arith.constant 0 : index
    %18 = vector.load %arg9[%c0_20, %c0_21] : memref<1x1xf32, #tpu.memory_space<vmem>>, vector<1x1xf32>
    %19 = vector.broadcast %18 : vector<1x1xf32> to vector<16x1xf32>
    %20 = arith.addf %17, %19 : vector<16x1xf32>
    %21 = math.tanh %20 : vector<16x1xf32>
    %c0_22 = arith.constant 0 : index
    %c0_23 = arith.constant 0 : index
    %22 = vector.load %arg6[%c0_22, %c0_23] : memref<8x1xf32, #tpu.memory_space<vmem>>, vector<8x1xf32>
    %cst_24 = arith.constant dense<0.000000e+00> : vector<16x1xf32>
    %23 = tpu.matmul %10, %22, %cst_24 {dimension_numbers = #tpu.dot_dimension_numbers<[1], [0], [0], [1], [0, 0, 1, 1], [], []>} : vector<16x8xf32>, vector<8x1xf32>, vector<16x1xf32> -> vector<16x1xf32>
    %24 = arith.mulf %21, %23 : vector<16x1xf32>
    %cst_25 = arith.constant dense<0.000000e+00> : vector<16x1xf32>
    %25 = tpu.matmul %9, %22, %cst_25 {dimension_numbers = #tpu.dot_dimension_numbers<[1], [0], [0], [1], [0, 0, 1, 1], [], []>} : vector<16x8xf32>, vector<8x1xf32>, vector<16x1xf32> -> vector<16x1xf32>
    %26 = arith.mulf %24, %25 : vector<16x1xf32>
    %cst_26 = arith.constant 3.000000e-01 : f32
    %27 = vector.broadcast %cst_26 : f32 to vector<16x1xf32>
    %28 = arith.addf %27, %26 : vector<16x1xf32>
    %c0_27 = arith.constant 0 : index
    %c0_28 = arith.constant 0 : index
    %29 = vector.load %arg10[%c0_27, %c0_28] : memref<16x10xf32, #tpu.memory_space<vmem>>, vector<16x10xf32>
    %c0_29 = arith.constant 0 : index
    %c0_30 = arith.constant 0 : index
    %30 = vector.load %arg11[%c0_29, %c0_30] : memref<10x4096xf32, #tpu.memory_space<vmem>>, vector<10x4096xf32>
    %cst_31 = arith.constant dense<0.000000e+00> : vector<16x4096xf32>
    %31 = tpu.matmul %29, %30, %cst_31 {dimension_numbers = #tpu.dot_dimension_numbers<[1], [0], [0], [1], [0, 0, 1, 1], [], []>} : vector<16x10xf32>, vector<10x4096xf32>, vector<16x4096xf32> -> vector<16x4096xf32>
    %c0_32 = arith.constant 0 : index
    %c0_33 = arith.constant 0 : index
    %32 = vector.load %arg12[%c0_32, %c0_33] : memref<1x4096xf32, #tpu.memory_space<vmem>>, vector<1x4096xf32>
    %cst_34 = arith.constant dense<0.000000e+00> : vector<16x4096xf32>
    %33 = tpu.matmul %28, %32, %cst_34 {dimension_numbers = #tpu.dot_dimension_numbers<[1], [0], [0], [1], [0, 0, 1, 1], [], []>} : vector<16x1xf32>, vector<1x4096xf32>, vector<16x4096xf32> -> vector<16x4096xf32>
    %34 = arith.addf %31, %33 : vector<16x4096xf32>
    %c0_35 = arith.constant 0 : index
    %c0_36 = arith.constant 0 : index
    %35 = vector.load %arg13[%c0_35, %c0_36] : memref<1x4096xf32, #tpu.memory_space<vmem>>, vector<1x4096xf32>
    %36 = vector.broadcast %35 : vector<1x4096xf32> to vector<16x4096xf32>
    %37 = arith.addf %34, %36 : vector<16x4096xf32>
    %c0_37 = arith.constant 0 : index
    %c0_38 = arith.constant 0 : index
    %38 = vector.load %arg15[%c0_37, %c0_38] : memref<16x4096xf32, #tpu.memory_space<vmem>>, vector<16x4096xf32>
    tpu.vector_store %arg15[%c0_37, %c0_38], %37 {strides = array<i32>} : memref<16x4096xf32, #tpu.memory_space<vmem>>, vector<16x4096xf32>,
    return
  }
  func.func @transform_0(%arg0: i32) -> (i32, i32) {
    %c0_i32 = arith.constant 0 : i32
    %c0_i32_0 = arith.constant 0 : i32
    %c0_i32_1 = arith.constant 0 : i32
    return %c0_i32, %c0_i32_0 : i32, i32
  }
  func.func @transform_1(%arg0: i32) -> (i32, i32) {
    %c0_i32 = arith.constant 0 : i32
    %c0_i32_0 = arith.constant 0 : i32
    %c0_i32_1 = arith.constant 0 : i32
    return %c0_i32, %c0_i32_0 : i32, i32
  }
  func.func @transform_2(%arg0: i32) -> (i32, i32) {
    %c0_i32 = arith.constant 0 : i32
    %c0_i32_0 = arith.constant 0 : i32
    %c0_i32_1 = arith.constant 0 : i32
    return %c0_i32, %c0_i32_0 : i32, i32
  }
  func.func @transform_3(%arg0: i32) -> (i32, i32) {
    %c0_i32 = arith.constant 0 : i32
    %c0_i32_0 = arith.constant 0 : i32
    %c0_i32_1 = arith.constant 0 : i32
    return %c0_i32, %c0_i32_0 : i32, i32
  }
  func.func @transform_4(%arg0: i32) -> (i32, i32) {
    %c0_i32 = arith.constant 0 : i32
    %c0_i32_0 = arith.constant 0 : i32
    %c0_i32_1 = arith.constant 0 : i32
    return %c0_i32, %c0_i32_0 : i32, i32
  }
  func.func @transform_5(%arg0: i32) -> (i32, i32) {
    %c0_i32 = arith.constant 0 : i32
    %c0_i32_0 = arith.constant 0 : i32
    %c0_i32_1 = arith.constant 0 : i32
    return %c0_i32, %c0_i32_0 : i32, i32
  }
  func.func @transform_6(%arg0: i32) -> (i32, i32) {
    %c0_i32 = arith.constant 0 : i32
    %c0_i32_0 = arith.constant 0 : i32
    %c0_i32_1 = arith.constant 0 : i32
    return %c0_i32, %c0_i32_0 : i32, i32
  }
  func.func @transform_7(%arg0: i32) -> (i32, i32) {
    %c0_i32 = arith.constant 0 : i32
    %c0_i32_0 = arith.constant 0 : i32
    %c0_i32_1 = arith.constant 0 : i32
    return %c0_i32, %c0_i32_0 : i32, i32
  }
  func.func @transform_8(%arg0: i32) -> (i32, i32) {
    %c0_i32 = arith.constant 0 : i32
    %c0_i32_0 = arith.constant 0 : i32
    %c0_i32_1 = arith.constant 0 : i32
    return %c0_i32, %c0_i32_0 : i32, i32
  }
  func.func @transform_9(%arg0: i32) -> (i32, i32) {
    %c0_i32 = arith.constant 0 : i32
    %c0_i32_0 = arith.constant 0 : i32
    %c0_i32_1 = arith.constant 0 : i32
    return %c0_i32, %c0_i32_0 : i32, i32
  }
  func.func @transform_10(%arg0: i32) -> (i32, i32) {
    %c0_i32 = arith.constant 0 : i32
    %c0_i32_0 = arith.constant 0 : i32
    %c0_i32_1 = arith.constant 0 : i32
    return %c0_i32, %c0_i32_0 : i32, i32
  }
  func.func @transform_11(%arg0: i32) -> (i32, i32) {
    %c0_i32 = arith.constant 0 : i32
    %c0_i32_0 = arith.constant 0 : i32
    %c0_i32_1 = arith.constant 0 : i32
    return %c0_i32, %c0_i32_0 : i32, i32
  }
  func.func @transform_12(%arg0: i32) -> (i32, i32) {
    %c0_i32 = arith.constant 0 : i32
    %c0_i32_0 = arith.constant 0 : i32
    %c0_i32_1 = arith.constant 0 : i32
    return %c0_i32, %c0_i32_0 : i32, i32
  }
  func.func @transform_13(%arg0: i32) -> (i32, i32) {
    %c0_i32 = arith.constant 0 : i32
    %c0_i32_0 = arith.constant 0 : i32
    %c0_i32_1 = arith.constant 0 : i32
    return %c0_i32, %c0_i32_0 : i32, i32
  }
  func.func @transform_14(%arg0: i32) -> (i32, i32) {
    %c0_i32 = arith.constant 0 : i32
    %c0_i32_0 = arith.constant 0 : i32
    %c0_i32_1 = arith.constant 0 : i32
    return %c0_i32, %c0_i32_0 : i32, i32
  }
}

module attributes {stable_mosaic.version = 11 : i64} {
  func.func @_mp_gru_kernel(%arg0: i32, %arg1: memref<8x64xf32, #tpu.memory_space<vmem>>, %arg2: memref<16x8xf32, #tpu.memory_space<vmem>>, %arg3: memref<8x16xf32, #tpu.memory_space<vmem>>, %arg4: memref<1024x64xf32, #tpu.memory_space<vmem>>, %arg5: memref<16x1024xf32, #tpu.memory_space<vmem>>, %arg6: memref<1x64xf32, #tpu.memory_space<vmem>>, %arg7: memref<64x64xf32, #tpu.memory_space<vmem>>, %arg8: memref<64x64xf32, #tpu.memory_space<vmem>>, %arg9: memref<64x64xf32, #tpu.memory_space<vmem>>, %arg10: memref<64x64xf32, #tpu.memory_space<vmem>>, %arg11: memref<64x64xf32, #tpu.memory_space<vmem>>, %arg12: memref<64x64xf32, #tpu.memory_space<vmem>>, %arg13: memref<1x64xf32, #tpu.memory_space<vmem>>, %arg14: memref<1x64xf32, #tpu.memory_space<vmem>>, %arg15: memref<1x64xf32, #tpu.memory_space<vmem>>, %arg16: memref<1x64xf32, #tpu.memory_space<vmem>>, %arg17: memref<8x64xf32, #tpu.memory_space<vmem>>) attributes {dimension_semantics = [#tpu.dimension_semantics<arbitrary>], iteration_bounds = array<i64: 3>, scalar_prefetch = 0 : i64, scratch_operands = 0 : i64, tpu.core_type = #tpu.core_type<tc>, window_params = [{pipeline_mode = #tpu.pipeline_mode<synchronous>, transform_indices = @transform_0, window_bounds = array<i64: 8, 64>}, {pipeline_mode = #tpu.pipeline_mode<synchronous>, transform_indices = @transform_1, window_bounds = array<i64: 16, 8>}, {pipeline_mode = #tpu.pipeline_mode<synchronous>, transform_indices = @transform_2, window_bounds = array<i64: 8, 16>}, {pipeline_mode = #tpu.pipeline_mode<synchronous>, transform_indices = @transform_3, window_bounds = array<i64: 1024, 64>}, {pipeline_mode = #tpu.pipeline_mode<synchronous>, transform_indices = @transform_4, window_bounds = array<i64: 16, 1024>}, {pipeline_mode = #tpu.pipeline_mode<synchronous>, transform_indices = @transform_5, window_bounds = array<i64: 1, 64>}, {pipeline_mode = #tpu.pipeline_mode<synchronous>, transform_indices = @transform_6, window_bounds = array<i64: 64, 64>}, {pipeline_mode = #tpu.pipeline_mode<synchronous>, transform_indices = @transform_7, window_bounds = array<i64: 64, 64>}, {pipeline_mode = #tpu.pipeline_mode<synchronous>, transform_indices = @transform_8, window_bounds = array<i64: 64, 64>}, {pipeline_mode = #tpu.pipeline_mode<synchronous>, transform_indices = @transform_9, window_bounds = array<i64: 64, 64>}, {pipeline_mode = #tpu.pipeline_mode<synchronous>, transform_indices = @transform_10, window_bounds = array<i64: 64, 64>}, {pipeline_mode = #tpu.pipeline_mode<synchronous>, transform_indices = @transform_11, window_bounds = array<i64: 64, 64>}, {pipeline_mode = #tpu.pipeline_mode<synchronous>, transform_indices = @transform_12, window_bounds = array<i64: 1, 64>}, {pipeline_mode = #tpu.pipeline_mode<synchronous>, transform_indices = @transform_13, window_bounds = array<i64: 1, 64>}, {pipeline_mode = #tpu.pipeline_mode<synchronous>, transform_indices = @transform_14, window_bounds = array<i64: 1, 64>}, {pipeline_mode = #tpu.pipeline_mode<synchronous>, transform_indices = @transform_15, window_bounds = array<i64: 1, 64>}, {pipeline_mode = #tpu.pipeline_mode<synchronous>, transform_indices = @transform_16, window_bounds = array<i64: 8, 64>}]} {
    %c0_i32 = arith.constant 0 : i32
    %0 = arith.cmpi eq, %arg0, %c0_i32 : i32
    %1 = arith.extui %0 : i1 to i32
    %c0_i32_0 = arith.constant 0 : i32
    %2 = arith.cmpi ne, %1, %c0_i32_0 : i32
    scf.if %2 {
      %c0_50 = arith.constant 0 : index
      %c0_51 = arith.constant 0 : index
      %67 = vector.load %arg1[%c0_50, %c0_51] : memref<8x64xf32, #tpu.memory_space<vmem>>, vector<8x64xf32>
      %c0_52 = arith.constant 0 : index
      %c0_53 = arith.constant 0 : index
      %68 = vector.load %arg17[%c0_52, %c0_53] : memref<8x64xf32, #tpu.memory_space<vmem>>, vector<8x64xf32>
      tpu.vector_store %arg17[%c0_52, %c0_53], %67 {strides = array<i32>} : memref<8x64xf32, #tpu.memory_space<vmem>>, vector<8x64xf32>,
    } else {
    }
    %c0 = arith.constant 0 : index
    %c0_1 = arith.constant 0 : index
    %3 = vector.load %arg17[%c0, %c0_1] : memref<8x64xf32, #tpu.memory_space<vmem>>, vector<8x64xf32>
    %c0_2 = arith.constant 0 : index
    %c0_3 = arith.constant 0 : index
    %4 = vector.load %arg2[%c0_2, %c0_3] : memref<16x8xf32, #tpu.memory_space<vmem>>, vector<16x8xf32>
    %cst = arith.constant dense<0.000000e+00> : vector<16x64xf32>
    %5 = tpu.matmul %4, %3, %cst {dimension_numbers = #tpu.dot_dimension_numbers<[1], [0], [0], [1], [0, 0, 1, 1], [], []>} : vector<16x8xf32>, vector<8x64xf32>, vector<16x64xf32> -> vector<16x64xf32>
    %6 = tpu.concatenate %5, %5, %5, %5, %5, %5, %5, %5, %5, %5, %5, %5, %5, %5, %5, %5 in 1 : vector<16x64xf32>, vector<16x64xf32>, vector<16x64xf32>, vector<16x64xf32>, vector<16x64xf32>, vector<16x64xf32>, vector<16x64xf32>, vector<16x64xf32>, vector<16x64xf32>, vector<16x64xf32>, vector<16x64xf32>, vector<16x64xf32>, vector<16x64xf32>, vector<16x64xf32>, vector<16x64xf32>, vector<16x64xf32> -> vector<16x1024xf32>
    %c0_4 = arith.constant 0 : index
    %c0_5 = arith.constant 0 : index
    %7 = vector.load %arg5[%c0_4, %c0_5] : memref<16x1024xf32, #tpu.memory_space<vmem>>, vector<16x1024xf32>
    %8 = arith.mulf %6, %7 : vector<16x1024xf32>
    %c0_6 = arith.constant 0 : index
    %c0_7 = arith.constant 0 : index
    %9 = vector.load %arg4[%c0_6, %c0_7] : memref<1024x64xf32, #tpu.memory_space<vmem>>, vector<1024x64xf32>
    %cst_8 = arith.constant dense<0.000000e+00> : vector<16x64xf32>
    %10 = tpu.matmul %8, %9, %cst_8 {dimension_numbers = #tpu.dot_dimension_numbers<[1], [0], [0], [1], [0, 0, 1, 1], [], []>} : vector<16x1024xf32>, vector<1024x64xf32>, vector<16x64xf32> -> vector<16x64xf32>
    %c0_9 = arith.constant 0 : index
    %c0_10 = arith.constant 0 : index
    %11 = vector.load %arg3[%c0_9, %c0_10] : memref<8x16xf32, #tpu.memory_space<vmem>>, vector<8x16xf32>
    %cst_11 = arith.constant dense<0.000000e+00> : vector<8x64xf32>
    %12 = tpu.matmul %11, %10, %cst_11 {dimension_numbers = #tpu.dot_dimension_numbers<[1], [0], [0], [1], [0, 0, 1, 1], [], []>} : vector<8x16xf32>, vector<16x64xf32>, vector<8x64xf32> -> vector<8x64xf32>
    %c0_12 = arith.constant 0 : index
    %c0_13 = arith.constant 0 : index
    %13 = vector.load %arg6[%c0_12, %c0_13] : memref<1x64xf32, #tpu.memory_space<vmem>>, vector<1x64xf32>
    %14 = vector.broadcast %13 : vector<1x64xf32> to vector<8x64xf32>
    %15 = arith.addf %12, %14 : vector<8x64xf32>
    %cst_14 = arith.constant 0.000000e+00 : f32
    %16 = vector.broadcast %cst_14 : f32 to vector<8x64xf32>
    %17 = arith.maximumf %15, %16 : vector<8x64xf32>
    %c0_15 = arith.constant 0 : index
    %c0_16 = arith.constant 0 : index
    %18 = vector.load %arg7[%c0_15, %c0_16] : memref<64x64xf32, #tpu.memory_space<vmem>>, vector<64x64xf32>
    %cst_17 = arith.constant dense<0.000000e+00> : vector<8x64xf32>
    %19 = tpu.matmul %17, %18, %cst_17 {dimension_numbers = #tpu.dot_dimension_numbers<[1], [0], [0], [1], [0, 0, 1, 1], [], []>} : vector<8x64xf32>, vector<64x64xf32>, vector<8x64xf32> -> vector<8x64xf32>
    %c0_18 = arith.constant 0 : index
    %c0_19 = arith.constant 0 : index
    %20 = vector.load %arg10[%c0_18, %c0_19] : memref<64x64xf32, #tpu.memory_space<vmem>>, vector<64x64xf32>
    %cst_20 = arith.constant dense<0.000000e+00> : vector<8x64xf32>
    %21 = tpu.matmul %3, %20, %cst_20 {dimension_numbers = #tpu.dot_dimension_numbers<[1], [0], [0], [1], [0, 0, 1, 1], [], []>} : vector<8x64xf32>, vector<64x64xf32>, vector<8x64xf32> -> vector<8x64xf32>
    %22 = arith.addf %19, %21 : vector<8x64xf32>
    %c0_21 = arith.constant 0 : index
    %c0_22 = arith.constant 0 : index
    %23 = vector.load %arg13[%c0_21, %c0_22] : memref<1x64xf32, #tpu.memory_space<vmem>>, vector<1x64xf32>
    %24 = vector.broadcast %23 : vector<1x64xf32> to vector<8x64xf32>
    %25 = arith.addf %22, %24 : vector<8x64xf32>
    %cst_23 = arith.constant 0.000000e+00 : f32
    %26 = vector.broadcast %cst_23 : f32 to vector<8x64xf32>
    %27 = arith.subf %26, %25 : vector<8x64xf32>
    %28 = math.exp %27 : vector<8x64xf32>
    %cst_24 = arith.constant 1.000000e+00 : f32
    %29 = vector.broadcast %cst_24 : f32 to vector<8x64xf32>
    %30 = arith.addf %29, %28 : vector<8x64xf32>
    %cst_25 = arith.constant 1.000000e+00 : f32
    %31 = vector.broadcast %cst_25 : f32 to vector<8x64xf32>
    %32 = arith.divf %31, %30 : vector<8x64xf32>
    %c0_26 = arith.constant 0 : index
    %c0_27 = arith.constant 0 : index
    %33 = vector.load %arg8[%c0_26, %c0_27] : memref<64x64xf32, #tpu.memory_space<vmem>>, vector<64x64xf32>
    %cst_28 = arith.constant dense<0.000000e+00> : vector<8x64xf32>
    %34 = tpu.matmul %17, %33, %cst_28 {dimension_numbers = #tpu.dot_dimension_numbers<[1], [0], [0], [1], [0, 0, 1, 1], [], []>} : vector<8x64xf32>, vector<64x64xf32>, vector<8x64xf32> -> vector<8x64xf32>
    %c0_29 = arith.constant 0 : index
    %c0_30 = arith.constant 0 : index
    %35 = vector.load %arg11[%c0_29, %c0_30] : memref<64x64xf32, #tpu.memory_space<vmem>>, vector<64x64xf32>
    %cst_31 = arith.constant dense<0.000000e+00> : vector<8x64xf32>
    %36 = tpu.matmul %3, %35, %cst_31 {dimension_numbers = #tpu.dot_dimension_numbers<[1], [0], [0], [1], [0, 0, 1, 1], [], []>} : vector<8x64xf32>, vector<64x64xf32>, vector<8x64xf32> -> vector<8x64xf32>
    %37 = arith.addf %34, %36 : vector<8x64xf32>
    %c0_32 = arith.constant 0 : index
    %c0_33 = arith.constant 0 : index
    %38 = vector.load %arg14[%c0_32, %c0_33] : memref<1x64xf32, #tpu.memory_space<vmem>>, vector<1x64xf32>
    %39 = vector.broadcast %38 : vector<1x64xf32> to vector<8x64xf32>
    %40 = arith.addf %37, %39 : vector<8x64xf32>
    %cst_34 = arith.constant 0.000000e+00 : f32
    %41 = vector.broadcast %cst_34 : f32 to vector<8x64xf32>
    %42 = arith.subf %41, %40 : vector<8x64xf32>
    %43 = math.exp %42 : vector<8x64xf32>
    %cst_35 = arith.constant 1.000000e+00 : f32
    %44 = vector.broadcast %cst_35 : f32 to vector<8x64xf32>
    %45 = arith.addf %44, %43 : vector<8x64xf32>
    %cst_36 = arith.constant 1.000000e+00 : f32
    %46 = vector.broadcast %cst_36 : f32 to vector<8x64xf32>
    %47 = arith.divf %46, %45 : vector<8x64xf32>
    %c0_37 = arith.constant 0 : index
    %c0_38 = arith.constant 0 : index
    %48 = vector.load %arg9[%c0_37, %c0_38] : memref<64x64xf32, #tpu.memory_space<vmem>>, vector<64x64xf32>
    %cst_39 = arith.constant dense<0.000000e+00> : vector<8x64xf32>
    %49 = tpu.matmul %17, %48, %cst_39 {dimension_numbers = #tpu.dot_dimension_numbers<[1], [0], [0], [1], [0, 0, 1, 1], [], []>} : vector<8x64xf32>, vector<64x64xf32>, vector<8x64xf32> -> vector<8x64xf32>
    %c0_40 = arith.constant 0 : index
    %c0_41 = arith.constant 0 : index
    %50 = vector.load %arg15[%c0_40, %c0_41] : memref<1x64xf32, #tpu.memory_space<vmem>>, vector<1x64xf32>
    %51 = vector.broadcast %50 : vector<1x64xf32> to vector<8x64xf32>
    %52 = arith.addf %49, %51 : vector<8x64xf32>
    %c0_42 = arith.constant 0 : index
    %c0_43 = arith.constant 0 : index
    %53 = vector.load %arg12[%c0_42, %c0_43] : memref<64x64xf32, #tpu.memory_space<vmem>>, vector<64x64xf32>
    %cst_44 = arith.constant dense<0.000000e+00> : vector<8x64xf32>
    %54 = tpu.matmul %3, %53, %cst_44 {dimension_numbers = #tpu.dot_dimension_numbers<[1], [0], [0], [1], [0, 0, 1, 1], [], []>} : vector<8x64xf32>, vector<64x64xf32>, vector<8x64xf32> -> vector<8x64xf32>
    %c0_45 = arith.constant 0 : index
    %c0_46 = arith.constant 0 : index
    %55 = vector.load %arg16[%c0_45, %c0_46] : memref<1x64xf32, #tpu.memory_space<vmem>>, vector<1x64xf32>
    %56 = vector.broadcast %55 : vector<1x64xf32> to vector<8x64xf32>
    %57 = arith.addf %54, %56 : vector<8x64xf32>
    %58 = arith.mulf %32, %57 : vector<8x64xf32>
    %59 = arith.addf %52, %58 : vector<8x64xf32>
    %60 = math.tanh %59 : vector<8x64xf32>
    %cst_47 = arith.constant 1.000000e+00 : f32
    %61 = vector.broadcast %cst_47 : f32 to vector<8x64xf32>
    %62 = arith.subf %61, %47 : vector<8x64xf32>
    %63 = arith.mulf %62, %60 : vector<8x64xf32>
    %64 = arith.mulf %47, %3 : vector<8x64xf32>
    %65 = arith.addf %63, %64 : vector<8x64xf32>
    %c0_48 = arith.constant 0 : index
    %c0_49 = arith.constant 0 : index
    %66 = vector.load %arg17[%c0_48, %c0_49] : memref<8x64xf32, #tpu.memory_space<vmem>>, vector<8x64xf32>
    tpu.vector_store %arg17[%c0_48, %c0_49], %65 {strides = array<i32>} : memref<8x64xf32, #tpu.memory_space<vmem>>, vector<8x64xf32>,
    return
  }
  func.func @transform_0(%arg0: i32) -> (i32, i32) {
    %c0_i32 = arith.constant 0 : i32
    %c0_i32_0 = arith.constant 0 : i32
    %c0_i32_1 = arith.constant 0 : i32
    return %c0_i32, %c0_i32_0 : i32, i32
  }
  func.func @transform_1(%arg0: i32) -> (i32, i32) {
    %c0_i32 = arith.constant 0 : i32
    %c0_i32_0 = arith.constant 0 : i32
    %c0_i32_1 = arith.constant 0 : i32
    return %c0_i32, %c0_i32_0 : i32, i32
  }
  func.func @transform_2(%arg0: i32) -> (i32, i32) {
    %c0_i32 = arith.constant 0 : i32
    %c0_i32_0 = arith.constant 0 : i32
    %c0_i32_1 = arith.constant 0 : i32
    return %c0_i32, %c0_i32_0 : i32, i32
  }
  func.func @transform_3(%arg0: i32) -> (i32, i32) {
    %c0_i32 = arith.constant 0 : i32
    %c0_i32_0 = arith.constant 0 : i32
    %c0_i32_1 = arith.constant 0 : i32
    return %c0_i32, %c0_i32_0 : i32, i32
  }
  func.func @transform_4(%arg0: i32) -> (i32, i32) {
    %c0_i32 = arith.constant 0 : i32
    %c0_i32_0 = arith.constant 0 : i32
    %c0_i32_1 = arith.constant 0 : i32
    return %c0_i32, %c0_i32_0 : i32, i32
  }
  func.func @transform_5(%arg0: i32) -> (i32, i32) {
    %c0_i32 = arith.constant 0 : i32
    %c0_i32_0 = arith.constant 0 : i32
    %c0_i32_1 = arith.constant 0 : i32
    return %c0_i32, %c0_i32_0 : i32, i32
  }
  func.func @transform_6(%arg0: i32) -> (i32, i32) {
    %c0_i32 = arith.constant 0 : i32
    %c0_i32_0 = arith.constant 0 : i32
    %c0_i32_1 = arith.constant 0 : i32
    return %c0_i32, %c0_i32_0 : i32, i32
  }
  func.func @transform_7(%arg0: i32) -> (i32, i32) {
    %c0_i32 = arith.constant 0 : i32
    %c0_i32_0 = arith.constant 0 : i32
    %c0_i32_1 = arith.constant 0 : i32
    return %c0_i32, %c0_i32_0 : i32, i32
  }
  func.func @transform_8(%arg0: i32) -> (i32, i32) {
    %c0_i32 = arith.constant 0 : i32
    %c0_i32_0 = arith.constant 0 : i32
    %c0_i32_1 = arith.constant 0 : i32
    return %c0_i32, %c0_i32_0 : i32, i32
  }
  func.func @transform_9(%arg0: i32) -> (i32, i32) {
    %c0_i32 = arith.constant 0 : i32
    %c0_i32_0 = arith.constant 0 : i32
    %c0_i32_1 = arith.constant 0 : i32
    return %c0_i32, %c0_i32_0 : i32, i32
  }
  func.func @transform_10(%arg0: i32) -> (i32, i32) {
    %c0_i32 = arith.constant 0 : i32
    %c0_i32_0 = arith.constant 0 : i32
    %c0_i32_1 = arith.constant 0 : i32
    return %c0_i32, %c0_i32_0 : i32, i32
  }
  func.func @transform_11(%arg0: i32) -> (i32, i32) {
    %c0_i32 = arith.constant 0 : i32
    %c0_i32_0 = arith.constant 0 : i32
    %c0_i32_1 = arith.constant 0 : i32
    return %c0_i32, %c0_i32_0 : i32, i32
  }
  func.func @transform_12(%arg0: i32) -> (i32, i32) {
    %c0_i32 = arith.constant 0 : i32
    %c0_i32_0 = arith.constant 0 : i32
    %c0_i32_1 = arith.constant 0 : i32
    return %c0_i32, %c0_i32_0 : i32, i32
  }
  func.func @transform_13(%arg0: i32) -> (i32, i32) {
    %c0_i32 = arith.constant 0 : i32
    %c0_i32_0 = arith.constant 0 : i32
    %c0_i32_1 = arith.constant 0 : i32
    return %c0_i32, %c0_i32_0 : i32, i32
  }
  func.func @transform_14(%arg0: i32) -> (i32, i32) {
    %c0_i32 = arith.constant 0 : i32
    %c0_i32_0 = arith.constant 0 : i32
    %c0_i32_1 = arith.constant 0 : i32
    return %c0_i32, %c0_i32_0 : i32, i32
  }
  func.func @transform_15(%arg0: i32) -> (i32, i32) {
    %c0_i32 = arith.constant 0 : i32
    %c0_i32_0 = arith.constant 0 : i32
    %c0_i32_1 = arith.constant 0 : i32
    return %c0_i32, %c0_i32_0 : i32, i32
  }
  func.func @transform_16(%arg0: i32) -> (i32, i32) {
    %c0_i32 = arith.constant 0 : i32
    %c0_i32_0 = arith.constant 0 : i32
    %c0_i32_1 = arith.constant 0 : i32
    return %c0_i32, %c0_i32_0 : i32, i32
  }
}

module attributes {stable_mosaic.version = 11 : i64} {
  func.func @_set2set_sparsify_kernel(%arg0: i32, %arg1: memref<8x128xf32, #tpu.memory_space<vmem>>, %arg2: memref<128x512xf32, #tpu.memory_space<vmem>>, %arg3: memref<128x512xf32, #tpu.memory_space<vmem>>, %arg4: memref<128x512xf32, #tpu.memory_space<vmem>>, %arg5: memref<1x512xf32, #tpu.memory_space<vmem>>, %arg6: memref<128x1024xf32, #tpu.memory_space<vmem>>, %arg7: memref<128x1024xf32, #tpu.memory_space<vmem>>, %arg8: memref<1x1024xf32, #tpu.memory_space<vmem>>, %arg9: memref<1x1xf32, #tpu.memory_space<vmem>>, %arg10: memref<1x1024xf32, #tpu.memory_space<vmem>>) attributes {dimension_semantics = [#tpu.dimension_semantics<arbitrary>], iteration_bounds = array<i64: 1>, scalar_prefetch = 0 : i64, scratch_operands = 0 : i64, tpu.core_type = #tpu.core_type<tc>, window_params = [{pipeline_mode = #tpu.pipeline_mode<synchronous>, transform_indices = @transform_0, window_bounds = array<i64: 8, 128>}, {pipeline_mode = #tpu.pipeline_mode<synchronous>, transform_indices = @transform_1, window_bounds = array<i64: 128, 512>}, {pipeline_mode = #tpu.pipeline_mode<synchronous>, transform_indices = @transform_2, window_bounds = array<i64: 128, 512>}, {pipeline_mode = #tpu.pipeline_mode<synchronous>, transform_indices = @transform_3, window_bounds = array<i64: 128, 512>}, {pipeline_mode = #tpu.pipeline_mode<synchronous>, transform_indices = @transform_4, window_bounds = array<i64: 1, 512>}, {pipeline_mode = #tpu.pipeline_mode<synchronous>, transform_indices = @transform_5, window_bounds = array<i64: 128, 1024>}, {pipeline_mode = #tpu.pipeline_mode<synchronous>, transform_indices = @transform_6, window_bounds = array<i64: 128, 1024>}, {pipeline_mode = #tpu.pipeline_mode<synchronous>, transform_indices = @transform_7, window_bounds = array<i64: 1, 1024>}, {pipeline_mode = #tpu.pipeline_mode<synchronous>, transform_indices = @transform_8, window_bounds = array<i64: 1, 1>}, {pipeline_mode = #tpu.pipeline_mode<synchronous>, transform_indices = @transform_9, window_bounds = array<i64: 1, 1024>}]} {
    %c0 = arith.constant 0 : index
    %c0_0 = arith.constant 0 : index
    %0 = vector.load %arg1[%c0, %c0_0] : memref<8x128xf32, #tpu.memory_space<vmem>>, vector<8x128xf32>
    %cst = arith.constant 0.000000e+00 : f32
    %1 = vector.broadcast %cst : f32 to vector<1x128xf32>
    %cst_1 = arith.constant 0.000000e+00 : f32
    %2 = vector.broadcast %cst_1 : f32 to vector<1x128xf32>
    %cst_2 = arith.constant 0.000000e+00 : f32
    %3 = vector.broadcast %cst_2 : f32 to vector<1x128xf32>
    %cst_3 = arith.constant 0.000000e+00 : f32
    %4 = vector.broadcast %cst_3 : f32 to vector<1x128xf32>
    %c0_4 = arith.constant 0 : index
    %c0_5 = arith.constant 0 : index
    %5 = vector.load %arg2[%c0_4, %c0_5] : memref<128x512xf32, #tpu.memory_space<vmem>>, vector<128x512xf32>
    %cst_6 = arith.constant dense<0.000000e+00> : vector<1x512xf32>
    %6 = tpu.matmul %1, %5, %cst_6 {dimension_numbers = #tpu.dot_dimension_numbers<[1], [0], [0], [1], [0, 0, 1, 1], [], []>} : vector<1x128xf32>, vector<128x512xf32>, vector<1x512xf32> -> vector<1x512xf32>
    %c0_7 = arith.constant 0 : index
    %c0_8 = arith.constant 0 : index
    %7 = vector.load %arg3[%c0_7, %c0_8] : memref<128x512xf32, #tpu.memory_space<vmem>>, vector<128x512xf32>
    %cst_9 = arith.constant dense<0.000000e+00> : vector<1x512xf32>
    %8 = tpu.matmul %2, %7, %cst_9 {dimension_numbers = #tpu.dot_dimension_numbers<[1], [0], [0], [1], [0, 0, 1, 1], [], []>} : vector<1x128xf32>, vector<128x512xf32>, vector<1x512xf32> -> vector<1x512xf32>
    %9 = arith.addf %6, %8 : vector<1x512xf32>
    %c0_10 = arith.constant 0 : index
    %c0_11 = arith.constant 0 : index
    %10 = vector.load %arg4[%c0_10, %c0_11] : memref<128x512xf32, #tpu.memory_space<vmem>>, vector<128x512xf32>
    %cst_12 = arith.constant dense<0.000000e+00> : vector<1x512xf32>
    %11 = tpu.matmul %3, %10, %cst_12 {dimension_numbers = #tpu.dot_dimension_numbers<[1], [0], [0], [1], [0, 0, 1, 1], [], []>} : vector<1x128xf32>, vector<128x512xf32>, vector<1x512xf32> -> vector<1x512xf32>
    %12 = arith.addf %9, %11 : vector<1x512xf32>
    %c0_13 = arith.constant 0 : index
    %c0_14 = arith.constant 0 : index
    %13 = vector.load %arg5[%c0_13, %c0_14] : memref<1x512xf32, #tpu.memory_space<vmem>>, vector<1x512xf32>
    %14 = arith.addf %12, %13 : vector<1x512xf32>
    %15 = vector.extract_strided_slice %14 {offsets = [0, 0], sizes = [1, 128], strides = [1, 1]} : vector<1x512xf32> to vector<1x128xf32>
    %cst_15 = arith.constant 0.000000e+00 : f32
    %16 = vector.broadcast %cst_15 : f32 to vector<1x128xf32>
    %17 = arith.subf %16, %15 : vector<1x128xf32>
    %18 = math.exp %17 : vector<1x128xf32>
    %cst_16 = arith.constant 1.000000e+00 : f32
    %19 = vector.broadcast %cst_16 : f32 to vector<1x128xf32>
    %20 = arith.addf %19, %18 : vector<1x128xf32>
    %cst_17 = arith.constant 1.000000e+00 : f32
    %21 = vector.broadcast %cst_17 : f32 to vector<1x128xf32>
    %22 = arith.divf %21, %20 : vector<1x128xf32>
    %23 = vector.extract_strided_slice %14 {offsets = [0, 128], sizes = [1, 128], strides = [1, 1]} : vector<1x512xf32> to vector<1x128xf32>
    %cst_18 = arith.constant 0.000000e+00 : f32
    %24 = vector.broadcast %cst_18 : f32 to vector<1x128xf32>
    %25 = arith.subf %24, %23 : vector<1x128xf32>
    %26 = math.exp %25 : vector<1x128xf32>
    %cst_19 = arith.constant 1.000000e+00 : f32
    %27 = vector.broadcast %cst_19 : f32 to vector<1x128xf32>
    %28 = arith.addf %27, %26 : vector<1x128xf32>
    %cst_20 = arith.constant 1.000000e+00 : f32
    %29 = vector.broadcast %cst_20 : f32 to vector<1x128xf32>
    %30 = arith.divf %29, %28 : vector<1x128xf32>
    %31 = vector.extract_strided_slice %14 {offsets = [0, 256], sizes = [1, 128], strides = [1, 1]} : vector<1x512xf32> to vector<1x128xf32>
    %32 = math.tanh %31 : vector<1x128xf32>
    %33 = vector.extract_strided_slice %14 {offsets = [0, 384], sizes = [1, 128], strides = [1, 1]} : vector<1x512xf32> to vector<1x128xf32>
    %cst_21 = arith.constant 0.000000e+00 : f32
    %34 = vector.broadcast %cst_21 : f32 to vector<1x128xf32>
    %35 = arith.subf %34, %33 : vector<1x128xf32>
    %36 = math.exp %35 : vector<1x128xf32>
    %cst_22 = arith.constant 1.000000e+00 : f32
    %37 = vector.broadcast %cst_22 : f32 to vector<1x128xf32>
    %38 = arith.addf %37, %36 : vector<1x128xf32>
    %cst_23 = arith.constant 1.000000e+00 : f32
    %39 = vector.broadcast %cst_23 : f32 to vector<1x128xf32>
    %40 = arith.divf %39, %38 : vector<1x128xf32>
    %41 = arith.mulf %30, %4 : vector<1x128xf32>
    %42 = arith.mulf %22, %32 : vector<1x128xf32>
    %43 = arith.addf %41, %42 : vector<1x128xf32>
    %44 = math.tanh %43 : vector<1x128xf32>
    %45 = arith.mulf %40, %44 : vector<1x128xf32>
    %46 = vector.broadcast %45 : vector<1x128xf32> to vector<8x128xf32>
    %47 = arith.mulf %0, %46 : vector<8x128xf32>
    %cst_24 = arith.constant dense<0.000000e+00> : vector<8xf32>
    %48 = vector.multi_reduction <add>, %47, %cst_24 [1] : vector<8x128xf32> to vector<8xf32>
    %49 = vector.shape_cast %48 : vector<8xf32> to vector<8x1xf32>
    %cst_25 = arith.constant dense<0xFF800000> : vector<1xf32>
    %50 = vector.multi_reduction <maximumf>, %49, %cst_25 [0] : vector<8x1xf32> to vector<1xf32>
    %51 = vector.shape_cast %50 : vector<1xf32> to vector<1x1xf32>
    %52 = vector.broadcast %51 : vector<1x1xf32> to vector<8x1xf32>
    %53 = arith.subf %49, %52 : vector<8x1xf32>
    %54 = math.exp %53 : vector<8x1xf32>
    %cst_26 = arith.constant dense<0.000000e+00> : vector<1xf32>
    %55 = vector.multi_reduction <add>, %54, %cst_26 [0] : vector<8x1xf32> to vector<1xf32>
    %56 = vector.shape_cast %55 : vector<1xf32> to vector<1x1xf32>
    %57 = vector.broadcast %56 : vector<1x1xf32> to vector<8x1xf32>
    %58 = arith.divf %54, %57 : vector<8x1xf32>
    %59 = vector.broadcast %58 : vector<8x1xf32> to vector<8x128xf32>
    %60 = arith.mulf %59, %0 : vector<8x128xf32>
    %cst_27 = arith.constant dense<0.000000e+00> : vector<128xf32>
    %61 = vector.multi_reduction <add>, %60, %cst_27 [0] : vector<8x128xf32> to vector<128xf32>
    %62 = vector.shape_cast %61 : vector<128xf32> to vector<1x128xf32>
    %c0_28 = arith.constant 0 : index
    %c0_29 = arith.constant 0 : index
    %63 = vector.load %arg2[%c0_28, %c0_29] : memref<128x512xf32, #tpu.memory_space<vmem>>, vector<128x512xf32>
    %cst_30 = arith.constant dense<0.000000e+00> : vector<1x512xf32>
    %64 = tpu.matmul %45, %63, %cst_30 {dimension_numbers = #tpu.dot_dimension_numbers<[1], [0], [0], [1], [0, 0, 1, 1], [], []>} : vector<1x128xf32>, vector<128x512xf32>, vector<1x512xf32> -> vector<1x512xf32>
    %c0_31 = arith.constant 0 : index
    %c0_32 = arith.constant 0 : index
    %65 = vector.load %arg3[%c0_31, %c0_32] : memref<128x512xf32, #tpu.memory_space<vmem>>, vector<128x512xf32>
    %cst_33 = arith.constant dense<0.000000e+00> : vector<1x512xf32>
    %66 = tpu.matmul %62, %65, %cst_33 {dimension_numbers = #tpu.dot_dimension_numbers<[1], [0], [0], [1], [0, 0, 1, 1], [], []>} : vector<1x128xf32>, vector<128x512xf32>, vector<1x512xf32> -> vector<1x512xf32>
    %67 = arith.addf %64, %66 : vector<1x512xf32>
    %c0_34 = arith.constant 0 : index
    %c0_35 = arith.constant 0 : index
    %68 = vector.load %arg4[%c0_34, %c0_35] : memref<128x512xf32, #tpu.memory_space<vmem>>, vector<128x512xf32>
    %cst_36 = arith.constant dense<0.000000e+00> : vector<1x512xf32>
    %69 = tpu.matmul %45, %68, %cst_36 {dimension_numbers = #tpu.dot_dimension_numbers<[1], [0], [0], [1], [0, 0, 1, 1], [], []>} : vector<1x128xf32>, vector<128x512xf32>, vector<1x512xf32> -> vector<1x512xf32>
    %70 = arith.addf %67, %69 : vector<1x512xf32>
    %c0_37 = arith.constant 0 : index
    %c0_38 = arith.constant 0 : index
    %71 = vector.load %arg5[%c0_37, %c0_38] : memref<1x512xf32, #tpu.memory_space<vmem>>, vector<1x512xf32>
    %72 = arith.addf %70, %71 : vector<1x512xf32>
    %73 = vector.extract_strided_slice %72 {offsets = [0, 0], sizes = [1, 128], strides = [1, 1]} : vector<1x512xf32> to vector<1x128xf32>
    %cst_39 = arith.constant 0.000000e+00 : f32
    %74 = vector.broadcast %cst_39 : f32 to vector<1x128xf32>
    %75 = arith.subf %74, %73 : vector<1x128xf32>
    %76 = math.exp %75 : vector<1x128xf32>
    %cst_40 = arith.constant 1.000000e+00 : f32
    %77 = vector.broadcast %cst_40 : f32 to vector<1x128xf32>
    %78 = arith.addf %77, %76 : vector<1x128xf32>
    %cst_41 = arith.constant 1.000000e+00 : f32
    %79 = vector.broadcast %cst_41 : f32 to vector<1x128xf32>
    %80 = arith.divf %79, %78 : vector<1x128xf32>
    %81 = vector.extract_strided_slice %72 {offsets = [0, 128], sizes = [1, 128], strides = [1, 1]} : vector<1x512xf32> to vector<1x128xf32>
    %cst_42 = arith.constant 0.000000e+00 : f32
    %82 = vector.broadcast %cst_42 : f32 to vector<1x128xf32>
    %83 = arith.subf %82, %81 : vector<1x128xf32>
    %84 = math.exp %83 : vector<1x128xf32>
    %cst_43 = arith.constant 1.000000e+00 : f32
    %85 = vector.broadcast %cst_43 : f32 to vector<1x128xf32>
    %86 = arith.addf %85, %84 : vector<1x128xf32>
    %cst_44 = arith.constant 1.000000e+00 : f32
    %87 = vector.broadcast %cst_44 : f32 to vector<1x128xf32>
    %88 = arith.divf %87, %86 : vector<1x128xf32>
    %89 = vector.extract_strided_slice %72 {offsets = [0, 256], sizes = [1, 128], strides = [1, 1]} : vector<1x512xf32> to vector<1x128xf32>
    %90 = math.tanh %89 : vector<1x128xf32>
    %91 = vector.extract_strided_slice %72 {offsets = [0, 384], sizes = [1, 128], strides = [1, 1]} : vector<1x512xf32> to vector<1x128xf32>
    %cst_45 = arith.constant 0.000000e+00 : f32
    %92 = vector.broadcast %cst_45 : f32 to vector<1x128xf32>
    %93 = arith.subf %92, %91 : vector<1x128xf32>
    %94 = math.exp %93 : vector<1x128xf32>
    %cst_46 = arith.constant 1.000000e+00 : f32
    %95 = vector.broadcast %cst_46 : f32 to vector<1x128xf32>
    %96 = arith.addf %95, %94 : vector<1x128xf32>
    %cst_47 = arith.constant 1.000000e+00 : f32
    %97 = vector.broadcast %cst_47 : f32 to vector<1x128xf32>
    %98 = arith.divf %97, %96 : vector<1x128xf32>
    %99 = arith.mulf %88, %43 : vector<1x128xf32>
    %100 = arith.mulf %80, %90 : vector<1x128xf32>
    %101 = arith.addf %99, %100 : vector<1x128xf32>
    %102 = math.tanh %101 : vector<1x128xf32>
    %103 = arith.mulf %98, %102 : vector<1x128xf32>
    %104 = vector.broadcast %103 : vector<1x128xf32> to vector<8x128xf32>
    %105 = arith.mulf %0, %104 : vector<8x128xf32>
    %cst_48 = arith.constant dense<0.000000e+00> : vector<8xf32>
    %106 = vector.multi_reduction <add>, %105, %cst_48 [1] : vector<8x128xf32> to vector<8xf32>
    %107 = vector.shape_cast %106 : vector<8xf32> to vector<8x1xf32>
    %cst_49 = arith.constant dense<0xFF800000> : vector<1xf32>
    %108 = vector.multi_reduction <maximumf>, %107, %cst_49 [0] : vector<8x1xf32> to vector<1xf32>
    %109 = vector.shape_cast %108 : vector<1xf32> to vector<1x1xf32>
    %110 = vector.broadcast %109 : vector<1x1xf32> to vector<8x1xf32>
    %111 = arith.subf %107, %110 : vector<8x1xf32>
    %112 = math.exp %111 : vector<8x1xf32>
    %cst_50 = arith.constant dense<0.000000e+00> : vector<1xf32>
    %113 = vector.multi_reduction <add>, %112, %cst_50 [0] : vector<8x1xf32> to vector<1xf32>
    %114 = vector.shape_cast %113 : vector<1xf32> to vector<1x1xf32>
    %115 = vector.broadcast %114 : vector<1x1xf32> to vector<8x1xf32>
    %116 = arith.divf %112, %115 : vector<8x1xf32>
    %117 = vector.broadcast %116 : vector<8x1xf32> to vector<8x128xf32>
    %118 = arith.mulf %117, %0 : vector<8x128xf32>
    %cst_51 = arith.constant dense<0.000000e+00> : vector<128xf32>
    %119 = vector.multi_reduction <add>, %118, %cst_51 [0] : vector<8x128xf32> to vector<128xf32>
    %120 = vector.shape_cast %119 : vector<128xf32> to vector<1x128xf32>
    %c0_52 = arith.constant 0 : index
    %c0_53 = arith.constant 0 : index
    %121 = vector.load %arg2[%c0_52, %c0_53] : memref<128x512xf32, #tpu.memory_space<vmem>>, vector<128x512xf32>
    %cst_54 = arith.constant dense<0.000000e+00> : vector<1x512xf32>
    %122 = tpu.matmul %103, %121, %cst_54 {dimension_numbers = #tpu.dot_dimension_numbers<[1], [0], [0], [1], [0, 0, 1, 1], [], []>} : vector<1x128xf32>, vector<128x512xf32>, vector<1x512xf32> -> vector<1x512xf32>
    %c0_55 = arith.constant 0 : index
    %c0_56 = arith.constant 0 : index
    %123 = vector.load %arg3[%c0_55, %c0_56] : memref<128x512xf32, #tpu.memory_space<vmem>>, vector<128x512xf32>
    %cst_57 = arith.constant dense<0.000000e+00> : vector<1x512xf32>
    %124 = tpu.matmul %120, %123, %cst_57 {dimension_numbers = #tpu.dot_dimension_numbers<[1], [0], [0], [1], [0, 0, 1, 1], [], []>} : vector<1x128xf32>, vector<128x512xf32>, vector<1x512xf32> -> vector<1x512xf32>
    %125 = arith.addf %122, %124 : vector<1x512xf32>
    %c0_58 = arith.constant 0 : index
    %c0_59 = arith.constant 0 : index
    %126 = vector.load %arg4[%c0_58, %c0_59] : memref<128x512xf32, #tpu.memory_space<vmem>>, vector<128x512xf32>
    %cst_60 = arith.constant dense<0.000000e+00> : vector<1x512xf32>
    %127 = tpu.matmul %103, %126, %cst_60 {dimension_numbers = #tpu.dot_dimension_numbers<[1], [0], [0], [1], [0, 0, 1, 1], [], []>} : vector<1x128xf32>, vector<128x512xf32>, vector<1x512xf32> -> vector<1x512xf32>
    %128 = arith.addf %125, %127 : vector<1x512xf32>
    %c0_61 = arith.constant 0 : index
    %c0_62 = arith.constant 0 : index
    %129 = vector.load %arg5[%c0_61, %c0_62] : memref<1x512xf32, #tpu.memory_space<vmem>>, vector<1x512xf32>
    %130 = arith.addf %128, %129 : vector<1x512xf32>
    %131 = vector.extract_strided_slice %130 {offsets = [0, 0], sizes = [1, 128], strides = [1, 1]} : vector<1x512xf32> to vector<1x128xf32>
    %cst_63 = arith.constant 0.000000e+00 : f32
    %132 = vector.broadcast %cst_63 : f32 to vector<1x128xf32>
    %133 = arith.subf %132, %131 : vector<1x128xf32>
    %134 = math.exp %133 : vector<1x128xf32>
    %cst_64 = arith.constant 1.000000e+00 : f32
    %135 = vector.broadcast %cst_64 : f32 to vector<1x128xf32>
    %136 = arith.addf %135, %134 : vector<1x128xf32>
    %cst_65 = arith.constant 1.000000e+00 : f32
    %137 = vector.broadcast %cst_65 : f32 to vector<1x128xf32>
    %138 = arith.divf %137, %136 : vector<1x128xf32>
    %139 = vector.extract_strided_slice %130 {offsets = [0, 128], sizes = [1, 128], strides = [1, 1]} : vector<1x512xf32> to vector<1x128xf32>
    %cst_66 = arith.constant 0.000000e+00 : f32
    %140 = vector.broadcast %cst_66 : f32 to vector<1x128xf32>
    %141 = arith.subf %140, %139 : vector<1x128xf32>
    %142 = math.exp %141 : vector<1x128xf32>
    %cst_67 = arith.constant 1.000000e+00 : f32
    %143 = vector.broadcast %cst_67 : f32 to vector<1x128xf32>
    %144 = arith.addf %143, %142 : vector<1x128xf32>
    %cst_68 = arith.constant 1.000000e+00 : f32
    %145 = vector.broadcast %cst_68 : f32 to vector<1x128xf32>
    %146 = arith.divf %145, %144 : vector<1x128xf32>
    %147 = vector.extract_strided_slice %130 {offsets = [0, 256], sizes = [1, 128], strides = [1, 1]} : vector<1x512xf32> to vector<1x128xf32>
    %148 = math.tanh %147 : vector<1x128xf32>
    %149 = vector.extract_strided_slice %130 {offsets = [0, 384], sizes = [1, 128], strides = [1, 1]} : vector<1x512xf32> to vector<1x128xf32>
    %cst_69 = arith.constant 0.000000e+00 : f32
    %150 = vector.broadcast %cst_69 : f32 to vector<1x128xf32>
    %151 = arith.subf %150, %149 : vector<1x128xf32>
    %152 = math.exp %151 : vector<1x128xf32>
    %cst_70 = arith.constant 1.000000e+00 : f32
    %153 = vector.broadcast %cst_70 : f32 to vector<1x128xf32>
    %154 = arith.addf %153, %152 : vector<1x128xf32>
    %cst_71 = arith.constant 1.000000e+00 : f32
    %155 = vector.broadcast %cst_71 : f32 to vector<1x128xf32>
    %156 = arith.divf %155, %154 : vector<1x128xf32>
    %157 = arith.mulf %146, %101 : vector<1x128xf32>
    %158 = arith.mulf %138, %148 : vector<1x128xf32>
    %159 = arith.addf %157, %158 : vector<1x128xf32>
    %160 = math.tanh %159 : vector<1x128xf32>
    %161 = arith.mulf %156, %160 : vector<1x128xf32>
    %162 = vector.broadcast %161 : vector<1x128xf32> to vector<8x128xf32>
    %163 = arith.mulf %0, %162 : vector<8x128xf32>
    %cst_72 = arith.constant dense<0.000000e+00> : vector<8xf32>
    %164 = vector.multi_reduction <add>, %163, %cst_72 [1] : vector<8x128xf32> to vector<8xf32>
    %165 = vector.shape_cast %164 : vector<8xf32> to vector<8x1xf32>
    %cst_73 = arith.constant dense<0xFF800000> : vector<1xf32>
    %166 = vector.multi_reduction <maximumf>, %165, %cst_73 [0] : vector<8x1xf32> to vector<1xf32>
    %167 = vector.shape_cast %166 : vector<1xf32> to vector<1x1xf32>
    %168 = vector.broadcast %167 : vector<1x1xf32> to vector<8x1xf32>
    %169 = arith.subf %165, %168 : vector<8x1xf32>
    %170 = math.exp %169 : vector<8x1xf32>
    %cst_74 = arith.constant dense<0.000000e+00> : vector<1xf32>
    %171 = vector.multi_reduction <add>, %170, %cst_74 [0] : vector<8x1xf32> to vector<1xf32>
    %172 = vector.shape_cast %171 : vector<1xf32> to vector<1x1xf32>
    %173 = vector.broadcast %172 : vector<1x1xf32> to vector<8x1xf32>
    %174 = arith.divf %170, %173 : vector<8x1xf32>
    %175 = vector.broadcast %174 : vector<8x1xf32> to vector<8x128xf32>
    %176 = arith.mulf %175, %0 : vector<8x128xf32>
    %cst_75 = arith.constant dense<0.000000e+00> : vector<128xf32>
    %177 = vector.multi_reduction <add>, %176, %cst_75 [0] : vector<8x128xf32> to vector<128xf32>
    %178 = vector.shape_cast %177 : vector<128xf32> to vector<1x128xf32>
    %c0_76 = arith.constant 0 : index
    %c0_77 = arith.constant 0 : index
    %179 = vector.load %arg6[%c0_76, %c0_77] : memref<128x1024xf32, #tpu.memory_space<vmem>>, vector<128x1024xf32>
    %cst_78 = arith.constant dense<0.000000e+00> : vector<1x1024xf32>
    %180 = tpu.matmul %161, %179, %cst_78 {dimension_numbers = #tpu.dot_dimension_numbers<[1], [0], [0], [1], [0, 0, 1, 1], [], []>} : vector<1x128xf32>, vector<128x1024xf32>, vector<1x1024xf32> -> vector<1x1024xf32>
    %c0_79 = arith.constant 0 : index
    %c0_80 = arith.constant 0 : index
    %181 = vector.load %arg7[%c0_79, %c0_80] : memref<128x1024xf32, #tpu.memory_space<vmem>>, vector<128x1024xf32>
    %cst_81 = arith.constant dense<0.000000e+00> : vector<1x1024xf32>
    %182 = tpu.matmul %178, %181, %cst_81 {dimension_numbers = #tpu.dot_dimension_numbers<[1], [0], [0], [1], [0, 0, 1, 1], [], []>} : vector<1x128xf32>, vector<128x1024xf32>, vector<1x1024xf32> -> vector<1x1024xf32>
    %183 = arith.addf %180, %182 : vector<1x1024xf32>
    %c0_82 = arith.constant 0 : index
    %c0_83 = arith.constant 0 : index
    %184 = vector.load %arg8[%c0_82, %c0_83] : memref<1x1024xf32, #tpu.memory_space<vmem>>, vector<1x1024xf32>
    %185 = arith.addf %183, %184 : vector<1x1024xf32>
    %cst_84 = arith.constant 0.000000e+00 : f32
    %186 = vector.broadcast %cst_84 : f32 to vector<1x1024xf32>
    %187 = arith.cmpf oge, %185, %186 : vector<1x1024xf32>
    %c0_85 = arith.constant 0 : index
    %c0_86 = arith.constant 0 : index
    %188 = vector.load %arg9[%c0_85, %c0_86] : memref<1x1xf32, #tpu.memory_space<vmem>>, vector<1x1xf32>
    %189 = vector.broadcast %188 : vector<1x1xf32> to vector<1x1024xf32>
    %190 = arith.mulf %189, %185 : vector<1x1024xf32>
    %191 = arith.select %187, %185, %190 : vector<1x1024xi1>, vector<1x1024xf32>
    %c0_87 = arith.constant 0 : index
    %c0_88 = arith.constant 0 : index
    %192 = vector.load %arg10[%c0_87, %c0_88] : memref<1x1024xf32, #tpu.memory_space<vmem>>, vector<1x1024xf32>
    tpu.vector_store %arg10[%c0_87, %c0_88], %191 {strides = array<i32>} : memref<1x1024xf32, #tpu.memory_space<vmem>>, vector<1x1024xf32>,
    return
  }
  func.func @transform_0(%arg0: i32) -> (i32, i32) {
    %c0_i32 = arith.constant 0 : i32
    %c0_i32_0 = arith.constant 0 : i32
    %c0_i32_1 = arith.constant 0 : i32
    return %c0_i32, %c0_i32_0 : i32, i32
  }
  func.func @transform_1(%arg0: i32) -> (i32, i32) {
    %c0_i32 = arith.constant 0 : i32
    %c0_i32_0 = arith.constant 0 : i32
    %c0_i32_1 = arith.constant 0 : i32
    return %c0_i32, %c0_i32_0 : i32, i32
  }
  func.func @transform_2(%arg0: i32) -> (i32, i32) {
    %c0_i32 = arith.constant 0 : i32
    %c0_i32_0 = arith.constant 0 : i32
    %c0_i32_1 = arith.constant 0 : i32
    return %c0_i32, %c0_i32_0 : i32, i32
  }
  func.func @transform_3(%arg0: i32) -> (i32, i32) {
    %c0_i32 = arith.constant 0 : i32
    %c0_i32_0 = arith.constant 0 : i32
    %c0_i32_1 = arith.constant 0 : i32
    return %c0_i32, %c0_i32_0 : i32, i32
  }
  func.func @transform_4(%arg0: i32) -> (i32, i32) {
    %c0_i32 = arith.constant 0 : i32
    %c0_i32_0 = arith.constant 0 : i32
    %c0_i32_1 = arith.constant 0 : i32
    return %c0_i32, %c0_i32_0 : i32, i32
  }
  func.func @transform_5(%arg0: i32) -> (i32, i32) {
    %c0_i32 = arith.constant 0 : i32
    %c0_i32_0 = arith.constant 0 : i32
    %c0_i32_1 = arith.constant 0 : i32
    return %c0_i32, %c0_i32_0 : i32, i32
  }
  func.func @transform_6(%arg0: i32) -> (i32, i32) {
    %c0_i32 = arith.constant 0 : i32
    %c0_i32_0 = arith.constant 0 : i32
    %c0_i32_1 = arith.constant 0 : i32
    return %c0_i32, %c0_i32_0 : i32, i32
  }
  func.func @transform_7(%arg0: i32) -> (i32, i32) {
    %c0_i32 = arith.constant 0 : i32
    %c0_i32_0 = arith.constant 0 : i32
    %c0_i32_1 = arith.constant 0 : i32
    return %c0_i32, %c0_i32_0 : i32, i32
  }
  func.func @transform_8(%arg0: i32) -> (i32, i32) {
    %c0_i32 = arith.constant 0 : i32
    %c0_i32_0 = arith.constant 0 : i32
    %c0_i32_1 = arith.constant 0 : i32
    return %c0_i32, %c0_i32_0 : i32, i32
  }
  func.func @transform_9(%arg0: i32) -> (i32, i32) {
    %c0_i32 = arith.constant 0 : i32
    %c0_i32_0 = arith.constant 0 : i32
    %c0_i32_1 = arith.constant 0 : i32
    return %c0_i32, %c0_i32_0 : i32, i32
  }
}

</mosaic_0001>

<llo_original>
// kernel: mpnn_forward.4
$region0: #{mpnn_forward.4}
  #allocation0 [shape = 'u32[]', space=smem, size = 0x4, offset = 0x4, fixed_abs, tag = 'smem constant byte address 0x4 - core index']
  #allocation1 [shape = 'u32[144,128]{1,0:T(1,128)}', space=vmem, size = 0x12000, scoped, tag = 'internal scratch']
  %s0 = inlined_call_operand.vmem [shape: f32[8,64], index: 0, kind: input, shape index: {}]
  %s1 = inlined_call_operand.vmem [shape: f32[16,8], index: 1, kind: input, shape index: {}]
  %s2 = inlined_call_operand.vmem [shape: f32[8,16], index: 2, kind: input, shape index: {}]
  %s3 = inlined_call_operand.vmem [shape: f32[1024,64], index: 3, kind: input, shape index: {}]
  %s4 = inlined_call_operand.vmem [shape: f32[16,1024], index: 4, kind: input, shape index: {}]
  %s5 = inlined_call_operand.hbm [shape: f32[1,64], index: 5, kind: input, shape index: {}]
  %s6 = inlined_call_operand.vmem [shape: f32[64,64], index: 6, kind: input, shape index: {}]
  %s7 = inlined_call_operand.vmem [shape: f32[64,64], index: 7, kind: input, shape index: {}]
  %s8 = inlined_call_operand.vmem [shape: f32[64,64], index: 8, kind: input, shape index: {}]
  %s9 = inlined_call_operand.vmem [shape: f32[64,64], index: 9, kind: input, shape index: {}]
  %s10 = inlined_call_operand.vmem [shape: f32[64,64], index: 10, kind: input, shape index: {}]
  %s11 = inlined_call_operand.vmem [shape: f32[64,64], index: 11, kind: input, shape index: {}]
  %s12 = inlined_call_operand.hbm [shape: f32[1,64], index: 12, kind: input, shape index: {}]
  %s13 = inlined_call_operand.hbm [shape: f32[1,64], index: 13, kind: input, shape index: {}]
  %s14 = inlined_call_operand.hbm [shape: f32[1,64], index: 14, kind: input, shape index: {}]
  %s15 = inlined_call_operand.hbm [shape: f32[1,64], index: 15, kind: input, shape index: {}]
  %s16 = inlined_call_operand.vmem [shape: f32[8,64], index: 16, kind: output, shape index: {}]
  %s17 = sld [smem:[#allocation0]]
  $region121: #{mpnn_forward.4} parent=0
    _
  %s19 = ssub.s32 1, %s17
  %s20 = scalar_select 0, %s19, %s17
  $region1: #{mpnn_forward.4} parent=0
    #allocation2 [shape = 'u8[512]{0}', space=vmem, size = 0x400, scoped, tag = 'input window, operand 5, single buffered']
    #allocation3 [shape = 's32[2]{0}', space=sflag, size = 0x8, scoped, tag = 'scoped memory for mpnn_forward.4']
    #allocation4 [shape = 'u8[512]{0}', space=vmem, size = 0x400, scoped, tag = 'input window, operand 12, single buffered']
    #allocation5 [shape = 's32[1]{0}', space=sflag, size = 0x4, scoped, tag = 'scoped memory for mpnn_forward.4']
    #allocation6 [shape = 'u8[512]{0}', space=vmem, size = 0x400, scoped, tag = 'input window, operand 13, single buffered']
    #allocation7 [shape = 'u8[512]{0}', space=vmem, size = 0x400, scoped, tag = 'input window, operand 14, single buffered']
    #allocation8 [shape = 's32[1]{0}', space=sflag, size = 0x4, scoped, tag = 'scoped memory for mpnn_forward.4']
    #allocation9 [shape = 'u8[512]{0}', space=vmem, size = 0x400, scoped, tag = 'input window, operand 15, single buffered']
    %21 = vsyncpa [#allocation3], 0
    %22 = vsyncpa [#allocation5], 0
    %23 = vsyncpa [#allocation8], 0
    loop: start=0, step=1, limit=5
    $region2: #{mpnn_forward.4} parent=1 // loop_pre_header
      _
    $region3: #{mpnn_forward.4} parent=1 // loop_header
      %s25 = sphi 0, %s29
      %p26 = scmp.ge.s32.totalorder %s25, 5
      %s33 = sphi 0, %s33
      %s35 = sphi 0, %s33
      %s36 = sphi 0, %s35
      %s50 = sphi 0, %s36
      %s54 = sphi 0, %s54
      %s56 = sphi 0, %s54
      %s57 = sphi 0, %s56
      %s71 = sphi 0, %s57
      %s75 = sphi 0, %s75
      %s77 = sphi 0, %s75
      %s78 = sphi 0, %s77
      %s92 = sphi 0, %s78
      %s96 = sphi 0, %s96
      %s98 = sphi 0, %s96
      %s99 = sphi 0, %s98
      %s113 = sphi 0, %s99
      %s117 = sphi 0, %s117
      %s119 = sphi 0, %s117
      %s120 = sphi 0, %s119
      %s134 = sphi 0, %s120
      %s138 = sphi 0, %s138
      %s140 = sphi 0, %s138
      %s141 = sphi 0, %s140
      %s155 = sphi 0, %s141
      %s159 = sphi 0, %s159
      %s161 = sphi 0, %s159
      %s162 = sphi 0, %s161
      %s176 = sphi 0, %s162
      %s180 = sphi 0, %s180
      %s182 = sphi 0, %s180
      %s183 = sphi 0, %s182
      %s197 = sphi 0, %s183
      %s201 = sphi 0, %s201
      %s203 = sphi 0, %s201
      %s204 = sphi 0, %s203
      %s218 = sphi 0, %s204
      %s222 = sphi 0, %s222
      %s224 = sphi 0, %s222
      %s225 = sphi 0, %s224
      %s239 = sphi 0, %s225
      %s243 = sphi 0, %s243
      %s245 = sphi 0, %s243
      %s246 = sphi 0, %s245
      %s260 = sphi 0, %s246
      %s264 = sphi 0, %s264
      %s266 = sphi 0, %s264
      %s267 = sphi 0, %s266
      %s281 = sphi 0, %s267
      %s285 = sphi 0, %s285
      %s287 = sphi 0, %s285
      %s288 = sphi 0, %s287
      %s302 = sphi 0, %s288
      %s306 = sphi 0, %s306
      %s308 = sphi 0, %s306
      %s309 = sphi 0, %s308
      %s323 = sphi 0, %s309
      %s327 = sphi 0, %s327
      %s329 = sphi 0, %s327
      %s330 = sphi 0, %s329
      %s344 = sphi 0, %s330
      %s348 = sphi 0, %s348
      %s350 = sphi 0, %s348
      %s351 = sphi 0, %s350
      %s365 = sphi 0, %s351
      %s369 = sphi 0, %s369
      %s371 = sphi 0, %s369
      %s372 = sphi 0, %s371
      %s386 = sphi 0, %s372
    $region4: #{mpnn_forward.4} parent=1 // loop_header_branch
      %28 = sbr.rel (%p26) target = $region8
    $region5: #{mpnn_forward.4} parent=1 // loop_body
      %s30 = ssub.s32 %s25, 1
      %s31 = ssub.s32 %s25, 2
      %s32 = sadd.s32 %s25, 1
      %s34 = sadd.s32 %s33, 1
      %p37 = scmp.eq.s32.totalorder %s25, 2
      %p38 = scmp.ne.s32.totalorder %s33, %s35
      %p39 = scmp.eq.s32.totalorder %s25, 0
      %p40 = por %p38, %p39
      %p41 = scmp.ne.s32.totalorder %s33, %s35
      %p42 = scmp.eq.s32.totalorder %s30, 2
      %p43 = por %p41, %p42
      %p44 = scmp.ne.s32.totalorder %s35, %s36
      %p45 = scmp.eq.s32.totalorder %s30, 0
      %p46 = por %p44, %p45
      %p47 = scmp.ne.s32.totalorder %s35, %s36
      %p48 = scmp.eq.s32.totalorder %s31, 2
      %p49 = por %p47, %p48
      %p51 = scmp.ne.s32.totalorder %s36, %s50
      %p52 = scmp.eq.s32.totalorder %s31, 0
      %p53 = por %p51, %p52
      %s55 = sadd.s32 %s54, 1
      %p58 = scmp.eq.s32.totalorder %s25, 2
      %p59 = scmp.ne.s32.totalorder %s54, %s56
      %p60 = scmp.eq.s32.totalorder %s25, 0
      %p61 = por %p59, %p60
      %p62 = scmp.ne.s32.totalorder %s54, %s56
      %p63 = scmp.eq.s32.totalorder %s30, 2
      %p64 = por %p62, %p63
      %p65 = scmp.ne.s32.totalorder %s56, %s57
      %p66 = scmp.eq.s32.totalorder %s30, 0
      %p67 = por %p65, %p66
      %p68 = scmp.ne.s32.totalorder %s56, %s57
      %p69 = scmp.eq.s32.totalorder %s31, 2
      %p70 = por %p68, %p69
      %p72 = scmp.ne.s32.totalorder %s57, %s71
      %p73 = scmp.eq.s32.totalorder %s31, 0
      %p74 = por %p72, %p73
      %s76 = sadd.s32 %s75, 1
      %p79 = scmp.eq.s32.totalorder %s25, 2
      %p80 = scmp.ne.s32.totalorder %s75, %s77
      %p81 = scmp.eq.s32.totalorder %s25, 0
      %p82 = por %p80, %p81
      %p83 = scmp.ne.s32.totalorder %s75, %s77
      %p84 = scmp.eq.s32.totalorder %s30, 2
      %p85 = por %p83, %p84
      %p86 = scmp.ne.s32.totalorder %s77, %s78
      %p87 = scmp.eq.s32.totalorder %s30, 0
      %p88 = por %p86, %p87
      %p89 = scmp.ne.s32.totalorder %s77, %s78
      %p90 = scmp.eq.s32.totalorder %s31, 2
      %p91 = por %p89, %p90
      %p93 = scmp.ne.s32.totalorder %s78, %s92
      %p94 = scmp.eq.s32.totalorder %s31, 0
      %p95 = por %p93, %p94
      %s97 = sadd.s32 %s96, 1
      %p100 = scmp.eq.s32.totalorder %s25, 2
      %p101 = scmp.ne.s32.totalorder %s96, %s98
      %p102 = scmp.eq.s32.totalorder %s25, 0
      %p103 = por %p101, %p102
      %p104 = scmp.ne.s32.totalorder %s96, %s98
      %p105 = scmp.eq.s32.totalorder %s30, 2
      %p106 = por %p104, %p105
      %p107 = scmp.ne.s32.totalorder %s98, %s99
      %p108 = scmp.eq.s32.totalorder %s30, 0
      %p109 = por %p107, %p108
      %p110 = scmp.ne.s32.totalorder %s98, %s99
      %p111 = scmp.eq.s32.totalorder %s31, 2
      %p112 = por %p110, %p111
      %p114 = scmp.ne.s32.totalorder %s99, %s113
      %p115 = scmp.eq.s32.totalorder %s31, 0
      %p116 = por %p114, %p115
      %s118 = sadd.s32 %s117, 1
      %p121 = scmp.eq.s32.totalorder %s25, 2
      %p122 = scmp.ne.s32.totalorder %s117, %s119
      %p123 = scmp.eq.s32.totalorder %s25, 0
      %p124 = por %p122, %p123
      %p125 = scmp.ne.s32.totalorder %s117, %s119
      %p126 = scmp.eq.s32.totalorder %s30, 2
      %p127 = por %p125, %p126
      %p128 = scmp.ne.s32.totalorder %s119, %s120
      %p129 = scmp.eq.s32.totalorder %s30, 0
      %p130 = por %p128, %p129
      %p131 = scmp.ne.s32.totalorder %s119, %s120
      %p132 = scmp.eq.s32.totalorder %s31, 2
      %p133 = por %p131, %p132
      %p135 = scmp.ne.s32.totalorder %s120, %s134
      %p136 = scmp.eq.s32.totalorder %s31, 0
      %p137 = por %p135, %p136
      %s139 = sadd.s32 %s138, 1
      %p142 = scmp.eq.s32.totalorder %s25, 2
      %p143 = scmp.ne.s32.totalorder %s138, %s140
      %p144 = scmp.eq.s32.totalorder %s25, 0
      %p145 = por %p143, %p144
      %p146 = scmp.ne.s32.totalorder %s138, %s140
      %p147 = scmp.eq.s32.totalorder %s30, 2
      %p148 = por %p146, %p147
      %p149 = scmp.ne.s32.totalorder %s140, %s141
      %p150 = scmp.eq.s32.totalorder %s30, 0
      %p151 = por %p149, %p150
      %p152 = scmp.ne.s32.totalorder %s140, %s141
      %p153 = scmp.eq.s32.totalorder %s31, 2
      %p154 = por %p152, %p153
      %p156 = scmp.ne.s32.totalorder %s141, %s155
      %p157 = scmp.eq.s32.totalorder %s31, 0
      %p158 = por %p156, %p157
      %s160 = sadd.s32 %s159, 1
      %p163 = scmp.eq.s32.totalorder %s25, 2
      %p164 = scmp.ne.s32.totalorder %s159, %s161
      %p165 = scmp.eq.s32.totalorder %s25, 0
      %p166 = por %p164, %p165
      %p167 = scmp.ne.s32.totalorder %s159, %s161
      %p168 = scmp.eq.s32.totalorder %s30, 2
      %p169 = por %p167, %p168
      %p170 = scmp.ne.s32.totalorder %s161, %s162
      %p171 = scmp.eq.s32.totalorder %s30, 0
      %p172 = por %p170, %p171
      %p173 = scmp.ne.s32.totalorder %s161, %s162
      %p174 = scmp.eq.s32.totalorder %s31, 2
      %p175 = por %p173, %p174
      %p177 = scmp.ne.s32.totalorder %s162, %s176
      %p178 = scmp.eq.s32.totalorder %s31, 0
      %p179 = por %p177, %p178
      %s181 = sadd.s32 %s180, 1
      %p184 = scmp.eq.s32.totalorder %s25, 2
      %p185 = scmp.ne.s32.totalorder %s180, %s182
      %p186 = scmp.eq.s32.totalorder %s25, 0
      %p187 = por %p185, %p186
      %p188 = scmp.ne.s32.totalorder %s180, %s182
      %p189 = scmp.eq.s32.totalorder %s30, 2
      %p190 = por %p188, %p189
      %p191 = scmp.ne.s32.totalorder %s182, %s183
      %p192 = scmp.eq.s32.totalorder %s30, 0
      %p193 = por %p191, %p192
      %p194 = scmp.ne.s32.totalorder %s182, %s183
      %p195 = scmp.eq.s32.totalorder %s31, 2
      %p196 = por %p194, %p195
      %p198 = scmp.ne.s32.totalorder %s183, %s197
      %p199 = scmp.eq.s32.totalorder %s31, 0
      %p200 = por %p198, %p199
      %s202 = sadd.s32 %s201, 1
      %p205 = scmp.eq.s32.totalorder %s25, 2
      %p206 = scmp.ne.s32.totalorder %s201, %s203
      %p207 = scmp.eq.s32.totalorder %s25, 0
      %p208 = por %p206, %p207
      %p209 = scmp.ne.s32.totalorder %s201, %s203
      %p210 = scmp.eq.s32.totalorder %s30, 2
      %p211 = por %p209, %p210
      %p212 = scmp.ne.s32.totalorder %s203, %s204
      %p213 = scmp.eq.s32.totalorder %s30, 0
      %p214 = por %p212, %p213
      %p215 = scmp.ne.s32.totalorder %s203, %s204
      %p216 = scmp.eq.s32.totalorder %s31, 2
      %p217 = por %p215, %p216
      %p219 = scmp.ne.s32.totalorder %s204, %s218
      %p220 = scmp.eq.s32.totalorder %s31, 0
      %p221 = por %p219, %p220
      %s223 = sadd.s32 %s222, 1
      %p226 = scmp.eq.s32.totalorder %s25, 2
      %p227 = scmp.ne.s32.totalorder %s222, %s224
      %p228 = scmp.eq.s32.totalorder %s25, 0
      %p229 = por %p227, %p228
      %p230 = scmp.ne.s32.totalorder %s222, %s224
      %p231 = scmp.eq.s32.totalorder %s30, 2
      %p232 = por %p230, %p231
      %p233 = scmp.ne.s32.totalorder %s224, %s225
      %p234 = scmp.eq.s32.totalorder %s30, 0
      %p235 = por %p233, %p234
      %p236 = scmp.ne.s32.totalorder %s224, %s225
      %p237 = scmp.eq.s32.totalorder %s31, 2
      %p238 = por %p236, %p237
      %p240 = scmp.ne.s32.totalorder %s225, %s239
      %p241 = scmp.eq.s32.totalorder %s31, 0
      %p242 = por %p240, %p241
      %s244 = sadd.s32 %s243, 1
      %p247 = scmp.eq.s32.totalorder %s25, 2
      %p248 = scmp.ne.s32.totalorder %s243, %s245
      %p249 = scmp.eq.s32.totalorder %s25, 0
      %p250 = por %p248, %p249
      %p251 = scmp.ne.s32.totalorder %s243, %s245
      %p252 = scmp.eq.s32.totalorder %s30, 2
      %p253 = por %p251, %p252
      %p254 = scmp.ne.s32.totalorder %s245, %s246
      %p255 = scmp.eq.s32.totalorder %s30, 0
      %p256 = por %p254, %p255
      %p257 = scmp.ne.s32.totalorder %s245, %s246
      %p258 = scmp.eq.s32.totalorder %s31, 2
      %p259 = por %p257, %p258
      %p261 = scmp.ne.s32.totalorder %s246, %s260
      %p262 = scmp.eq.s32.totalorder %s31, 0
      %p263 = por %p261, %p262
      %s265 = sadd.s32 %s264, 1
      %p268 = scmp.eq.s32.totalorder %s25, 2
      %p269 = scmp.ne.s32.totalorder %s264, %s266
      %p270 = scmp.eq.s32.totalorder %s25, 0
      %p271 = por %p269, %p270
      %p272 = scmp.ne.s32.totalorder %s264, %s266
      %p273 = scmp.eq.s32.totalorder %s30, 2
      %p274 = por %p272, %p273
      %p275 = scmp.ne.s32.totalorder %s266, %s267
      %p276 = scmp.eq.s32.totalorder %s30, 0
      %p277 = por %p275, %p276
      %p278 = scmp.ne.s32.totalorder %s266, %s267
      %p279 = scmp.eq.s32.totalorder %s31, 2
      %p280 = por %p278, %p279
      %p282 = scmp.ne.s32.totalorder %s267, %s281
      %p283 = scmp.eq.s32.totalorder %s31, 0
      %p284 = por %p282, %p283
      %s286 = sadd.s32 %s285, 1
      %p289 = scmp.eq.s32.totalorder %s25, 2
      %p290 = scmp.ne.s32.totalorder %s285, %s287
      %p291 = scmp.eq.s32.totalorder %s25, 0
      %p292 = por %p290, %p291
      %p293 = scmp.ne.s32.totalorder %s285, %s287
      %p294 = scmp.eq.s32.totalorder %s30, 2
      %p295 = por %p293, %p294
      %p296 = scmp.ne.s32.totalorder %s287, %s288
      %p297 = scmp.eq.s32.totalorder %s30, 0
      %p298 = por %p296, %p297
      %p299 = scmp.ne.s32.totalorder %s287, %s288
      %p300 = scmp.eq.s32.totalorder %s31, 2
      %p301 = por %p299, %p300
      %p303 = scmp.ne.s32.totalorder %s288, %s302
      %p304 = scmp.eq.s32.totalorder %s31, 0
      %p305 = por %p303, %p304
      %s307 = sadd.s32 %s306, 1
      %p310 = scmp.eq.s32.totalorder %s25, 2
      %p311 = scmp.ne.s32.totalorder %s306, %s308
      %p312 = scmp.eq.s32.totalorder %s25, 0
      %p313 = por %p311, %p312
      %p314 = scmp.ne.s32.totalorder %s306, %s308
      %p315 = scmp.eq.s32.totalorder %s30, 2
      %p316 = por %p314, %p315
      %p317 = scmp.ne.s32.totalorder %s308, %s309
      %p318 = scmp.eq.s32.totalorder %s30, 0
      %p319 = por %p317, %p318
      %p320 = scmp.ne.s32.totalorder %s308, %s309
      %p321 = scmp.eq.s32.totalorder %s31, 2
      %p322 = por %p320, %p321
      %p324 = scmp.ne.s32.totalorder %s309, %s323
      %p325 = scmp.eq.s32.totalorder %s31, 0
      %p326 = por %p324, %p325
      %s328 = sadd.s32 %s327, 1
      %p331 = scmp.eq.s32.totalorder %s25, 2
      %p332 = scmp.ne.s32.totalorder %s327, %s329
      %p333 = scmp.eq.s32.totalorder %s25, 0
      %p334 = por %p332, %p333
      %p335 = scmp.ne.s32.totalorder %s327, %s329
      %p336 = scmp.eq.s32.totalorder %s30, 2
      %p337 = por %p335, %p336
      %p338 = scmp.ne.s32.totalorder %s329, %s330
      %p339 = scmp.eq.s32.totalorder %s30, 0
      %p340 = por %p338, %p339
      %p341 = scmp.ne.s32.totalorder %s329, %s330
      %p342 = scmp.eq.s32.totalorder %s31, 2
      %p343 = por %p341, %p342
      %p345 = scmp.ne.s32.totalorder %s330, %s344
      %p346 = scmp.eq.s32.totalorder %s31, 0
      %p347 = por %p345, %p346
      %s349 = sadd.s32 %s348, 1
      %p352 = scmp.eq.s32.totalorder %s25, 2
      %p353 = scmp.ne.s32.totalorder %s348, %s350
      %p354 = scmp.eq.s32.totalorder %s25, 0
      %p355 = por %p353, %p354
      %p356 = scmp.ne.s32.totalorder %s348, %s350
      %p357 = scmp.eq.s32.totalorder %s30, 2
      %p358 = por %p356, %p357
      %p359 = scmp.ne.s32.totalorder %s350, %s351
      %p360 = scmp.eq.s32.totalorder %s30, 0
      %p361 = por %p359, %p360
      %p362 = scmp.ne.s32.totalorder %s350, %s351
      %p363 = scmp.eq.s32.totalorder %s31, 2
      %p364 = por %p362, %p363
      %p366 = scmp.ne.s32.totalorder %s351, %s365
      %p367 = scmp.eq.s32.totalorder %s31, 0
      %p368 = por %p366, %p367
      %s370 = sadd.s32 %s369, 1
      %p373 = scmp.eq.s32.totalorder %s25, 2
      %p374 = scmp.ne.s32.totalorder %s369, %s371
      %p375 = scmp.eq.s32.totalorder %s25, 0
      %p376 = por %p374, %p375
      %p377 = scmp.ne.s32.totalorder %s369, %s371
      %p378 = scmp.eq.s32.totalorder %s30, 2
      %p379 = por %p377, %p378
      %p380 = scmp.ne.s32.totalorder %s371, %s372
      %p381 = scmp.eq.s32.totalorder %s30, 0
      %p382 = por %p380, %p381
      %p383 = scmp.ne.s32.totalorder %s371, %s372
      %p384 = scmp.eq.s32.totalorder %s31, 2
      %p385 = por %p383, %p384
      %p387 = scmp.ne.s32.totalorder %s372, %s386
      %p388 = scmp.eq.s32.totalorder %s31, 0
      %p389 = por %p387, %p388
      %p390 = scmp.le.s32.totalorder 1, %s25
      %p391 = scmp.lt.s32.totalorder %s25, 4
      %p392 = pnand %p390, %p391
      %p393 = pneg %p392
      // Predicated region
      $region9: #{mpnn_forward.4} parent=5 // pred_check
        _
      $region10: #{mpnn_forward.4} parent=5 // pred_check_branch
        %395 = sbr.rel (%p392) target = $region12
      $region11: #{mpnn_forward.4} parent=5 // pred_region
        %s396 = ssub.s32 %s25, 1
        // Predicated region
        $region13: #{mpnn_forward.4} parent=11 // pred_check
          %p397 = pneg %p46
        $region14: #{mpnn_forward.4} parent=11 // pred_check_branch
          %399 = sbr.rel (%p397) target = $region16
        $region15: #{mpnn_forward.4} parent=11 // pred_region
          _
        $region16: #{mpnn_forward.4} parent=11 // pred_fallthru
          _
        // Predicated region
        $region17: #{mpnn_forward.4} parent=11 // pred_check
          %p400 = pneg %p67
        $region18: #{mpnn_forward.4} parent=11 // pred_check_branch
          %402 = sbr.rel (%p400) target = $region20
        $region19: #{mpnn_forward.4} parent=11 // pred_region
          _
        $region20: #{mpnn_forward.4} parent=11 // pred_fallthru
          _
        // Predicated region
        $region21: #{mpnn_forward.4} parent=11 // pred_check
          %p403 = pneg %p88
        $region22: #{mpnn_forward.4} parent=11 // pred_check_branch
          %405 = sbr.rel (%p403) target = $region24
        $region23: #{mpnn_forward.4} parent=11 // pred_region
          _
        $region24: #{mpnn_forward.4} parent=11 // pred_fallthru
          _
        // Predicated region
        $region25: #{mpnn_forward.4} parent=11 // pred_check
          %p406 = pneg %p109
        $region26: #{mpnn_forward.4} parent=11 // pred_check_branch
          %408 = sbr.rel (%p406) target = $region28
        $region27: #{mpnn_forward.4} parent=11 // pred_region
          _
        $region28: #{mpnn_forward.4} parent=11 // pred_fallthru
          _
        // Predicated region
        $region29: #{mpnn_forward.4} parent=11 // pred_check
          %p409 = pneg %p130
        $region30: #{mpnn_forward.4} parent=11 // pred_check_branch
          %411 = sbr.rel (%p409) target = $region32
        $region31: #{mpnn_forward.4} parent=11 // pred_region
          _
        $region32: #{mpnn_forward.4} parent=11 // pred_fallthru
          _
        // Predicated region
        $region33: #{mpnn_forward.4} parent=11 // pred_check
          %p412 = pneg %p151
        $region34: #{mpnn_forward.4} parent=11 // pred_check_branch
          %414 = sbr.rel (%p412) target = $region36
        $region35: #{mpnn_forward.4} parent=11 // pred_region
          %s416 = ssub.s32 16, 16
          %417 = vsyncadd [#allocation3], %s416
          %s419 = sshll.u32 [#allocation2], 4
          %s420 = int_to_ptr.vmem [resolvable:$true] %s419
          %422 = dma.hbm_to_vmem [thread:$0]  %s5, 16, %s420, [#allocation3]
        $region36: #{mpnn_forward.4} parent=11 // pred_fallthru
          _
        // Predicated region
        $region37: #{mpnn_forward.4} parent=11 // pred_check
          %p423 = pneg %p172
        $region38: #{mpnn_forward.4} parent=11 // pred_check_branch
          %425 = sbr.rel (%p423) target = $region40
        $region39: #{mpnn_forward.4} parent=11 // pred_region
          _
        $region40: #{mpnn_forward.4} parent=11 // pred_fallthru
          _
        // Predicated region
        $region41: #{mpnn_forward.4} parent=11 // pred_check
          %p426 = pneg %p193
        $region42: #{mpnn_forward.4} parent=11 // pred_check_branch
          %428 = sbr.rel (%p426) target = $region44
        $region43: #{mpnn_forward.4} parent=11 // pred_region
          _
        $region44: #{mpnn_forward.4} parent=11 // pred_fallthru
          _
        // Predicated region
        $region45: #{mpnn_forward.4} parent=11 // pred_check
          %p429 = pneg %p214
        $region46: #{mpnn_forward.4} parent=11 // pred_check_branch
          %431 = sbr.rel (%p429) target = $region48
        $region47: #{mpnn_forward.4} parent=11 // pred_region
          _
        $region48: #{mpnn_forward.4} parent=11 // pred_fallthru
          _
        // Predicated region
        $region49: #{mpnn_forward.4} parent=11 // pred_check
          %p432 = pneg %p235
        $region50: #{mpnn_forward.4} parent=11 // pred_check_branch
          %434 = sbr.rel (%p432) target = $region52
        $region51: #{mpnn_forward.4} parent=11 // pred_region
          _
        $region52: #{mpnn_forward.4} parent=11 // pred_fallthru
          _
        // Predicated region
        $region53: #{mpnn_forward.4} parent=11 // pred_check
          %p435 = pneg %p256
        $region54: #{mpnn_forward.4} parent=11 // pred_check_branch
          %437 = sbr.rel (%p435) target = $region56
        $region55: #{mpnn_forward.4} parent=11 // pred_region
          _
        $region56: #{mpnn_forward.4} parent=11 // pred_fallthru
          _
        // Predicated region
        $region57: #{mpnn_forward.4} parent=11 // pred_check
          %p438 = pneg %p277
        $region58: #{mpnn_forward.4} parent=11 // pred_check_branch
          %440 = sbr.rel (%p438) target = $region60
        $region59: #{mpnn_forward.4} parent=11 // pred_region
          _
        $region60: #{mpnn_forward.4} parent=11 // pred_fallthru
          _
        // Predicated region
        $region61: #{mpnn_forward.4} parent=11 // pred_check
          %p441 = pneg %p298
        $region62: #{mpnn_forward.4} parent=11 // pred_check_branch
          %443 = sbr.rel (%p441) target = $region64
        $region63: #{mpnn_forward.4} parent=11 // pred_region
          %s445 = ssub.s32 16, 16
          %446 = vsyncadd [#allocation5], %s445
          %s448 = sshll.u32 [#allocation4], 4
          %s449 = int_to_ptr.vmem [resolvable:$true] %s448
          %451 = dma.hbm_to_vmem [thread:$0]  %s12, 16, %s449, [#allocation5]
        $region64: #{mpnn_forward.4} parent=11 // pred_fallthru
          _
        // Predicated region
        $region65: #{mpnn_forward.4} parent=11 // pred_check
          %p452 = pneg %p319
        $region66: #{mpnn_forward.4} parent=11 // pred_check_branch
          %454 = sbr.rel (%p452) target = $region68
        $region67: #{mpnn_forward.4} parent=11 // pred_region
          %s456 = ssub.s32 16, 16
          %457 = vsyncadd [#allocation5], %s456
          %s459 = sshll.u32 [#allocation6], 4
          %s460 = int_to_ptr.vmem [resolvable:$true] %s459
          %462 = dma.hbm_to_vmem [thread:$0]  %s13, 16, %s460, [#allocation5]
        $region68: #{mpnn_forward.4} parent=11 // pred_fallthru
          _
        // Predicated region
        $region69: #{mpnn_forward.4} parent=11 // pred_check
          %p463 = pneg %p340
        $region70: #{mpnn_forward.4} parent=11 // pred_check_branch
          %465 = sbr.rel (%p463) target = $region72
        $region71: #{mpnn_forward.4} parent=11 // pred_region
          %s467 = ssub.s32 16, 16
          %468 = vsyncadd [#allocation8], %s467
          %s470 = sshll.u32 [#allocation7], 4
          %s471 = int_to_ptr.vmem [resolvable:$true] %s470
          %473 = dma.hbm_to_vmem [thread:$0]  %s14, 16, %s471, [#allocation8]
        $region72: #{mpnn_forward.4} parent=11 // pred_fallthru
          _
        // Predicated region
        $region73: #{mpnn_forward.4} parent=11 // pred_check
          %p474 = pneg %p361
        $region74: #{mpnn_forward.4} parent=11 // pred_check_branch
          %476 = sbr.rel (%p474) target = $region76
        $region75: #{mpnn_forward.4} parent=11 // pred_region
          %s478 = ssub.s32 16, 16
          %479 = vsyncadd [#allocation8], %s478
          %s481 = sshll.u32 [#allocation9], 4
          %s482 = int_to_ptr.vmem [resolvable:$true] %s481
          %484 = dma.hbm_to_vmem [thread:$0]  %s15, 16, %s482, [#allocation8]
        $region76: #{mpnn_forward.4} parent=11 // pred_fallthru
          _
      $region12: #{mpnn_forward.4} parent=5 // pred_fallthru
        _
      %p485 = scmp.lt.s32.totalorder %s25, 3
      // Predicated region
      $region77: #{mpnn_forward.4} parent=5 // pred_check
        %p486 = pneg %p485
      $region78: #{mpnn_forward.4} parent=5 // pred_check_branch
        %488 = sbr.rel (%p486) target = $region80
      $region79: #{mpnn_forward.4} parent=5 // pred_region
        _
      $region80: #{mpnn_forward.4} parent=5 // pred_fallthru
        _
      %p489 = scmp.le.s32.totalorder 1, %s25
      %p490 = scmp.lt.s32.totalorder %s25, 4
      %p491 = pnand %p489, %p490
      %p492 = pneg %p491
      // Predicated region
      $region81: #{mpnn_forward.4} parent=5 // pred_check
        _
      $region82: #{mpnn_forward.4} parent=5 // pred_check_branch
        %494 = sbr.rel (%p491) target = $region84
      $region83: #{mpnn_forward.4} parent=5 // pred_region
        %s495 = ssub.s32 %s25, 1
        // Predicated region
        $region85: #{mpnn_forward.4} parent=83 // pred_check
          %p496 = pneg %p151
        $region86: #{mpnn_forward.4} parent=83 // pred_check_branch
          %498 = sbr.rel (%p496) target = $region88
        $region87: #{mpnn_forward.4} parent=83 // pred_region
          %499 = dma.done [#allocation3], 16
        $region88: #{mpnn_forward.4} parent=83 // pred_fallthru
          _
        // Predicated region
        $region89: #{mpnn_forward.4} parent=83 // pred_check
          %p500 = pneg %p298
        $region90: #{mpnn_forward.4} parent=83 // pred_check_branch
          %502 = sbr.rel (%p500) target = $region92
        $region91: #{mpnn_forward.4} parent=83 // pred_region
          %503 = dma.done [#allocation5], 16
        $region92: #{mpnn_forward.4} parent=83 // pred_fallthru
          _
        // Predicated region
        $region93: #{mpnn_forward.4} parent=83 // pred_check
          %p504 = pneg %p319
        $region94: #{mpnn_forward.4} parent=83 // pred_check_branch
          %506 = sbr.rel (%p504) target = $region96
        $region95: #{mpnn_forward.4} parent=83 // pred_region
          %507 = dma.done [#allocation5], 16
        $region96: #{mpnn_forward.4} parent=83 // pred_fallthru
          _
        // Predicated region
        $region97: #{mpnn_forward.4} parent=83 // pred_check
          %p508 = pneg %p340
        $region98: #{mpnn_forward.4} parent=83 // pred_check_branch
          %510 = sbr.rel (%p508) target = $region100
        $region99: #{mpnn_forward.4} parent=83 // pred_region
          %511 = dma.done [#allocation8], 16
        $region100: #{mpnn_forward.4} parent=83 // pred_fallthru
          _
        // Predicated region
        $region101: #{mpnn_forward.4} parent=83 // pred_check
          %p512 = pneg %p361
        $region102: #{mpnn_forward.4} parent=83 // pred_check_branch
          %514 = sbr.rel (%p512) target = $region104
        $region103: #{mpnn_forward.4} parent=83 // pred_region
          %515 = dma.done [#allocation8], 16
        $region104: #{mpnn_forward.4} parent=83 // pred_fallthru
          _
        %p516 = pneg %p46
        %p517 = pneg %p43
        %p518 = pneg %p67
        %p519 = pneg %p64
        %p520 = pneg %p88
        %p521 = pneg %p85
        %p522 = pneg %p109
        %p523 = pneg %p106
        %p524 = pneg %p130
        %p525 = pneg %p127
        %p526 = pneg %p151
        %p527 = pneg %p148
        %p528 = pneg %p172
        %p529 = pneg %p169
        %p530 = pneg %p193
        %p531 = pneg %p190
        %p532 = pneg %p214
        %p533 = pneg %p211
        %p534 = pneg %p235
        %p535 = pneg %p232
        %p536 = pneg %p256
        %p537 = pneg %p253
        %p538 = pneg %p277
        %p539 = pneg %p274
        %p540 = pneg %p298
        %p541 = pneg %p295
        %p542 = pneg %p319
        %p543 = pneg %p316
        %p544 = pneg %p340
        %p545 = pneg %p337
        %p546 = pneg %p361
        %p547 = pneg %p358
        %p548 = pneg %p382
        %p549 = pneg %p379
        %p550 = scmp.eq.s32.totalorder %s30, 0
        // Predicated region
        $region105: #{mpnn_forward.4} parent=83 // pred_check
          %p551 = pneg %p550
        $region106: #{mpnn_forward.4} parent=83 // pred_check_branch
          %553 = sbr.rel (%p551) target = $region108
        $region107: #{mpnn_forward.4} parent=83 // pred_region
          %v554 = vld [vmem:[%s0] sm:$0xff]
          %vm555 = vcmask 523264
          %556 = vst.msk [vmem:[%s16] sm:$0xff] %vm555, %v554
        $region108: #{mpnn_forward.4} parent=83 // pred_fallthru
          _
        %v557 = vld [vmem:[%s16] sm:$0xff]
        %v558 = vld [vmem:[%s1] sm:$0xff]
        %v559 = vld [vmem:[%s1 + $0x8] sm:$0xff]
        %vm560 = vcmask 64512
        %v562 = vsel %vm560, %v558, 0
        %v565 = vsel %vm560, %v559, 0
        %567 = vmatprep.subr.mxu0 0.0
        %568 = vmatpush1.msra.mxu0 %v557
        %569 = vmatprep.subr.mxu0 0.0
        %570 = vmatpush1.msra.mxu0 0.0
        %571 = vmatprep.subr.mxu0 0.0
        %572 = vmatpush1.msra.mxu0 0.0
        %573 = vmatprep.subr.mxu0 0.0
        %574 = vmatpush1.msra.mxu0 0.0
        %575 = vmatprep.subr.mxu0 0.0
        %576 = vmatpush1.msra.mxu0 0.0
        %577 = vmatprep.subr.mxu0 0.0
        %578 = vmatpush1.msra.mxu0 0.0
        %579 = vmatprep.subr.mxu0 0.0
        %580 = vmatpush1.msra.mxu0 0.0
        %581 = vmatprep.subr.mxu0 0.0
        %582 = vmatpush1.msra.mxu0 0.0
        %583 = vmatprep.subr.mxu0 0.0
        %584 = vmatpush1.msra.mxu0 0.0
        %585 = vmatprep.subr.mxu0 0.0
        %586 = vmatpush1.msra.mxu0 0.0
        %587 = vmatprep.subr.mxu0 0.0
        %588 = vmatpush1.msra.mxu0 0.0
        %589 = vmatprep.subr.mxu0 0.0
        %590 = vmatpush1.msra.mxu0 0.0
        %591 = vmatprep.subr.mxu0 0.0
        %592 = vmatpush1.msra.mxu0 0.0
        %593 = vmatprep.subr.mxu0 0.0
        %594 = vmatpush1.msra.mxu0 0.0
        %595 = vmatprep.subr.mxu0 0.0
        %596 = vmatpush1.msra.mxu0 0.0
        %597 = vmatprep.subr.mxu0 0.0
        %598 = vmatpush1.msra.mxu0 0.0
        %599 = vmatprep.subr.mxu0 0.0
        %600 = vmatpush1.msra.mxu0 0.0
        %601 = vmatprep.subr.mxu0 0.0
        %602 = vmatpush1.msra.mxu0 0.0
        %603 = vmatprep.subr.mxu0 0.0
        %604 = vmatpush1.msra.mxu0 0.0
        %605 = vmatprep.subr.mxu0 0.0
        %606 = vmatpush1.msra.mxu0 0.0
        %607 = vmatprep.subr.mxu0 0.0
        %608 = vmatpush1.msra.mxu0 0.0
        %609 = vmatprep.subr.mxu0 0.0
        %610 = vmatpush1.msra.mxu0 0.0
        %611 = vmatprep.subr.mxu0 0.0
        %612 = vmatpush1.msra.mxu0 0.0
        %613 = vmatprep.subr.mxu0 0.0
        %614 = vmatpush1.msra.mxu0 0.0
        %615 = vmatprep.subr.mxu0 0.0
        %616 = vmatpush1.msra.mxu0 0.0
        %617 = vmatprep.subr.mxu0 0.0
        %618 = vmatpush1.msra.mxu0 0.0
        %619 = vmatprep.subr.mxu0 0.0
        %620 = vmatpush1.msra.mxu0 0.0
        %621 = vmatprep.subr.mxu0 0.0
        %622 = vmatpush1.msra.mxu0 0.0
        %623 = vmatprep.subr.mxu0 0.0
        %624 = vmatpush1.msra.mxu0 0.0
        %625 = vmatprep.subr.mxu0 0.0
        %626 = vmatpush1.msra.mxu0 0.0
        %627 = vmatprep.subr.mxu0 0.0
        %628 = vmatpush1.msra.mxu0 0.0
        %629 = vmatprep.subr.mxu0 0.0
        %630 = vmatpush1.msra.mxu0 0.0
        %631 = vmatprep.mubr.f32.mxu0 0.0
        %632 = vmatmul.mubr.f32.gmra.mrb[0].mxu0 %v562
        %v633 = vpop.f32.mrb[0].mxu0
        %v634 = vadd.f32 0.0, %v633
        %v635 = vpop.f32.mrb[0].mxu0
        %636 = vmatprep.mubr.f32.mxu0 0.0
        %637 = vmatmul.mubr.f32.gmra.mrb[0].mxu0 %v565
        %v638 = vpop.f32.mrb[0].mxu0
        %v639 = vadd.f32 0.0, %v638
        %v640 = vpop.f32.mrb[0].mxu0
        %641 = vdwg.mxu0
        %644 = vrot.lane.b32.xlu0 %v634, 64
        %v645 = vpop.permute.xlu0 %644
        %646 = vrot.lane.b32.xlu0 %v639, 64
        %v647 = vpop.permute.xlu0 %646
        %vm650 = vcmask 523264
        %v651 = vsel %vm650, %v634, %v645
        %v652 = vsel %vm650, %v639, %v647
        %v653 = vld [vmem:[%s4] sm:$0xff]
        %v654 = vld [vmem:[%s4 + $0x8] sm:$0xff]
        %v655 = vld [vmem:[%s4 + $0x10] sm:$0xff]
        %v656 = vld [vmem:[%s4 + $0x18] sm:$0xff]
        %v657 = vld [vmem:[%s4 + $0x20] sm:$0xff]
        %v658 = vld [vmem:[%s4 + $0x28] sm:$0xff]
        %v659 = vld [vmem:[%s4 + $0x30] sm:$0xff]
        %v660 = vld [vmem:[%s4 + $0x38] sm:$0xff]
        %v661 = vld [vmem:[%s4 + $0x40] sm:$0xff]
        %v662 = vld [vmem:[%s4 + $0x48] sm:$0xff]
        %v663 = vld [vmem:[%s4 + $0x50] sm:$0xff]
        %v664 = vld [vmem:[%s4 + $0x58] sm:$0xff]
        %v665 = vld [vmem:[%s4 + $0x60] sm:$0xff]
        %v666 = vld [vmem:[%s4 + $0x68] sm:$0xff]
        %v667 = vld [vmem:[%s4 + $0x70] sm:$0xff]
        %v668 = vld [vmem:[%s4 + $0x78] sm:$0xff]
        %v669 = vmul.f32 %v651, %v653
        %v670 = vmul.f32 %v651, %v654
        %v671 = vmul.f32 %v651, %v655
        %v672 = vmul.f32 %v651, %v656
        %v673 = vmul.f32 %v651, %v657
        %v674 = vmul.f32 %v651, %v658
        %v675 = vmul.f32 %v651, %v659
        %v676 = vmul.f32 %v651, %v660
        %v677 = vmul.f32 %v652, %v661
        %v678 = vmul.f32 %v652, %v662
        %v679 = vmul.f32 %v652, %v663
        %v680 = vmul.f32 %v652, %v664
        %v681 = vmul.f32 %v652, %v665
        %v682 = vmul.f32 %v652, %v666
        %v683 = vmul.f32 %v652, %v667
        %v684 = vmul.f32 %v652, %v668
        %v685 = vld [vmem:[%s3] sm:$0xff]
        %v686 = vld [vmem:[%s3 + $0x8] sm:$0xff]
        %v687 = vld [vmem:[%s3 + $0x10] sm:$0xff]
        %v688 = vld [vmem:[%s3 + $0x18] sm:$0xff]
        %v689 = vld [vmem:[%s3 + $0x20] sm:$0xff]
        %v690 = vld [vmem:[%s3 + $0x28] sm:$0xff]
        %v691 = vld [vmem:[%s3 + $0x30] sm:$0xff]
        %v692 = vld [vmem:[%s3 + $0x38] sm:$0xff]
        %v693 = vld [vmem:[%s3 + $0x40] sm:$0xff]
        %v694 = vld [vmem:[%s3 + $0x48] sm:$0xff]
        %v695 = vld [vmem:[%s3 + $0x50] sm:$0xff]
        %v696 = vld [vmem:[%s3 + $0x58] sm:$0xff]
        %v697 = vld [vmem:[%s3 + $0x60] sm:$0xff]
        %v698 = vld [vmem:[%s3 + $0x68] sm:$0xff]
        %v699 = vld [vmem:[%s3 + $0x70] sm:$0xff]
        %v700 = vld [vmem:[%s3 + $0x78] sm:$0xff]
        %v701 = vld [vmem:[%s3 + $0x80] sm:$0xff]
        %v702 = vld [vmem:[%s3 + $0x88] sm:$0xff]
        %v703 = vld [vmem:[%s3 + $0x90] sm:$0xff]
        %v704 = vld [vmem:[%s3 + $0x98] sm:$0xff]
        %v705 = vld [vmem:[%s3 + $0xa0] sm:$0xff]
        %v706 = vld [vmem:[%s3 + $0xa8] sm:$0xff]
        %v707 = vld [vmem:[%s3 + $0xb0] sm:$0xff]
        %v708 = vld [vmem:[%s3 + $0xb8] sm:$0xff]
        %v709 = vld [vmem:[%s3 + $0xc0] sm:$0xff]
        %v710 = vld [vmem:[%s3 + $0xc8] sm:$0xff]
        %v711 = vld [vmem:[%s3 + $0xd0] sm:$0xff]
        %v712 = vld [vmem:[%s3 + $0xd8] sm:$0xff]
        %v713 = vld [vmem:[%s3 + $0xe0] sm:$0xff]
        %v714 = vld [vmem:[%s3 + $0xe8] sm:$0xff]
        %v715 = vld [vmem:[%s3 + $0xf0] sm:$0xff]
        %v716 = vld [vmem:[%s3 + $0xf8] sm:$0xff]
        %v717 = vld [vmem:[%s3 + $0x100] sm:$0xff]
        %v718 = vld [vmem:[%s3 + $0x108] sm:$0xff]
        %v719 = vld [vmem:[%s3 + $0x110] sm:$0xff]
        %v720 = vld [vmem:[%s3 + $0x118] sm:$0xff]
        %v721 = vld [vmem:[%s3 + $0x120] sm:$0xff]
        %v722 = vld [vmem:[%s3 + $0x128] sm:$0xff]
        %v723 = vld [vmem:[%s3 + $0x130] sm:$0xff]
        %v724 = vld [vmem:[%s3 + $0x138] sm:$0xff]
        %v725 = vld [vmem:[%s3 + $0x140] sm:$0xff]
        %v726 = vld [vmem:[%s3 + $0x148] sm:$0xff]
        %v727 = vld [vmem:[%s3 + $0x150] sm:$0xff]
        %v728 = vld [vmem:[%s3 + $0x158] sm:$0xff]
        %v729 = vld [vmem:[%s3 + $0x160] sm:$0xff]
        %v730 = vld [vmem:[%s3 + $0x168] sm:$0xff]
        %v731 = vld [vmem:[%s3 + $0x170] sm:$0xff]
        %v732 = vld [vmem:[%s3 + $0x178] sm:$0xff]
        %v733 = vld [vmem:[%s3 + $0x180] sm:$0xff]
        %v734 = vld [vmem:[%s3 + $0x188] sm:$0xff]
        %v735 = vld [vmem:[%s3 + $0x190] sm:$0xff]
        %v736 = vld [vmem:[%s3 + $0x198] sm:$0xff]
        %v737 = vld [vmem:[%s3 + $0x1a0] sm:$0xff]
        %v738 = vld [vmem:[%s3 + $0x1a8] sm:$0xff]
        %v739 = vld [vmem:[%s3 + $0x1b0] sm:$0xff]
        %v740 = vld [vmem:[%s3 + $0x1b8] sm:$0xff]
        %v741 = vld [vmem:[%s3 + $0x1c0] sm:$0xff]
        %v742 = vld [vmem:[%s3 + $0x1c8] sm:$0xff]
        %v743 = vld [vmem:[%s3 + $0x1d0] sm:$0xff]
        %v744 = vld [vmem:[%s3 + $0x1d8] sm:$0xff]
        %v745 = vld [vmem:[%s3 + $0x1e0] sm:$0xff]
        %v746 = vld [vmem:[%s3 + $0x1e8] sm:$0xff]
        %v747 = vld [vmem:[%s3 + $0x1f0] sm:$0xff]
        %v748 = vld [vmem:[%s3 + $0x1f8] sm:$0xff]
        %v749 = vld [vmem:[%s3 + $0x200] sm:$0xff]
        %v750 = vld [vmem:[%s3 + $0x208] sm:$0xff]
        %v751 = vld [vmem:[%s3 + $0x210] sm:$0xff]
        %v752 = vld [vmem:[%s3 + $0x218] sm:$0xff]
        %v753 = vld [vmem:[%s3 + $0x220] sm:$0xff]
        %v754 = vld [vmem:[%s3 + $0x228] sm:$0xff]
        %v755 = vld [vmem:[%s3 + $0x230] sm:$0xff]
        %v756 = vld [vmem:[%s3 + $0x238] sm:$0xff]
        %v757 = vld [vmem:[%s3 + $0x240] sm:$0xff]
        %v758 = vld [vmem:[%s3 + $0x248] sm:$0xff]
        %v759 = vld [vmem:[%s3 + $0x250] sm:$0xff]
        %v760 = vld [vmem:[%s3 + $0x258] sm:$0xff]
        %v761 = vld [vmem:[%s3 + $0x260] sm:$0xff]
        %v762 = vld [vmem:[%s3 + $0x268] sm:$0xff]
        %v763 = vld [vmem:[%s3 + $0x270] sm:$0xff]
        %v764 = vld [vmem:[%s3 + $0x278] sm:$0xff]
        %v765 = vld [vmem:[%s3 + $0x280] sm:$0xff]
        %v766 = vld [vmem:[%s3 + $0x288] sm:$0xff]
        %v767 = vld [vmem:[%s3 + $0x290] sm:$0xff]
        %v768 = vld [vmem:[%s3 + $0x298] sm:$0xff]
        %v769 = vld [vmem:[%s3 + $0x2a0] sm:$0xff]
        %v770 = vld [vmem:[%s3 + $0x2a8] sm:$0xff]
        %v771 = vld [vmem:[%s3 + $0x2b0] sm:$0xff]
        %v772 = vld [vmem:[%s3 + $0x2b8] sm:$0xff]
        %v773 = vld [vmem:[%s3 + $0x2c0] sm:$0xff]
        %v774 = vld [vmem:[%s3 + $0x2c8] sm:$0xff]
        %v775 = vld [vmem:[%s3 + $0x2d0] sm:$0xff]
        %v776 = vld [vmem:[%s3 + $0x2d8] sm:$0xff]
        %v777 = vld [vmem:[%s3 + $0x2e0] sm:$0xff]
        %v778 = vld [vmem:[%s3 + $0x2e8] sm:$0xff]
        %v779 = vld [vmem:[%s3 + $0x2f0] sm:$0xff]
        %v780 = vld [vmem:[%s3 + $0x2f8] sm:$0xff]
        %v781 = vld [vmem:[%s3 + $0x300] sm:$0xff]
        %v782 = vld [vmem:[%s3 + $0x308] sm:$0xff]
        %v783 = vld [vmem:[%s3 + $0x310] sm:$0xff]
        %v784 = vld [vmem:[%s3 + $0x318] sm:$0xff]
        %v785 = vld [vmem:[%s3 + $0x320] sm:$0xff]
        %v786 = vld [vmem:[%s3 + $0x328] sm:$0xff]
        %v787 = vld [vmem:[%s3 + $0x330] sm:$0xff]
        %v788 = vld [vmem:[%s3 + $0x338] sm:$0xff]
        %v789 = vld [vmem:[%s3 + $0x340] sm:$0xff]
        %v790 = vld [vmem:[%s3 + $0x348] sm:$0xff]
        %v791 = vld [vmem:[%s3 + $0x350] sm:$0xff]
        %v792 = vld [vmem:[%s3 + $0x358] sm:$0xff]
        %v793 = vld [vmem:[%s3 + $0x360] sm:$0xff]
        %v794 = vld [vmem:[%s3 + $0x368] sm:$0xff]
        %v795 = vld [vmem:[%s3 + $0x370] sm:$0xff]
        %v796 = vld [vmem:[%s3 + $0x378] sm:$0xff]
        %v797 = vld [vmem:[%s3 + $0x380] sm:$0xff]
        %v798 = vld [vmem:[%s3 + $0x388] sm:$0xff]
        %v799 = vld [vmem:[%s3 + $0x390] sm:$0xff]
        %v800 = vld [vmem:[%s3 + $0x398] sm:$0xff]
        %v801 = vld [vmem:[%s3 + $0x3a0] sm:$0xff]
        %v802 = vld [vmem:[%s3 + $0x3a8] sm:$0xff]
        %v803 = vld [vmem:[%s3 + $0x3b0] sm:$0xff]
        %v804 = vld [vmem:[%s3 + $0x3b8] sm:$0xff]
        %v805 = vld [vmem:[%s3 + $0x3c0] sm:$0xff]
        %v806 = vld [vmem:[%s3 + $0x3c8] sm:$0xff]
        %v807 = vld [vmem:[%s3 + $0x3d0] sm:$0xff]
        %v808 = vld [vmem:[%s3 + $0x3d8] sm:$0xff]
        %v809 = vld [vmem:[%s3 + $0x3e0] sm:$0xff]
        %v810 = vld [vmem:[%s3 + $0x3e8] sm:$0xff]
        %v811 = vld [vmem:[%s3 + $0x3f0] sm:$0xff]
        %v812 = vld [vmem:[%s3 + $0x3f8] sm:$0xff]
        %813 = vmatprep.subr.mxu0 0.0
        %814 = vmatpush1.msra.mxu0 %v685
        %815 = vmatprep.subr.mxu0 0.0
        %816 = vmatpush1.msra.mxu0 %v686
        %817 = vmatprep.subr.mxu0 0.0
        %818 = vmatpush1.msra.mxu0 %v687
        %819 = vmatprep.subr.mxu0 0.0
        %820 = vmatpush1.msra.mxu0 %v688
        %821 = vmatprep.subr.mxu0 0.0
        %822 = vmatpush1.msra.mxu0 %v689
        %823 = vmatprep.subr.mxu0 0.0
        %824 = vmatpush1.msra.mxu0 %v690
        %825 = vmatprep.subr.mxu0 0.0
        %826 = vmatpush1.msra.mxu0 %v691
        %827 = vmatprep.subr.mxu0 0.0
        %828 = vmatpush1.msra.mxu0 %v692
        %829 = vmatprep.subr.mxu0 0.0
        %830 = vmatpush1.msra.mxu0 %v693
        %831 = vmatprep.subr.mxu0 0.0
        %832 = vmatpush1.msra.mxu0 %v694
        %833 = vmatprep.subr.mxu0 0.0
        %834 = vmatpush1.msra.mxu0 %v695
        %835 = vmatprep.subr.mxu0 0.0
        %836 = vmatpush1.msra.mxu0 %v696
        %837 = vmatprep.subr.mxu0 0.0
        %838 = vmatpush1.msra.mxu0 %v697
        %839 = vmatprep.subr.mxu0 0.0
        %840 = vmatpush1.msra.mxu0 %v698
        %841 = vmatprep.subr.mxu0 0.0
        %842 = vmatpush1.msra.mxu0 %v699
        %843 = vmatprep.subr.mxu0 0.0
        %844 = vmatpush1.msra.mxu0 %v700
        %845 = vmatprep.subr.mxu0 0.0
        %846 = vmatpush1.msra.mxu0 %v701
        %847 = vmatprep.subr.mxu0 0.0
        %848 = vmatpush1.msra.mxu0 %v702
        %849 = vmatprep.subr.mxu0 0.0
        %850 = vmatpush1.msra.mxu0 %v703
        %851 = vmatprep.subr.mxu0 0.0
        %852 = vmatpush1.msra.mxu0 %v704
        %853 = vmatprep.subr.mxu0 0.0
        %854 = vmatpush1.msra.mxu0 %v705
        %855 = vmatprep.subr.mxu0 0.0
        %856 = vmatpush1.msra.mxu0 %v706
        %857 = vmatprep.subr.mxu0 0.0
        %858 = vmatpush1.msra.mxu0 %v707
        %859 = vmatprep.subr.mxu0 0.0
        %860 = vmatpush1.msra.mxu0 %v708
        %861 = vmatprep.subr.mxu0 0.0
        %862 = vmatpush1.msra.mxu0 %v709
        %863 = vmatprep.subr.mxu0 0.0
        %864 = vmatpush1.msra.mxu0 %v710
        %865 = vmatprep.subr.mxu0 0.0
        %866 = vmatpush1.msra.mxu0 %v711
        %867 = vmatprep.subr.mxu0 0.0
        %868 = vmatpush1.msra.mxu0 %v712
        %869 = vmatprep.subr.mxu0 0.0
        %870 = vmatpush1.msra.mxu0 %v713
        %871 = vmatprep.subr.mxu0 0.0
        %872 = vmatpush1.msra.mxu0 %v714
        %873 = vmatprep.subr.mxu0 0.0
        %874 = vmatpush1.msra.mxu0 %v715
        %875 = vmatprep.subr.mxu0 0.0
        %876 = vmatpush1.msra.mxu0 %v716
        %877 = vmatprep.mubr.f32.mxu0 %v670
        %878 = vmatmul.mubr.f32.gmra.mrb[0].mxu0 %v669
        %v879 = vpop.f32.mrb[0].mxu0
        %v880 = vadd.f32 0.0, %v879
        %v881 = vpop.f32.mrb[0].mxu0
        %882 = vmatprep.mubr.f32.mxu0 %v678
        %883 = vmatmul.mubr.f32.gmra.mrb[0].mxu0 %v677
        %v884 = vpop.f32.mrb[0].mxu0
        %v885 = vadd.f32 0.0, %v884
        %v886 = vpop.f32.mrb[0].mxu0
        %887 = vdwg.mxu0
        %888 = vmatprep.subr.mxu0 0.0
        %889 = vmatpush1.msra.mxu0 %v717
        %890 = vmatprep.subr.mxu0 0.0
        %891 = vmatpush1.msra.mxu0 %v718
        %892 = vmatprep.subr.mxu0 0.0
        %893 = vmatpush1.msra.mxu0 %v719
        %894 = vmatprep.subr.mxu0 0.0
        %895 = vmatpush1.msra.mxu0 %v720
        %896 = vmatprep.subr.mxu0 0.0
        %897 = vmatpush1.msra.mxu0 %v721
        %898 = vmatprep.subr.mxu0 0.0
        %899 = vmatpush1.msra.mxu0 %v722
        %900 = vmatprep.subr.mxu0 0.0
        %901 = vmatpush1.msra.mxu0 %v723
        %902 = vmatprep.subr.mxu0 0.0
        %903 = vmatpush1.msra.mxu0 %v724
        %904 = vmatprep.subr.mxu0 0.0
        %905 = vmatpush1.msra.mxu0 %v725
        %906 = vmatprep.subr.mxu0 0.0
        %907 = vmatpush1.msra.mxu0 %v726
        %908 = vmatprep.subr.mxu0 0.0
        %909 = vmatpush1.msra.mxu0 %v727
        %910 = vmatprep.subr.mxu0 0.0
        %911 = vmatpush1.msra.mxu0 %v728
        %912 = vmatprep.subr.mxu0 0.0
        %913 = vmatpush1.msra.mxu0 %v729
        %914 = vmatprep.subr.mxu0 0.0
        %915 = vmatpush1.msra.mxu0 %v730
        %916 = vmatprep.subr.mxu0 0.0
        %917 = vmatpush1.msra.mxu0 %v731
        %918 = vmatprep.subr.mxu0 0.0
        %919 = vmatpush1.msra.mxu0 %v732
        %920 = vmatprep.subr.mxu0 0.0
        %921 = vmatpush1.msra.mxu0 %v733
        %922 = vmatprep.subr.mxu0 0.0
        %923 = vmatpush1.msra.mxu0 %v734
        %924 = vmatprep.subr.mxu0 0.0
        %925 = vmatpush1.msra.mxu0 %v735
        %926 = vmatprep.subr.mxu0 0.0
        %927 = vmatpush1.msra.mxu0 %v736
        %928 = vmatprep.subr.mxu0 0.0
        %929 = vmatpush1.msra.mxu0 %v737
        %930 = vmatprep.subr.mxu0 0.0
        %931 = vmatpush1.msra.mxu0 %v738
        %932 = vmatprep.subr.mxu0 0.0
        %933 = vmatpush1.msra.mxu0 %v739
        %934 = vmatprep.subr.mxu0 0.0
        %935 = vmatpush1.msra.mxu0 %v740
        %936 = vmatprep.subr.mxu0 0.0
        %937 = vmatpush1.msra.mxu0 %v741
        %938 = vmatprep.subr.mxu0 0.0
        %939 = vmatpush1.msra.mxu0 %v742
        %940 = vmatprep.subr.mxu0 0.0
        %941 = vmatpush1.msra.mxu0 %v743
        %942 = vmatprep.subr.mxu0 0.0
        %943 = vmatpush1.msra.mxu0 %v744
        %944 = vmatprep.subr.mxu0 0.0
        %945 = vmatpush1.msra.mxu0 %v745
        %946 = vmatprep.subr.mxu0 0.0
        %947 = vmatpush1.msra.mxu0 %v746
        %948 = vmatprep.subr.mxu0 0.0
        %949 = vmatpush1.msra.mxu0 %v747
        %950 = vmatprep.subr.mxu0 0.0
        %951 = vmatpush1.msra.mxu0 %v748
        %952 = vmatprep.mubr.f32.mxu0 %v672
        %953 = vmatmul.mubr.f32.gmra.mrb[0].mxu0 %v671
        %v954 = vpop.f32.mrb[0].mxu0
        %v955 = vadd.f32 %v880, %v954
        %v956 = vpop.f32.mrb[0].mxu0
        %957 = vmatprep.mubr.f32.mxu0 %v680
        %958 = vmatmul.mubr.f32.gmra.mrb[0].mxu0 %v679
        %v959 = vpop.f32.mrb[0].mxu0
        %v960 = vadd.f32 %v885, %v959
        %v961 = vpop.f32.mrb[0].mxu0
        %962 = vdwg.mxu0
        %963 = vmatprep.subr.mxu0 0.0
        %964 = vmatpush1.msra.mxu0 %v749
        %965 = vmatprep.subr.mxu0 0.0
        %966 = vmatpush1.msra.mxu0 %v750
        %967 = vmatprep.subr.mxu0 0.0
        %968 = vmatpush1.msra.mxu0 %v751
        %969 = vmatprep.subr.mxu0 0.0
        %970 = vmatpush1.msra.mxu0 %v752
        %971 = vmatprep.subr.mxu0 0.0
        %972 = vmatpush1.msra.mxu0 %v753
        %973 = vmatprep.subr.mxu0 0.0
        %974 = vmatpush1.msra.mxu0 %v754
        %975 = vmatprep.subr.mxu0 0.0
        %976 = vmatpush1.msra.mxu0 %v755
        %977 = vmatprep.subr.mxu0 0.0
        %978 = vmatpush1.msra.mxu0 %v756
        %979 = vmatprep.subr.mxu0 0.0
        %980 = vmatpush1.msra.mxu0 %v757
        %981 = vmatprep.subr.mxu0 0.0
        %982 = vmatpush1.msra.mxu0 %v758
        %983 = vmatprep.subr.mxu0 0.0
        %984 = vmatpush1.msra.mxu0 %v759
        %985 = vmatprep.subr.mxu0 0.0
        %986 = vmatpush1.msra.mxu0 %v760
        %987 = vmatprep.subr.mxu0 0.0
        %988 = vmatpush1.msra.mxu0 %v761
        %989 = vmatprep.subr.mxu0 0.0
        %990 = vmatpush1.msra.mxu0 %v762
        %991 = vmatprep.subr.mxu0 0.0
        %992 = vmatpush1.msra.mxu0 %v763
        %993 = vmatprep.subr.mxu0 0.0
        %994 = vmatpush1.msra.mxu0 %v764
        %995 = vmatprep.subr.mxu0 0.0
        %996 = vmatpush1.msra.mxu0 %v765
        %997 = vmatprep.subr.mxu0 0.0
        %998 = vmatpush1.msra.mxu0 %v766
        %999 = vmatprep.subr.mxu0 0.0
        %1000 = vmatpush1.msra.mxu0 %v767
        %1001 = vmatprep.subr.mxu0 0.0
        %1002 = vmatpush1.msra.mxu0 %v768
        %1003 = vmatprep.subr.mxu0 0.0
        %1004 = vmatpush1.msra.mxu0 %v769
        %1005 = vmatprep.subr.mxu0 0.0
        %1006 = vmatpush1.msra.mxu0 %v770
        %1007 = vmatprep.subr.mxu0 0.0
        %1008 = vmatpush1.msra.mxu0 %v771
        %1009 = vmatprep.subr.mxu0 0.0
        %1010 = vmatpush1.msra.mxu0 %v772
        %1011 = vmatprep.subr.mxu0 0.0
        %1012 = vmatpush1.msra.mxu0 %v773
        %1013 = vmatprep.subr.mxu0 0.0
        %1014 = vmatpush1.msra.mxu0 %v774
        %1015 = vmatprep.subr.mxu0 0.0
        %1016 = vmatpush1.msra.mxu0 %v775
        %1017 = vmatprep.subr.mxu0 0.0
        %1018 = vmatpush1.msra.mxu0 %v776
        %1019 = vmatprep.subr.mxu0 0.0
        %1020 = vmatpush1.msra.mxu0 %v777
        %1021 = vmatprep.subr.mxu0 0.0
        %1022 = vmatpush1.msra.mxu0 %v778
        %1023 = vmatprep.subr.mxu0 0.0
        %1024 = vmatpush1.msra.mxu0 %v779
        %1025 = vmatprep.subr.mxu0 0.0
        %1026 = vmatpush1.msra.mxu0 %v780
        %1027 = vmatprep.mubr.f32.mxu0 %v674
        %1028 = vmatmul.mubr.f32.gmra.mrb[0].mxu0 %v673
        %v1029 = vpop.f32.mrb[0].mxu0
        %v1030 = vadd.f32 %v955, %v1029
        %v1031 = vpop.f32.mrb[0].mxu0
        %1032 = vmatprep.mubr.f32.mxu0 %v682
        %1033 = vmatmul.mubr.f32.gmra.mrb[0].mxu0 %v681
        %v1034 = vpop.f32.mrb[0].mxu0
        %v1035 = vadd.f32 %v960, %v1034
        %v1036 = vpop.f32.mrb[0].mxu0
        %1037 = vdwg.mxu0
        %1038 = vmatprep.subr.mxu0 0.0
        %1039 = vmatpush1.msra.mxu0 %v781
        %1040 = vmatprep.subr.mxu0 0.0
        %1041 = vmatpush1.msra.mxu0 %v782
        %1042 = vmatprep.subr.mxu0 0.0
        %1043 = vmatpush1.msra.mxu0 %v783
        %1044 = vmatprep.subr.mxu0 0.0
        %1045 = vmatpush1.msra.mxu0 %v784
        %1046 = vmatprep.subr.mxu0 0.0
        %1047 = vmatpush1.msra.mxu0 %v785
        %1048 = vmatprep.subr.mxu0 0.0
        %1049 = vmatpush1.msra.mxu0 %v786
        %1050 = vmatprep.subr.mxu0 0.0
        %1051 = vmatpush1.msra.mxu0 %v787
        %1052 = vmatprep.subr.mxu0 0.0
        %1053 = vmatpush1.msra.mxu0 %v788
        %1054 = vmatprep.subr.mxu0 0.0
        %1055 = vmatpush1.msra.mxu0 %v789
        %1056 = vmatprep.subr.mxu0 0.0
        %1057 = vmatpush1.msra.mxu0 %v790
        %1058 = vmatprep.subr.mxu0 0.0
        %1059 = vmatpush1.msra.mxu0 %v791
        %1060 = vmatprep.subr.mxu0 0.0
        %1061 = vmatpush1.msra.mxu0 %v792
        %1062 = vmatprep.subr.mxu0 0.0
        %1063 = vmatpush1.msra.mxu0 %v793
        %1064 = vmatprep.subr.mxu0 0.0
        %1065 = vmatpush1.msra.mxu0 %v794
        %1066 = vmatprep.subr.mxu0 0.0
        %1067 = vmatpush1.msra.mxu0 %v795
        %1068 = vmatprep.subr.mxu0 0.0
        %1069 = vmatpush1.msra.mxu0 %v796
        %1070 = vmatprep.subr.mxu0 0.0
        %1071 = vmatpush1.msra.mxu0 %v797
        %1072 = vmatprep.subr.mxu0 0.0
        %1073 = vmatpush1.msra.mxu0 %v798
        %1074 = vmatprep.subr.mxu0 0.0
        %1075 = vmatpush1.msra.mxu0 %v799
        %1076 = vmatprep.subr.mxu0 0.0
        %1077 = vmatpush1.msra.mxu0 %v800
        %1078 = vmatprep.subr.mxu0 0.0
        %1079 = vmatpush1.msra.mxu0 %v801
        %1080 = vmatprep.subr.mxu0 0.0
        %1081 = vmatpush1.msra.mxu0 %v802
        %1082 = vmatprep.subr.mxu0 0.0
        %1083 = vmatpush1.msra.mxu0 %v803
        %1084 = vmatprep.subr.mxu0 0.0
        %1085 = vmatpush1.msra.mxu0 %v804
        %1086 = vmatprep.subr.mxu0 0.0
        %1087 = vmatpush1.msra.mxu0 %v805
        %1088 = vmatprep.subr.mxu0 0.0
        %1089 = vmatpush1.msra.mxu0 %v806
        %1090 = vmatprep.subr.mxu0 0.0
        %1091 = vmatpush1.msra.mxu0 %v807
        %1092 = vmatprep.subr.mxu0 0.0
        %1093 = vmatpush1.msra.mxu0 %v808
        %1094 = vmatprep.subr.mxu0 0.0
        %1095 = vmatpush1.msra.mxu0 %v809
        %1096 = vmatprep.subr.mxu0 0.0
        %1097 = vmatpush1.msra.mxu0 %v810
        %1098 = vmatprep.subr.mxu0 0.0
        %1099 = vmatpush1.msra.mxu0 %v811
        %1100 = vmatprep.subr.mxu0 0.0
        %1101 = vmatpush1.msra.mxu0 %v812
        %1102 = vmatprep.mubr.f32.mxu0 %v676
        %1103 = vmatmul.mubr.f32.gmra.mrb[0].mxu0 %v675
        %v1104 = vpop.f32.mrb[0].mxu0
        %v1105 = vadd.f32 %v1030, %v1104
        %v1106 = vpop.f32.mrb[0].mxu0
        %1107 = vmatprep.mubr.f32.mxu0 %v684
        %1108 = vmatmul.mubr.f32.gmra.mrb[0].mxu0 %v683
        %v1109 = vpop.f32.mrb[0].mxu0
        %v1110 = vadd.f32 %v1035, %v1109
        %v1111 = vpop.f32.mrb[0].mxu0
        %1112 = vdwg.mxu0
        %v1113 = vld [vmem:[%s2] sm:$0xff]
        %v1114 = vld [vmem:[#allocation2] sm:$0x1]
        %v1116 = vlaneseq
        %v1117 = vshrl.u32 %v1116, 7
        %v1118 = vsub.s32 0, %v1117
        %v1119 = vrot.slane %v1114, %v1118
        %vm1121 = vcmask 130048
        %v1123 = vsel %vm1121, %v1113, 0
        %1125 = vmatprep.subr.mxu0 0.0
        %1126 = vmatpush1.msra.mxu0 %v1105
        %1127 = vmatprep.subr.mxu0 0.0
        %1128 = vmatpush1.msra.mxu0 %v1110
        %1129 = vmatprep.subr.mxu0 0.0
        %1130 = vmatpush1.msra.mxu0 0.0
        %1131 = vmatprep.subr.mxu0 0.0
        %1132 = vmatpush1.msra.mxu0 0.0
        %1133 = vmatprep.subr.mxu0 0.0
        %1134 = vmatpush1.msra.mxu0 0.0
        %1135 = vmatprep.subr.mxu0 0.0
        %1136 = vmatpush1.msra.mxu0 0.0
        %1137 = vmatprep.subr.mxu0 0.0
        %1138 = vmatpush1.msra.mxu0 0.0
        %1139 = vmatprep.subr.mxu0 0.0
        %1140 = vmatpush1.msra.mxu0 0.0
        %1141 = vmatprep.subr.mxu0 0.0
        %1142 = vmatpush1.msra.mxu0 0.0
        %1143 = vmatprep.subr.mxu0 0.0
        %1144 = vmatpush1.msra.mxu0 0.0
        %1145 = vmatprep.subr.mxu0 0.0
        %1146 = vmatpush1.msra.mxu0 0.0
        %1147 = vmatprep.subr.mxu0 0.0
        %1148 = vmatpush1.msra.mxu0 0.0
        %1149 = vmatprep.subr.mxu0 0.0
        %1150 = vmatpush1.msra.mxu0 0.0
        %1151 = vmatprep.subr.mxu0 0.0
        %1152 = vmatpush1.msra.mxu0 0.0
        %1153 = vmatprep.subr.mxu0 0.0
        %1154 = vmatpush1.msra.mxu0 0.0
        %1155 = vmatprep.subr.mxu0 0.0
        %1156 = vmatpush1.msra.mxu0 0.0
        %1157 = vmatprep.subr.mxu0 0.0
        %1158 = vmatpush1.msra.mxu0 0.0
        %1159 = vmatprep.subr.mxu0 0.0
        %1160 = vmatpush1.msra.mxu0 0.0
        %1161 = vmatprep.subr.mxu0 0.0
        %1162 = vmatpush1.msra.mxu0 0.0
        %1163 = vmatprep.subr.mxu0 0.0
        %1164 = vmatpush1.msra.mxu0 0.0
        %1165 = vmatprep.subr.mxu0 0.0
        %1166 = vmatpush1.msra.mxu0 0.0
        %1167 = vmatprep.subr.mxu0 0.0
        %1168 = vmatpush1.msra.mxu0 0.0
        %1169 = vmatprep.subr.mxu0 0.0
        %1170 = vmatpush1.msra.mxu0 0.0
        %1171 = vmatprep.subr.mxu0 0.0
        %1172 = vmatpush1.msra.mxu0 0.0
        %1173 = vmatprep.subr.mxu0 0.0
        %1174 = vmatpush1.msra.mxu0 0.0
        %1175 = vmatprep.subr.mxu0 0.0
        %1176 = vmatpush1.msra.mxu0 0.0
        %1177 = vmatprep.subr.mxu0 0.0
        %1178 = vmatpush1.msra.mxu0 0.0
        %1179 = vmatprep.subr.mxu0 0.0
        %1180 = vmatpush1.msra.mxu0 0.0
        %1181 = vmatprep.subr.mxu0 0.0
        %1182 = vmatpush1.msra.mxu0 0.0
        %1183 = vmatprep.subr.mxu0 0.0
        %1184 = vmatpush1.msra.mxu0 0.0
        %1185 = vmatprep.subr.mxu0 0.0
        %1186 = vmatpush1.msra.mxu0 0.0
        %1187 = vmatprep.subr.mxu0 0.0
        %1188 = vmatpush1.msra.mxu0 0.0
        %1189 = vmatprep.mubr.f32.mxu0 0.0
        %1190 = vmatmul.mubr.f32.gmra.mrb[0].mxu0 %v1123
        %v1191 = vpop.f32.mrb[0].mxu0
        %v1192 = vadd.f32 %v1119, %v1191
        %v1193 = vpop.f32.mrb[0].mxu0
        %1194 = vdwg.mxu0
        %v1195 = vmax.f32 %v1192, 0.0
        %v1196 = vld [vmem:[%s6] sm:$0xff]
        %v1197 = vld [vmem:[%s6 + $0x8] sm:$0xff]
        %v1198 = vld [vmem:[%s6 + $0x10] sm:$0xff]
        %v1199 = vld [vmem:[%s6 + $0x18] sm:$0xff]
        %v1200 = vld [vmem:[%s6 + $0x20] sm:$0xff]
        %v1201 = vld [vmem:[%s6 + $0x28] sm:$0xff]
        %v1202 = vld [vmem:[%s6 + $0x30] sm:$0xff]
        %v1203 = vld [vmem:[%s6 + $0x38] sm:$0xff]
        %v1204 = vld [vmem:[%s9] sm:$0xff]
        %v1205 = vld [vmem:[%s9 + $0x8] sm:$0xff]
        %v1206 = vld [vmem:[%s9 + $0x10] sm:$0xff]
        %v1207 = vld [vmem:[%s9 + $0x18] sm:$0xff]
        %v1208 = vld [vmem:[%s9 + $0x20] sm:$0xff]
        %v1209 = vld [vmem:[%s9 + $0x28] sm:$0xff]
        %v1210 = vld [vmem:[%s9 + $0x30] sm:$0xff]
        %v1211 = vld [vmem:[%s9 + $0x38] sm:$0xff]
        %v1213 = vsel %vm650, %v557, 0
        %1215 = vmatprep.subr.mxu0 0.0
        %1216 = vmatpush1.msra.mxu0 %v1204
        %1217 = vmatprep.subr.mxu0 0.0
        %1218 = vmatpush1.msra.mxu0 %v1205
        %1219 = vmatprep.subr.mxu0 0.0
        %1220 = vmatpush1.msra.mxu0 %v1206
        %1221 = vmatprep.subr.mxu0 0.0
        %1222 = vmatpush1.msra.mxu0 %v1207
        %1223 = vmatprep.subr.mxu0 0.0
        %1224 = vmatpush1.msra.mxu0 %v1208
        %1225 = vmatprep.subr.mxu0 0.0
        %1226 = vmatpush1.msra.mxu0 %v1209
        %1227 = vmatprep.subr.mxu0 0.0
        %1228 = vmatpush1.msra.mxu0 %v1210
        %1229 = vmatprep.subr.mxu0 0.0
        %1230 = vmatpush1.msra.mxu0 %v1211
        %1231 = vmatprep.subr.mxu0 0.0
        %1232 = vmatpush1.msra.mxu0 0.0
        %1233 = vmatprep.subr.mxu0 0.0
        %1234 = vmatpush1.msra.mxu0 0.0
        %1235 = vmatprep.subr.mxu0 0.0
        %1236 = vmatpush1.msra.mxu0 0.0
        %1237 = vmatprep.subr.mxu0 0.0
        %1238 = vmatpush1.msra.mxu0 0.0
        %1239 = vmatprep.subr.mxu0 0.0
        %1240 = vmatpush1.msra.mxu0 0.0
        %1241 = vmatprep.subr.mxu0 0.0
        %1242 = vmatpush1.msra.mxu0 0.0
        %1243 = vmatprep.subr.mxu0 0.0
        %1244 = vmatpush1.msra.mxu0 0.0
        %1245 = vmatprep.subr.mxu0 0.0
        %1246 = vmatpush1.msra.mxu0 0.0
        %1247 = vmatprep.subr.mxu0 0.0
        %1248 = vmatpush1.msra.mxu0 0.0
        %1249 = vmatprep.subr.mxu0 0.0
        %1250 = vmatpush1.msra.mxu0 0.0
        %1251 = vmatprep.subr.mxu0 0.0
        %1252 = vmatpush1.msra.mxu0 0.0
        %1253 = vmatprep.subr.mxu0 0.0
        %1254 = vmatpush1.msra.mxu0 0.0
        %1255 = vmatprep.subr.mxu0 0.0
        %1256 = vmatpush1.msra.mxu0 0.0
        %1257 = vmatprep.subr.mxu0 0.0
        %1258 = vmatpush1.msra.mxu0 0.0
        %1259 = vmatprep.subr.mxu0 0.0
        %1260 = vmatpush1.msra.mxu0 0.0
        %1261 = vmatprep.subr.mxu0 0.0
        %1262 = vmatpush1.msra.mxu0 0.0
        %1263 = vmatprep.subr.mxu0 0.0
        %1264 = vmatpush1.msra.mxu0 0.0
        %1265 = vmatprep.subr.mxu0 0.0
        %1266 = vmatpush1.msra.mxu0 0.0
        %1267 = vmatprep.subr.mxu0 0.0
        %1268 = vmatpush1.msra.mxu0 0.0
        %1269 = vmatprep.subr.mxu0 0.0
        %1270 = vmatpush1.msra.mxu0 0.0
        %1271 = vmatprep.subr.mxu0 0.0
        %1272 = vmatpush1.msra.mxu0 0.0
        %1273 = vmatprep.subr.mxu0 0.0
        %1274 = vmatpush1.msra.mxu0 0.0
        %1275 = vmatprep.subr.mxu0 0.0
        %1276 = vmatpush1.msra.mxu0 0.0
        %1277 = vmatprep.subr.mxu0 0.0
        %1278 = vmatpush1.msra.mxu0 0.0
        %1279 = vmatprep.mubr.f32.mxu0 0.0
        %1280 = vmatmul.mubr.f32.gmra.mrb[0].mxu0 %v1213
        %v1281 = vpop.f32.mrb[0].mxu0
        %v1282 = vadd.f32 0.0, %v1281
        %v1283 = vpop.f32.mrb[0].mxu0
        %1284 = vdwg.mxu0
        %v1286 = vsel %vm650, %v1195, 0
        %1288 = vmatprep.subr.mxu0 0.0
        %1289 = vmatpush1.msra.mxu0 %v1196
        %1290 = vmatprep.subr.mxu0 0.0
        %1291 = vmatpush1.msra.mxu0 %v1197
        %1292 = vmatprep.subr.mxu0 0.0
        %1293 = vmatpush1.msra.mxu0 %v1198
        %1294 = vmatprep.subr.mxu0 0.0
        %1295 = vmatpush1.msra.mxu0 %v1199
        %1296 = vmatprep.subr.mxu0 0.0
        %1297 = vmatpush1.msra.mxu0 %v1200
        %1298 = vmatprep.subr.mxu0 0.0
        %1299 = vmatpush1.msra.mxu0 %v1201
        %1300 = vmatprep.subr.mxu0 0.0
        %1301 = vmatpush1.msra.mxu0 %v1202
        %1302 = vmatprep.subr.mxu0 0.0
        %1303 = vmatpush1.msra.mxu0 %v1203
        %1304 = vmatprep.subr.mxu0 0.0
        %1305 = vmatpush1.msra.mxu0 0.0
        %1306 = vmatprep.subr.mxu0 0.0
        %1307 = vmatpush1.msra.mxu0 0.0
        %1308 = vmatprep.subr.mxu0 0.0
        %1309 = vmatpush1.msra.mxu0 0.0
        %1310 = vmatprep.subr.mxu0 0.0
        %1311 = vmatpush1.msra.mxu0 0.0
        %1312 = vmatprep.subr.mxu0 0.0
        %1313 = vmatpush1.msra.mxu0 0.0
        %1314 = vmatprep.subr.mxu0 0.0
        %1315 = vmatpush1.msra.mxu0 0.0
        %1316 = vmatprep.subr.mxu0 0.0
        %1317 = vmatpush1.msra.mxu0 0.0
        %1318 = vmatprep.subr.mxu0 0.0
        %1319 = vmatpush1.msra.mxu0 0.0
        %1320 = vmatprep.subr.mxu0 0.0
        %1321 = vmatpush1.msra.mxu0 0.0
        %1322 = vmatprep.subr.mxu0 0.0
        %1323 = vmatpush1.msra.mxu0 0.0
        %1324 = vmatprep.subr.mxu0 0.0
        %1325 = vmatpush1.msra.mxu0 0.0
        %1326 = vmatprep.subr.mxu0 0.0
        %1327 = vmatpush1.msra.mxu0 0.0
        %1328 = vmatprep.subr.mxu0 0.0
        %1329 = vmatpush1.msra.mxu0 0.0
        %1330 = vmatprep.subr.mxu0 0.0
        %1331 = vmatpush1.msra.mxu0 0.0
        %1332 = vmatprep.subr.mxu0 0.0
        %1333 = vmatpush1.msra.mxu0 0.0
        %1334 = vmatprep.subr.mxu0 0.0
        %1335 = vmatpush1.msra.mxu0 0.0
        %1336 = vmatprep.subr.mxu0 0.0
        %1337 = vmatpush1.msra.mxu0 0.0
        %1338 = vmatprep.subr.mxu0 0.0
        %1339 = vmatpush1.msra.mxu0 0.0
        %1340 = vmatprep.subr.mxu0 0.0
        %1341 = vmatpush1.msra.mxu0 0.0
        %1342 = vmatprep.subr.mxu0 0.0
        %1343 = vmatpush1.msra.mxu0 0.0
        %1344 = vmatprep.subr.mxu0 0.0
        %1345 = vmatpush1.msra.mxu0 0.0
        %1346 = vmatprep.subr.mxu0 0.0
        %1347 = vmatpush1.msra.mxu0 0.0
        %1348 = vmatprep.subr.mxu0 0.0
        %1349 = vmatpush1.msra.mxu0 0.0
        %1350 = vmatprep.subr.mxu0 0.0
        %1351 = vmatpush1.msra.mxu0 0.0
        %1352 = vmatprep.mubr.f32.mxu0 0.0
        %1353 = vmatmul.mubr.f32.gmra.mrb[0].mxu0 %v1286
        %v1354 = vpop.f32.mrb[0].mxu0
        %v1355 = vadd.f32 %v1282, %v1354
        %v1356 = vpop.f32.mrb[0].mxu0
        %1357 = vdwg.mxu0
        %v1358 = vld [vmem:[#allocation4] sm:$0x1]
        %v1360 = vlaneseq
        %v1361 = vshrl.u32 %v1360, 7
        %v1362 = vsub.s32 0, %v1361
        %v1363 = vrot.slane %v1358, %v1362
        %v1365 = vadd.f32 %v1355, %v1363
        %v1366 = vsub.f32 0.0, %v1365
        %v1367 = vmul.f32 %v1366, 1.442695
        %v1368 = vpow.pop %v1367
        %v1369 = vadd.f32 %v1368, 1.0
        %v1370 = vrcp.pop %v1369
        %v1371 = vmul.f32 1.0, %v1370
        %v1372 = vld [vmem:[%s7] sm:$0xff]
        %v1373 = vld [vmem:[%s7 + $0x8] sm:$0xff]
        %v1374 = vld [vmem:[%s7 + $0x10] sm:$0xff]
        %v1375 = vld [vmem:[%s7 + $0x18] sm:$0xff]
        %v1376 = vld [vmem:[%s7 + $0x20] sm:$0xff]
        %v1377 = vld [vmem:[%s7 + $0x28] sm:$0xff]
        %v1378 = vld [vmem:[%s7 + $0x30] sm:$0xff]
        %v1379 = vld [vmem:[%s7 + $0x38] sm:$0xff]
        %v1380 = vld [vmem:[%s10] sm:$0xff]
        %v1381 = vld [vmem:[%s10 + $0x8] sm:$0xff]
        %v1382 = vld [vmem:[%s10 + $0x10] sm:$0xff]
        %v1383 = vld [vmem:[%s10 + $0x18] sm:$0xff]
        %v1384 = vld [vmem:[%s10 + $0x20] sm:$0xff]
        %v1385 = vld [vmem:[%s10 + $0x28] sm:$0xff]
        %v1386 = vld [vmem:[%s10 + $0x30] sm:$0xff]
        %v1387 = vld [vmem:[%s10 + $0x38] sm:$0xff]
        %1388 = vmatprep.subr.mxu0 0.0
        %1389 = vmatpush1.msra.mxu0 %v1380
        %1390 = vmatprep.subr.mxu0 0.0
        %1391 = vmatpush1.msra.mxu0 %v1381
        %1392 = vmatprep.subr.mxu0 0.0
        %1393 = vmatpush1.msra.mxu0 %v1382
        %1394 = vmatprep.subr.mxu0 0.0
        %1395 = vmatpush1.msra.mxu0 %v1383
        %1396 = vmatprep.subr.mxu0 0.0
        %1397 = vmatpush1.msra.mxu0 %v1384
        %1398 = vmatprep.subr.mxu0 0.0
        %1399 = vmatpush1.msra.mxu0 %v1385
        %1400 = vmatprep.subr.mxu0 0.0
        %1401 = vmatpush1.msra.mxu0 %v1386
        %1402 = vmatprep.subr.mxu0 0.0
        %1403 = vmatpush1.msra.mxu0 %v1387
        %1404 = vmatprep.subr.mxu0 0.0
        %1405 = vmatpush1.msra.mxu0 0.0
        %1406 = vmatprep.subr.mxu0 0.0
        %1407 = vmatpush1.msra.mxu0 0.0
        %1408 = vmatprep.subr.mxu0 0.0
        %1409 = vmatpush1.msra.mxu0 0.0
        %1410 = vmatprep.subr.mxu0 0.0
        %1411 = vmatpush1.msra.mxu0 0.0
        %1412 = vmatprep.subr.mxu0 0.0
        %1413 = vmatpush1.msra.mxu0 0.0
        %1414 = vmatprep.subr.mxu0 0.0
        %1415 = vmatpush1.msra.mxu0 0.0
        %1416 = vmatprep.subr.mxu0 0.0
        %1417 = vmatpush1.msra.mxu0 0.0
        %1418 = vmatprep.subr.mxu0 0.0
        %1419 = vmatpush1.msra.mxu0 0.0
        %1420 = vmatprep.subr.mxu0 0.0
        %1421 = vmatpush1.msra.mxu0 0.0
        %1422 = vmatprep.subr.mxu0 0.0
        %1423 = vmatpush1.msra.mxu0 0.0
        %1424 = vmatprep.subr.mxu0 0.0
        %1425 = vmatpush1.msra.mxu0 0.0
        %1426 = vmatprep.subr.mxu0 0.0
        %1427 = vmatpush1.msra.mxu0 0.0
        %1428 = vmatprep.subr.mxu0 0.0
        %1429 = vmatpush1.msra.mxu0 0.0
        %1430 = vmatprep.subr.mxu0 0.0
        %1431 = vmatpush1.msra.mxu0 0.0
        %1432 = vmatprep.subr.mxu0 0.0
        %1433 = vmatpush1.msra.mxu0 0.0
        %1434 = vmatprep.subr.mxu0 0.0
        %1435 = vmatpush1.msra.mxu0 0.0
        %1436 = vmatprep.subr.mxu0 0.0
        %1437 = vmatpush1.msra.mxu0 0.0
        %1438 = vmatprep.subr.mxu0 0.0
        %1439 = vmatpush1.msra.mxu0 0.0
        %1440 = vmatprep.subr.mxu0 0.0
        %1441 = vmatpush1.msra.mxu0 0.0
        %1442 = vmatprep.subr.mxu0 0.0
        %1443 = vmatpush1.msra.mxu0 0.0
        %1444 = vmatprep.subr.mxu0 0.0
        %1445 = vmatpush1.msra.mxu0 0.0
        %1446 = vmatprep.subr.mxu0 0.0
        %1447 = vmatpush1.msra.mxu0 0.0
        %1448 = vmatprep.subr.mxu0 0.0
        %1449 = vmatpush1.msra.mxu0 0.0
        %1450 = vmatprep.subr.mxu0 0.0
        %1451 = vmatpush1.msra.mxu0 0.0
        %1452 = vmatprep.mubr.f32.mxu0 0.0
        %1453 = vmatmul.mubr.f32.gmra.mrb[0].mxu0 %v1213
        %v1454 = vpop.f32.mrb[0].mxu0
        %v1455 = vadd.f32 0.0, %v1454
        %v1456 = vpop.f32.mrb[0].mxu0
        %1457 = vdwg.mxu0
        %1458 = vmatprep.subr.mxu0 0.0
        %1459 = vmatpush1.msra.mxu0 %v1372
        %1460 = vmatprep.subr.mxu0 0.0
        %1461 = vmatpush1.msra.mxu0 %v1373
        %1462 = vmatprep.subr.mxu0 0.0
        %1463 = vmatpush1.msra.mxu0 %v1374
        %1464 = vmatprep.subr.mxu0 0.0
        %1465 = vmatpush1.msra.mxu0 %v1375
        %1466 = vmatprep.subr.mxu0 0.0
        %1467 = vmatpush1.msra.mxu0 %v1376
        %1468 = vmatprep.subr.mxu0 0.0
        %1469 = vmatpush1.msra.mxu0 %v1377
        %1470 = vmatprep.subr.mxu0 0.0
        %1471 = vmatpush1.msra.mxu0 %v1378
        %1472 = vmatprep.subr.mxu0 0.0
        %1473 = vmatpush1.msra.mxu0 %v1379
        %1474 = vmatprep.subr.mxu0 0.0
        %1475 = vmatpush1.msra.mxu0 0.0
        %1476 = vmatprep.subr.mxu0 0.0
        %1477 = vmatpush1.msra.mxu0 0.0
        %1478 = vmatprep.subr.mxu0 0.0
        %1479 = vmatpush1.msra.mxu0 0.0
        %1480 = vmatprep.subr.mxu0 0.0
        %1481 = vmatpush1.msra.mxu0 0.0
        %1482 = vmatprep.subr.mxu0 0.0
        %1483 = vmatpush1.msra.mxu0 0.0
        %1484 = vmatprep.subr.mxu0 0.0
        %1485 = vmatpush1.msra.mxu0 0.0
        %1486 = vmatprep.subr.mxu0 0.0
        %1487 = vmatpush1.msra.mxu0 0.0
        %1488 = vmatprep.subr.mxu0 0.0
        %1489 = vmatpush1.msra.mxu0 0.0
        %1490 = vmatprep.subr.mxu0 0.0
        %1491 = vmatpush1.msra.mxu0 0.0
        %1492 = vmatprep.subr.mxu0 0.0
        %1493 = vmatpush1.msra.mxu0 0.0
        %1494 = vmatprep.subr.mxu0 0.0
        %1495 = vmatpush1.msra.mxu0 0.0
        %1496 = vmatprep.subr.mxu0 0.0
        %1497 = vmatpush1.msra.mxu0 0.0
        %1498 = vmatprep.subr.mxu0 0.0
        %1499 = vmatpush1.msra.mxu0 0.0
        %1500 = vmatprep.subr.mxu0 0.0
        %1501 = vmatpush1.msra.mxu0 0.0
        %1502 = vmatprep.subr.mxu0 0.0
        %1503 = vmatpush1.msra.mxu0 0.0
        %1504 = vmatprep.subr.mxu0 0.0
        %1505 = vmatpush1.msra.mxu0 0.0
        %1506 = vmatprep.subr.mxu0 0.0
        %1507 = vmatpush1.msra.mxu0 0.0
        %1508 = vmatprep.subr.mxu0 0.0
        %1509 = vmatpush1.msra.mxu0 0.0
        %1510 = vmatprep.subr.mxu0 0.0
        %1511 = vmatpush1.msra.mxu0 0.0
        %1512 = vmatprep.subr.mxu0 0.0
        %1513 = vmatpush1.msra.mxu0 0.0
        %1514 = vmatprep.subr.mxu0 0.0
        %1515 = vmatpush1.msra.mxu0 0.0
        %1516 = vmatprep.subr.mxu0 0.0
        %1517 = vmatpush1.msra.mxu0 0.0
        %1518 = vmatprep.subr.mxu0 0.0
        %1519 = vmatpush1.msra.mxu0 0.0
        %1520 = vmatprep.subr.mxu0 0.0
        %1521 = vmatpush1.msra.mxu0 0.0
        %1522 = vmatprep.mubr.f32.mxu0 0.0
        %1523 = vmatmul.mubr.f32.gmra.mrb[0].mxu0 %v1286
        %v1524 = vpop.f32.mrb[0].mxu0
        %v1525 = vadd.f32 %v1455, %v1524
        %v1526 = vpop.f32.mrb[0].mxu0
        %1527 = vdwg.mxu0
        %v1528 = vld [vmem:[#allocation6] sm:$0x1]
        %v1530 = vlaneseq
        %v1531 = vshrl.u32 %v1530, 7
        %v1532 = vsub.s32 0, %v1531
        %v1533 = vrot.slane %v1528, %v1532
        %v1535 = vadd.f32 %v1525, %v1533
        %v1536 = vsub.f32 0.0, %v1535
        %v1537 = vmul.f32 %v1536, 1.442695
        %v1538 = vpow.pop %v1537
        %v1539 = vadd.f32 %v1538, 1.0
        %v1540 = vrcp.pop %v1539
        %v1541 = vmul.f32 1.0, %v1540
        %v1542 = vld [vmem:[%s8] sm:$0xff]
        %v1543 = vld [vmem:[%s8 + $0x8] sm:$0xff]
        %v1544 = vld [vmem:[%s8 + $0x10] sm:$0xff]
        %v1545 = vld [vmem:[%s8 + $0x18] sm:$0xff]
        %v1546 = vld [vmem:[%s8 + $0x20] sm:$0xff]
        %v1547 = vld [vmem:[%s8 + $0x28] sm:$0xff]
        %v1548 = vld [vmem:[%s8 + $0x30] sm:$0xff]
        %v1549 = vld [vmem:[%s8 + $0x38] sm:$0xff]
        %v1550 = vld [vmem:[#allocation7] sm:$0x1]
        %v1552 = vlaneseq
        %v1553 = vshrl.u32 %v1552, 7
        %v1554 = vsub.s32 0, %v1553
        %v1555 = vrot.slane %v1550, %v1554
        %1557 = vmatprep.subr.mxu0 0.0
        %1558 = vmatpush1.msra.mxu0 %v1542
        %1559 = vmatprep.subr.mxu0 0.0
        %1560 = vmatpush1.msra.mxu0 %v1543
        %1561 = vmatprep.subr.mxu0 0.0
        %1562 = vmatpush1.msra.mxu0 %v1544
        %1563 = vmatprep.subr.mxu0 0.0
        %1564 = vmatpush1.msra.mxu0 %v1545
        %1565 = vmatprep.subr.mxu0 0.0
        %1566 = vmatpush1.msra.mxu0 %v1546
        %1567 = vmatprep.subr.mxu0 0.0
        %1568 = vmatpush1.msra.mxu0 %v1547
        %1569 = vmatprep.subr.mxu0 0.0
        %1570 = vmatpush1.msra.mxu0 %v1548
        %1571 = vmatprep.subr.mxu0 0.0
        %1572 = vmatpush1.msra.mxu0 %v1549
        %1573 = vmatprep.subr.mxu0 0.0
        %1574 = vmatpush1.msra.mxu0 0.0
        %1575 = vmatprep.subr.mxu0 0.0
        %1576 = vmatpush1.msra.mxu0 0.0
        %1577 = vmatprep.subr.mxu0 0.0
        %1578 = vmatpush1.msra.mxu0 0.0
        %1579 = vmatprep.subr.mxu0 0.0
        %1580 = vmatpush1.msra.mxu0 0.0
        %1581 = vmatprep.subr.mxu0 0.0
        %1582 = vmatpush1.msra.mxu0 0.0
        %1583 = vmatprep.subr.mxu0 0.0
        %1584 = vmatpush1.msra.mxu0 0.0
        %1585 = vmatprep.subr.mxu0 0.0
        %1586 = vmatpush1.msra.mxu0 0.0
        %1587 = vmatprep.subr.mxu0 0.0
        %1588 = vmatpush1.msra.mxu0 0.0
        %1589 = vmatprep.subr.mxu0 0.0
        %1590 = vmatpush1.msra.mxu0 0.0
        %1591 = vmatprep.subr.mxu0 0.0
        %1592 = vmatpush1.msra.mxu0 0.0
        %1593 = vmatprep.subr.mxu0 0.0
        %1594 = vmatpush1.msra.mxu0 0.0
        %1595 = vmatprep.subr.mxu0 0.0
        %1596 = vmatpush1.msra.mxu0 0.0
        %1597 = vmatprep.subr.mxu0 0.0
        %1598 = vmatpush1.msra.mxu0 0.0
        %1599 = vmatprep.subr.mxu0 0.0
        %1600 = vmatpush1.msra.mxu0 0.0
        %1601 = vmatprep.subr.mxu0 0.0
        %1602 = vmatpush1.msra.mxu0 0.0
        %1603 = vmatprep.subr.mxu0 0.0
        %1604 = vmatpush1.msra.mxu0 0.0
        %1605 = vmatprep.subr.mxu0 0.0
        %1606 = vmatpush1.msra.mxu0 0.0
        %1607 = vmatprep.subr.mxu0 0.0
        %1608 = vmatpush1.msra.mxu0 0.0
        %1609 = vmatprep.subr.mxu0 0.0
        %1610 = vmatpush1.msra.mxu0 0.0
        %1611 = vmatprep.subr.mxu0 0.0
        %1612 = vmatpush1.msra.mxu0 0.0
        %1613 = vmatprep.subr.mxu0 0.0
        %1614 = vmatpush1.msra.mxu0 0.0
        %1615 = vmatprep.subr.mxu0 0.0
        %1616 = vmatpush1.msra.mxu0 0.0
        %1617 = vmatprep.subr.mxu0 0.0
        %1618 = vmatpush1.msra.mxu0 0.0
        %1619 = vmatprep.subr.mxu0 0.0
        %1620 = vmatpush1.msra.mxu0 0.0
        %1621 = vmatprep.mubr.f32.mxu0 0.0
        %1622 = vmatmul.mubr.f32.gmra.mrb[0].mxu0 %v1286
        %v1623 = vpop.f32.mrb[0].mxu0
        %v1624 = vadd.f32 %v1555, %v1623
        %v1625 = vpop.f32.mrb[0].mxu0
        %1626 = vdwg.mxu0
        %v1627 = vld [vmem:[%s11] sm:$0xff]
        %v1628 = vld [vmem:[%s11 + $0x8] sm:$0xff]
        %v1629 = vld [vmem:[%s11 + $0x10] sm:$0xff]
        %v1630 = vld [vmem:[%s11 + $0x18] sm:$0xff]
        %v1631 = vld [vmem:[%s11 + $0x20] sm:$0xff]
        %v1632 = vld [vmem:[%s11 + $0x28] sm:$0xff]
        %v1633 = vld [vmem:[%s11 + $0x30] sm:$0xff]
        %v1634 = vld [vmem:[%s11 + $0x38] sm:$0xff]
        %v1635 = vld [vmem:[#allocation9] sm:$0x1]
        %v1637 = vlaneseq
        %v1638 = vshrl.u32 %v1637, 7
        %v1639 = vsub.s32 0, %v1638
        %v1640 = vrot.slane %v1635, %v1639
        %1642 = vmatprep.subr.mxu0 0.0
        %1643 = vmatpush1.msra.mxu0 %v1627
        %1644 = vmatprep.subr.mxu0 0.0
        %1645 = vmatpush1.msra.mxu0 %v1628
        %1646 = vmatprep.subr.mxu0 0.0
        %1647 = vmatpush1.msra.mxu0 %v1629
        %1648 = vmatprep.subr.mxu0 0.0
        %1649 = vmatpush1.msra.mxu0 %v1630
        %1650 = vmatprep.subr.mxu0 0.0
        %1651 = vmatpush1.msra.mxu0 %v1631
        %1652 = vmatprep.subr.mxu0 0.0
        %1653 = vmatpush1.msra.mxu0 %v1632
        %1654 = vmatprep.subr.mxu0 0.0
        %1655 = vmatpush1.msra.mxu0 %v1633
        %1656 = vmatprep.subr.mxu0 0.0
        %1657 = vmatpush1.msra.mxu0 %v1634
        %1658 = vmatprep.subr.mxu0 0.0
        %1659 = vmatpush1.msra.mxu0 0.0
        %1660 = vmatprep.subr.mxu0 0.0
        %1661 = vmatpush1.msra.mxu0 0.0
        %1662 = vmatprep.subr.mxu0 0.0
        %1663 = vmatpush1.msra.mxu0 0.0
        %1664 = vmatprep.subr.mxu0 0.0
        %1665 = vmatpush1.msra.mxu0 0.0
        %1666 = vmatprep.subr.mxu0 0.0
        %1667 = vmatpush1.msra.mxu0 0.0
        %1668 = vmatprep.subr.mxu0 0.0
        %1669 = vmatpush1.msra.mxu0 0.0
        %1670 = vmatprep.subr.mxu0 0.0
        %1671 = vmatpush1.msra.mxu0 0.0
        %1672 = vmatprep.subr.mxu0 0.0
        %1673 = vmatpush1.msra.mxu0 0.0
        %1674 = vmatprep.subr.mxu0 0.0
        %1675 = vmatpush1.msra.mxu0 0.0
        %1676 = vmatprep.subr.mxu0 0.0
        %1677 = vmatpush1.msra.mxu0 0.0
        %1678 = vmatprep.subr.mxu0 0.0
        %1679 = vmatpush1.msra.mxu0 0.0
        %1680 = vmatprep.subr.mxu0 0.0
        %1681 = vmatpush1.msra.mxu0 0.0
        %1682 = vmatprep.subr.mxu0 0.0
        %1683 = vmatpush1.msra.mxu0 0.0
        %1684 = vmatprep.subr.mxu0 0.0
        %1685 = vmatpush1.msra.mxu0 0.0
        %1686 = vmatprep.subr.mxu0 0.0
        %1687 = vmatpush1.msra.mxu0 0.0
        %1688 = vmatprep.subr.mxu0 0.0
        %1689 = vmatpush1.msra.mxu0 0.0
        %1690 = vmatprep.subr.mxu0 0.0
        %1691 = vmatpush1.msra.mxu0 0.0
        %1692 = vmatprep.subr.mxu0 0.0
        %1693 = vmatpush1.msra.mxu0 0.0
        %1694 = vmatprep.subr.mxu0 0.0
        %1695 = vmatpush1.msra.mxu0 0.0
        %1696 = vmatprep.subr.mxu0 0.0
        %1697 = vmatpush1.msra.mxu0 0.0
        %1698 = vmatprep.subr.mxu0 0.0
        %1699 = vmatpush1.msra.mxu0 0.0
        %1700 = vmatprep.subr.mxu0 0.0
        %1701 = vmatpush1.msra.mxu0 0.0
        %1702 = vmatprep.subr.mxu0 0.0
        %1703 = vmatpush1.msra.mxu0 0.0
        %1704 = vmatprep.subr.mxu0 0.0
        %1705 = vmatpush1.msra.mxu0 0.0
        %1706 = vmatprep.mubr.f32.mxu0 0.0
        %1707 = vmatmul.mubr.f32.gmra.mrb[0].mxu0 %v1213
        %v1708 = vpop.f32.mrb[0].mxu0
        %v1709 = vadd.f32 %v1640, %v1708
        %v1710 = vpop.f32.mrb[0].mxu0
        %1711 = vdwg.mxu0
        %v1712 = vmul.f32 %v1371, %v1709
        %v1713 = vadd.f32 %v1624, %v1712
        %v1714 = vtanh.pop %v1713
        %v1715 = vsub.f32 1.0, %v1541
        %v1716 = vmul.f32 %v1715, %v1714
        %v1717 = vmul.f32 %v1541, %v557
        %v1718 = vadd.f32 %v1716, %v1717
        %1719 = vst.msk [vmem:[%s16] sm:$0xff] %vm650, %v1718
        // Predicated region
        $region109: #{mpnn_forward.4} parent=83 // pred_check
          %p1720 = pneg %p379
        $region110: #{mpnn_forward.4} parent=83 // pred_check_branch
          %1722 = sbr.rel (%p1720) target = $region112
        $region111: #{mpnn_forward.4} parent=83 // pred_region
          _
        $region112: #{mpnn_forward.4} parent=83 // pred_fallthru
          _
        // Predicated region
        $region113: #{mpnn_forward.4} parent=83 // pred_check
          %p1723 = pneg %p379
        $region114: #{mpnn_forward.4} parent=83 // pred_check_branch
          %1725 = sbr.rel (%p1723) target = $region116
        $region115: #{mpnn_forward.4} parent=83 // pred_region
          _
        $region116: #{mpnn_forward.4} parent=83 // pred_fallthru
          _
      $region84: #{mpnn_forward.4} parent=5 // pred_fallthru
        _
      %p1726 = scmp.le.s32.totalorder 2, %s25
      // Predicated region
      $region117: #{mpnn_forward.4} parent=5 // pred_check
        %p1727 = pneg %p1726
      $region118: #{mpnn_forward.4} parent=5 // pred_check_branch
        %1729 = sbr.rel (%p1727) target = $region120
      $region119: #{mpnn_forward.4} parent=5 // pred_region
        %s1730 = ssub.s32 %s25, 2
      $region120: #{mpnn_forward.4} parent=5 // pred_fallthru
        _
    $region6: #{mpnn_forward.4} parent=1 // loop_footer
      %s29 = sadd.s32 1, %s25
    $region7: #{mpnn_forward.4} parent=1 // loop_footer_branch
      %24 = sbr.rel target = $region3
    $region8: #{mpnn_forward.4} parent=1 // loop_exit
      _
    %1731 = vsyncpa [#allocation3], 1
    %s1732 = scalar_lea.sflag [#allocation3], 1
    %1733 = vsyncpa %s1732, 1
    %1734 = vsyncpa [#allocation5], 1
    %1735 = vsyncpa [#allocation8], 1

// kernel: mpnn_forward.3
$region0: #{mpnn_forward.3}
  #allocation0 [shape = 'u32[]', space=smem, size = 0x4, offset = 0x4, fixed_abs, tag = 'smem constant byte address 0x4 - core index']
  #allocation1 [shape = 'u32[144,128]{1,0:T(1,128)}', space=vmem, size = 0x12000, scoped, tag = 'internal scratch']
  #allocation2 [shape = 'f32[1,1]{1,0:T(1,128)S(1)}', space=vmem, size = 0x200, scoped, tag = 'scoped memory for mpnn_forward.3']
  %s0 = inlined_call_operand.vmem [shape: f32[8,16], index: 0, kind: input, shape index: {}]
  %s1 = inlined_call_operand.vmem [shape: f32[16,64], index: 1, kind: input, shape index: {}]
  %s2 = inlined_call_operand.vmem [shape: f32[1,64], index: 2, kind: input, shape index: {}]
  %s3 = inlined_call_operand.vmem [shape: f32[16,8], index: 3, kind: input, shape index: {}]
  %s4 = inlined_call_operand.vmem [shape: f32[16,8], index: 4, kind: input, shape index: {}]
  %s5 = inlined_call_operand.vmem [shape: f32[8,1], index: 5, kind: input, shape index: {}]
  %s6 = inlined_call_operand.vmem [shape: f32[64,1], index: 6, kind: input, shape index: {}]
  %s7 = inlined_call_operand.vmem [shape: f32[64,1], index: 7, kind: input, shape index: {}]
  %s8 = inlined_call_operand.<no memory space> [shape: f32[1,1], index: 8, kind: input, shape index: {}]
  %s9 = inlined_call_operand.vmem [shape: f32[16,10], index: 9, kind: input, shape index: {}]
  %s10 = inlined_call_operand.hbm [shape: f32[10,4096], index: 10, kind: input, shape index: {}]
  %s11 = inlined_call_operand.vmem [shape: f32[1,4096], index: 11, kind: input, shape index: {}]
  %s12 = inlined_call_operand.vmem [shape: f32[1,4096], index: 12, kind: input, shape index: {}]
  %s13 = inlined_call_operand.vmem [shape: f32[8,64], index: 13, kind: output, shape index: {0}]
  %s14 = inlined_call_operand.vmem [shape: f32[16,4096], index: 14, kind: output, shape index: {1}]
  %15 = xla_tuple %s13, %s14
  %s16 = sld [smem:[#allocation0]]
  $region74: #{mpnn_forward.3} parent=0
    _
  %s18 = ssub.s32 1, %s16
  %s19 = scalar_select 0, %s18, %s16
  %v20 = vstv %s8
  %21 = vst [vmem:[#allocation2] sm:$0x1] %v20
  $region1: #{mpnn_forward.3} parent=0
    #allocation3 [shape = 'u8[262144]{0}', space=vmem, size = 0x40000, scoped, tag = 'input window, operand 10, single buffered']
    #allocation4 [shape = 's32[1]{0}', space=sflag, size = 0x4, scoped, tag = 'scoped memory for mpnn_forward.3']
    %22 = vsyncpa [#allocation4], 0
    // Predicated region
    $region2: #{mpnn_forward.3} parent=1 // pred_check
      _
    $region3: #{mpnn_forward.3} parent=1 // pred_check_branch
      %24 = sbr.rel (0) target = $region5
    $region4: #{mpnn_forward.3} parent=1 // pred_region
      _
    $region5: #{mpnn_forward.3} parent=1 // pred_fallthru
      _
    // Predicated region
    $region6: #{mpnn_forward.3} parent=1 // pred_check
      _
    $region7: #{mpnn_forward.3} parent=1 // pred_check_branch
      %26 = sbr.rel (0) target = $region9
    $region8: #{mpnn_forward.3} parent=1 // pred_region
      _
    $region9: #{mpnn_forward.3} parent=1 // pred_fallthru
      _
    // Predicated region
    $region10: #{mpnn_forward.3} parent=1 // pred_check
      _
    $region11: #{mpnn_forward.3} parent=1 // pred_check_branch
      %28 = sbr.rel (0) target = $region13
    $region12: #{mpnn_forward.3} parent=1 // pred_region
      _
    $region13: #{mpnn_forward.3} parent=1 // pred_fallthru
      _
    // Predicated region
    $region14: #{mpnn_forward.3} parent=1 // pred_check
      _
    $region15: #{mpnn_forward.3} parent=1 // pred_check_branch
      %30 = sbr.rel (0) target = $region17
    $region16: #{mpnn_forward.3} parent=1 // pred_region
      _
    $region17: #{mpnn_forward.3} parent=1 // pred_fallthru
      _
    // Predicated region
    $region18: #{mpnn_forward.3} parent=1 // pred_check
      _
    $region19: #{mpnn_forward.3} parent=1 // pred_check_branch
      %32 = sbr.rel (0) target = $region21
    $region20: #{mpnn_forward.3} parent=1 // pred_region
      _
    $region21: #{mpnn_forward.3} parent=1 // pred_fallthru
      _
    // Predicated region
    $region22: #{mpnn_forward.3} parent=1 // pred_check
      _
    $region23: #{mpnn_forward.3} parent=1 // pred_check_branch
      %34 = sbr.rel (0) target = $region25
    $region24: #{mpnn_forward.3} parent=1 // pred_region
      _
    $region25: #{mpnn_forward.3} parent=1 // pred_fallthru
      _
    // Predicated region
    $region26: #{mpnn_forward.3} parent=1 // pred_check
      _
    $region27: #{mpnn_forward.3} parent=1 // pred_check_branch
      %36 = sbr.rel (0) target = $region29
    $region28: #{mpnn_forward.3} parent=1 // pred_region
      _
    $region29: #{mpnn_forward.3} parent=1 // pred_fallthru
      _
    // Predicated region
    $region30: #{mpnn_forward.3} parent=1 // pred_check
      _
    $region31: #{mpnn_forward.3} parent=1 // pred_check_branch
      %38 = sbr.rel (0) target = $region33
    $region32: #{mpnn_forward.3} parent=1 // pred_region
      _
    $region33: #{mpnn_forward.3} parent=1 // pred_fallthru
      _
    // Predicated region
    $region34: #{mpnn_forward.3} parent=1 // pred_check
      _
    $region35: #{mpnn_forward.3} parent=1 // pred_check_branch
      %40 = sbr.rel (0) target = $region37
    $region36: #{mpnn_forward.3} parent=1 // pred_region
      _
    $region37: #{mpnn_forward.3} parent=1 // pred_fallthru
      _
    // Predicated region
    $region38: #{mpnn_forward.3} parent=1 // pred_check
      _
    $region39: #{mpnn_forward.3} parent=1 // pred_check_branch
      %42 = sbr.rel (0) target = $region41
    $region40: #{mpnn_forward.3} parent=1 // pred_region
      _
    $region41: #{mpnn_forward.3} parent=1 // pred_fallthru
      _
    // Predicated region
    $region42: #{mpnn_forward.3} parent=1 // pred_check
      _
    $region43: #{mpnn_forward.3} parent=1 // pred_check_branch
      %44 = sbr.rel (0) target = $region45
    $region44: #{mpnn_forward.3} parent=1 // pred_region
      %s46 = ssub.s32 8192, 8192
      %47 = vsyncadd [#allocation4], %s46
      %s48 = sshll.u32 [#allocation3], 4
      %s49 = int_to_ptr.vmem [resolvable:$true] %s48
      %54 = dma.hbm_to_vmem [thread:$0]  %s10, 8192, %s49, [#allocation4], 4096, 4096, 256
    $region45: #{mpnn_forward.3} parent=1 // pred_fallthru
      _
    // Predicated region
    $region46: #{mpnn_forward.3} parent=1 // pred_check
      _
    $region47: #{mpnn_forward.3} parent=1 // pred_check_branch
      %56 = sbr.rel (0) target = $region49
    $region48: #{mpnn_forward.3} parent=1 // pred_region
      _
    $region49: #{mpnn_forward.3} parent=1 // pred_fallthru
      _
    // Predicated region
    $region50: #{mpnn_forward.3} parent=1 // pred_check
      _
    $region51: #{mpnn_forward.3} parent=1 // pred_check_branch
      %58 = sbr.rel (0) target = $region53
    $region52: #{mpnn_forward.3} parent=1 // pred_region
      _
    $region53: #{mpnn_forward.3} parent=1 // pred_fallthru
      _
    // Predicated region
    $region54: #{mpnn_forward.3} parent=1 // pred_check
      _
    $region55: #{mpnn_forward.3} parent=1 // pred_check_branch
      %60 = sbr.rel (0) target = $region57
    $region56: #{mpnn_forward.3} parent=1 // pred_region
      %61 = dma.done [#allocation4], 8192
    $region57: #{mpnn_forward.3} parent=1 // pred_fallthru
      _
    %v62 = vld [vmem:[%s0] sm:$0xff]
    %v63 = vld [vmem:[%s1] sm:$0xff]
    %v64 = vld [vmem:[%s1 + $0x8] sm:$0xff]
    %v65 = vld [vmem:[%s2] sm:$0x1]
    %v67 = vlaneseq
    %v68 = vshrl.u32 %v67, 7
    %v69 = vsub.s32 0, %v68
    %v70 = vrot.slane %v65, %v69
    %vm72 = vcmask 130048
    %v74 = vsel %vm72, %v62, 0
    %76 = vmatprep.subr.mxu0 0.0
    %77 = vmatpush1.msra.mxu0 %v63
    %78 = vmatprep.subr.mxu0 0.0
    %79 = vmatpush1.msra.mxu0 %v64
    %80 = vmatprep.subr.mxu0 0.0
    %81 = vmatpush1.msra.mxu0 0.0
    %82 = vmatprep.subr.mxu0 0.0
    %83 = vmatpush1.msra.mxu0 0.0
    %84 = vmatprep.subr.mxu0 0.0
    %85 = vmatpush1.msra.mxu0 0.0
    %86 = vmatprep.subr.mxu0 0.0
    %87 = vmatpush1.msra.mxu0 0.0
    %88 = vmatprep.subr.mxu0 0.0
    %89 = vmatpush1.msra.mxu0 0.0
    %90 = vmatprep.subr.mxu0 0.0
    %91 = vmatpush1.msra.mxu0 0.0
    %92 = vmatprep.subr.mxu0 0.0
    %93 = vmatpush1.msra.mxu0 0.0
    %94 = vmatprep.subr.mxu0 0.0
    %95 = vmatpush1.msra.mxu0 0.0
    %96 = vmatprep.subr.mxu0 0.0
    %97 = vmatpush1.msra.mxu0 0.0
    %98 = vmatprep.subr.mxu0 0.0
    %99 = vmatpush1.msra.mxu0 0.0
    %100 = vmatprep.subr.mxu0 0.0
    %101 = vmatpush1.msra.mxu0 0.0
    %102 = vmatprep.subr.mxu0 0.0
    %103 = vmatpush1.msra.mxu0 0.0
    %104 = vmatprep.subr.mxu0 0.0
    %105 = vmatpush1.msra.mxu0 0.0
    %106 = vmatprep.subr.mxu0 0.0
    %107 = vmatpush1.msra.mxu0 0.0
    %108 = vmatprep.subr.mxu0 0.0
    %109 = vmatpush1.msra.mxu0 0.0
    %110 = vmatprep.subr.mxu0 0.0
    %111 = vmatpush1.msra.mxu0 0.0
    %112 = vmatprep.subr.mxu0 0.0
    %113 = vmatpush1.msra.mxu0 0.0
    %114 = vmatprep.subr.mxu0 0.0
    %115 = vmatpush1.msra.mxu0 0.0
    %116 = vmatprep.subr.mxu0 0.0
    %117 = vmatpush1.msra.mxu0 0.0
    %118 = vmatprep.subr.mxu0 0.0
    %119 = vmatpush1.msra.mxu0 0.0
    %120 = vmatprep.subr.mxu0 0.0
    %121 = vmatpush1.msra.mxu0 0.0
    %122 = vmatprep.subr.mxu0 0.0
    %123 = vmatpush1.msra.mxu0 0.0
    %124 = vmatprep.subr.mxu0 0.0
    %125 = vmatpush1.msra.mxu0 0.0
    %126 = vmatprep.subr.mxu0 0.0
    %127 = vmatpush1.msra.mxu0 0.0
    %128 = vmatprep.subr.mxu0 0.0
    %129 = vmatpush1.msra.mxu0 0.0
    %130 = vmatprep.subr.mxu0 0.0
    %131 = vmatpush1.msra.mxu0 0.0
    %132 = vmatprep.subr.mxu0 0.0
    %133 = vmatpush1.msra.mxu0 0.0
    %134 = vmatprep.subr.mxu0 0.0
    %135 = vmatpush1.msra.mxu0 0.0
    %136 = vmatprep.subr.mxu0 0.0
    %137 = vmatpush1.msra.mxu0 0.0
    %138 = vmatprep.subr.mxu0 0.0
    %139 = vmatpush1.msra.mxu0 0.0
    %140 = vmatprep.mubr.f32.mxu0 0.0
    %141 = vmatmul.mubr.f32.gmra.mrb[0].mxu0 %v74
    %v142 = vpop.f32.mrb[0].mxu0
    %v143 = vadd.f32 %v70, %v142
    %v144 = vpop.f32.mrb[0].mxu0
    %145 = vdwg.mxu0
    %v146 = vmax.f32 %v143, 0.0
    %vm147 = vcmask 523264
    %148 = vst.msk [vmem:[%s13] sm:$0xff] %vm147, %v146
    %v149 = vld [vmem:[%s3] sm:$0xff]
    %v150 = vld [vmem:[%s3 + $0x8] sm:$0xff]
    %v151 = vld [vmem:[%s4] sm:$0xff]
    %v152 = vld [vmem:[%s4 + $0x8] sm:$0xff]
    %vm153 = vcmask 64512
    %v155 = vsel %vm153, %v149, 0
    %v158 = vsel %vm153, %v150, 0
    %160 = vmatprep.subr.mxu0 0.0
    %161 = vmatpush1.msra.mxu0 %v146
    %162 = vmatprep.subr.mxu0 0.0
    %163 = vmatpush1.msra.mxu0 0.0
    %164 = vmatprep.subr.mxu0 0.0
    %165 = vmatpush1.msra.mxu0 0.0
    %166 = vmatprep.subr.mxu0 0.0
    %167 = vmatpush1.msra.mxu0 0.0
    %168 = vmatprep.subr.mxu0 0.0
    %169 = vmatpush1.msra.mxu0 0.0
    %170 = vmatprep.subr.mxu0 0.0
    %171 = vmatpush1.msra.mxu0 0.0
    %172 = vmatprep.subr.mxu0 0.0
    %173 = vmatpush1.msra.mxu0 0.0
    %174 = vmatprep.subr.mxu0 0.0
    %175 = vmatpush1.msra.mxu0 0.0
    %176 = vmatprep.subr.mxu0 0.0
    %177 = vmatpush1.msra.mxu0 0.0
    %178 = vmatprep.subr.mxu0 0.0
    %179 = vmatpush1.msra.mxu0 0.0
    %180 = vmatprep.subr.mxu0 0.0
    %181 = vmatpush1.msra.mxu0 0.0
    %182 = vmatprep.subr.mxu0 0.0
    %183 = vmatpush1.msra.mxu0 0.0
    %184 = vmatprep.subr.mxu0 0.0
    %185 = vmatpush1.msra.mxu0 0.0
    %186 = vmatprep.subr.mxu0 0.0
    %187 = vmatpush1.msra.mxu0 0.0
    %188 = vmatprep.subr.mxu0 0.0
    %189 = vmatpush1.msra.mxu0 0.0
    %190 = vmatprep.subr.mxu0 0.0
    %191 = vmatpush1.msra.mxu0 0.0
    %192 = vmatprep.subr.mxu0 0.0
    %193 = vmatpush1.msra.mxu0 0.0
    %194 = vmatprep.subr.mxu0 0.0
    %195 = vmatpush1.msra.mxu0 0.0
    %196 = vmatprep.subr.mxu0 0.0
    %197 = vmatpush1.msra.mxu0 0.0
    %198 = vmatprep.subr.mxu0 0.0
    %199 = vmatpush1.msra.mxu0 0.0
    %200 = vmatprep.subr.mxu0 0.0
    %201 = vmatpush1.msra.mxu0 0.0
    %202 = vmatprep.subr.mxu0 0.0
    %203 = vmatpush1.msra.mxu0 0.0
    %204 = vmatprep.subr.mxu0 0.0
    %205 = vmatpush1.msra.mxu0 0.0
    %206 = vmatprep.subr.mxu0 0.0
    %207 = vmatpush1.msra.mxu0 0.0
    %208 = vmatprep.subr.mxu0 0.0
    %209 = vmatpush1.msra.mxu0 0.0
    %210 = vmatprep.subr.mxu0 0.0
    %211 = vmatpush1.msra.mxu0 0.0
    %212 = vmatprep.subr.mxu0 0.0
    %213 = vmatpush1.msra.mxu0 0.0
    %214 = vmatprep.subr.mxu0 0.0
    %215 = vmatpush1.msra.mxu0 0.0
    %216 = vmatprep.subr.mxu0 0.0
    %217 = vmatpush1.msra.mxu0 0.0
    %218 = vmatprep.subr.mxu0 0.0
    %219 = vmatpush1.msra.mxu0 0.0
    %220 = vmatprep.subr.mxu0 0.0
    %221 = vmatpush1.msra.mxu0 0.0
    %222 = vmatprep.subr.mxu0 0.0
    %223 = vmatpush1.msra.mxu0 0.0
    %224 = vmatprep.mubr.f32.mxu0 0.0
    %225 = vmatmul.mubr.f32.gmra.mrb[0].mxu0 %v155
    %v226 = vpop.f32.mrb[0].mxu0
    %v227 = vadd.f32 0.0, %v226
    %v228 = vpop.f32.mrb[0].mxu0
    %229 = vmatprep.mubr.f32.mxu0 0.0
    %230 = vmatmul.mubr.f32.gmra.mrb[0].mxu0 %v158
    %v231 = vpop.f32.mrb[0].mxu0
    %v232 = vadd.f32 0.0, %v231
    %v233 = vpop.f32.mrb[0].mxu0
    %234 = vdwg.mxu0
    %v236 = vsel %vm153, %v151, 0
    %v239 = vsel %vm153, %v152, 0
    %241 = vmatprep.subr.mxu0 0.0
    %242 = vmatpush1.msra.mxu0 %v146
    %243 = vmatprep.subr.mxu0 0.0
    %244 = vmatpush1.msra.mxu0 0.0
    %245 = vmatprep.subr.mxu0 0.0
    %246 = vmatpush1.msra.mxu0 0.0
    %247 = vmatprep.subr.mxu0 0.0
    %248 = vmatpush1.msra.mxu0 0.0
    %249 = vmatprep.subr.mxu0 0.0
    %250 = vmatpush1.msra.mxu0 0.0
    %251 = vmatprep.subr.mxu0 0.0
    %252 = vmatpush1.msra.mxu0 0.0
    %253 = vmatprep.subr.mxu0 0.0
    %254 = vmatpush1.msra.mxu0 0.0
    %255 = vmatprep.subr.mxu0 0.0
    %256 = vmatpush1.msra.mxu0 0.0
    %257 = vmatprep.subr.mxu0 0.0
    %258 = vmatpush1.msra.mxu0 0.0
    %259 = vmatprep.subr.mxu0 0.0
    %260 = vmatpush1.msra.mxu0 0.0
    %261 = vmatprep.subr.mxu0 0.0
    %262 = vmatpush1.msra.mxu0 0.0
    %263 = vmatprep.subr.mxu0 0.0
    %264 = vmatpush1.msra.mxu0 0.0
    %265 = vmatprep.subr.mxu0 0.0
    %266 = vmatpush1.msra.mxu0 0.0
    %267 = vmatprep.subr.mxu0 0.0
    %268 = vmatpush1.msra.mxu0 0.0
    %269 = vmatprep.subr.mxu0 0.0
    %270 = vmatpush1.msra.mxu0 0.0
    %271 = vmatprep.subr.mxu0 0.0
    %272 = vmatpush1.msra.mxu0 0.0
    %273 = vmatprep.subr.mxu0 0.0
    %274 = vmatpush1.msra.mxu0 0.0
    %275 = vmatprep.subr.mxu0 0.0
    %276 = vmatpush1.msra.mxu0 0.0
    %277 = vmatprep.subr.mxu0 0.0
    %278 = vmatpush1.msra.mxu0 0.0
    %279 = vmatprep.subr.mxu0 0.0
    %280 = vmatpush1.msra.mxu0 0.0
    %281 = vmatprep.subr.mxu0 0.0
    %282 = vmatpush1.msra.mxu0 0.0
    %283 = vmatprep.subr.mxu0 0.0
    %284 = vmatpush1.msra.mxu0 0.0
    %285 = vmatprep.subr.mxu0 0.0
    %286 = vmatpush1.msra.mxu0 0.0
    %287 = vmatprep.subr.mxu0 0.0
    %288 = vmatpush1.msra.mxu0 0.0
    %289 = vmatprep.subr.mxu0 0.0
    %290 = vmatpush1.msra.mxu0 0.0
    %291 = vmatprep.subr.mxu0 0.0
    %292 = vmatpush1.msra.mxu0 0.0
    %293 = vmatprep.subr.mxu0 0.0
    %294 = vmatpush1.msra.mxu0 0.0
    %295 = vmatprep.subr.mxu0 0.0
    %296 = vmatpush1.msra.mxu0 0.0
    %297 = vmatprep.subr.mxu0 0.0
    %298 = vmatpush1.msra.mxu0 0.0
    %299 = vmatprep.subr.mxu0 0.0
    %300 = vmatpush1.msra.mxu0 0.0
    %301 = vmatprep.subr.mxu0 0.0
    %302 = vmatpush1.msra.mxu0 0.0
    %303 = vmatprep.subr.mxu0 0.0
    %304 = vmatpush1.msra.mxu0 0.0
    %305 = vmatprep.mubr.f32.mxu0 0.0
    %306 = vmatmul.mubr.f32.gmra.mrb[0].mxu0 %v236
    %v307 = vpop.f32.mrb[0].mxu0
    %v308 = vadd.f32 0.0, %v307
    %v309 = vpop.f32.mrb[0].mxu0
    %310 = vmatprep.mubr.f32.mxu0 0.0
    %311 = vmatmul.mubr.f32.gmra.mrb[0].mxu0 %v239
    %v312 = vpop.f32.mrb[0].mxu0
    %v313 = vadd.f32 0.0, %v312
    %v314 = vpop.f32.mrb[0].mxu0
    %315 = vdwg.mxu0
    %v316 = vld [vmem:[%s6] sm:$0xff]
    %v317 = vld [vmem:[%s6 + $0x8] sm:$0xff]
    %v318 = vld [vmem:[%s6 + $0x10] sm:$0xff]
    %v319 = vld [vmem:[%s6 + $0x18] sm:$0xff]
    %v320 = vld [vmem:[%s6 + $0x20] sm:$0xff]
    %v321 = vld [vmem:[%s6 + $0x28] sm:$0xff]
    %v322 = vld [vmem:[%s6 + $0x30] sm:$0xff]
    %v323 = vld [vmem:[%s6 + $0x38] sm:$0xff]
    %v324 = vld [vmem:[%s7] sm:$0xff]
    %v325 = vld [vmem:[%s7 + $0x8] sm:$0xff]
    %v326 = vld [vmem:[%s7 + $0x10] sm:$0xff]
    %v327 = vld [vmem:[%s7 + $0x18] sm:$0xff]
    %v328 = vld [vmem:[%s7 + $0x20] sm:$0xff]
    %v329 = vld [vmem:[%s7 + $0x28] sm:$0xff]
    %v330 = vld [vmem:[%s7 + $0x30] sm:$0xff]
    %v331 = vld [vmem:[%s7 + $0x38] sm:$0xff]
    %v333 = vsel %vm147, %v227, 0
    %v336 = vsel %vm147, %v232, 0
    %338 = vmatprep.subr.mxu0 0.0
    %339 = vmatpush1.msra.mxu0 %v324
    %340 = vmatprep.subr.mxu0 0.0
    %341 = vmatpush1.msra.mxu0 %v325
    %342 = vmatprep.subr.mxu0 0.0
    %343 = vmatpush1.msra.mxu0 %v326
    %344 = vmatprep.subr.mxu0 0.0
    %345 = vmatpush1.msra.mxu0 %v327
    %346 = vmatprep.subr.mxu0 0.0
    %347 = vmatpush1.msra.mxu0 %v328
    %348 = vmatprep.subr.mxu0 0.0
    %349 = vmatpush1.msra.mxu0 %v329
    %350 = vmatprep.subr.mxu0 0.0
    %351 = vmatpush1.msra.mxu0 %v330
    %352 = vmatprep.subr.mxu0 0.0
    %353 = vmatpush1.msra.mxu0 %v331
    %354 = vmatprep.subr.mxu0 0.0
    %355 = vmatpush1.msra.mxu0 0.0
    %356 = vmatprep.subr.mxu0 0.0
    %357 = vmatpush1.msra.mxu0 0.0
    %358 = vmatprep.subr.mxu0 0.0
    %359 = vmatpush1.msra.mxu0 0.0
    %360 = vmatprep.subr.mxu0 0.0
    %361 = vmatpush1.msra.mxu0 0.0
    %362 = vmatprep.subr.mxu0 0.0
    %363 = vmatpush1.msra.mxu0 0.0
    %364 = vmatprep.subr.mxu0 0.0
    %365 = vmatpush1.msra.mxu0 0.0
    %366 = vmatprep.subr.mxu0 0.0
    %367 = vmatpush1.msra.mxu0 0.0
    %368 = vmatprep.subr.mxu0 0.0
    %369 = vmatpush1.msra.mxu0 0.0
    %370 = vmatprep.subr.mxu0 0.0
    %371 = vmatpush1.msra.mxu0 0.0
    %372 = vmatprep.subr.mxu0 0.0
    %373 = vmatpush1.msra.mxu0 0.0
    %374 = vmatprep.subr.mxu0 0.0
    %375 = vmatpush1.msra.mxu0 0.0
    %376 = vmatprep.subr.mxu0 0.0
    %377 = vmatpush1.msra.mxu0 0.0
    %378 = vmatprep.subr.mxu0 0.0
    %379 = vmatpush1.msra.mxu0 0.0
    %380 = vmatprep.subr.mxu0 0.0
    %381 = vmatpush1.msra.mxu0 0.0
    %382 = vmatprep.subr.mxu0 0.0
    %383 = vmatpush1.msra.mxu0 0.0
    %384 = vmatprep.subr.mxu0 0.0
    %385 = vmatpush1.msra.mxu0 0.0
    %386 = vmatprep.subr.mxu0 0.0
    %387 = vmatpush1.msra.mxu0 0.0
    %388 = vmatprep.subr.mxu0 0.0
    %389 = vmatpush1.msra.mxu0 0.0
    %390 = vmatprep.subr.mxu0 0.0
    %391 = vmatpush1.msra.mxu0 0.0
    %392 = vmatprep.subr.mxu0 0.0
    %393 = vmatpush1.msra.mxu0 0.0
    %394 = vmatprep.subr.mxu0 0.0
    %395 = vmatpush1.msra.mxu0 0.0
    %396 = vmatprep.subr.mxu0 0.0
    %397 = vmatpush1.msra.mxu0 0.0
    %398 = vmatprep.subr.mxu0 0.0
    %399 = vmatpush1.msra.mxu0 0.0
    %400 = vmatprep.subr.mxu0 0.0
    %401 = vmatpush1.msra.mxu0 0.0
    %402 = vmatprep.mubr.f32.mxu0 0.0
    %403 = vmatmul.mubr.f32.gmra.mrb[0].mxu0 %v333
    %v404 = vpop.f32.mrb[0].mxu0
    %v405 = vadd.f32 0.0, %v404
    %v406 = vpop.f32.mrb[0].mxu0
    %407 = vmatprep.mubr.f32.mxu0 0.0
    %408 = vmatmul.mubr.f32.gmra.mrb[0].mxu0 %v336
    %v409 = vpop.f32.mrb[0].mxu0
    %v410 = vadd.f32 0.0, %v409
    %v411 = vpop.f32.mrb[0].mxu0
    %412 = vdwg.mxu0
    %v414 = vsel %vm147, %v308, 0
    %v417 = vsel %vm147, %v313, 0
    %419 = vmatprep.subr.mxu0 0.0
    %420 = vmatpush1.msra.mxu0 %v316
    %421 = vmatprep.subr.mxu0 0.0
    %422 = vmatpush1.msra.mxu0 %v317
    %423 = vmatprep.subr.mxu0 0.0
    %424 = vmatpush1.msra.mxu0 %v318
    %425 = vmatprep.subr.mxu0 0.0
    %426 = vmatpush1.msra.mxu0 %v319
    %427 = vmatprep.subr.mxu0 0.0
    %428 = vmatpush1.msra.mxu0 %v320
    %429 = vmatprep.subr.mxu0 0.0
    %430 = vmatpush1.msra.mxu0 %v321
    %431 = vmatprep.subr.mxu0 0.0
    %432 = vmatpush1.msra.mxu0 %v322
    %433 = vmatprep.subr.mxu0 0.0
    %434 = vmatpush1.msra.mxu0 %v323
    %435 = vmatprep.subr.mxu0 0.0
    %436 = vmatpush1.msra.mxu0 0.0
    %437 = vmatprep.subr.mxu0 0.0
    %438 = vmatpush1.msra.mxu0 0.0
    %439 = vmatprep.subr.mxu0 0.0
    %440 = vmatpush1.msra.mxu0 0.0
    %441 = vmatprep.subr.mxu0 0.0
    %442 = vmatpush1.msra.mxu0 0.0
    %443 = vmatprep.subr.mxu0 0.0
    %444 = vmatpush1.msra.mxu0 0.0
    %445 = vmatprep.subr.mxu0 0.0
    %446 = vmatpush1.msra.mxu0 0.0
    %447 = vmatprep.subr.mxu0 0.0
    %448 = vmatpush1.msra.mxu0 0.0
    %449 = vmatprep.subr.mxu0 0.0
    %450 = vmatpush1.msra.mxu0 0.0
    %451 = vmatprep.subr.mxu0 0.0
    %452 = vmatpush1.msra.mxu0 0.0
    %453 = vmatprep.subr.mxu0 0.0
    %454 = vmatpush1.msra.mxu0 0.0
    %455 = vmatprep.subr.mxu0 0.0
    %456 = vmatpush1.msra.mxu0 0.0
    %457 = vmatprep.subr.mxu0 0.0
    %458 = vmatpush1.msra.mxu0 0.0
    %459 = vmatprep.subr.mxu0 0.0
    %460 = vmatpush1.msra.mxu0 0.0
    %461 = vmatprep.subr.mxu0 0.0
    %462 = vmatpush1.msra.mxu0 0.0
    %463 = vmatprep.subr.mxu0 0.0
    %464 = vmatpush1.msra.mxu0 0.0
    %465 = vmatprep.subr.mxu0 0.0
    %466 = vmatpush1.msra.mxu0 0.0
    %467 = vmatprep.subr.mxu0 0.0
    %468 = vmatpush1.msra.mxu0 0.0
    %469 = vmatprep.subr.mxu0 0.0
    %470 = vmatpush1.msra.mxu0 0.0
    %471 = vmatprep.subr.mxu0 0.0
    %472 = vmatpush1.msra.mxu0 0.0
    %473 = vmatprep.subr.mxu0 0.0
    %474 = vmatpush1.msra.mxu0 0.0
    %475 = vmatprep.subr.mxu0 0.0
    %476 = vmatpush1.msra.mxu0 0.0
    %477 = vmatprep.subr.mxu0 0.0
    %478 = vmatpush1.msra.mxu0 0.0
    %479 = vmatprep.subr.mxu0 0.0
    %480 = vmatpush1.msra.mxu0 0.0
    %481 = vmatprep.subr.mxu0 0.0
    %482 = vmatpush1.msra.mxu0 0.0
    %483 = vmatprep.mubr.f32.mxu0 0.0
    %484 = vmatmul.mubr.f32.gmra.mrb[0].mxu0 %v414
    %v485 = vpop.f32.mrb[0].mxu0
    %v486 = vadd.f32 %v405, %v485
    %v487 = vpop.f32.mrb[0].mxu0
    %488 = vmatprep.mubr.f32.mxu0 0.0
    %489 = vmatmul.mubr.f32.gmra.mrb[0].mxu0 %v417
    %v490 = vpop.f32.mrb[0].mxu0
    %v491 = vadd.f32 %v410, %v490
    %v492 = vpop.f32.mrb[0].mxu0
    %493 = vdwg.mxu0
    %v494 = vld [vmem:[#allocation2] sm:$0x1]
    %v496 = vlaneseq
    %v497 = vshrl.u32 %v496, 7
    %v498 = vsub.s32 0, %v497
    %v499 = vrot.slane %v494, %v498
    %v501 = vadd.f32 %v486, %v499
    %v502 = vadd.f32 %v491, %v499
    %v503 = vtanh.pop %v501
    %v504 = vtanh.pop %v502
    %v505 = vld [vmem:[%s5] sm:$0xff]
    %506 = vmatprep.subr.mxu0 0.0
    %507 = vmatpush1.msra.mxu0 %v505
    %508 = vmatprep.subr.mxu0 0.0
    %509 = vmatpush1.msra.mxu0 0.0
    %510 = vmatprep.subr.mxu0 0.0
    %511 = vmatpush1.msra.mxu0 0.0
    %512 = vmatprep.subr.mxu0 0.0
    %513 = vmatpush1.msra.mxu0 0.0
    %514 = vmatprep.subr.mxu0 0.0
    %515 = vmatpush1.msra.mxu0 0.0
    %516 = vmatprep.subr.mxu0 0.0
    %517 = vmatpush1.msra.mxu0 0.0
    %518 = vmatprep.subr.mxu0 0.0
    %519 = vmatpush1.msra.mxu0 0.0
    %520 = vmatprep.subr.mxu0 0.0
    %521 = vmatpush1.msra.mxu0 0.0
    %522 = vmatprep.subr.mxu0 0.0
    %523 = vmatpush1.msra.mxu0 0.0
    %524 = vmatprep.subr.mxu0 0.0
    %525 = vmatpush1.msra.mxu0 0.0
    %526 = vmatprep.subr.mxu0 0.0
    %527 = vmatpush1.msra.mxu0 0.0
    %528 = vmatprep.subr.mxu0 0.0
    %529 = vmatpush1.msra.mxu0 0.0
    %530 = vmatprep.subr.mxu0 0.0
    %531 = vmatpush1.msra.mxu0 0.0
    %532 = vmatprep.subr.mxu0 0.0
    %533 = vmatpush1.msra.mxu0 0.0
    %534 = vmatprep.subr.mxu0 0.0
    %535 = vmatpush1.msra.mxu0 0.0
    %536 = vmatprep.subr.mxu0 0.0
    %537 = vmatpush1.msra.mxu0 0.0
    %538 = vmatprep.subr.mxu0 0.0
    %539 = vmatpush1.msra.mxu0 0.0
    %540 = vmatprep.subr.mxu0 0.0
    %541 = vmatpush1.msra.mxu0 0.0
    %542 = vmatprep.subr.mxu0 0.0
    %543 = vmatpush1.msra.mxu0 0.0
    %544 = vmatprep.subr.mxu0 0.0
    %545 = vmatpush1.msra.mxu0 0.0
    %546 = vmatprep.subr.mxu0 0.0
    %547 = vmatpush1.msra.mxu0 0.0
    %548 = vmatprep.subr.mxu0 0.0
    %549 = vmatpush1.msra.mxu0 0.0
    %550 = vmatprep.subr.mxu0 0.0
    %551 = vmatpush1.msra.mxu0 0.0
    %552 = vmatprep.subr.mxu0 0.0
    %553 = vmatpush1.msra.mxu0 0.0
    %554 = vmatprep.subr.mxu0 0.0
    %555 = vmatpush1.msra.mxu0 0.0
    %556 = vmatprep.subr.mxu0 0.0
    %557 = vmatpush1.msra.mxu0 0.0
    %558 = vmatprep.subr.mxu0 0.0
    %559 = vmatpush1.msra.mxu0 0.0
    %560 = vmatprep.subr.mxu0 0.0
    %561 = vmatpush1.msra.mxu0 0.0
    %562 = vmatprep.subr.mxu0 0.0
    %563 = vmatpush1.msra.mxu0 0.0
    %564 = vmatprep.subr.mxu0 0.0
    %565 = vmatpush1.msra.mxu0 0.0
    %566 = vmatprep.subr.mxu0 0.0
    %567 = vmatpush1.msra.mxu0 0.0
    %568 = vmatprep.subr.mxu0 0.0
    %569 = vmatpush1.msra.mxu0 0.0
    %570 = vmatprep.mubr.f32.mxu0 0.0
    %571 = vmatmul.mubr.f32.gmra.mrb[0].mxu0 %v236
    %v572 = vpop.f32.mrb[0].mxu0
    %v573 = vadd.f32 0.0, %v572
    %v574 = vpop.f32.mrb[0].mxu0
    %575 = vmatprep.mubr.f32.mxu0 0.0
    %576 = vmatmul.mubr.f32.gmra.mrb[0].mxu0 %v239
    %v577 = vpop.f32.mrb[0].mxu0
    %v578 = vadd.f32 0.0, %v577
    %v579 = vpop.f32.mrb[0].mxu0
    %580 = vdwg.mxu0
    %v581 = vmul.f32 %v503, %v573
    %v582 = vmul.f32 %v504, %v578
    %583 = vmatprep.subr.mxu0 0.0
    %584 = vmatpush1.msra.mxu0 %v505
    %585 = vmatprep.subr.mxu0 0.0
    %586 = vmatpush1.msra.mxu0 0.0
    %587 = vmatprep.subr.mxu0 0.0
    %588 = vmatpush1.msra.mxu0 0.0
    %589 = vmatprep.subr.mxu0 0.0
    %590 = vmatpush1.msra.mxu0 0.0
    %591 = vmatprep.subr.mxu0 0.0
    %592 = vmatpush1.msra.mxu0 0.0
    %593 = vmatprep.subr.mxu0 0.0
    %594 = vmatpush1.msra.mxu0 0.0
    %595 = vmatprep.subr.mxu0 0.0
    %596 = vmatpush1.msra.mxu0 0.0
    %597 = vmatprep.subr.mxu0 0.0
    %598 = vmatpush1.msra.mxu0 0.0
    %599 = vmatprep.subr.mxu0 0.0
    %600 = vmatpush1.msra.mxu0 0.0
    %601 = vmatprep.subr.mxu0 0.0
    %602 = vmatpush1.msra.mxu0 0.0
    %603 = vmatprep.subr.mxu0 0.0
    %604 = vmatpush1.msra.mxu0 0.0
    %605 = vmatprep.subr.mxu0 0.0
    %606 = vmatpush1.msra.mxu0 0.0
    %607 = vmatprep.subr.mxu0 0.0
    %608 = vmatpush1.msra.mxu0 0.0
    %609 = vmatprep.subr.mxu0 0.0
    %610 = vmatpush1.msra.mxu0 0.0
    %611 = vmatprep.subr.mxu0 0.0
    %612 = vmatpush1.msra.mxu0 0.0
    %613 = vmatprep.subr.mxu0 0.0
    %614 = vmatpush1.msra.mxu0 0.0
    %615 = vmatprep.subr.mxu0 0.0
    %616 = vmatpush1.msra.mxu0 0.0
    %617 = vmatprep.subr.mxu0 0.0
    %618 = vmatpush1.msra.mxu0 0.0
    %619 = vmatprep.subr.mxu0 0.0
    %620 = vmatpush1.msra.mxu0 0.0
    %621 = vmatprep.subr.mxu0 0.0
    %622 = vmatpush1.msra.mxu0 0.0
    %623 = vmatprep.subr.mxu0 0.0
    %624 = vmatpush1.msra.mxu0 0.0
    %625 = vmatprep.subr.mxu0 0.0
    %626 = vmatpush1.msra.mxu0 0.0
    %627 = vmatprep.subr.mxu0 0.0
    %628 = vmatpush1.msra.mxu0 0.0
    %629 = vmatprep.subr.mxu0 0.0
    %630 = vmatpush1.msra.mxu0 0.0
    %631 = vmatprep.subr.mxu0 0.0
    %632 = vmatpush1.msra.mxu0 0.0
    %633 = vmatprep.subr.mxu0 0.0
    %634 = vmatpush1.msra.mxu0 0.0
    %635 = vmatprep.subr.mxu0 0.0
    %636 = vmatpush1.msra.mxu0 0.0
    %637 = vmatprep.subr.mxu0 0.0
    %638 = vmatpush1.msra.mxu0 0.0
    %639 = vmatprep.subr.mxu0 0.0
    %640 = vmatpush1.msra.mxu0 0.0
    %641 = vmatprep.subr.mxu0 0.0
    %642 = vmatpush1.msra.mxu0 0.0
    %643 = vmatprep.subr.mxu0 0.0
    %644 = vmatpush1.msra.mxu0 0.0
    %645 = vmatprep.subr.mxu0 0.0
    %646 = vmatpush1.msra.mxu0 0.0
    %647 = vmatprep.mubr.f32.mxu0 0.0
    %648 = vmatmul.mubr.f32.gmra.mrb[0].mxu0 %v155
    %v649 = vpop.f32.mrb[0].mxu0
    %v650 = vadd.f32 0.0, %v649
    %v651 = vpop.f32.mrb[0].mxu0
    %652 = vmatprep.mubr.f32.mxu0 0.0
    %653 = vmatmul.mubr.f32.gmra.mrb[0].mxu0 %v158
    %v654 = vpop.f32.mrb[0].mxu0
    %v655 = vadd.f32 0.0, %v654
    %v656 = vpop.f32.mrb[0].mxu0
    %657 = vdwg.mxu0
    %v658 = vmul.f32 %v581, %v650
    %v659 = vmul.f32 %v582, %v655
    %v660 = vadd.f32 %v658, 0.3
    %v661 = vadd.f32 %v659, 0.3
    %v662 = vld [vmem:[%s9] sm:$0xff]
    %v663 = vld [vmem:[%s9 + $0x8] sm:$0xff]
    %v664 = vld [vmem:[#allocation3] sm:$0xff]
    %v665 = vld [vmem:[#allocation3 + $0x8] sm:$0xff]
    %v666 = vld [vmem:[#allocation3 + $0x10] sm:$0xff]
    %v667 = vld [vmem:[#allocation3 + $0x18] sm:$0xff]
    %v668 = vld [vmem:[#allocation3 + $0x20] sm:$0xff]
    %v669 = vld [vmem:[#allocation3 + $0x28] sm:$0xff]
    %v670 = vld [vmem:[#allocation3 + $0x30] sm:$0xff]
    %v671 = vld [vmem:[#allocation3 + $0x38] sm:$0xff]
    %v672 = vld [vmem:[#allocation3 + $0x40] sm:$0xff]
    %v673 = vld [vmem:[#allocation3 + $0x48] sm:$0xff]
    %v674 = vld [vmem:[#allocation3 + $0x50] sm:$0xff]
    %v675 = vld [vmem:[#allocation3 + $0x58] sm:$0xff]
    %v676 = vld [vmem:[#allocation3 + $0x60] sm:$0xff]
    %v677 = vld [vmem:[#allocation3 + $0x68] sm:$0xff]
    %v678 = vld [vmem:[#allocation3 + $0x70] sm:$0xff]
    %v679 = vld [vmem:[#allocation3 + $0x78] sm:$0xff]
    %v680 = vld [vmem:[#allocation3 + $0x80] sm:$0xff]
    %v681 = vld [vmem:[#allocation3 + $0x88] sm:$0xff]
    %v682 = vld [vmem:[#allocation3 + $0x90] sm:$0xff]
    %v683 = vld [vmem:[#allocation3 + $0x98] sm:$0xff]
    %v684 = vld [vmem:[#allocation3 + $0xa0] sm:$0xff]
    %v685 = vld [vmem:[#allocation3 + $0xa8] sm:$0xff]
    %v686 = vld [vmem:[#allocation3 + $0xb0] sm:$0xff]
    %v687 = vld [vmem:[#allocation3 + $0xb8] sm:$0xff]
    %v688 = vld [vmem:[#allocation3 + $0xc0] sm:$0xff]
    %v689 = vld [vmem:[#allocation3 + $0xc8] sm:$0xff]
    %v690 = vld [vmem:[#allocation3 + $0xd0] sm:$0xff]
    %v691 = vld [vmem:[#allocation3 + $0xd8] sm:$0xff]
    %v692 = vld [vmem:[#allocation3 + $0xe0] sm:$0xff]
    %v693 = vld [vmem:[#allocation3 + $0xe8] sm:$0xff]
    %v694 = vld [vmem:[#allocation3 + $0xf0] sm:$0xff]
    %v695 = vld [vmem:[#allocation3 + $0xf8] sm:$0xff]
    %v696 = vld [vmem:[#allocation3 + $0x100] sm:$0x3]
    %v697 = vld [vmem:[#allocation3 + $0x108] sm:$0x3]
    %v698 = vld [vmem:[#allocation3 + $0x110] sm:$0x3]
    %v699 = vld [vmem:[#allocation3 + $0x118] sm:$0x3]
    %v700 = vld [vmem:[#allocation3 + $0x120] sm:$0x3]
    %v701 = vld [vmem:[#allocation3 + $0x128] sm:$0x3]
    %v702 = vld [vmem:[#allocation3 + $0x130] sm:$0x3]
    %v703 = vld [vmem:[#allocation3 + $0x138] sm:$0x3]
    %v704 = vld [vmem:[#allocation3 + $0x140] sm:$0x3]
    %v705 = vld [vmem:[#allocation3 + $0x148] sm:$0x3]
    %v706 = vld [vmem:[#allocation3 + $0x150] sm:$0x3]
    %v707 = vld [vmem:[#allocation3 + $0x158] sm:$0x3]
    %v708 = vld [vmem:[#allocation3 + $0x160] sm:$0x3]
    %v709 = vld [vmem:[#allocation3 + $0x168] sm:$0x3]
    %v710 = vld [vmem:[#allocation3 + $0x170] sm:$0x3]
    %v711 = vld [vmem:[#allocation3 + $0x178] sm:$0x3]
    %v712 = vld [vmem:[#allocation3 + $0x180] sm:$0x3]
    %v713 = vld [vmem:[#allocation3 + $0x188] sm:$0x3]
    %v714 = vld [vmem:[#allocation3 + $0x190] sm:$0x3]
    %v715 = vld [vmem:[#allocation3 + $0x198] sm:$0x3]
    %v716 = vld [vmem:[#allocation3 + $0x1a0] sm:$0x3]
    %v717 = vld [vmem:[#allocation3 + $0x1a8] sm:$0x3]
    %v718 = vld [vmem:[#allocation3 + $0x1b0] sm:$0x3]
    %v719 = vld [vmem:[#allocation3 + $0x1b8] sm:$0x3]
    %v720 = vld [vmem:[#allocation3 + $0x1c0] sm:$0x3]
    %v721 = vld [vmem:[#allocation3 + $0x1c8] sm:$0x3]
    %v722 = vld [vmem:[#allocation3 + $0x1d0] sm:$0x3]
    %v723 = vld [vmem:[#allocation3 + $0x1d8] sm:$0x3]
    %v724 = vld [vmem:[#allocation3 + $0x1e0] sm:$0x3]
    %v725 = vld [vmem:[#allocation3 + $0x1e8] sm:$0x3]
    %v726 = vld [vmem:[#allocation3 + $0x1f0] sm:$0x3]
    %v727 = vld [vmem:[#allocation3 + $0x1f8] sm:$0x3]
    %v728 = vld [vmem:[%s11] sm:$0xff]
    %v729 = vld [vmem:[%s11 + $0x8] sm:$0xff]
    %v730 = vld [vmem:[%s11 + $0x10] sm:$0xff]
    %v731 = vld [vmem:[%s11 + $0x18] sm:$0xff]
    %v736 = vlaneseq
    %v737 = vshrl.u32 %v736, 7
    %v738 = vsub.s32 0, %v737
    %v739 = vrot.slane %v728, %v738
    %v740 = vlaneseq
    %v741 = vshrl.u32 %v740, 7
    %v742 = vsub.s32 1, %v741
    %v743 = vrot.slane %v728, %v742
    %v744 = vlaneseq
    %v745 = vshrl.u32 %v744, 7
    %v746 = vsub.s32 2, %v745
    %v747 = vrot.slane %v728, %v746
    %v748 = vlaneseq
    %v749 = vshrl.u32 %v748, 7
    %v750 = vsub.s32 3, %v749
    %v751 = vrot.slane %v728, %v750
    %v752 = vlaneseq
    %v753 = vshrl.u32 %v752, 7
    %v754 = vsub.s32 4, %v753
    %v755 = vrot.slane %v728, %v754
    %v756 = vlaneseq
    %v757 = vshrl.u32 %v756, 7
    %v758 = vsub.s32 5, %v757
    %v759 = vrot.slane %v728, %v758
    %v760 = vlaneseq
    %v761 = vshrl.u32 %v760, 7
    %v762 = vsub.s32 6, %v761
    %v763 = vrot.slane %v728, %v762
    %v764 = vlaneseq
    %v765 = vshrl.u32 %v764, 7
    %v766 = vsub.s32 7, %v765
    %v767 = vrot.slane %v728, %v766
    %v768 = vlaneseq
    %v769 = vshrl.u32 %v768, 7
    %v770 = vsub.s32 0, %v769
    %v771 = vrot.slane %v729, %v770
    %v772 = vlaneseq
    %v773 = vshrl.u32 %v772, 7
    %v774 = vsub.s32 1, %v773
    %v775 = vrot.slane %v729, %v774
    %v776 = vlaneseq
    %v777 = vshrl.u32 %v776, 7
    %v778 = vsub.s32 2, %v777
    %v779 = vrot.slane %v729, %v778
    %v780 = vlaneseq
    %v781 = vshrl.u32 %v780, 7
    %v782 = vsub.s32 3, %v781
    %v783 = vrot.slane %v729, %v782
    %v784 = vlaneseq
    %v785 = vshrl.u32 %v784, 7
    %v786 = vsub.s32 4, %v785
    %v787 = vrot.slane %v729, %v786
    %v788 = vlaneseq
    %v789 = vshrl.u32 %v788, 7
    %v790 = vsub.s32 5, %v789
    %v791 = vrot.slane %v729, %v790
    %v792 = vlaneseq
    %v793 = vshrl.u32 %v792, 7
    %v794 = vsub.s32 6, %v793
    %v795 = vrot.slane %v729, %v794
    %v796 = vlaneseq
    %v797 = vshrl.u32 %v796, 7
    %v798 = vsub.s32 7, %v797
    %v799 = vrot.slane %v729, %v798
    %v800 = vlaneseq
    %v801 = vshrl.u32 %v800, 7
    %v802 = vsub.s32 0, %v801
    %v803 = vrot.slane %v730, %v802
    %v804 = vlaneseq
    %v805 = vshrl.u32 %v804, 7
    %v806 = vsub.s32 1, %v805
    %v807 = vrot.slane %v730, %v806
    %v808 = vlaneseq
    %v809 = vshrl.u32 %v808, 7
    %v810 = vsub.s32 2, %v809
    %v811 = vrot.slane %v730, %v810
    %v812 = vlaneseq
    %v813 = vshrl.u32 %v812, 7
    %v814 = vsub.s32 3, %v813
    %v815 = vrot.slane %v730, %v814
    %v816 = vlaneseq
    %v817 = vshrl.u32 %v816, 7
    %v818 = vsub.s32 4, %v817
    %v819 = vrot.slane %v730, %v818
    %v820 = vlaneseq
    %v821 = vshrl.u32 %v820, 7
    %v822 = vsub.s32 5, %v821
    %v823 = vrot.slane %v730, %v822
    %v824 = vlaneseq
    %v825 = vshrl.u32 %v824, 7
    %v826 = vsub.s32 6, %v825
    %v827 = vrot.slane %v730, %v826
    %v828 = vlaneseq
    %v829 = vshrl.u32 %v828, 7
    %v830 = vsub.s32 7, %v829
    %v831 = vrot.slane %v730, %v830
    %v832 = vlaneseq
    %v833 = vshrl.u32 %v832, 7
    %v834 = vsub.s32 0, %v833
    %v835 = vrot.slane %v731, %v834
    %v836 = vlaneseq
    %v837 = vshrl.u32 %v836, 7
    %v838 = vsub.s32 1, %v837
    %v839 = vrot.slane %v731, %v838
    %v840 = vlaneseq
    %v841 = vshrl.u32 %v840, 7
    %v842 = vsub.s32 2, %v841
    %v843 = vrot.slane %v731, %v842
    %v844 = vlaneseq
    %v845 = vshrl.u32 %v844, 7
    %v846 = vsub.s32 3, %v845
    %v847 = vrot.slane %v731, %v846
    %v848 = vlaneseq
    %v849 = vshrl.u32 %v848, 7
    %v850 = vsub.s32 4, %v849
    %v851 = vrot.slane %v731, %v850
    %v852 = vlaneseq
    %v853 = vshrl.u32 %v852, 7
    %v854 = vsub.s32 5, %v853
    %v855 = vrot.slane %v731, %v854
    %v856 = vlaneseq
    %v857 = vshrl.u32 %v856, 7
    %v858 = vsub.s32 6, %v857
    %v859 = vrot.slane %v731, %v858
    %v860 = vlaneseq
    %v861 = vshrl.u32 %v860, 7
    %v862 = vsub.s32 7, %v861
    %v863 = vrot.slane %v731, %v862
    %vm864 = vcmask 7168
    %v866 = vsel %vm864, %v660, 0
    %v869 = vsel %vm864, %v661, 0
    %vm871 = vcmask 1040384
    %v872 = vsel %vm871, %v739, 0
    %v874 = vsel %vm871, %v743, 0
    %v876 = vsel %vm871, %v747, 0
    %v878 = vsel %vm871, %v751, 0
    %v880 = vsel %vm871, %v755, 0
    %v882 = vsel %vm871, %v759, 0
    %v884 = vsel %vm871, %v763, 0
    %v886 = vsel %vm871, %v767, 0
    %v888 = vsel %vm871, %v771, 0
    %v890 = vsel %vm871, %v775, 0
    %v892 = vsel %vm871, %v779, 0
    %v894 = vsel %vm871, %v783, 0
    %v896 = vsel %vm871, %v787, 0
    %v898 = vsel %vm871, %v791, 0
    %v900 = vsel %vm871, %v795, 0
    %v902 = vsel %vm871, %v799, 0
    %v904 = vsel %vm871, %v803, 0
    %v906 = vsel %vm871, %v807, 0
    %v908 = vsel %vm871, %v811, 0
    %v910 = vsel %vm871, %v815, 0
    %v912 = vsel %vm871, %v819, 0
    %v914 = vsel %vm871, %v823, 0
    %v916 = vsel %vm871, %v827, 0
    %v918 = vsel %vm871, %v831, 0
    %v920 = vsel %vm871, %v835, 0
    %v922 = vsel %vm871, %v839, 0
    %v924 = vsel %vm871, %v843, 0
    %v926 = vsel %vm871, %v847, 0
    %v928 = vsel %vm871, %v851, 0
    %v930 = vsel %vm871, %v855, 0
    %v932 = vsel %vm871, %v859, 0
    %v934 = vsel %vm871, %v863, 0
    %936 = vmatprep.subr.mxu0 %v874
    %937 = vmatpush1.msra.mxu0 %v872
    %938 = vmatprep.subr.mxu0 0.0
    %939 = vmatpush1.msra.mxu0 0.0
    %940 = vmatprep.subr.mxu0 0.0
    %941 = vmatpush1.msra.mxu0 0.0
    %942 = vmatprep.subr.mxu0 0.0
    %943 = vmatpush1.msra.mxu0 0.0
    %944 = vmatprep.subr.mxu0 0.0
    %945 = vmatpush1.msra.mxu0 0.0
    %946 = vmatprep.subr.mxu0 0.0
    %947 = vmatpush1.msra.mxu0 0.0
    %948 = vmatprep.subr.mxu0 0.0
    %949 = vmatpush1.msra.mxu0 0.0
    %950 = vmatprep.subr.mxu0 0.0
    %951 = vmatpush1.msra.mxu0 0.0
    %952 = vmatprep.subr.mxu0 0.0
    %953 = vmatpush1.msra.mxu0 0.0
    %954 = vmatprep.subr.mxu0 0.0
    %955 = vmatpush1.msra.mxu0 0.0
    %956 = vmatprep.subr.mxu0 0.0
    %957 = vmatpush1.msra.mxu0 0.0
    %958 = vmatprep.subr.mxu0 0.0
    %959 = vmatpush1.msra.mxu0 0.0
    %960 = vmatprep.subr.mxu0 0.0
    %961 = vmatpush1.msra.mxu0 0.0
    %962 = vmatprep.subr.mxu0 0.0
    %963 = vmatpush1.msra.mxu0 0.0
    %964 = vmatprep.subr.mxu0 0.0
    %965 = vmatpush1.msra.mxu0 0.0
    %966 = vmatprep.subr.mxu0 0.0
    %967 = vmatpush1.msra.mxu0 0.0
    %968 = vmatprep.subr.mxu0 0.0
    %969 = vmatpush1.msra.mxu0 0.0
    %970 = vmatprep.subr.mxu0 0.0
    %971 = vmatpush1.msra.mxu0 0.0
    %972 = vmatprep.subr.mxu0 0.0
    %973 = vmatpush1.msra.mxu0 0.0
    %974 = vmatprep.subr.mxu0 0.0
    %975 = vmatpush1.msra.mxu0 0.0
    %976 = vmatprep.subr.mxu0 0.0
    %977 = vmatpush1.msra.mxu0 0.0
    %978 = vmatprep.subr.mxu0 0.0
    %979 = vmatpush1.msra.mxu0 0.0
    %980 = vmatprep.subr.mxu0 0.0
    %981 = vmatpush1.msra.mxu0 0.0
    %982 = vmatprep.subr.mxu0 0.0
    %983 = vmatpush1.msra.mxu0 0.0
    %984 = vmatprep.subr.mxu0 0.0
    %985 = vmatpush1.msra.mxu0 0.0
    %986 = vmatprep.subr.mxu0 0.0
    %987 = vmatpush1.msra.mxu0 0.0
    %988 = vmatprep.subr.mxu0 0.0
    %989 = vmatpush1.msra.mxu0 0.0
    %990 = vmatprep.subr.mxu0 0.0
    %991 = vmatpush1.msra.mxu0 0.0
    %992 = vmatprep.subr.mxu0 0.0
    %993 = vmatpush1.msra.mxu0 0.0
    %994 = vmatprep.subr.mxu0 0.0
    %995 = vmatpush1.msra.mxu0 0.0
    %996 = vmatprep.subr.mxu0 0.0
    %997 = vmatpush1.msra.mxu0 0.0
    %998 = vmatprep.subr.mxu0 0.0
    %999 = vmatpush1.msra.mxu0 0.0
    %1000 = vmatprep.mubr.f32.mxu0 0.0
    %1001 = vmatmul.mubr.f32.gmra.mrb[0].mxu0 %v866
    %v1002 = vpop.f32.mrb[0].mxu0
    %v1003 = vadd.f32 0.0, %v1002
    %v1004 = vpop.f32.mrb[0].mxu0
    %v1005 = vadd.f32 0.0, %v1004
    %1006 = vmatprep.mubr.f32.mxu0 0.0
    %1007 = vmatmul.mubr.f32.gmra.mrb[0].mxu0 %v869
    %v1008 = vpop.f32.mrb[0].mxu0
    %v1009 = vadd.f32 0.0, %v1008
    %v1010 = vpop.f32.mrb[0].mxu0
    %v1011 = vadd.f32 0.0, %v1010
    %1012 = vdwg.mxu0
    %1013 = vmatprep.subr.mxu0 %v878
    %1014 = vmatpush1.msra.mxu0 %v876
    %1015 = vmatprep.subr.mxu0 0.0
    %1016 = vmatpush1.msra.mxu0 0.0
    %1017 = vmatprep.subr.mxu0 0.0
    %1018 = vmatpush1.msra.mxu0 0.0
    %1019 = vmatprep.subr.mxu0 0.0
    %1020 = vmatpush1.msra.mxu0 0.0
    %1021 = vmatprep.subr.mxu0 0.0
    %1022 = vmatpush1.msra.mxu0 0.0
    %1023 = vmatprep.subr.mxu0 0.0
    %1024 = vmatpush1.msra.mxu0 0.0
    %1025 = vmatprep.subr.mxu0 0.0
    %1026 = vmatpush1.msra.mxu0 0.0
    %1027 = vmatprep.subr.mxu0 0.0
    %1028 = vmatpush1.msra.mxu0 0.0
    %1029 = vmatprep.subr.mxu0 0.0
    %1030 = vmatpush1.msra.mxu0 0.0
    %1031 = vmatprep.subr.mxu0 0.0
    %1032 = vmatpush1.msra.mxu0 0.0
    %1033 = vmatprep.subr.mxu0 0.0
    %1034 = vmatpush1.msra.mxu0 0.0
    %1035 = vmatprep.subr.mxu0 0.0
    %1036 = vmatpush1.msra.mxu0 0.0
    %1037 = vmatprep.subr.mxu0 0.0
    %1038 = vmatpush1.msra.mxu0 0.0
    %1039 = vmatprep.subr.mxu0 0.0
    %1040 = vmatpush1.msra.mxu0 0.0
    %1041 = vmatprep.subr.mxu0 0.0
    %1042 = vmatpush1.msra.mxu0 0.0
    %1043 = vmatprep.subr.mxu0 0.0
    %1044 = vmatpush1.msra.mxu0 0.0
    %1045 = vmatprep.subr.mxu0 0.0
    %1046 = vmatpush1.msra.mxu0 0.0
    %1047 = vmatprep.subr.mxu0 0.0
    %1048 = vmatpush1.msra.mxu0 0.0
    %1049 = vmatprep.subr.mxu0 0.0
    %1050 = vmatpush1.msra.mxu0 0.0
    %1051 = vmatprep.subr.mxu0 0.0
    %1052 = vmatpush1.msra.mxu0 0.0
    %1053 = vmatprep.subr.mxu0 0.0
    %1054 = vmatpush1.msra.mxu0 0.0
    %1055 = vmatprep.subr.mxu0 0.0
    %1056 = vmatpush1.msra.mxu0 0.0
    %1057 = vmatprep.subr.mxu0 0.0
    %1058 = vmatpush1.msra.mxu0 0.0
    %1059 = vmatprep.subr.mxu0 0.0
    %1060 = vmatpush1.msra.mxu0 0.0
    %1061 = vmatprep.subr.mxu0 0.0
    %1062 = vmatpush1.msra.mxu0 0.0
    %1063 = vmatprep.subr.mxu0 0.0
    %1064 = vmatpush1.msra.mxu0 0.0
    %1065 = vmatprep.subr.mxu0 0.0
    %1066 = vmatpush1.msra.mxu0 0.0
    %1067 = vmatprep.subr.mxu0 0.0
    %1068 = vmatpush1.msra.mxu0 0.0
    %1069 = vmatprep.subr.mxu0 0.0
    %1070 = vmatpush1.msra.mxu0 0.0
    %1071 = vmatprep.subr.mxu0 0.0
    %1072 = vmatpush1.msra.mxu0 0.0
    %1073 = vmatprep.subr.mxu0 0.0
    %1074 = vmatpush1.msra.mxu0 0.0
    %1075 = vmatprep.subr.mxu0 0.0
    %1076 = vmatpush1.msra.mxu0 0.0
    %1077 = vmatprep.mubr.f32.mxu0 0.0
    %1078 = vmatmul.mubr.f32.gmra.mrb[0].mxu0 %v866
    %v1079 = vpop.f32.mrb[0].mxu0
    %v1080 = vadd.f32 0.0, %v1079
    %v1081 = vpop.f32.mrb[0].mxu0
    %v1082 = vadd.f32 0.0, %v1081
    %1083 = vmatprep.mubr.f32.mxu0 0.0
    %1084 = vmatmul.mubr.f32.gmra.mrb[0].mxu0 %v869
    %v1085 = vpop.f32.mrb[0].mxu0
    %v1086 = vadd.f32 0.0, %v1085
    %v1087 = vpop.f32.mrb[0].mxu0
    %v1088 = vadd.f32 0.0, %v1087
    %1089 = vdwg.mxu0
    %1090 = vmatprep.subr.mxu0 %v882
    %1091 = vmatpush1.msra.mxu0 %v880
    %1092 = vmatprep.subr.mxu0 0.0
    %1093 = vmatpush1.msra.mxu0 0.0
    %1094 = vmatprep.subr.mxu0 0.0
    %1095 = vmatpush1.msra.mxu0 0.0
    %1096 = vmatprep.subr.mxu0 0.0
    %1097 = vmatpush1.msra.mxu0 0.0
    %1098 = vmatprep.subr.mxu0 0.0
    %1099 = vmatpush1.msra.mxu0 0.0
    %1100 = vmatprep.subr.mxu0 0.0
    %1101 = vmatpush1.msra.mxu0 0.0
    %1102 = vmatprep.subr.mxu0 0.0
    %1103 = vmatpush1.msra.mxu0 0.0
    %1104 = vmatprep.subr.mxu0 0.0
    %1105 = vmatpush1.msra.mxu0 0.0
    %1106 = vmatprep.subr.mxu0 0.0
    %1107 = vmatpush1.msra.mxu0 0.0
    %1108 = vmatprep.subr.mxu0 0.0
    %1109 = vmatpush1.msra.mxu0 0.0
    %1110 = vmatprep.subr.mxu0 0.0
    %1111 = vmatpush1.msra.mxu0 0.0
    %1112 = vmatprep.subr.mxu0 0.0
    %1113 = vmatpush1.msra.mxu0 0.0
    %1114 = vmatprep.subr.mxu0 0.0
    %1115 = vmatpush1.msra.mxu0 0.0
    %1116 = vmatprep.subr.mxu0 0.0
    %1117 = vmatpush1.msra.mxu0 0.0
    %1118 = vmatprep.subr.mxu0 0.0
    %1119 = vmatpush1.msra.mxu0 0.0
    %1120 = vmatprep.subr.mxu0 0.0
    %1121 = vmatpush1.msra.mxu0 0.0
    %1122 = vmatprep.subr.mxu0 0.0
    %1123 = vmatpush1.msra.mxu0 0.0
    %1124 = vmatprep.subr.mxu0 0.0
    %1125 = vmatpush1.msra.mxu0 0.0
    %1126 = vmatprep.subr.mxu0 0.0
    %1127 = vmatpush1.msra.mxu0 0.0
    %1128 = vmatprep.subr.mxu0 0.0
    %1129 = vmatpush1.msra.mxu0 0.0
    %1130 = vmatprep.subr.mxu0 0.0
    %1131 = vmatpush1.msra.mxu0 0.0
    %1132 = vmatprep.subr.mxu0 0.0
    %1133 = vmatpush1.msra.mxu0 0.0
    %1134 = vmatprep.subr.mxu0 0.0
    %1135 = vmatpush1.msra.mxu0 0.0
    %1136 = vmatprep.subr.mxu0 0.0
    %1137 = vmatpush1.msra.mxu0 0.0
    %1138 = vmatprep.subr.mxu0 0.0
    %1139 = vmatpush1.msra.mxu0 0.0
    %1140 = vmatprep.subr.mxu0 0.0
    %1141 = vmatpush1.msra.mxu0 0.0
    %1142 = vmatprep.subr.mxu0 0.0
    %1143 = vmatpush1.msra.mxu0 0.0
    %1144 = vmatprep.subr.mxu0 0.0
    %1145 = vmatpush1.msra.mxu0 0.0
    %1146 = vmatprep.subr.mxu0 0.0
    %1147 = vmatpush1.msra.mxu0 0.0
    %1148 = vmatprep.subr.mxu0 0.0
    %1149 = vmatpush1.msra.mxu0 0.0
    %1150 = vmatprep.subr.mxu0 0.0
    %1151 = vmatpush1.msra.mxu0 0.0
    %1152 = vmatprep.subr.mxu0 0.0
    %1153 = vmatpush1.msra.mxu0 0.0
    %1154 = vmatprep.mubr.f32.mxu0 0.0
    %1155 = vmatmul.mubr.f32.gmra.mrb[0].mxu0 %v866
    %v1156 = vpop.f32.mrb[0].mxu0
    %v1157 = vadd.f32 0.0, %v1156
    %v1158 = vpop.f32.mrb[0].mxu0
    %v1159 = vadd.f32 0.0, %v1158
    %1160 = vmatprep.mubr.f32.mxu0 0.0
    %1161 = vmatmul.mubr.f32.gmra.mrb[0].mxu0 %v869
    %v1162 = vpop.f32.mrb[0].mxu0
    %v1163 = vadd.f32 0.0, %v1162
    %v1164 = vpop.f32.mrb[0].mxu0
    %v1165 = vadd.f32 0.0, %v1164
    %1166 = vdwg.mxu0
    %1167 = vmatprep.subr.mxu0 %v886
    %1168 = vmatpush1.msra.mxu0 %v884
    %1169 = vmatprep.subr.mxu0 0.0
    %1170 = vmatpush1.msra.mxu0 0.0
    %1171 = vmatprep.subr.mxu0 0.0
    %1172 = vmatpush1.msra.mxu0 0.0
    %1173 = vmatprep.subr.mxu0 0.0
    %1174 = vmatpush1.msra.mxu0 0.0
    %1175 = vmatprep.subr.mxu0 0.0
    %1176 = vmatpush1.msra.mxu0 0.0
    %1177 = vmatprep.subr.mxu0 0.0
    %1178 = vmatpush1.msra.mxu0 0.0
    %1179 = vmatprep.subr.mxu0 0.0
    %1180 = vmatpush1.msra.mxu0 0.0
    %1181 = vmatprep.subr.mxu0 0.0
    %1182 = vmatpush1.msra.mxu0 0.0
    %1183 = vmatprep.subr.mxu0 0.0
    %1184 = vmatpush1.msra.mxu0 0.0
    %1185 = vmatprep.subr.mxu0 0.0
    %1186 = vmatpush1.msra.mxu0 0.0
    %1187 = vmatprep.subr.mxu0 0.0
    %1188 = vmatpush1.msra.mxu0 0.0
    %1189 = vmatprep.subr.mxu0 0.0
    %1190 = vmatpush1.msra.mxu0 0.0
    %1191 = vmatprep.subr.mxu0 0.0
    %1192 = vmatpush1.msra.mxu0 0.0
    %1193 = vmatprep.subr.mxu0 0.0
    %1194 = vmatpush1.msra.mxu0 0.0
    %1195 = vmatprep.subr.mxu0 0.0
    %1196 = vmatpush1.msra.mxu0 0.0
    %1197 = vmatprep.subr.mxu0 0.0
    %1198 = vmatpush1.msra.mxu0 0.0
    %1199 = vmatprep.subr.mxu0 0.0
    %1200 = vmatpush1.msra.mxu0 0.0
    %1201 = vmatprep.subr.mxu0 0.0
    %1202 = vmatpush1.msra.mxu0 0.0
    %1203 = vmatprep.subr.mxu0 0.0
    %1204 = vmatpush1.msra.mxu0 0.0
    %1205 = vmatprep.subr.mxu0 0.0
    %1206 = vmatpush1.msra.mxu0 0.0
    %1207 = vmatprep.subr.mxu0 0.0
    %1208 = vmatpush1.msra.mxu0 0.0
    %1209 = vmatprep.subr.mxu0 0.0
    %1210 = vmatpush1.msra.mxu0 0.0
    %1211 = vmatprep.subr.mxu0 0.0
    %1212 = vmatpush1.msra.mxu0 0.0
    %1213 = vmatprep.subr.mxu0 0.0
    %1214 = vmatpush1.msra.mxu0 0.0
    %1215 = vmatprep.subr.mxu0 0.0
    %1216 = vmatpush1.msra.mxu0 0.0
    %1217 = vmatprep.subr.mxu0 0.0
    %1218 = vmatpush1.msra.mxu0 0.0
    %1219 = vmatprep.subr.mxu0 0.0
    %1220 = vmatpush1.msra.mxu0 0.0
    %1221 = vmatprep.subr.mxu0 0.0
    %1222 = vmatpush1.msra.mxu0 0.0
    %1223 = vmatprep.subr.mxu0 0.0
    %1224 = vmatpush1.msra.mxu0 0.0
    %1225 = vmatprep.subr.mxu0 0.0
    %1226 = vmatpush1.msra.mxu0 0.0
    %1227 = vmatprep.subr.mxu0 0.0
    %1228 = vmatpush1.msra.mxu0 0.0
    %1229 = vmatprep.subr.mxu0 0.0
    %1230 = vmatpush1.msra.mxu0 0.0
    %1231 = vmatprep.mubr.f32.mxu0 0.0
    %1232 = vmatmul.mubr.f32.gmra.mrb[0].mxu0 %v866
    %v1233 = vpop.f32.mrb[0].mxu0
    %v1234 = vadd.f32 0.0, %v1233
    %v1235 = vpop.f32.mrb[0].mxu0
    %v1236 = vadd.f32 0.0, %v1235
    %1237 = vmatprep.mubr.f32.mxu0 0.0
    %1238 = vmatmul.mubr.f32.gmra.mrb[0].mxu0 %v869
    %v1239 = vpop.f32.mrb[0].mxu0
    %v1240 = vadd.f32 0.0, %v1239
    %v1241 = vpop.f32.mrb[0].mxu0
    %v1242 = vadd.f32 0.0, %v1241
    %1243 = vdwg.mxu0
    %1244 = vmatprep.subr.mxu0 %v890
    %1245 = vmatpush1.msra.mxu0 %v888
    %1246 = vmatprep.subr.mxu0 0.0
    %1247 = vmatpush1.msra.mxu0 0.0
    %1248 = vmatprep.subr.mxu0 0.0
    %1249 = vmatpush1.msra.mxu0 0.0
    %1250 = vmatprep.subr.mxu0 0.0
    %1251 = vmatpush1.msra.mxu0 0.0
    %1252 = vmatprep.subr.mxu0 0.0
    %1253 = vmatpush1.msra.mxu0 0.0
    %1254 = vmatprep.subr.mxu0 0.0
    %1255 = vmatpush1.msra.mxu0 0.0
    %1256 = vmatprep.subr.mxu0 0.0
    %1257 = vmatpush1.msra.mxu0 0.0
    %1258 = vmatprep.subr.mxu0 0.0
    %1259 = vmatpush1.msra.mxu0 0.0
    %1260 = vmatprep.subr.mxu0 0.0
    %1261 = vmatpush1.msra.mxu0 0.0
    %1262 = vmatprep.subr.mxu0 0.0
    %1263 = vmatpush1.msra.mxu0 0.0
    %1264 = vmatprep.subr.mxu0 0.0
    %1265 = vmatpush1.msra.mxu0 0.0
    %1266 = vmatprep.subr.mxu0 0.0
    %1267 = vmatpush1.msra.mxu0 0.0
    %1268 = vmatprep.subr.mxu0 0.0
    %1269 = vmatpush1.msra.mxu0 0.0
    %1270 = vmatprep.subr.mxu0 0.0
    %1271 = vmatpush1.msra.mxu0 0.0
    %1272 = vmatprep.subr.mxu0 0.0
    %1273 = vmatpush1.msra.mxu0 0.0
    %1274 = vmatprep.subr.mxu0 0.0
    %1275 = vmatpush1.msra.mxu0 0.0
    %1276 = vmatprep.subr.mxu0 0.0
    %1277 = vmatpush1.msra.mxu0 0.0
    %1278 = vmatprep.subr.mxu0 0.0
    %1279 = vmatpush1.msra.mxu0 0.0
    %1280 = vmatprep.subr.mxu0 0.0
    %1281 = vmatpush1.msra.mxu0 0.0
    %1282 = vmatprep.subr.mxu0 0.0
    %1283 = vmatpush1.msra.mxu0 0.0
    %1284 = vmatprep.subr.mxu0 0.0
    %1285 = vmatpush1.msra.mxu0 0.0
    %1286 = vmatprep.subr.mxu0 0.0
    %1287 = vmatpush1.msra.mxu0 0.0
    %1288 = vmatprep.subr.mxu0 0.0
    %1289 = vmatpush1.msra.mxu0 0.0
    %1290 = vmatprep.subr.mxu0 0.0
    %1291 = vmatpush1.msra.mxu0 0.0
    %1292 = vmatprep.subr.mxu0 0.0
    %1293 = vmatpush1.msra.mxu0 0.0
    %1294 = vmatprep.subr.mxu0 0.0
    %1295 = vmatpush1.msra.mxu0 0.0
    %1296 = vmatprep.subr.mxu0 0.0
    %1297 = vmatpush1.msra.mxu0 0.0
    %1298 = vmatprep.subr.mxu0 0.0
    %1299 = vmatpush1.msra.mxu0 0.0
    %1300 = vmatprep.subr.mxu0 0.0
    %1301 = vmatpush1.msra.mxu0 0.0
    %1302 = vmatprep.subr.mxu0 0.0
    %1303 = vmatpush1.msra.mxu0 0.0
    %1304 = vmatprep.subr.mxu0 0.0
    %1305 = vmatpush1.msra.mxu0 0.0
    %1306 = vmatprep.subr.mxu0 0.0
    %1307 = vmatpush1.msra.mxu0 0.0
    %1308 = vmatprep.mubr.f32.mxu0 0.0
    %1309 = vmatmul.mubr.f32.gmra.mrb[0].mxu0 %v866
    %v1310 = vpop.f32.mrb[0].mxu0
    %v1311 = vadd.f32 0.0, %v1310
    %v1312 = vpop.f32.mrb[0].mxu0
    %v1313 = vadd.f32 0.0, %v1312
    %1314 = vmatprep.mubr.f32.mxu0 0.0
    %1315 = vmatmul.mubr.f32.gmra.mrb[0].mxu0 %v869
    %v1316 = vpop.f32.mrb[0].mxu0
    %v1317 = vadd.f32 0.0, %v1316
    %v1318 = vpop.f32.mrb[0].mxu0
    %v1319 = vadd.f32 0.0, %v1318
    %1320 = vdwg.mxu0
    %1321 = vmatprep.subr.mxu0 %v894
    %1322 = vmatpush1.msra.mxu0 %v892
    %1323 = vmatprep.subr.mxu0 0.0
    %1324 = vmatpush1.msra.mxu0 0.0
    %1325 = vmatprep.subr.mxu0 0.0
    %1326 = vmatpush1.msra.mxu0 0.0
    %1327 = vmatprep.subr.mxu0 0.0
    %1328 = vmatpush1.msra.mxu0 0.0
    %1329 = vmatprep.subr.mxu0 0.0
    %1330 = vmatpush1.msra.mxu0 0.0
    %1331 = vmatprep.subr.mxu0 0.0
    %1332 = vmatpush1.msra.mxu0 0.0
    %1333 = vmatprep.subr.mxu0 0.0
    %1334 = vmatpush1.msra.mxu0 0.0
    %1335 = vmatprep.subr.mxu0 0.0
    %1336 = vmatpush1.msra.mxu0 0.0
    %1337 = vmatprep.subr.mxu0 0.0
    %1338 = vmatpush1.msra.mxu0 0.0
    %1339 = vmatprep.subr.mxu0 0.0
    %1340 = vmatpush1.msra.mxu0 0.0
    %1341 = vmatprep.subr.mxu0 0.0
    %1342 = vmatpush1.msra.mxu0 0.0
    %1343 = vmatprep.subr.mxu0 0.0
    %1344 = vmatpush1.msra.mxu0 0.0
    %1345 = vmatprep.subr.mxu0 0.0
    %1346 = vmatpush1.msra.mxu0 0.0
    %1347 = vmatprep.subr.mxu0 0.0
    %1348 = vmatpush1.msra.mxu0 0.0
    %1349 = vmatprep.subr.mxu0 0.0
    %1350 = vmatpush1.msra.mxu0 0.0
    %1351 = vmatprep.subr.mxu0 0.0
    %1352 = vmatpush1.msra.mxu0 0.0
    %1353 = vmatprep.subr.mxu0 0.0
    %1354 = vmatpush1.msra.mxu0 0.0
    %1355 = vmatprep.subr.mxu0 0.0
    %1356 = vmatpush1.msra.mxu0 0.0
    %1357 = vmatprep.subr.mxu0 0.0
    %1358 = vmatpush1.msra.mxu0 0.0
    %1359 = vmatprep.subr.mxu0 0.0
    %1360 = vmatpush1.msra.mxu0 0.0
    %1361 = vmatprep.subr.mxu0 0.0
    %1362 = vmatpush1.msra.mxu0 0.0
    %1363 = vmatprep.subr.mxu0 0.0
    %1364 = vmatpush1.msra.mxu0 0.0
    %1365 = vmatprep.subr.mxu0 0.0
    %1366 = vmatpush1.msra.mxu0 0.0
    %1367 = vmatprep.subr.mxu0 0.0
    %1368 = vmatpush1.msra.mxu0 0.0
    %1369 = vmatprep.subr.mxu0 0.0
    %1370 = vmatpush1.msra.mxu0 0.0
    %1371 = vmatprep.subr.mxu0 0.0
    %1372 = vmatpush1.msra.mxu0 0.0
    %1373 = vmatprep.subr.mxu0 0.0
    %1374 = vmatpush1.msra.mxu0 0.0
    %1375 = vmatprep.subr.mxu0 0.0
    %1376 = vmatpush1.msra.mxu0 0.0
    %1377 = vmatprep.subr.mxu0 0.0
    %1378 = vmatpush1.msra.mxu0 0.0
    %1379 = vmatprep.subr.mxu0 0.0
    %1380 = vmatpush1.msra.mxu0 0.0
    %1381 = vmatprep.subr.mxu0 0.0
    %1382 = vmatpush1.msra.mxu0 0.0
    %1383 = vmatprep.subr.mxu0 0.0
    %1384 = vmatpush1.msra.mxu0 0.0
    %1385 = vmatprep.mubr.f32.mxu0 0.0
    %1386 = vmatmul.mubr.f32.gmra.mrb[0].mxu0 %v866
    %v1387 = vpop.f32.mrb[0].mxu0
    %v1388 = vadd.f32 0.0, %v1387
    %v1389 = vpop.f32.mrb[0].mxu0
    %v1390 = vadd.f32 0.0, %v1389
    %1391 = vmatprep.mubr.f32.mxu0 0.0
    %1392 = vmatmul.mubr.f32.gmra.mrb[0].mxu0 %v869
    %v1393 = vpop.f32.mrb[0].mxu0
    %v1394 = vadd.f32 0.0, %v1393
    %v1395 = vpop.f32.mrb[0].mxu0
    %v1396 = vadd.f32 0.0, %v1395
    %1397 = vdwg.mxu0
    %1398 = vmatprep.subr.mxu0 %v898
    %1399 = vmatpush1.msra.mxu0 %v896
    %1400 = vmatprep.subr.mxu0 0.0
    %1401 = vmatpush1.msra.mxu0 0.0
    %1402 = vmatprep.subr.mxu0 0.0
    %1403 = vmatpush1.msra.mxu0 0.0
    %1404 = vmatprep.subr.mxu0 0.0
    %1405 = vmatpush1.msra.mxu0 0.0
    %1406 = vmatprep.subr.mxu0 0.0
    %1407 = vmatpush1.msra.mxu0 0.0
    %1408 = vmatprep.subr.mxu0 0.0
    %1409 = vmatpush1.msra.mxu0 0.0
    %1410 = vmatprep.subr.mxu0 0.0
    %1411 = vmatpush1.msra.mxu0 0.0
    %1412 = vmatprep.subr.mxu0 0.0
    %1413 = vmatpush1.msra.mxu0 0.0
    %1414 = vmatprep.subr.mxu0 0.0
    %1415 = vmatpush1.msra.mxu0 0.0
    %1416 = vmatprep.subr.mxu0 0.0
    %1417 = vmatpush1.msra.mxu0 0.0
    %1418 = vmatprep.subr.mxu0 0.0
    %1419 = vmatpush1.msra.mxu0 0.0
    %1420 = vmatprep.subr.mxu0 0.0
    %1421 = vmatpush1.msra.mxu0 0.0
    %1422 = vmatprep.subr.mxu0 0.0
    %1423 = vmatpush1.msra.mxu0 0.0
    %1424 = vmatprep.subr.mxu0 0.0
    %1425 = vmatpush1.msra.mxu0 0.0
    %1426 = vmatprep.subr.mxu0 0.0
    %1427 = vmatpush1.msra.mxu0 0.0
    %1428 = vmatprep.subr.mxu0 0.0
    %1429 = vmatpush1.msra.mxu0 0.0
    %1430 = vmatprep.subr.mxu0 0.0
    %1431 = vmatpush1.msra.mxu0 0.0
    %1432 = vmatprep.subr.mxu0 0.0
    %1433 = vmatpush1.msra.mxu0 0.0
    %1434 = vmatprep.subr.mxu0 0.0
    %1435 = vmatpush1.msra.mxu0 0.0
    %1436 = vmatprep.subr.mxu0 0.0
    %1437 = vmatpush1.msra.mxu0 0.0
    %1438 = vmatprep.subr.mxu0 0.0
    %1439 = vmatpush1.msra.mxu0 0.0
    %1440 = vmatprep.subr.mxu0 0.0
    %1441 = vmatpush1.msra.mxu0 0.0
    %1442 = vmatprep.subr.mxu0 0.0
    %1443 = vmatpush1.msra.mxu0 0.0
    %1444 = vmatprep.subr.mxu0 0.0
    %1445 = vmatpush1.msra.mxu0 0.0
    %1446 = vmatprep.subr.mxu0 0.0
    %1447 = vmatpush1.msra.mxu0 0.0
    %1448 = vmatprep.subr.mxu0 0.0
    %1449 = vmatpush1.msra.mxu0 0.0
    %1450 = vmatprep.subr.mxu0 0.0
    %1451 = vmatpush1.msra.mxu0 0.0
    %1452 = vmatprep.subr.mxu0 0.0
    %1453 = vmatpush1.msra.mxu0 0.0
    %1454 = vmatprep.subr.mxu0 0.0
    %1455 = vmatpush1.msra.mxu0 0.0
    %1456 = vmatprep.subr.mxu0 0.0
    %1457 = vmatpush1.msra.mxu0 0.0
    %1458 = vmatprep.subr.mxu0 0.0
    %1459 = vmatpush1.msra.mxu0 0.0
    %1460 = vmatprep.subr.mxu0 0.0
    %1461 = vmatpush1.msra.mxu0 0.0
    %1462 = vmatprep.mubr.f32.mxu0 0.0
    %1463 = vmatmul.mubr.f32.gmra.mrb[0].mxu0 %v866
    %v1464 = vpop.f32.mrb[0].mxu0
    %v1465 = vadd.f32 0.0, %v1464
    %v1466 = vpop.f32.mrb[0].mxu0
    %v1467 = vadd.f32 0.0, %v1466
    %1468 = vmatprep.mubr.f32.mxu0 0.0
    %1469 = vmatmul.mubr.f32.gmra.mrb[0].mxu0 %v869
    %v1470 = vpop.f32.mrb[0].mxu0
    %v1471 = vadd.f32 0.0, %v1470
    %v1472 = vpop.f32.mrb[0].mxu0
    %v1473 = vadd.f32 0.0, %v1472
    %1474 = vdwg.mxu0
    %1475 = vmatprep.subr.mxu0 %v902
    %1476 = vmatpush1.msra.mxu0 %v900
    %1477 = vmatprep.subr.mxu0 0.0
    %1478 = vmatpush1.msra.mxu0 0.0
    %1479 = vmatprep.subr.mxu0 0.0
    %1480 = vmatpush1.msra.mxu0 0.0
    %1481 = vmatprep.subr.mxu0 0.0
    %1482 = vmatpush1.msra.mxu0 0.0
    %1483 = vmatprep.subr.mxu0 0.0
    %1484 = vmatpush1.msra.mxu0 0.0
    %1485 = vmatprep.subr.mxu0 0.0
    %1486 = vmatpush1.msra.mxu0 0.0
    %1487 = vmatprep.subr.mxu0 0.0
    %1488 = vmatpush1.msra.mxu0 0.0
    %1489 = vmatprep.subr.mxu0 0.0
    %1490 = vmatpush1.msra.mxu0 0.0
    %1491 = vmatprep.subr.mxu0 0.0
    %1492 = vmatpush1.msra.mxu0 0.0
    %1493 = vmatprep.subr.mxu0 0.0
    %1494 = vmatpush1.msra.mxu0 0.0
    %1495 = vmatprep.subr.mxu0 0.0
    %1496 = vmatpush1.msra.mxu0 0.0
    %1497 = vmatprep.subr.mxu0 0.0
    %1498 = vmatpush1.msra.mxu0 0.0
    %1499 = vmatprep.subr.mxu0 0.0
    %1500 = vmatpush1.msra.mxu0 0.0
    %1501 = vmatprep.subr.mxu0 0.0
    %1502 = vmatpush1.msra.mxu0 0.0
    %1503 = vmatprep.subr.mxu0 0.0
    %1504 = vmatpush1.msra.mxu0 0.0
    %1505 = vmatprep.subr.mxu0 0.0
    %1506 = vmatpush1.msra.mxu0 0.0
    %1507 = vmatprep.subr.mxu0 0.0
    %1508 = vmatpush1.msra.mxu0 0.0
    %1509 = vmatprep.subr.mxu0 0.0
    %1510 = vmatpush1.msra.mxu0 0.0
    %1511 = vmatprep.subr.mxu0 0.0
    %1512 = vmatpush1.msra.mxu0 0.0
    %1513 = vmatprep.subr.mxu0 0.0
    %1514 = vmatpush1.msra.mxu0 0.0
    %1515 = vmatprep.subr.mxu0 0.0
    %1516 = vmatpush1.msra.mxu0 0.0
    %1517 = vmatprep.subr.mxu0 0.0
    %1518 = vmatpush1.msra.mxu0 0.0
    %1519 = vmatprep.subr.mxu0 0.0
    %1520 = vmatpush1.msra.mxu0 0.0
    %1521 = vmatprep.subr.mxu0 0.0
    %1522 = vmatpush1.msra.mxu0 0.0
    %1523 = vmatprep.subr.mxu0 0.0
    %1524 = vmatpush1.msra.mxu0 0.0
    %1525 = vmatprep.subr.mxu0 0.0
    %1526 = vmatpush1.msra.mxu0 0.0
    %1527 = vmatprep.subr.mxu0 0.0
    %1528 = vmatpush1.msra.mxu0 0.0
    %1529 = vmatprep.subr.mxu0 0.0
    %1530 = vmatpush1.msra.mxu0 0.0
    %1531 = vmatprep.subr.mxu0 0.0
    %1532 = vmatpush1.msra.mxu0 0.0
    %1533 = vmatprep.subr.mxu0 0.0
    %1534 = vmatpush1.msra.mxu0 0.0
    %1535 = vmatprep.subr.mxu0 0.0
    %1536 = vmatpush1.msra.mxu0 0.0
    %1537 = vmatprep.subr.mxu0 0.0
    %1538 = vmatpush1.msra.mxu0 0.0
    %1539 = vmatprep.mubr.f32.mxu0 0.0
    %1540 = vmatmul.mubr.f32.gmra.mrb[0].mxu0 %v866
    %v1541 = vpop.f32.mrb[0].mxu0
    %v1542 = vadd.f32 0.0, %v1541
    %v1543 = vpop.f32.mrb[0].mxu0
    %v1544 = vadd.f32 0.0, %v1543
    %1545 = vmatprep.mubr.f32.mxu0 0.0
    %1546 = vmatmul.mubr.f32.gmra.mrb[0].mxu0 %v869
    %v1547 = vpop.f32.mrb[0].mxu0
    %v1548 = vadd.f32 0.0, %v1547
    %v1549 = vpop.f32.mrb[0].mxu0
    %v1550 = vadd.f32 0.0, %v1549
    %1551 = vdwg.mxu0
    %1552 = vmatprep.subr.mxu0 %v906
    %1553 = vmatpush1.msra.mxu0 %v904
    %1554 = vmatprep.subr.mxu0 0.0
    %1555 = vmatpush1.msra.mxu0 0.0
    %1556 = vmatprep.subr.mxu0 0.0
    %1557 = vmatpush1.msra.mxu0 0.0
    %1558 = vmatprep.subr.mxu0 0.0
    %1559 = vmatpush1.msra.mxu0 0.0
    %1560 = vmatprep.subr.mxu0 0.0
    %1561 = vmatpush1.msra.mxu0 0.0
    %1562 = vmatprep.subr.mxu0 0.0
    %1563 = vmatpush1.msra.mxu0 0.0
    %1564 = vmatprep.subr.mxu0 0.0
    %1565 = vmatpush1.msra.mxu0 0.0
    %1566 = vmatprep.subr.mxu0 0.0
    %1567 = vmatpush1.msra.mxu0 0.0
    %1568 = vmatprep.subr.mxu0 0.0
    %1569 = vmatpush1.msra.mxu0 0.0
    %1570 = vmatprep.subr.mxu0 0.0
    %1571 = vmatpush1.msra.mxu0 0.0
    %1572 = vmatprep.subr.mxu0 0.0
    %1573 = vmatpush1.msra.mxu0 0.0
    %1574 = vmatprep.subr.mxu0 0.0
    %1575 = vmatpush1.msra.mxu0 0.0
    %1576 = vmatprep.subr.mxu0 0.0
    %1577 = vmatpush1.msra.mxu0 0.0
    %1578 = vmatprep.subr.mxu0 0.0
    %1579 = vmatpush1.msra.mxu0 0.0
    %1580 = vmatprep.subr.mxu0 0.0
    %1581 = vmatpush1.msra.mxu0 0.0
    %1582 = vmatprep.subr.mxu0 0.0
    %1583 = vmatpush1.msra.mxu0 0.0
    %1584 = vmatprep.subr.mxu0 0.0
    %1585 = vmatpush1.msra.mxu0 0.0
    %1586 = vmatprep.subr.mxu0 0.0
    %1587 = vmatpush1.msra.mxu0 0.0
    %1588 = vmatprep.subr.mxu0 0.0
    %1589 = vmatpush1.msra.mxu0 0.0
    %1590 = vmatprep.subr.mxu0 0.0
    %1591 = vmatpush1.msra.mxu0 0.0
    %1592 = vmatprep.subr.mxu0 0.0
    %1593 = vmatpush1.msra.mxu0 0.0
    %1594 = vmatprep.subr.mxu0 0.0
    %1595 = vmatpush1.msra.mxu0 0.0
    %1596 = vmatprep.subr.mxu0 0.0
    %1597 = vmatpush1.msra.mxu0 0.0
    %1598 = vmatprep.subr.mxu0 0.0
    %1599 = vmatpush1.msra.mxu0 0.0
    %1600 = vmatprep.subr.mxu0 0.0
    %1601 = vmatpush1.msra.mxu0 0.0
    %1602 = vmatprep.subr.mxu0 0.0
    %1603 = vmatpush1.msra.mxu0 0.0
    %1604 = vmatprep.subr.mxu0 0.0
    %1605 = vmatpush1.msra.mxu0 0.0
    %1606 = vmatprep.subr.mxu0 0.0
    %1607 = vmatpush1.msra.mxu0 0.0
    %1608 = vmatprep.subr.mxu0 0.0
    %1609 = vmatpush1.msra.mxu0 0.0
    %1610 = vmatprep.subr.mxu0 0.0
    %1611 = vmatpush1.msra.mxu0 0.0
    %1612 = vmatprep.subr.mxu0 0.0
    %1613 = vmatpush1.msra.mxu0 0.0
    %1614 = vmatprep.subr.mxu0 0.0
    %1615 = vmatpush1.msra.mxu0 0.0
    %1616 = vmatprep.mubr.f32.mxu0 0.0
    %1617 = vmatmul.mubr.f32.gmra.mrb[0].mxu0 %v866
    %v1618 = vpop.f32.mrb[0].mxu0
    %v1619 = vadd.f32 0.0, %v1618
    %v1620 = vpop.f32.mrb[0].mxu0
    %v1621 = vadd.f32 0.0, %v1620
    %1622 = vmatprep.mubr.f32.mxu0 0.0
    %1623 = vmatmul.mubr.f32.gmra.mrb[0].mxu0 %v869
    %v1624 = vpop.f32.mrb[0].mxu0
    %v1625 = vadd.f32 0.0, %v1624
    %v1626 = vpop.f32.mrb[0].mxu0
    %v1627 = vadd.f32 0.0, %v1626
    %1628 = vdwg.mxu0
    %1629 = vmatprep.subr.mxu0 %v910
    %1630 = vmatpush1.msra.mxu0 %v908
    %1631 = vmatprep.subr.mxu0 0.0
    %1632 = vmatpush1.msra.mxu0 0.0
    %1633 = vmatprep.subr.mxu0 0.0
    %1634 = vmatpush1.msra.mxu0 0.0
    %1635 = vmatprep.subr.mxu0 0.0
    %1636 = vmatpush1.msra.mxu0 0.0
    %1637 = vmatprep.subr.mxu0 0.0
    %1638 = vmatpush1.msra.mxu0 0.0
    %1639 = vmatprep.subr.mxu0 0.0
    %1640 = vmatpush1.msra.mxu0 0.0
    %1641 = vmatprep.subr.mxu0 0.0
    %1642 = vmatpush1.msra.mxu0 0.0
    %1643 = vmatprep.subr.mxu0 0.0
    %1644 = vmatpush1.msra.mxu0 0.0
    %1645 = vmatprep.subr.mxu0 0.0
    %1646 = vmatpush1.msra.mxu0 0.0
    %1647 = vmatprep.subr.mxu0 0.0
    %1648 = vmatpush1.msra.mxu0 0.0
    %1649 = vmatprep.subr.mxu0 0.0
    %1650 = vmatpush1.msra.mxu0 0.0
    %1651 = vmatprep.subr.mxu0 0.0
    %1652 = vmatpush1.msra.mxu0 0.0
    %1653 = vmatprep.subr.mxu0 0.0
    %1654 = vmatpush1.msra.mxu0 0.0
    %1655 = vmatprep.subr.mxu0 0.0
    %1656 = vmatpush1.msra.mxu0 0.0
    %1657 = vmatprep.subr.mxu0 0.0
    %1658 = vmatpush1.msra.mxu0 0.0
    %1659 = vmatprep.subr.mxu0 0.0
    %1660 = vmatpush1.msra.mxu0 0.0
    %1661 = vmatprep.subr.mxu0 0.0
    %1662 = vmatpush1.msra.mxu0 0.0
    %1663 = vmatprep.subr.mxu0 0.0
    %1664 = vmatpush1.msra.mxu0 0.0
    %1665 = vmatprep.subr.mxu0 0.0
    %1666 = vmatpush1.msra.mxu0 0.0
    %1667 = vmatprep.subr.mxu0 0.0
    %1668 = vmatpush1.msra.mxu0 0.0
    %1669 = vmatprep.subr.mxu0 0.0
    %1670 = vmatpush1.msra.mxu0 0.0
    %1671 = vmatprep.subr.mxu0 0.0
    %1672 = vmatpush1.msra.mxu0 0.0
    %1673 = vmatprep.subr.mxu0 0.0
    %1674 = vmatpush1.msra.mxu0 0.0
    %1675 = vmatprep.subr.mxu0 0.0
    %1676 = vmatpush1.msra.mxu0 0.0
    %1677 = vmatprep.subr.mxu0 0.0
    %1678 = vmatpush1.msra.mxu0 0.0
    %1679 = vmatprep.subr.mxu0 0.0
    %1680 = vmatpush1.msra.mxu0 0.0
    %1681 = vmatprep.subr.mxu0 0.0
    %1682 = vmatpush1.msra.mxu0 0.0
    %1683 = vmatprep.subr.mxu0 0.0
    %1684 = vmatpush1.msra.mxu0 0.0
    %1685 = vmatprep.subr.mxu0 0.0
    %1686 = vmatpush1.msra.mxu0 0.0
    %1687 = vmatprep.subr.mxu0 0.0
    %1688 = vmatpush1.msra.mxu0 0.0
    %1689 = vmatprep.subr.mxu0 0.0
    %1690 = vmatpush1.msra.mxu0 0.0
    %1691 = vmatprep.subr.mxu0 0.0
    %1692 = vmatpush1.msra.mxu0 0.0
    %1693 = vmatprep.mubr.f32.mxu0 0.0
    %1694 = vmatmul.mubr.f32.gmra.mrb[0].mxu0 %v866
    %v1695 = vpop.f32.mrb[0].mxu0
    %v1696 = vadd.f32 0.0, %v1695
    %v1697 = vpop.f32.mrb[0].mxu0
    %v1698 = vadd.f32 0.0, %v1697
    %1699 = vmatprep.mubr.f32.mxu0 0.0
    %1700 = vmatmul.mubr.f32.gmra.mrb[0].mxu0 %v869
    %v1701 = vpop.f32.mrb[0].mxu0
    %v1702 = vadd.f32 0.0, %v1701
    %v1703 = vpop.f32.mrb[0].mxu0
    %v1704 = vadd.f32 0.0, %v1703
    %1705 = vdwg.mxu0
    %1706 = vmatprep.subr.mxu0 %v914
    %1707 = vmatpush1.msra.mxu0 %v912
    %1708 = vmatprep.subr.mxu0 0.0
    %1709 = vmatpush1.msra.mxu0 0.0
    %1710 = vmatprep.subr.mxu0 0.0
    %1711 = vmatpush1.msra.mxu0 0.0
    %1712 = vmatprep.subr.mxu0 0.0
    %1713 = vmatpush1.msra.mxu0 0.0
    %1714 = vmatprep.subr.mxu0 0.0
    %1715 = vmatpush1.msra.mxu0 0.0
    %1716 = vmatprep.subr.mxu0 0.0
    %1717 = vmatpush1.msra.mxu0 0.0
    %1718 = vmatprep.subr.mxu0 0.0
    %1719 = vmatpush1.msra.mxu0 0.0
    %1720 = vmatprep.subr.mxu0 0.0
    %1721 = vmatpush1.msra.mxu0 0.0
    %1722 = vmatprep.subr.mxu0 0.0
    %1723 = vmatpush1.msra.mxu0 0.0
    %1724 = vmatprep.subr.mxu0 0.0
    %1725 = vmatpush1.msra.mxu0 0.0
    %1726 = vmatprep.subr.mxu0 0.0
    %1727 = vmatpush1.msra.mxu0 0.0
    %1728 = vmatprep.subr.mxu0 0.0
    %1729 = vmatpush1.msra.mxu0 0.0
    %1730 = vmatprep.subr.mxu0 0.0
    %1731 = vmatpush1.msra.mxu0 0.0
    %1732 = vmatprep.subr.mxu0 0.0
    %1733 = vmatpush1.msra.mxu0 0.0
    %1734 = vmatprep.subr.mxu0 0.0
    %1735 = vmatpush1.msra.mxu0 0.0
    %1736 = vmatprep.subr.mxu0 0.0
    %1737 = vmatpush1.msra.mxu0 0.0
    %1738 = vmatprep.subr.mxu0 0.0
    %1739 = vmatpush1.msra.mxu0 0.0
    %1740 = vmatprep.subr.mxu0 0.0
    %1741 = vmatpush1.msra.mxu0 0.0
    %1742 = vmatprep.subr.mxu0 0.0
    %1743 = vmatpush1.msra.mxu0 0.0
    %1744 = vmatprep.subr.mxu0 0.0
    %1745 = vmatpush1.msra.mxu0 0.0
    %1746 = vmatprep.subr.mxu0 0.0
    %1747 = vmatpush1.msra.mxu0 0.0
    %1748 = vmatprep.subr.mxu0 0.0
    %1749 = vmatpush1.msra.mxu0 0.0
    %1750 = vmatprep.subr.mxu0 0.0
    %1751 = vmatpush1.msra.mxu0 0.0
    %1752 = vmatprep.subr.mxu0 0.0
    %1753 = vmatpush1.msra.mxu0 0.0
    %1754 = vmatprep.subr.mxu0 0.0
    %1755 = vmatpush1.msra.mxu0 0.0
    %1756 = vmatprep.subr.mxu0 0.0
    %1757 = vmatpush1.msra.mxu0 0.0
    %1758 = vmatprep.subr.mxu0 0.0
    %1759 = vmatpush1.msra.mxu0 0.0
    %1760 = vmatprep.subr.mxu0 0.0
    %1761 = vmatpush1.msra.mxu0 0.0
    %1762 = vmatprep.subr.mxu0 0.0
    %1763 = vmatpush1.msra.mxu0 0.0
    %1764 = vmatprep.subr.mxu0 0.0
    %1765 = vmatpush1.msra.mxu0 0.0
    %1766 = vmatprep.subr.mxu0 0.0
    %1767 = vmatpush1.msra.mxu0 0.0
    %1768 = vmatprep.subr.mxu0 0.0
    %1769 = vmatpush1.msra.mxu0 0.0
    %1770 = vmatprep.mubr.f32.mxu0 0.0
    %1771 = vmatmul.mubr.f32.gmra.mrb[0].mxu0 %v866
    %v1772 = vpop.f32.mrb[0].mxu0
    %v1773 = vadd.f32 0.0, %v1772
    %v1774 = vpop.f32.mrb[0].mxu0
    %v1775 = vadd.f32 0.0, %v1774
    %1776 = vmatprep.mubr.f32.mxu0 0.0
    %1777 = vmatmul.mubr.f32.gmra.mrb[0].mxu0 %v869
    %v1778 = vpop.f32.mrb[0].mxu0
    %v1779 = vadd.f32 0.0, %v1778
    %v1780 = vpop.f32.mrb[0].mxu0
    %v1781 = vadd.f32 0.0, %v1780
    %1782 = vdwg.mxu0
    %1783 = vmatprep.subr.mxu0 %v918
    %1784 = vmatpush1.msra.mxu0 %v916
    %1785 = vmatprep.subr.mxu0 0.0
    %1786 = vmatpush1.msra.mxu0 0.0
    %1787 = vmatprep.subr.mxu0 0.0
    %1788 = vmatpush1.msra.mxu0 0.0
    %1789 = vmatprep.subr.mxu0 0.0
    %1790 = vmatpush1.msra.mxu0 0.0
    %1791 = vmatprep.subr.mxu0 0.0
    %1792 = vmatpush1.msra.mxu0 0.0
    %1793 = vmatprep.subr.mxu0 0.0
    %1794 = vmatpush1.msra.mxu0 0.0
    %1795 = vmatprep.subr.mxu0 0.0
    %1796 = vmatpush1.msra.mxu0 0.0
    %1797 = vmatprep.subr.mxu0 0.0
    %1798 = vmatpush1.msra.mxu0 0.0
    %1799 = vmatprep.subr.mxu0 0.0
    %1800 = vmatpush1.msra.mxu0 0.0
    %1801 = vmatprep.subr.mxu0 0.0
    %1802 = vmatpush1.msra.mxu0 0.0
    %1803 = vmatprep.subr.mxu0 0.0
    %1804 = vmatpush1.msra.mxu0 0.0
    %1805 = vmatprep.subr.mxu0 0.0
    %1806 = vmatpush1.msra.mxu0 0.0
    %1807 = vmatprep.subr.mxu0 0.0
    %1808 = vmatpush1.msra.mxu0 0.0
    %1809 = vmatprep.subr.mxu0 0.0
    %1810 = vmatpush1.msra.mxu0 0.0
    %1811 = vmatprep.subr.mxu0 0.0
    %1812 = vmatpush1.msra.mxu0 0.0
    %1813 = vmatprep.subr.mxu0 0.0
    %1814 = vmatpush1.msra.mxu0 0.0
    %1815 = vmatprep.subr.mxu0 0.0
    %1816 = vmatpush1.msra.mxu0 0.0
    %1817 = vmatprep.subr.mxu0 0.0
    %1818 = vmatpush1.msra.mxu0 0.0
    %1819 = vmatprep.subr.mxu0 0.0
    %1820 = vmatpush1.msra.mxu0 0.0
    %1821 = vmatprep.subr.mxu0 0.0
    %1822 = vmatpush1.msra.mxu0 0.0
    %1823 = vmatprep.subr.mxu0 0.0
    %1824 = vmatpush1.msra.mxu0 0.0
    %1825 = vmatprep.subr.mxu0 0.0
    %1826 = vmatpush1.msra.mxu0 0.0
    %1827 = vmatprep.subr.mxu0 0.0
    %1828 = vmatpush1.msra.mxu0 0.0
    %1829 = vmatprep.subr.mxu0 0.0
    %1830 = vmatpush1.msra.mxu0 0.0
    %1831 = vmatprep.subr.mxu0 0.0
    %1832 = vmatpush1.msra.mxu0 0.0
    %1833 = vmatprep.subr.mxu0 0.0
    %1834 = vmatpush1.msra.mxu0 0.0
    %1835 = vmatprep.subr.mxu0 0.0
    %1836 = vmatpush1.msra.mxu0 0.0
    %1837 = vmatprep.subr.mxu0 0.0
    %1838 = vmatpush1.msra.mxu0 0.0
    %1839 = vmatprep.subr.mxu0 0.0
    %1840 = vmatpush1.msra.mxu0 0.0
    %1841 = vmatprep.subr.mxu0 0.0
    %1842 = vmatpush1.msra.mxu0 0.0
    %1843 = vmatprep.subr.mxu0 0.0
    %1844 = vmatpush1.msra.mxu0 0.0
    %1845 = vmatprep.subr.mxu0 0.0
    %1846 = vmatpush1.msra.mxu0 0.0
    %1847 = vmatprep.mubr.f32.mxu0 0.0
    %1848 = vmatmul.mubr.f32.gmra.mrb[0].mxu0 %v866
    %v1849 = vpop.f32.mrb[0].mxu0
    %v1850 = vadd.f32 0.0, %v1849
    %v1851 = vpop.f32.mrb[0].mxu0
    %v1852 = vadd.f32 0.0, %v1851
    %1853 = vmatprep.mubr.f32.mxu0 0.0
    %1854 = vmatmul.mubr.f32.gmra.mrb[0].mxu0 %v869
    %v1855 = vpop.f32.mrb[0].mxu0
    %v1856 = vadd.f32 0.0, %v1855
    %v1857 = vpop.f32.mrb[0].mxu0
    %v1858 = vadd.f32 0.0, %v1857
    %1859 = vdwg.mxu0
    %1860 = vmatprep.subr.mxu0 %v922
    %1861 = vmatpush1.msra.mxu0 %v920
    %1862 = vmatprep.subr.mxu0 0.0
    %1863 = vmatpush1.msra.mxu0 0.0
    %1864 = vmatprep.subr.mxu0 0.0
    %1865 = vmatpush1.msra.mxu0 0.0
    %1866 = vmatprep.subr.mxu0 0.0
    %1867 = vmatpush1.msra.mxu0 0.0
    %1868 = vmatprep.subr.mxu0 0.0
    %1869 = vmatpush1.msra.mxu0 0.0
    %1870 = vmatprep.subr.mxu0 0.0
    %1871 = vmatpush1.msra.mxu0 0.0
    %1872 = vmatprep.subr.mxu0 0.0
    %1873 = vmatpush1.msra.mxu0 0.0
    %1874 = vmatprep.subr.mxu0 0.0
    %1875 = vmatpush1.msra.mxu0 0.0
    %1876 = vmatprep.subr.mxu0 0.0
    %1877 = vmatpush1.msra.mxu0 0.0
    %1878 = vmatprep.subr.mxu0 0.0
    %1879 = vmatpush1.msra.mxu0 0.0
    %1880 = vmatprep.subr.mxu0 0.0
    %1881 = vmatpush1.msra.mxu0 0.0
    %1882 = vmatprep.subr.mxu0 0.0
    %1883 = vmatpush1.msra.mxu0 0.0
    %1884 = vmatprep.subr.mxu0 0.0
    %1885 = vmatpush1.msra.mxu0 0.0
    %1886 = vmatprep.subr.mxu0 0.0
    %1887 = vmatpush1.msra.mxu0 0.0
    %1888 = vmatprep.subr.mxu0 0.0
    %1889 = vmatpush1.msra.mxu0 0.0
    %1890 = vmatprep.subr.mxu0 0.0
    %1891 = vmatpush1.msra.mxu0 0.0
    %1892 = vmatprep.subr.mxu0 0.0
    %1893 = vmatpush1.msra.mxu0 0.0
    %1894 = vmatprep.subr.mxu0 0.0
    %1895 = vmatpush1.msra.mxu0 0.0
    %1896 = vmatprep.subr.mxu0 0.0
    %1897 = vmatpush1.msra.mxu0 0.0
    %1898 = vmatprep.subr.mxu0 0.0
    %1899 = vmatpush1.msra.mxu0 0.0
    %1900 = vmatprep.subr.mxu0 0.0
    %1901 = vmatpush1.msra.mxu0 0.0
    %1902 = vmatprep.subr.mxu0 0.0
    %1903 = vmatpush1.msra.mxu0 0.0
    %1904 = vmatprep.subr.mxu0 0.0
    %1905 = vmatpush1.msra.mxu0 0.0
    %1906 = vmatprep.subr.mxu0 0.0
    %1907 = vmatpush1.msra.mxu0 0.0
    %1908 = vmatprep.subr.mxu0 0.0
    %1909 = vmatpush1.msra.mxu0 0.0
    %1910 = vmatprep.subr.mxu0 0.0
    %1911 = vmatpush1.msra.mxu0 0.0
    %1912 = vmatprep.subr.mxu0 0.0
    %1913 = vmatpush1.msra.mxu0 0.0
    %1914 = vmatprep.subr.mxu0 0.0
    %1915 = vmatpush1.msra.mxu0 0.0
    %1916 = vmatprep.subr.mxu0 0.0
    %1917 = vmatpush1.msra.mxu0 0.0
    %1918 = vmatprep.subr.mxu0 0.0
    %1919 = vmatpush1.msra.mxu0 0.0
    %1920 = vmatprep.subr.mxu0 0.0
    %1921 = vmatpush1.msra.mxu0 0.0
    %1922 = vmatprep.subr.mxu0 0.0
    %1923 = vmatpush1.msra.mxu0 0.0
    %1924 = vmatprep.mubr.f32.mxu0 0.0
    %1925 = vmatmul.mubr.f32.gmra.mrb[0].mxu0 %v866
    %v1926 = vpop.f32.mrb[0].mxu0
    %v1927 = vadd.f32 0.0, %v1926
    %v1928 = vpop.f32.mrb[0].mxu0
    %v1929 = vadd.f32 0.0, %v1928
    %1930 = vmatprep.mubr.f32.mxu0 0.0
    %1931 = vmatmul.mubr.f32.gmra.mrb[0].mxu0 %v869
    %v1932 = vpop.f32.mrb[0].mxu0
    %v1933 = vadd.f32 0.0, %v1932
    %v1934 = vpop.f32.mrb[0].mxu0
    %v1935 = vadd.f32 0.0, %v1934
    %1936 = vdwg.mxu0
    %1937 = vmatprep.subr.mxu0 %v926
    %1938 = vmatpush1.msra.mxu0 %v924
    %1939 = vmatprep.subr.mxu0 0.0
    %1940 = vmatpush1.msra.mxu0 0.0
    %1941 = vmatprep.subr.mxu0 0.0
    %1942 = vmatpush1.msra.mxu0 0.0
    %1943 = vmatprep.subr.mxu0 0.0
    %1944 = vmatpush1.msra.mxu0 0.0
    %1945 = vmatprep.subr.mxu0 0.0
    %1946 = vmatpush1.msra.mxu0 0.0
    %1947 = vmatprep.subr.mxu0 0.0
    %1948 = vmatpush1.msra.mxu0 0.0
    %1949 = vmatprep.subr.mxu0 0.0
    %1950 = vmatpush1.msra.mxu0 0.0
    %1951 = vmatprep.subr.mxu0 0.0
    %1952 = vmatpush1.msra.mxu0 0.0
    %1953 = vmatprep.subr.mxu0 0.0
    %1954 = vmatpush1.msra.mxu0 0.0
    %1955 = vmatprep.subr.mxu0 0.0
    %1956 = vmatpush1.msra.mxu0 0.0
    %1957 = vmatprep.subr.mxu0 0.0
    %1958 = vmatpush1.msra.mxu0 0.0
    %1959 = vmatprep.subr.mxu0 0.0
    %1960 = vmatpush1.msra.mxu0 0.0
    %1961 = vmatprep.subr.mxu0 0.0
    %1962 = vmatpush1.msra.mxu0 0.0
    %1963 = vmatprep.subr.mxu0 0.0
    %1964 = vmatpush1.msra.mxu0 0.0
    %1965 = vmatprep.subr.mxu0 0.0
    %1966 = vmatpush1.msra.mxu0 0.0
    %1967 = vmatprep.subr.mxu0 0.0
    %1968 = vmatpush1.msra.mxu0 0.0
    %1969 = vmatprep.subr.mxu0 0.0
    %1970 = vmatpush1.msra.mxu0 0.0
    %1971 = vmatprep.subr.mxu0 0.0
    %1972 = vmatpush1.msra.mxu0 0.0
    %1973 = vmatprep.subr.mxu0 0.0
    %1974 = vmatpush1.msra.mxu0 0.0
    %1975 = vmatprep.subr.mxu0 0.0
    %1976 = vmatpush1.msra.mxu0 0.0
    %1977 = vmatprep.subr.mxu0 0.0
    %1978 = vmatpush1.msra.mxu0 0.0
    %1979 = vmatprep.subr.mxu0 0.0
    %1980 = vmatpush1.msra.mxu0 0.0
    %1981 = vmatprep.subr.mxu0 0.0
    %1982 = vmatpush1.msra.mxu0 0.0
    %1983 = vmatprep.subr.mxu0 0.0
    %1984 = vmatpush1.msra.mxu0 0.0
    %1985 = vmatprep.subr.mxu0 0.0
    %1986 = vmatpush1.msra.mxu0 0.0
    %1987 = vmatprep.subr.mxu0 0.0
    %1988 = vmatpush1.msra.mxu0 0.0
    %1989 = vmatprep.subr.mxu0 0.0
    %1990 = vmatpush1.msra.mxu0 0.0
    %1991 = vmatprep.subr.mxu0 0.0
    %1992 = vmatpush1.msra.mxu0 0.0
    %1993 = vmatprep.subr.mxu0 0.0
    %1994 = vmatpush1.msra.mxu0 0.0
    %1995 = vmatprep.subr.mxu0 0.0
    %1996 = vmatpush1.msra.mxu0 0.0
    %1997 = vmatprep.subr.mxu0 0.0
    %1998 = vmatpush1.msra.mxu0 0.0
    %1999 = vmatprep.subr.mxu0 0.0
    %2000 = vmatpush1.msra.mxu0 0.0
    %2001 = vmatprep.mubr.f32.mxu0 0.0
    %2002 = vmatmul.mubr.f32.gmra.mrb[0].mxu0 %v866
    %v2003 = vpop.f32.mrb[0].mxu0
    %v2004 = vadd.f32 0.0, %v2003
    %v2005 = vpop.f32.mrb[0].mxu0
    %v2006 = vadd.f32 0.0, %v2005
    %2007 = vmatprep.mubr.f32.mxu0 0.0
    %2008 = vmatmul.mubr.f32.gmra.mrb[0].mxu0 %v869
    %v2009 = vpop.f32.mrb[0].mxu0
    %v2010 = vadd.f32 0.0, %v2009
    %v2011 = vpop.f32.mrb[0].mxu0
    %v2012 = vadd.f32 0.0, %v2011
    %2013 = vdwg.mxu0
    %2014 = vmatprep.subr.mxu0 %v930
    %2015 = vmatpush1.msra.mxu0 %v928
    %2016 = vmatprep.subr.mxu0 0.0
    %2017 = vmatpush1.msra.mxu0 0.0
    %2018 = vmatprep.subr.mxu0 0.0
    %2019 = vmatpush1.msra.mxu0 0.0
    %2020 = vmatprep.subr.mxu0 0.0
    %2021 = vmatpush1.msra.mxu0 0.0
    %2022 = vmatprep.subr.mxu0 0.0
    %2023 = vmatpush1.msra.mxu0 0.0
    %2024 = vmatprep.subr.mxu0 0.0
    %2025 = vmatpush1.msra.mxu0 0.0
    %2026 = vmatprep.subr.mxu0 0.0
    %2027 = vmatpush1.msra.mxu0 0.0
    %2028 = vmatprep.subr.mxu0 0.0
    %2029 = vmatpush1.msra.mxu0 0.0
    %2030 = vmatprep.subr.mxu0 0.0
    %2031 = vmatpush1.msra.mxu0 0.0
    %2032 = vmatprep.subr.mxu0 0.0
    %2033 = vmatpush1.msra.mxu0 0.0
    %2034 = vmatprep.subr.mxu0 0.0
    %2035 = vmatpush1.msra.mxu0 0.0
    %2036 = vmatprep.subr.mxu0 0.0
    %2037 = vmatpush1.msra.mxu0 0.0
    %2038 = vmatprep.subr.mxu0 0.0
    %2039 = vmatpush1.msra.mxu0 0.0
    %2040 = vmatprep.subr.mxu0 0.0
    %2041 = vmatpush1.msra.mxu0 0.0
    %2042 = vmatprep.subr.mxu0 0.0
    %2043 = vmatpush1.msra.mxu0 0.0
    %2044 = vmatprep.subr.mxu0 0.0
    %2045 = vmatpush1.msra.mxu0 0.0
    %2046 = vmatprep.subr.mxu0 0.0
    %2047 = vmatpush1.msra.mxu0 0.0
    %2048 = vmatprep.subr.mxu0 0.0
    %2049 = vmatpush1.msra.mxu0 0.0
    %2050 = vmatprep.subr.mxu0 0.0
    %2051 = vmatpush1.msra.mxu0 0.0
    %2052 = vmatprep.subr.mxu0 0.0
    %2053 = vmatpush1.msra.mxu0 0.0
    %2054 = vmatprep.subr.mxu0 0.0
    %2055 = vmatpush1.msra.mxu0 0.0
    %2056 = vmatprep.subr.mxu0 0.0
    %2057 = vmatpush1.msra.mxu0 0.0
    %2058 = vmatprep.subr.mxu0 0.0
    %2059 = vmatpush1.msra.mxu0 0.0
    %2060 = vmatprep.subr.mxu0 0.0
    %2061 = vmatpush1.msra.mxu0 0.0
    %2062 = vmatprep.subr.mxu0 0.0
    %2063 = vmatpush1.msra.mxu0 0.0
    %2064 = vmatprep.subr.mxu0 0.0
    %2065 = vmatpush1.msra.mxu0 0.0
    %2066 = vmatprep.subr.mxu0 0.0
    %2067 = vmatpush1.msra.mxu0 0.0
    %2068 = vmatprep.subr.mxu0 0.0
    %2069 = vmatpush1.msra.mxu0 0.0
    %2070 = vmatprep.subr.mxu0 0.0
    %2071 = vmatpush1.msra.mxu0 0.0
    %2072 = vmatprep.subr.mxu0 0.0
    %2073 = vmatpush1.msra.mxu0 0.0
    %2074 = vmatprep.subr.mxu0 0.0
    %2075 = vmatpush1.msra.mxu0 0.0
    %2076 = vmatprep.subr.mxu0 0.0
    %2077 = vmatpush1.msra.mxu0 0.0
    %2078 = vmatprep.mubr.f32.mxu0 0.0
    %2079 = vmatmul.mubr.f32.gmra.mrb[0].mxu0 %v866
    %v2080 = vpop.f32.mrb[0].mxu0
    %v2081 = vadd.f32 0.0, %v2080
    %v2082 = vpop.f32.mrb[0].mxu0
    %v2083 = vadd.f32 0.0, %v2082
    %2084 = vmatprep.mubr.f32.mxu0 0.0
    %2085 = vmatmul.mubr.f32.gmra.mrb[0].mxu0 %v869
    %v2086 = vpop.f32.mrb[0].mxu0
    %v2087 = vadd.f32 0.0, %v2086
    %v2088 = vpop.f32.mrb[0].mxu0
    %v2089 = vadd.f32 0.0, %v2088
    %2090 = vdwg.mxu0
    %2091 = vmatprep.subr.mxu0 %v934
    %2092 = vmatpush1.msra.mxu0 %v932
    %2093 = vmatprep.subr.mxu0 0.0
    %2094 = vmatpush1.msra.mxu0 0.0
    %2095 = vmatprep.subr.mxu0 0.0
    %2096 = vmatpush1.msra.mxu0 0.0
    %2097 = vmatprep.subr.mxu0 0.0
    %2098 = vmatpush1.msra.mxu0 0.0
    %2099 = vmatprep.subr.mxu0 0.0
    %2100 = vmatpush1.msra.mxu0 0.0
    %2101 = vmatprep.subr.mxu0 0.0
    %2102 = vmatpush1.msra.mxu0 0.0
    %2103 = vmatprep.subr.mxu0 0.0
    %2104 = vmatpush1.msra.mxu0 0.0
    %2105 = vmatprep.subr.mxu0 0.0
    %2106 = vmatpush1.msra.mxu0 0.0
    %2107 = vmatprep.subr.mxu0 0.0
    %2108 = vmatpush1.msra.mxu0 0.0
    %2109 = vmatprep.subr.mxu0 0.0
    %2110 = vmatpush1.msra.mxu0 0.0
    %2111 = vmatprep.subr.mxu0 0.0
    %2112 = vmatpush1.msra.mxu0 0.0
    %2113 = vmatprep.subr.mxu0 0.0
    %2114 = vmatpush1.msra.mxu0 0.0
    %2115 = vmatprep.subr.mxu0 0.0
    %2116 = vmatpush1.msra.mxu0 0.0
    %2117 = vmatprep.subr.mxu0 0.0
    %2118 = vmatpush1.msra.mxu0 0.0
    %2119 = vmatprep.subr.mxu0 0.0
    %2120 = vmatpush1.msra.mxu0 0.0
    %2121 = vmatprep.subr.mxu0 0.0
    %2122 = vmatpush1.msra.mxu0 0.0
    %2123 = vmatprep.subr.mxu0 0.0
    %2124 = vmatpush1.msra.mxu0 0.0
    %2125 = vmatprep.subr.mxu0 0.0
    %2126 = vmatpush1.msra.mxu0 0.0
    %2127 = vmatprep.subr.mxu0 0.0
    %2128 = vmatpush1.msra.mxu0 0.0
    %2129 = vmatprep.subr.mxu0 0.0
    %2130 = vmatpush1.msra.mxu0 0.0
    %2131 = vmatprep.subr.mxu0 0.0
    %2132 = vmatpush1.msra.mxu0 0.0
    %2133 = vmatprep.subr.mxu0 0.0
    %2134 = vmatpush1.msra.mxu0 0.0
    %2135 = vmatprep.subr.mxu0 0.0
    %2136 = vmatpush1.msra.mxu0 0.0
    %2137 = vmatprep.subr.mxu0 0.0
    %2138 = vmatpush1.msra.mxu0 0.0
    %2139 = vmatprep.subr.mxu0 0.0
    %2140 = vmatpush1.msra.mxu0 0.0
    %2141 = vmatprep.subr.mxu0 0.0
    %2142 = vmatpush1.msra.mxu0 0.0
    %2143 = vmatprep.subr.mxu0 0.0
    %2144 = vmatpush1.msra.mxu0 0.0
    %2145 = vmatprep.subr.mxu0 0.0
    %2146 = vmatpush1.msra.mxu0 0.0
    %2147 = vmatprep.subr.mxu0 0.0
    %2148 = vmatpush1.msra.mxu0 0.0
    %2149 = vmatprep.subr.mxu0 0.0
    %2150 = vmatpush1.msra.mxu0 0.0
    %2151 = vmatprep.subr.mxu0 0.0
    %2152 = vmatpush1.msra.mxu0 0.0
    %2153 = vmatprep.subr.mxu0 0.0
    %2154 = vmatpush1.msra.mxu0 0.0
    %2155 = vmatprep.mubr.f32.mxu0 0.0
    %2156 = vmatmul.mubr.f32.gmra.mrb[0].mxu0 %v866
    %v2157 = vpop.f32.mrb[0].mxu0
    %v2158 = vadd.f32 0.0, %v2157
    %v2159 = vpop.f32.mrb[0].mxu0
    %v2160 = vadd.f32 0.0, %v2159
    %2161 = vmatprep.mubr.f32.mxu0 0.0
    %2162 = vmatmul.mubr.f32.gmra.mrb[0].mxu0 %v869
    %v2163 = vpop.f32.mrb[0].mxu0
    %v2164 = vadd.f32 0.0, %v2163
    %v2165 = vpop.f32.mrb[0].mxu0
    %v2166 = vadd.f32 0.0, %v2165
    %2167 = vdwg.mxu0
    %vm2168 = vcmask 80896
    %v2170 = vsel %vm2168, %v662, 0
    %v2173 = vsel %vm2168, %v663, 0
    %vm2175 = vcmask 1041408
    %v2177 = vsel %vm2175, %v696, 0
    %v2180 = vsel %vm2175, %v697, 0
    %v2183 = vsel %vm2175, %v698, 0
    %v2186 = vsel %vm2175, %v699, 0
    %v2189 = vsel %vm2175, %v700, 0
    %v2192 = vsel %vm2175, %v701, 0
    %v2195 = vsel %vm2175, %v702, 0
    %v2198 = vsel %vm2175, %v703, 0
    %v2201 = vsel %vm2175, %v704, 0
    %v2204 = vsel %vm2175, %v705, 0
    %v2207 = vsel %vm2175, %v706, 0
    %v2210 = vsel %vm2175, %v707, 0
    %v2213 = vsel %vm2175, %v708, 0
    %v2216 = vsel %vm2175, %v709, 0
    %v2219 = vsel %vm2175, %v710, 0
    %v2222 = vsel %vm2175, %v711, 0
    %v2225 = vsel %vm2175, %v712, 0
    %v2228 = vsel %vm2175, %v713, 0
    %v2231 = vsel %vm2175, %v714, 0
    %v2234 = vsel %vm2175, %v715, 0
    %v2237 = vsel %vm2175, %v716, 0
    %v2240 = vsel %vm2175, %v717, 0
    %v2243 = vsel %vm2175, %v718, 0
    %v2246 = vsel %vm2175, %v719, 0
    %v2249 = vsel %vm2175, %v720, 0
    %v2252 = vsel %vm2175, %v721, 0
    %v2255 = vsel %vm2175, %v722, 0
    %v2258 = vsel %vm2175, %v723, 0
    %v2261 = vsel %vm2175, %v724, 0
    %v2264 = vsel %vm2175, %v725, 0
    %v2267 = vsel %vm2175, %v726, 0
    %v2270 = vsel %vm2175, %v727, 0
    %2272 = vmatprep.subr.mxu0 %v665
    %2273 = vmatpush1.msra.mxu0 %v664
    %2274 = vmatprep.subr.mxu0 %v2180
    %2275 = vmatpush1.msra.mxu0 %v2177
    %2276 = vmatprep.subr.mxu0 0.0
    %2277 = vmatpush1.msra.mxu0 0.0
    %2278 = vmatprep.subr.mxu0 0.0
    %2279 = vmatpush1.msra.mxu0 0.0
    %2280 = vmatprep.subr.mxu0 0.0
    %2281 = vmatpush1.msra.mxu0 0.0
    %2282 = vmatprep.subr.mxu0 0.0
    %2283 = vmatpush1.msra.mxu0 0.0
    %2284 = vmatprep.subr.mxu0 0.0
    %2285 = vmatpush1.msra.mxu0 0.0
    %2286 = vmatprep.subr.mxu0 0.0
    %2287 = vmatpush1.msra.mxu0 0.0
    %2288 = vmatprep.subr.mxu0 0.0
    %2289 = vmatpush1.msra.mxu0 0.0
    %2290 = vmatprep.subr.mxu0 0.0
    %2291 = vmatpush1.msra.mxu0 0.0
    %2292 = vmatprep.subr.mxu0 0.0
    %2293 = vmatpush1.msra.mxu0 0.0
    %2294 = vmatprep.subr.mxu0 0.0
    %2295 = vmatpush1.msra.mxu0 0.0
    %2296 = vmatprep.subr.mxu0 0.0
    %2297 = vmatpush1.msra.mxu0 0.0
    %2298 = vmatprep.subr.mxu0 0.0
    %2299 = vmatpush1.msra.mxu0 0.0
    %2300 = vmatprep.subr.mxu0 0.0
    %2301 = vmatpush1.msra.mxu0 0.0
    %2302 = vmatprep.subr.mxu0 0.0
    %2303 = vmatpush1.msra.mxu0 0.0
    %2304 = vmatprep.subr.mxu0 0.0
    %2305 = vmatpush1.msra.mxu0 0.0
    %2306 = vmatprep.subr.mxu0 0.0
    %2307 = vmatpush1.msra.mxu0 0.0
    %2308 = vmatprep.subr.mxu0 0.0
    %2309 = vmatpush1.msra.mxu0 0.0
    %2310 = vmatprep.subr.mxu0 0.0
    %2311 = vmatpush1.msra.mxu0 0.0
    %2312 = vmatprep.subr.mxu0 0.0
    %2313 = vmatpush1.msra.mxu0 0.0
    %2314 = vmatprep.subr.mxu0 0.0
    %2315 = vmatpush1.msra.mxu0 0.0
    %2316 = vmatprep.subr.mxu0 0.0
    %2317 = vmatpush1.msra.mxu0 0.0
    %2318 = vmatprep.subr.mxu0 0.0
    %2319 = vmatpush1.msra.mxu0 0.0
    %2320 = vmatprep.subr.mxu0 0.0
    %2321 = vmatpush1.msra.mxu0 0.0
    %2322 = vmatprep.subr.mxu0 0.0
    %2323 = vmatpush1.msra.mxu0 0.0
    %2324 = vmatprep.subr.mxu0 0.0
    %2325 = vmatpush1.msra.mxu0 0.0
    %2326 = vmatprep.subr.mxu0 0.0
    %2327 = vmatpush1.msra.mxu0 0.0
    %2328 = vmatprep.subr.mxu0 0.0
    %2329 = vmatpush1.msra.mxu0 0.0
    %2330 = vmatprep.subr.mxu0 0.0
    %2331 = vmatpush1.msra.mxu0 0.0
    %2332 = vmatprep.subr.mxu0 0.0
    %2333 = vmatpush1.msra.mxu0 0.0
    %2334 = vmatprep.subr.mxu0 0.0
    %2335 = vmatpush1.msra.mxu0 0.0
    %2336 = vmatprep.mubr.f32.mxu0 0.0
    %2337 = vmatmul.mubr.f32.gmra.mrb[0].mxu0 %v2170
    %v2338 = vpop.f32.mrb[0].mxu0
    %v2339 = vadd.f32 %v1003, %v2338
    %v2340 = vpop.f32.mrb[0].mxu0
    %v2341 = vadd.f32 %v1005, %v2340
    %2342 = vmatprep.mubr.f32.mxu0 0.0
    %2343 = vmatmul.mubr.f32.gmra.mrb[0].mxu0 %v2173
    %v2344 = vpop.f32.mrb[0].mxu0
    %v2345 = vadd.f32 %v1009, %v2344
    %v2346 = vpop.f32.mrb[0].mxu0
    %v2347 = vadd.f32 %v1011, %v2346
    %2348 = vdwg.mxu0
    %2349 = vmatprep.subr.mxu0 %v667
    %2350 = vmatpush1.msra.mxu0 %v666
    %2351 = vmatprep.subr.mxu0 %v2186
    %2352 = vmatpush1.msra.mxu0 %v2183
    %2353 = vmatprep.subr.mxu0 0.0
    %2354 = vmatpush1.msra.mxu0 0.0
    %2355 = vmatprep.subr.mxu0 0.0
    %2356 = vmatpush1.msra.mxu0 0.0
    %2357 = vmatprep.subr.mxu0 0.0
    %2358 = vmatpush1.msra.mxu0 0.0
    %2359 = vmatprep.subr.mxu0 0.0
    %2360 = vmatpush1.msra.mxu0 0.0
    %2361 = vmatprep.subr.mxu0 0.0
    %2362 = vmatpush1.msra.mxu0 0.0
    %2363 = vmatprep.subr.mxu0 0.0
    %2364 = vmatpush1.msra.mxu0 0.0
    %2365 = vmatprep.subr.mxu0 0.0
    %2366 = vmatpush1.msra.mxu0 0.0
    %2367 = vmatprep.subr.mxu0 0.0
    %2368 = vmatpush1.msra.mxu0 0.0
    %2369 = vmatprep.subr.mxu0 0.0
    %2370 = vmatpush1.msra.mxu0 0.0
    %2371 = vmatprep.subr.mxu0 0.0
    %2372 = vmatpush1.msra.mxu0 0.0
    %2373 = vmatprep.subr.mxu0 0.0
    %2374 = vmatpush1.msra.mxu0 0.0
    %2375 = vmatprep.subr.mxu0 0.0
    %2376 = vmatpush1.msra.mxu0 0.0
    %2377 = vmatprep.subr.mxu0 0.0
    %2378 = vmatpush1.msra.mxu0 0.0
    %2379 = vmatprep.subr.mxu0 0.0
    %2380 = vmatpush1.msra.mxu0 0.0
    %2381 = vmatprep.subr.mxu0 0.0
    %2382 = vmatpush1.msra.mxu0 0.0
    %2383 = vmatprep.subr.mxu0 0.0
    %2384 = vmatpush1.msra.mxu0 0.0
    %2385 = vmatprep.subr.mxu0 0.0
    %2386 = vmatpush1.msra.mxu0 0.0
    %2387 = vmatprep.subr.mxu0 0.0
    %2388 = vmatpush1.msra.mxu0 0.0
    %2389 = vmatprep.subr.mxu0 0.0
    %2390 = vmatpush1.msra.mxu0 0.0
    %2391 = vmatprep.subr.mxu0 0.0
    %2392 = vmatpush1.msra.mxu0 0.0
    %2393 = vmatprep.subr.mxu0 0.0
    %2394 = vmatpush1.msra.mxu0 0.0
    %2395 = vmatprep.subr.mxu0 0.0
    %2396 = vmatpush1.msra.mxu0 0.0
    %2397 = vmatprep.subr.mxu0 0.0
    %2398 = vmatpush1.msra.mxu0 0.0
    %2399 = vmatprep.subr.mxu0 0.0
    %2400 = vmatpush1.msra.mxu0 0.0
    %2401 = vmatprep.subr.mxu0 0.0
    %2402 = vmatpush1.msra.mxu0 0.0
    %2403 = vmatprep.subr.mxu0 0.0
    %2404 = vmatpush1.msra.mxu0 0.0
    %2405 = vmatprep.subr.mxu0 0.0
    %2406 = vmatpush1.msra.mxu0 0.0
    %2407 = vmatprep.subr.mxu0 0.0
    %2408 = vmatpush1.msra.mxu0 0.0
    %2409 = vmatprep.subr.mxu0 0.0
    %2410 = vmatpush1.msra.mxu0 0.0
    %2411 = vmatprep.subr.mxu0 0.0
    %2412 = vmatpush1.msra.mxu0 0.0
    %2413 = vmatprep.mubr.f32.mxu0 0.0
    %2414 = vmatmul.mubr.f32.gmra.mrb[0].mxu0 %v2170
    %v2415 = vpop.f32.mrb[0].mxu0
    %v2416 = vadd.f32 %v1080, %v2415
    %v2417 = vpop.f32.mrb[0].mxu0
    %v2418 = vadd.f32 %v1082, %v2417
    %2419 = vmatprep.mubr.f32.mxu0 0.0
    %2420 = vmatmul.mubr.f32.gmra.mrb[0].mxu0 %v2173
    %v2421 = vpop.f32.mrb[0].mxu0
    %v2422 = vadd.f32 %v1086, %v2421
    %v2423 = vpop.f32.mrb[0].mxu0
    %v2424 = vadd.f32 %v1088, %v2423
    %2425 = vdwg.mxu0
    %2426 = vmatprep.subr.mxu0 %v669
    %2427 = vmatpush1.msra.mxu0 %v668
    %2428 = vmatprep.subr.mxu0 %v2192
    %2429 = vmatpush1.msra.mxu0 %v2189
    %2430 = vmatprep.subr.mxu0 0.0
    %2431 = vmatpush1.msra.mxu0 0.0
    %2432 = vmatprep.subr.mxu0 0.0
    %2433 = vmatpush1.msra.mxu0 0.0
    %2434 = vmatprep.subr.mxu0 0.0
    %2435 = vmatpush1.msra.mxu0 0.0
    %2436 = vmatprep.subr.mxu0 0.0
    %2437 = vmatpush1.msra.mxu0 0.0
    %2438 = vmatprep.subr.mxu0 0.0
    %2439 = vmatpush1.msra.mxu0 0.0
    %2440 = vmatprep.subr.mxu0 0.0
    %2441 = vmatpush1.msra.mxu0 0.0
    %2442 = vmatprep.subr.mxu0 0.0
    %2443 = vmatpush1.msra.mxu0 0.0
    %2444 = vmatprep.subr.mxu0 0.0
    %2445 = vmatpush1.msra.mxu0 0.0
    %2446 = vmatprep.subr.mxu0 0.0
    %2447 = vmatpush1.msra.mxu0 0.0
    %2448 = vmatprep.subr.mxu0 0.0
    %2449 = vmatpush1.msra.mxu0 0.0
    %2450 = vmatprep.subr.mxu0 0.0
    %2451 = vmatpush1.msra.mxu0 0.0
    %2452 = vmatprep.subr.mxu0 0.0
    %2453 = vmatpush1.msra.mxu0 0.0
    %2454 = vmatprep.subr.mxu0 0.0
    %2455 = vmatpush1.msra.mxu0 0.0
    %2456 = vmatprep.subr.mxu0 0.0
    %2457 = vmatpush1.msra.mxu0 0.0
    %2458 = vmatprep.subr.mxu0 0.0
    %2459 = vmatpush1.msra.mxu0 0.0
    %2460 = vmatprep.subr.mxu0 0.0
    %2461 = vmatpush1.msra.mxu0 0.0
    %2462 = vmatprep.subr.mxu0 0.0
    %2463 = vmatpush1.msra.mxu0 0.0
    %2464 = vmatprep.subr.mxu0 0.0
    %2465 = vmatpush1.msra.mxu0 0.0
    %2466 = vmatprep.subr.mxu0 0.0
    %2467 = vmatpush1.msra.mxu0 0.0
    %2468 = vmatprep.subr.mxu0 0.0
    %2469 = vmatpush1.msra.mxu0 0.0
    %2470 = vmatprep.subr.mxu0 0.0
    %2471 = vmatpush1.msra.mxu0 0.0
    %2472 = vmatprep.subr.mxu0 0.0
    %2473 = vmatpush1.msra.mxu0 0.0
    %2474 = vmatprep.subr.mxu0 0.0
    %2475 = vmatpush1.msra.mxu0 0.0
    %2476 = vmatprep.subr.mxu0 0.0
    %2477 = vmatpush1.msra.mxu0 0.0
    %2478 = vmatprep.subr.mxu0 0.0
    %2479 = vmatpush1.msra.mxu0 0.0
    %2480 = vmatprep.subr.mxu0 0.0
    %2481 = vmatpush1.msra.mxu0 0.0
    %2482 = vmatprep.subr.mxu0 0.0
    %2483 = vmatpush1.msra.mxu0 0.0
    %2484 = vmatprep.subr.mxu0 0.0
    %2485 = vmatpush1.msra.mxu0 0.0
    %2486 = vmatprep.subr.mxu0 0.0
    %2487 = vmatpush1.msra.mxu0 0.0
    %2488 = vmatprep.subr.mxu0 0.0
    %2489 = vmatpush1.msra.mxu0 0.0
    %2490 = vmatprep.mubr.f32.mxu0 0.0
    %2491 = vmatmul.mubr.f32.gmra.mrb[0].mxu0 %v2170
    %v2492 = vpop.f32.mrb[0].mxu0
    %v2493 = vadd.f32 %v1157, %v2492
    %v2494 = vpop.f32.mrb[0].mxu0
    %v2495 = vadd.f32 %v1159, %v2494
    %2496 = vmatprep.mubr.f32.mxu0 0.0
    %2497 = vmatmul.mubr.f32.gmra.mrb[0].mxu0 %v2173
    %v2498 = vpop.f32.mrb[0].mxu0
    %v2499 = vadd.f32 %v1163, %v2498
    %v2500 = vpop.f32.mrb[0].mxu0
    %v2501 = vadd.f32 %v1165, %v2500
    %2502 = vdwg.mxu0
    %2503 = vmatprep.subr.mxu0 %v671
    %2504 = vmatpush1.msra.mxu0 %v670
    %2505 = vmatprep.subr.mxu0 %v2198
    %2506 = vmatpush1.msra.mxu0 %v2195
    %2507 = vmatprep.subr.mxu0 0.0
    %2508 = vmatpush1.msra.mxu0 0.0
    %2509 = vmatprep.subr.mxu0 0.0
    %2510 = vmatpush1.msra.mxu0 0.0
    %2511 = vmatprep.subr.mxu0 0.0
    %2512 = vmatpush1.msra.mxu0 0.0
    %2513 = vmatprep.subr.mxu0 0.0
    %2514 = vmatpush1.msra.mxu0 0.0
    %2515 = vmatprep.subr.mxu0 0.0
    %2516 = vmatpush1.msra.mxu0 0.0
    %2517 = vmatprep.subr.mxu0 0.0
    %2518 = vmatpush1.msra.mxu0 0.0
    %2519 = vmatprep.subr.mxu0 0.0
    %2520 = vmatpush1.msra.mxu0 0.0
    %2521 = vmatprep.subr.mxu0 0.0
    %2522 = vmatpush1.msra.mxu0 0.0
    %2523 = vmatprep.subr.mxu0 0.0
    %2524 = vmatpush1.msra.mxu0 0.0
    %2525 = vmatprep.subr.mxu0 0.0
    %2526 = vmatpush1.msra.mxu0 0.0
    %2527 = vmatprep.subr.mxu0 0.0
    %2528 = vmatpush1.msra.mxu0 0.0
    %2529 = vmatprep.subr.mxu0 0.0
    %2530 = vmatpush1.msra.mxu0 0.0
    %2531 = vmatprep.subr.mxu0 0.0
    %2532 = vmatpush1.msra.mxu0 0.0
    %2533 = vmatprep.subr.mxu0 0.0
    %2534 = vmatpush1.msra.mxu0 0.0
    %2535 = vmatprep.subr.mxu0 0.0
    %2536 = vmatpush1.msra.mxu0 0.0
    %2537 = vmatprep.subr.mxu0 0.0
    %2538 = vmatpush1.msra.mxu0 0.0
    %2539 = vmatprep.subr.mxu0 0.0
    %2540 = vmatpush1.msra.mxu0 0.0
    %2541 = vmatprep.subr.mxu0 0.0
    %2542 = vmatpush1.msra.mxu0 0.0
    %2543 = vmatprep.subr.mxu0 0.0
    %2544 = vmatpush1.msra.mxu0 0.0
    %2545 = vmatprep.subr.mxu0 0.0
    %2546 = vmatpush1.msra.mxu0 0.0
    %2547 = vmatprep.subr.mxu0 0.0
    %2548 = vmatpush1.msra.mxu0 0.0
    %2549 = vmatprep.subr.mxu0 0.0
    %2550 = vmatpush1.msra.mxu0 0.0
    %2551 = vmatprep.subr.mxu0 0.0
    %2552 = vmatpush1.msra.mxu0 0.0
    %2553 = vmatprep.subr.mxu0 0.0
    %2554 = vmatpush1.msra.mxu0 0.0
    %2555 = vmatprep.subr.mxu0 0.0
    %2556 = vmatpush1.msra.mxu0 0.0
    %2557 = vmatprep.subr.mxu0 0.0
    %2558 = vmatpush1.msra.mxu0 0.0
    %2559 = vmatprep.subr.mxu0 0.0
    %2560 = vmatpush1.msra.mxu0 0.0
    %2561 = vmatprep.subr.mxu0 0.0
    %2562 = vmatpush1.msra.mxu0 0.0
    %2563 = vmatprep.subr.mxu0 0.0
    %2564 = vmatpush1.msra.mxu0 0.0
    %2565 = vmatprep.subr.mxu0 0.0
    %2566 = vmatpush1.msra.mxu0 0.0
    %2567 = vmatprep.mubr.f32.mxu0 0.0
    %2568 = vmatmul.mubr.f32.gmra.mrb[0].mxu0 %v2170
    %v2569 = vpop.f32.mrb[0].mxu0
    %v2570 = vadd.f32 %v1234, %v2569
    %v2571 = vpop.f32.mrb[0].mxu0
    %v2572 = vadd.f32 %v1236, %v2571
    %2573 = vmatprep.mubr.f32.mxu0 0.0
    %2574 = vmatmul.mubr.f32.gmra.mrb[0].mxu0 %v2173
    %v2575 = vpop.f32.mrb[0].mxu0
    %v2576 = vadd.f32 %v1240, %v2575
    %v2577 = vpop.f32.mrb[0].mxu0
    %v2578 = vadd.f32 %v1242, %v2577
    %2579 = vdwg.mxu0
    %2580 = vmatprep.subr.mxu0 %v673
    %2581 = vmatpush1.msra.mxu0 %v672
    %2582 = vmatprep.subr.mxu0 %v2204
    %2583 = vmatpush1.msra.mxu0 %v2201
    %2584 = vmatprep.subr.mxu0 0.0
    %2585 = vmatpush1.msra.mxu0 0.0
    %2586 = vmatprep.subr.mxu0 0.0
    %2587 = vmatpush1.msra.mxu0 0.0
    %2588 = vmatprep.subr.mxu0 0.0
    %2589 = vmatpush1.msra.mxu0 0.0
    %2590 = vmatprep.subr.mxu0 0.0
    %2591 = vmatpush1.msra.mxu0 0.0
    %2592 = vmatprep.subr.mxu0 0.0
    %2593 = vmatpush1.msra.mxu0 0.0
    %2594 = vmatprep.subr.mxu0 0.0
    %2595 = vmatpush1.msra.mxu0 0.0
    %2596 = vmatprep.subr.mxu0 0.0
    %2597 = vmatpush1.msra.mxu0 0.0
    %2598 = vmatprep.subr.mxu0 0.0
    %2599 = vmatpush1.msra.mxu0 0.0
    %2600 = vmatprep.subr.mxu0 0.0
    %2601 = vmatpush1.msra.mxu0 0.0
    %2602 = vmatprep.subr.mxu0 0.0
    %2603 = vmatpush1.msra.mxu0 0.0
    %2604 = vmatprep.subr.mxu0 0.0
    %2605 = vmatpush1.msra.mxu0 0.0
    %2606 = vmatprep.subr.mxu0 0.0
    %2607 = vmatpush1.msra.mxu0 0.0
    %2608 = vmatprep.subr.mxu0 0.0
    %2609 = vmatpush1.msra.mxu0 0.0
    %2610 = vmatprep.subr.mxu0 0.0
    %2611 = vmatpush1.msra.mxu0 0.0
    %2612 = vmatprep.subr.mxu0 0.0
    %2613 = vmatpush1.msra.mxu0 0.0
    %2614 = vmatprep.subr.mxu0 0.0
    %2615 = vmatpush1.msra.mxu0 0.0
    %2616 = vmatprep.subr.mxu0 0.0
    %2617 = vmatpush1.msra.mxu0 0.0
    %2618 = vmatprep.subr.mxu0 0.0
    %2619 = vmatpush1.msra.mxu0 0.0
    %2620 = vmatprep.subr.mxu0 0.0
    %2621 = vmatpush1.msra.mxu0 0.0
    %2622 = vmatprep.subr.mxu0 0.0
    %2623 = vmatpush1.msra.mxu0 0.0
    %2624 = vmatprep.subr.mxu0 0.0
    %2625 = vmatpush1.msra.mxu0 0.0
    %2626 = vmatprep.subr.mxu0 0.0
    %2627 = vmatpush1.msra.mxu0 0.0
    %2628 = vmatprep.subr.mxu0 0.0
    %2629 = vmatpush1.msra.mxu0 0.0
    %2630 = vmatprep.subr.mxu0 0.0
    %2631 = vmatpush1.msra.mxu0 0.0
    %2632 = vmatprep.subr.mxu0 0.0
    %2633 = vmatpush1.msra.mxu0 0.0
    %2634 = vmatprep.subr.mxu0 0.0
    %2635 = vmatpush1.msra.mxu0 0.0
    %2636 = vmatprep.subr.mxu0 0.0
    %2637 = vmatpush1.msra.mxu0 0.0
    %2638 = vmatprep.subr.mxu0 0.0
    %2639 = vmatpush1.msra.mxu0 0.0
    %2640 = vmatprep.subr.mxu0 0.0
    %2641 = vmatpush1.msra.mxu0 0.0
    %2642 = vmatprep.subr.mxu0 0.0
    %2643 = vmatpush1.msra.mxu0 0.0
    %2644 = vmatprep.mubr.f32.mxu0 0.0
    %2645 = vmatmul.mubr.f32.gmra.mrb[0].mxu0 %v2170
    %v2646 = vpop.f32.mrb[0].mxu0
    %v2647 = vadd.f32 %v1311, %v2646
    %v2648 = vpop.f32.mrb[0].mxu0
    %v2649 = vadd.f32 %v1313, %v2648
    %2650 = vmatprep.mubr.f32.mxu0 0.0
    %2651 = vmatmul.mubr.f32.gmra.mrb[0].mxu0 %v2173
    %v2652 = vpop.f32.mrb[0].mxu0
    %v2653 = vadd.f32 %v1317, %v2652
    %v2654 = vpop.f32.mrb[0].mxu0
    %v2655 = vadd.f32 %v1319, %v2654
    %2656 = vdwg.mxu0
    %2657 = vmatprep.subr.mxu0 %v675
    %2658 = vmatpush1.msra.mxu0 %v674
    %2659 = vmatprep.subr.mxu0 %v2210
    %2660 = vmatpush1.msra.mxu0 %v2207
    %2661 = vmatprep.subr.mxu0 0.0
    %2662 = vmatpush1.msra.mxu0 0.0
    %2663 = vmatprep.subr.mxu0 0.0
    %2664 = vmatpush1.msra.mxu0 0.0
    %2665 = vmatprep.subr.mxu0 0.0
    %2666 = vmatpush1.msra.mxu0 0.0
    %2667 = vmatprep.subr.mxu0 0.0
    %2668 = vmatpush1.msra.mxu0 0.0
    %2669 = vmatprep.subr.mxu0 0.0
    %2670 = vmatpush1.msra.mxu0 0.0
    %2671 = vmatprep.subr.mxu0 0.0
    %2672 = vmatpush1.msra.mxu0 0.0
    %2673 = vmatprep.subr.mxu0 0.0
    %2674 = vmatpush1.msra.mxu0 0.0
    %2675 = vmatprep.subr.mxu0 0.0
    %2676 = vmatpush1.msra.mxu0 0.0
    %2677 = vmatprep.subr.mxu0 0.0
    %2678 = vmatpush1.msra.mxu0 0.0
    %2679 = vmatprep.subr.mxu0 0.0
    %2680 = vmatpush1.msra.mxu0 0.0
    %2681 = vmatprep.subr.mxu0 0.0
    %2682 = vmatpush1.msra.mxu0 0.0
    %2683 = vmatprep.subr.mxu0 0.0
    %2684 = vmatpush1.msra.mxu0 0.0
    %2685 = vmatprep.subr.mxu0 0.0
    %2686 = vmatpush1.msra.mxu0 0.0
    %2687 = vmatprep.subr.mxu0 0.0
    %2688 = vmatpush1.msra.mxu0 0.0
    %2689 = vmatprep.subr.mxu0 0.0
    %2690 = vmatpush1.msra.mxu0 0.0
    %2691 = vmatprep.subr.mxu0 0.0
    %2692 = vmatpush1.msra.mxu0 0.0
    %2693 = vmatprep.subr.mxu0 0.0
    %2694 = vmatpush1.msra.mxu0 0.0
    %2695 = vmatprep.subr.mxu0 0.0
    %2696 = vmatpush1.msra.mxu0 0.0
    %2697 = vmatprep.subr.mxu0 0.0
    %2698 = vmatpush1.msra.mxu0 0.0
    %2699 = vmatprep.subr.mxu0 0.0
    %2700 = vmatpush1.msra.mxu0 0.0
    %2701 = vmatprep.subr.mxu0 0.0
    %2702 = vmatpush1.msra.mxu0 0.0
    %2703 = vmatprep.subr.mxu0 0.0
    %2704 = vmatpush1.msra.mxu0 0.0
    %2705 = vmatprep.subr.mxu0 0.0
    %2706 = vmatpush1.msra.mxu0 0.0
    %2707 = vmatprep.subr.mxu0 0.0
    %2708 = vmatpush1.msra.mxu0 0.0
    %2709 = vmatprep.subr.mxu0 0.0
    %2710 = vmatpush1.msra.mxu0 0.0
    %2711 = vmatprep.subr.mxu0 0.0
    %2712 = vmatpush1.msra.mxu0 0.0
    %2713 = vmatprep.subr.mxu0 0.0
    %2714 = vmatpush1.msra.mxu0 0.0
    %2715 = vmatprep.subr.mxu0 0.0
    %2716 = vmatpush1.msra.mxu0 0.0
    %2717 = vmatprep.subr.mxu0 0.0
    %2718 = vmatpush1.msra.mxu0 0.0
    %2719 = vmatprep.subr.mxu0 0.0
    %2720 = vmatpush1.msra.mxu0 0.0
    %2721 = vmatprep.mubr.f32.mxu0 0.0
    %2722 = vmatmul.mubr.f32.gmra.mrb[0].mxu0 %v2170
    %v2723 = vpop.f32.mrb[0].mxu0
    %v2724 = vadd.f32 %v1388, %v2723
    %v2725 = vpop.f32.mrb[0].mxu0
    %v2726 = vadd.f32 %v1390, %v2725
    %2727 = vmatprep.mubr.f32.mxu0 0.0
    %2728 = vmatmul.mubr.f32.gmra.mrb[0].mxu0 %v2173
    %v2729 = vpop.f32.mrb[0].mxu0
    %v2730 = vadd.f32 %v1394, %v2729
    %v2731 = vpop.f32.mrb[0].mxu0
    %v2732 = vadd.f32 %v1396, %v2731
    %2733 = vdwg.mxu0
    %2734 = vmatprep.subr.mxu0 %v677
    %2735 = vmatpush1.msra.mxu0 %v676
    %2736 = vmatprep.subr.mxu0 %v2216
    %2737 = vmatpush1.msra.mxu0 %v2213
    %2738 = vmatprep.subr.mxu0 0.0
    %2739 = vmatpush1.msra.mxu0 0.0
    %2740 = vmatprep.subr.mxu0 0.0
    %2741 = vmatpush1.msra.mxu0 0.0
    %2742 = vmatprep.subr.mxu0 0.0
    %2743 = vmatpush1.msra.mxu0 0.0
    %2744 = vmatprep.subr.mxu0 0.0
    %2745 = vmatpush1.msra.mxu0 0.0
    %2746 = vmatprep.subr.mxu0 0.0
    %2747 = vmatpush1.msra.mxu0 0.0
    %2748 = vmatprep.subr.mxu0 0.0
    %2749 = vmatpush1.msra.mxu0 0.0
    %2750 = vmatprep.subr.mxu0 0.0
    %2751 = vmatpush1.msra.mxu0 0.0
    %2752 = vmatprep.subr.mxu0 0.0
    %2753 = vmatpush1.msra.mxu0 0.0
    %2754 = vmatprep.subr.mxu0 0.0
    %2755 = vmatpush1.msra.mxu0 0.0
    %2756 = vmatprep.subr.mxu0 0.0
    %2757 = vmatpush1.msra.mxu0 0.0
    %2758 = vmatprep.subr.mxu0 0.0
    %2759 = vmatpush1.msra.mxu0 0.0
    %2760 = vmatprep.subr.mxu0 0.0
    %2761 = vmatpush1.msra.mxu0 0.0
    %2762 = vmatprep.subr.mxu0 0.0
    %2763 = vmatpush1.msra.mxu0 0.0
    %2764 = vmatprep.subr.mxu0 0.0
    %2765 = vmatpush1.msra.mxu0 0.0
    %2766 = vmatprep.subr.mxu0 0.0
    %2767 = vmatpush1.msra.mxu0 0.0
    %2768 = vmatprep.subr.mxu0 0.0
    %2769 = vmatpush1.msra.mxu0 0.0
    %2770 = vmatprep.subr.mxu0 0.0
    %2771 = vmatpush1.msra.mxu0 0.0
    %2772 = vmatprep.subr.mxu0 0.0
    %2773 = vmatpush1.msra.mxu0 0.0
    %2774 = vmatprep.subr.mxu0 0.0
    %2775 = vmatpush1.msra.mxu0 0.0
    %2776 = vmatprep.subr.mxu0 0.0
    %2777 = vmatpush1.msra.mxu0 0.0
    %2778 = vmatprep.subr.mxu0 0.0
    %2779 = vmatpush1.msra.mxu0 0.0
    %2780 = vmatprep.subr.mxu0 0.0
    %2781 = vmatpush1.msra.mxu0 0.0
    %2782 = vmatprep.subr.mxu0 0.0
    %2783 = vmatpush1.msra.mxu0 0.0
    %2784 = vmatprep.subr.mxu0 0.0
    %2785 = vmatpush1.msra.mxu0 0.0
    %2786 = vmatprep.subr.mxu0 0.0
    %2787 = vmatpush1.msra.mxu0 0.0
    %2788 = vmatprep.subr.mxu0 0.0
    %2789 = vmatpush1.msra.mxu0 0.0
    %2790 = vmatprep.subr.mxu0 0.0
    %2791 = vmatpush1.msra.mxu0 0.0
    %2792 = vmatprep.subr.mxu0 0.0
    %2793 = vmatpush1.msra.mxu0 0.0
    %2794 = vmatprep.subr.mxu0 0.0
    %2795 = vmatpush1.msra.mxu0 0.0
    %2796 = vmatprep.subr.mxu0 0.0
    %2797 = vmatpush1.msra.mxu0 0.0
    %2798 = vmatprep.mubr.f32.mxu0 0.0
    %2799 = vmatmul.mubr.f32.gmra.mrb[0].mxu0 %v2170
    %v2800 = vpop.f32.mrb[0].mxu0
    %v2801 = vadd.f32 %v1465, %v2800
    %v2802 = vpop.f32.mrb[0].mxu0
    %v2803 = vadd.f32 %v1467, %v2802
    %2804 = vmatprep.mubr.f32.mxu0 0.0
    %2805 = vmatmul.mubr.f32.gmra.mrb[0].mxu0 %v2173
    %v2806 = vpop.f32.mrb[0].mxu0
    %v2807 = vadd.f32 %v1471, %v2806
    %v2808 = vpop.f32.mrb[0].mxu0
    %v2809 = vadd.f32 %v1473, %v2808
    %2810 = vdwg.mxu0
    %2811 = vmatprep.subr.mxu0 %v679
    %2812 = vmatpush1.msra.mxu0 %v678
    %2813 = vmatprep.subr.mxu0 %v2222
    %2814 = vmatpush1.msra.mxu0 %v2219
    %2815 = vmatprep.subr.mxu0 0.0
    %2816 = vmatpush1.msra.mxu0 0.0
    %2817 = vmatprep.subr.mxu0 0.0
    %2818 = vmatpush1.msra.mxu0 0.0
    %2819 = vmatprep.subr.mxu0 0.0
    %2820 = vmatpush1.msra.mxu0 0.0
    %2821 = vmatprep.subr.mxu0 0.0
    %2822 = vmatpush1.msra.mxu0 0.0
    %2823 = vmatprep.subr.mxu0 0.0
    %2824 = vmatpush1.msra.mxu0 0.0
    %2825 = vmatprep.subr.mxu0 0.0
    %2826 = vmatpush1.msra.mxu0 0.0
    %2827 = vmatprep.subr.mxu0 0.0
    %2828 = vmatpush1.msra.mxu0 0.0
    %2829 = vmatprep.subr.mxu0 0.0
    %2830 = vmatpush1.msra.mxu0 0.0
    %2831 = vmatprep.subr.mxu0 0.0
    %2832 = vmatpush1.msra.mxu0 0.0
    %2833 = vmatprep.subr.mxu0 0.0
    %2834 = vmatpush1.msra.mxu0 0.0
    %2835 = vmatprep.subr.mxu0 0.0
    %2836 = vmatpush1.msra.mxu0 0.0
    %2837 = vmatprep.subr.mxu0 0.0
    %2838 = vmatpush1.msra.mxu0 0.0
    %2839 = vmatprep.subr.mxu0 0.0
    %2840 = vmatpush1.msra.mxu0 0.0
    %2841 = vmatprep.subr.mxu0 0.0
    %2842 = vmatpush1.msra.mxu0 0.0
    %2843 = vmatprep.subr.mxu0 0.0
    %2844 = vmatpush1.msra.mxu0 0.0
    %2845 = vmatprep.subr.mxu0 0.0
    %2846 = vmatpush1.msra.mxu0 0.0
    %2847 = vmatprep.subr.mxu0 0.0
    %2848 = vmatpush1.msra.mxu0 0.0
    %2849 = vmatprep.subr.mxu0 0.0
    %2850 = vmatpush1.msra.mxu0 0.0
    %2851 = vmatprep.subr.mxu0 0.0
    %2852 = vmatpush1.msra.mxu0 0.0
    %2853 = vmatprep.subr.mxu0 0.0
    %2854 = vmatpush1.msra.mxu0 0.0
    %2855 = vmatprep.subr.mxu0 0.0
    %2856 = vmatpush1.msra.mxu0 0.0
    %2857 = vmatprep.subr.mxu0 0.0
    %2858 = vmatpush1.msra.mxu0 0.0
    %2859 = vmatprep.subr.mxu0 0.0
    %2860 = vmatpush1.msra.mxu0 0.0
    %2861 = vmatprep.subr.mxu0 0.0
    %2862 = vmatpush1.msra.mxu0 0.0
    %2863 = vmatprep.subr.mxu0 0.0
    %2864 = vmatpush1.msra.mxu0 0.0
    %2865 = vmatprep.subr.mxu0 0.0
    %2866 = vmatpush1.msra.mxu0 0.0
    %2867 = vmatprep.subr.mxu0 0.0
    %2868 = vmatpush1.msra.mxu0 0.0
    %2869 = vmatprep.subr.mxu0 0.0
    %2870 = vmatpush1.msra.mxu0 0.0
    %2871 = vmatprep.subr.mxu0 0.0
    %2872 = vmatpush1.msra.mxu0 0.0
    %2873 = vmatprep.subr.mxu0 0.0
    %2874 = vmatpush1.msra.mxu0 0.0
    %2875 = vmatprep.mubr.f32.mxu0 0.0
    %2876 = vmatmul.mubr.f32.gmra.mrb[0].mxu0 %v2170
    %v2877 = vpop.f32.mrb[0].mxu0
    %v2878 = vadd.f32 %v1542, %v2877
    %v2879 = vpop.f32.mrb[0].mxu0
    %v2880 = vadd.f32 %v1544, %v2879
    %2881 = vmatprep.mubr.f32.mxu0 0.0
    %2882 = vmatmul.mubr.f32.gmra.mrb[0].mxu0 %v2173
    %v2883 = vpop.f32.mrb[0].mxu0
    %v2884 = vadd.f32 %v1548, %v2883
    %v2885 = vpop.f32.mrb[0].mxu0
    %v2886 = vadd.f32 %v1550, %v2885
    %2887 = vdwg.mxu0
    %2888 = vmatprep.subr.mxu0 %v681
    %2889 = vmatpush1.msra.mxu0 %v680
    %2890 = vmatprep.subr.mxu0 %v2228
    %2891 = vmatpush1.msra.mxu0 %v2225
    %2892 = vmatprep.subr.mxu0 0.0
    %2893 = vmatpush1.msra.mxu0 0.0
    %2894 = vmatprep.subr.mxu0 0.0
    %2895 = vmatpush1.msra.mxu0 0.0
    %2896 = vmatprep.subr.mxu0 0.0
    %2897 = vmatpush1.msra.mxu0 0.0
    %2898 = vmatprep.subr.mxu0 0.0
    %2899 = vmatpush1.msra.mxu0 0.0
    %2900 = vmatprep.subr.mxu0 0.0
    %2901 = vmatpush1.msra.mxu0 0.0
    %2902 = vmatprep.subr.mxu0 0.0
    %2903 = vmatpush1.msra.mxu0 0.0
    %2904 = vmatprep.subr.mxu0 0.0
    %2905 = vmatpush1.msra.mxu0 0.0
    %2906 = vmatprep.subr.mxu0 0.0
    %2907 = vmatpush1.msra.mxu0 0.0
    %2908 = vmatprep.subr.mxu0 0.0
    %2909 = vmatpush1.msra.mxu0 0.0
    %2910 = vmatprep.subr.mxu0 0.0
    %2911 = vmatpush1.msra.mxu0 0.0
    %2912 = vmatprep.subr.mxu0 0.0
    %2913 = vmatpush1.msra.mxu0 0.0
    %2914 = vmatprep.subr.mxu0 0.0
    %2915 = vmatpush1.msra.mxu0 0.0
    %2916 = vmatprep.subr.mxu0 0.0
    %2917 = vmatpush1.msra.mxu0 0.0
    %2918 = vmatprep.subr.mxu0 0.0
    %2919 = vmatpush1.msra.mxu0 0.0
    %2920 = vmatprep.subr.mxu0 0.0
    %2921 = vmatpush1.msra.mxu0 0.0
    %2922 = vmatprep.subr.mxu0 0.0
    %2923 = vmatpush1.msra.mxu0 0.0
    %2924 = vmatprep.subr.mxu0 0.0
    %2925 = vmatpush1.msra.mxu0 0.0
    %2926 = vmatprep.subr.mxu0 0.0
    %2927 = vmatpush1.msra.mxu0 0.0
    %2928 = vmatprep.subr.mxu0 0.0
    %2929 = vmatpush1.msra.mxu0 0.0
    %2930 = vmatprep.subr.mxu0 0.0
    %2931 = vmatpush1.msra.mxu0 0.0
    %2932 = vmatprep.subr.mxu0 0.0
    %2933 = vmatpush1.msra.mxu0 0.0
    %2934 = vmatprep.subr.mxu0 0.0
    %2935 = vmatpush1.msra.mxu0 0.0
    %2936 = vmatprep.subr.mxu0 0.0
    %2937 = vmatpush1.msra.mxu0 0.0
    %2938 = vmatprep.subr.mxu0 0.0
    %2939 = vmatpush1.msra.mxu0 0.0
    %2940 = vmatprep.subr.mxu0 0.0
    %2941 = vmatpush1.msra.mxu0 0.0
    %2942 = vmatprep.subr.mxu0 0.0
    %2943 = vmatpush1.msra.mxu0 0.0
    %2944 = vmatprep.subr.mxu0 0.0
    %2945 = vmatpush1.msra.mxu0 0.0
    %2946 = vmatprep.subr.mxu0 0.0
    %2947 = vmatpush1.msra.mxu0 0.0
    %2948 = vmatprep.subr.mxu0 0.0
    %2949 = vmatpush1.msra.mxu0 0.0
    %2950 = vmatprep.subr.mxu0 0.0
    %2951 = vmatpush1.msra.mxu0 0.0
    %2952 = vmatprep.mubr.f32.mxu0 0.0
    %2953 = vmatmul.mubr.f32.gmra.mrb[0].mxu0 %v2170
    %v2954 = vpop.f32.mrb[0].mxu0
    %v2955 = vadd.f32 %v1619, %v2954
    %v2956 = vpop.f32.mrb[0].mxu0
    %v2957 = vadd.f32 %v1621, %v2956
    %2958 = vmatprep.mubr.f32.mxu0 0.0
    %2959 = vmatmul.mubr.f32.gmra.mrb[0].mxu0 %v2173
    %v2960 = vpop.f32.mrb[0].mxu0
    %v2961 = vadd.f32 %v1625, %v2960
    %v2962 = vpop.f32.mrb[0].mxu0
    %v2963 = vadd.f32 %v1627, %v2962
    %2964 = vdwg.mxu0
    %2965 = vmatprep.subr.mxu0 %v683
    %2966 = vmatpush1.msra.mxu0 %v682
    %2967 = vmatprep.subr.mxu0 %v2234
    %2968 = vmatpush1.msra.mxu0 %v2231
    %2969 = vmatprep.subr.mxu0 0.0
    %2970 = vmatpush1.msra.mxu0 0.0
    %2971 = vmatprep.subr.mxu0 0.0
    %2972 = vmatpush1.msra.mxu0 0.0
    %2973 = vmatprep.subr.mxu0 0.0
    %2974 = vmatpush1.msra.mxu0 0.0
    %2975 = vmatprep.subr.mxu0 0.0
    %2976 = vmatpush1.msra.mxu0 0.0
    %2977 = vmatprep.subr.mxu0 0.0
    %2978 = vmatpush1.msra.mxu0 0.0
    %2979 = vmatprep.subr.mxu0 0.0
    %2980 = vmatpush1.msra.mxu0 0.0
    %2981 = vmatprep.subr.mxu0 0.0
    %2982 = vmatpush1.msra.mxu0 0.0
    %2983 = vmatprep.subr.mxu0 0.0
    %2984 = vmatpush1.msra.mxu0 0.0
    %2985 = vmatprep.subr.mxu0 0.0
    %2986 = vmatpush1.msra.mxu0 0.0
    %2987 = vmatprep.subr.mxu0 0.0
    %2988 = vmatpush1.msra.mxu0 0.0
    %2989 = vmatprep.subr.mxu0 0.0
    %2990 = vmatpush1.msra.mxu0 0.0
    %2991 = vmatprep.subr.mxu0 0.0
    %2992 = vmatpush1.msra.mxu0 0.0
    %2993 = vmatprep.subr.mxu0 0.0
    %2994 = vmatpush1.msra.mxu0 0.0
    %2995 = vmatprep.subr.mxu0 0.0
    %2996 = vmatpush1.msra.mxu0 0.0
    %2997 = vmatprep.subr.mxu0 0.0
    %2998 = vmatpush1.msra.mxu0 0.0
    %2999 = vmatprep.subr.mxu0 0.0
    %3000 = vmatpush1.msra.mxu0 0.0
    %3001 = vmatprep.subr.mxu0 0.0
    %3002 = vmatpush1.msra.mxu0 0.0
    %3003 = vmatprep.subr.mxu0 0.0
    %3004 = vmatpush1.msra.mxu0 0.0
    %3005 = vmatprep.subr.mxu0 0.0
    %3006 = vmatpush1.msra.mxu0 0.0
    %3007 = vmatprep.subr.mxu0 0.0
    %3008 = vmatpush1.msra.mxu0 0.0
    %3009 = vmatprep.subr.mxu0 0.0
    %3010 = vmatpush1.msra.mxu0 0.0
    %3011 = vmatprep.subr.mxu0 0.0
    %3012 = vmatpush1.msra.mxu0 0.0
    %3013 = vmatprep.subr.mxu0 0.0
    %3014 = vmatpush1.msra.mxu0 0.0
    %3015 = vmatprep.subr.mxu0 0.0
    %3016 = vmatpush1.msra.mxu0 0.0
    %3017 = vmatprep.subr.mxu0 0.0
    %3018 = vmatpush1.msra.mxu0 0.0
    %3019 = vmatprep.subr.mxu0 0.0
    %3020 = vmatpush1.msra.mxu0 0.0
    %3021 = vmatprep.subr.mxu0 0.0
    %3022 = vmatpush1.msra.mxu0 0.0
    %3023 = vmatprep.subr.mxu0 0.0
    %3024 = vmatpush1.msra.mxu0 0.0
    %3025 = vmatprep.subr.mxu0 0.0
    %3026 = vmatpush1.msra.mxu0 0.0
    %3027 = vmatprep.subr.mxu0 0.0
    %3028 = vmatpush1.msra.mxu0 0.0
    %3029 = vmatprep.mubr.f32.mxu0 0.0
    %3030 = vmatmul.mubr.f32.gmra.mrb[0].mxu0 %v2170
    %v3031 = vpop.f32.mrb[0].mxu0
    %v3032 = vadd.f32 %v1696, %v3031
    %v3033 = vpop.f32.mrb[0].mxu0
    %v3034 = vadd.f32 %v1698, %v3033
    %3035 = vmatprep.mubr.f32.mxu0 0.0
    %3036 = vmatmul.mubr.f32.gmra.mrb[0].mxu0 %v2173
    %v3037 = vpop.f32.mrb[0].mxu0
    %v3038 = vadd.f32 %v1702, %v3037
    %v3039 = vpop.f32.mrb[0].mxu0
    %v3040 = vadd.f32 %v1704, %v3039
    %3041 = vdwg.mxu0
    %3042 = vmatprep.subr.mxu0 %v685
    %3043 = vmatpush1.msra.mxu0 %v684
    %3044 = vmatprep.subr.mxu0 %v2240
    %3045 = vmatpush1.msra.mxu0 %v2237
    %3046 = vmatprep.subr.mxu0 0.0
    %3047 = vmatpush1.msra.mxu0 0.0
    %3048 = vmatprep.subr.mxu0 0.0
    %3049 = vmatpush1.msra.mxu0 0.0
    %3050 = vmatprep.subr.mxu0 0.0
    %3051 = vmatpush1.msra.mxu0 0.0
    %3052 = vmatprep.subr.mxu0 0.0
    %3053 = vmatpush1.msra.mxu0 0.0
    %3054 = vmatprep.subr.mxu0 0.0
    %3055 = vmatpush1.msra.mxu0 0.0
    %3056 = vmatprep.subr.mxu0 0.0
    %3057 = vmatpush1.msra.mxu0 0.0
    %3058 = vmatprep.subr.mxu0 0.0
    %3059 = vmatpush1.msra.mxu0 0.0
    %3060 = vmatprep.subr.mxu0 0.0
    %3061 = vmatpush1.msra.mxu0 0.0
    %3062 = vmatprep.subr.mxu0 0.0
    %3063 = vmatpush1.msra.mxu0 0.0
    %3064 = vmatprep.subr.mxu0 0.0
    %3065 = vmatpush1.msra.mxu0 0.0
    %3066 = vmatprep.subr.mxu0 0.0
    %3067 = vmatpush1.msra.mxu0 0.0
    %3068 = vmatprep.subr.mxu0 0.0
    %3069 = vmatpush1.msra.mxu0 0.0
    %3070 = vmatprep.subr.mxu0 0.0
    %3071 = vmatpush1.msra.mxu0 0.0
    %3072 = vmatprep.subr.mxu0 0.0
    %3073 = vmatpush1.msra.mxu0 0.0
    %3074 = vmatprep.subr.mxu0 0.0
    %3075 = vmatpush1.msra.mxu0 0.0
    %3076 = vmatprep.subr.mxu0 0.0
    %3077 = vmatpush1.msra.mxu0 0.0
    %3078 = vmatprep.subr.mxu0 0.0
    %3079 = vmatpush1.msra.mxu0 0.0
    %3080 = vmatprep.subr.mxu0 0.0
    %3081 = vmatpush1.msra.mxu0 0.0
    %3082 = vmatprep.subr.mxu0 0.0
    %3083 = vmatpush1.msra.mxu0 0.0
    %3084 = vmatprep.subr.mxu0 0.0
    %3085 = vmatpush1.msra.mxu0 0.0
    %3086 = vmatprep.subr.mxu0 0.0
    %3087 = vmatpush1.msra.mxu0 0.0
    %3088 = vmatprep.subr.mxu0 0.0
    %3089 = vmatpush1.msra.mxu0 0.0
    %3090 = vmatprep.subr.mxu0 0.0
    %3091 = vmatpush1.msra.mxu0 0.0
    %3092 = vmatprep.subr.mxu0 0.0
    %3093 = vmatpush1.msra.mxu0 0.0
    %3094 = vmatprep.subr.mxu0 0.0
    %3095 = vmatpush1.msra.mxu0 0.0
    %3096 = vmatprep.subr.mxu0 0.0
    %3097 = vmatpush1.msra.mxu0 0.0
    %3098 = vmatprep.subr.mxu0 0.0
    %3099 = vmatpush1.msra.mxu0 0.0
    %3100 = vmatprep.subr.mxu0 0.0
    %3101 = vmatpush1.msra.mxu0 0.0
    %3102 = vmatprep.subr.mxu0 0.0
    %3103 = vmatpush1.msra.mxu0 0.0
    %3104 = vmatprep.subr.mxu0 0.0
    %3105 = vmatpush1.msra.mxu0 0.0
    %3106 = vmatprep.mubr.f32.mxu0 0.0
    %3107 = vmatmul.mubr.f32.gmra.mrb[0].mxu0 %v2170
    %v3108 = vpop.f32.mrb[0].mxu0
    %v3109 = vadd.f32 %v1773, %v3108
    %v3110 = vpop.f32.mrb[0].mxu0
    %v3111 = vadd.f32 %v1775, %v3110
    %3112 = vmatprep.mubr.f32.mxu0 0.0
    %3113 = vmatmul.mubr.f32.gmra.mrb[0].mxu0 %v2173
    %v3114 = vpop.f32.mrb[0].mxu0
    %v3115 = vadd.f32 %v1779, %v3114
    %v3116 = vpop.f32.mrb[0].mxu0
    %v3117 = vadd.f32 %v1781, %v3116
    %3118 = vdwg.mxu0
    %3119 = vmatprep.subr.mxu0 %v687
    %3120 = vmatpush1.msra.mxu0 %v686
    %3121 = vmatprep.subr.mxu0 %v2246
    %3122 = vmatpush1.msra.mxu0 %v2243
    %3123 = vmatprep.subr.mxu0 0.0
    %3124 = vmatpush1.msra.mxu0 0.0
    %3125 = vmatprep.subr.mxu0 0.0
    %3126 = vmatpush1.msra.mxu0 0.0
    %3127 = vmatprep.subr.mxu0 0.0
    %3128 = vmatpush1.msra.mxu0 0.0
    %3129 = vmatprep.subr.mxu0 0.0
    %3130 = vmatpush1.msra.mxu0 0.0
    %3131 = vmatprep.subr.mxu0 0.0
    %3132 = vmatpush1.msra.mxu0 0.0
    %3133 = vmatprep.subr.mxu0 0.0
    %3134 = vmatpush1.msra.mxu0 0.0
    %3135 = vmatprep.subr.mxu0 0.0
    %3136 = vmatpush1.msra.mxu0 0.0
    %3137 = vmatprep.subr.mxu0 0.0
    %3138 = vmatpush1.msra.mxu0 0.0
    %3139 = vmatprep.subr.mxu0 0.0
    %3140 = vmatpush1.msra.mxu0 0.0
    %3141 = vmatprep.subr.mxu0 0.0
    %3142 = vmatpush1.msra.mxu0 0.0
    %3143 = vmatprep.subr.mxu0 0.0
    %3144 = vmatpush1.msra.mxu0 0.0
    %3145 = vmatprep.subr.mxu0 0.0
    %3146 = vmatpush1.msra.mxu0 0.0
    %3147 = vmatprep.subr.mxu0 0.0
    %3148 = vmatpush1.msra.mxu0 0.0
    %3149 = vmatprep.subr.mxu0 0.0
    %3150 = vmatpush1.msra.mxu0 0.0
    %3151 = vmatprep.subr.mxu0 0.0
    %3152 = vmatpush1.msra.mxu0 0.0
    %3153 = vmatprep.subr.mxu0 0.0
    %3154 = vmatpush1.msra.mxu0 0.0
    %3155 = vmatprep.subr.mxu0 0.0
    %3156 = vmatpush1.msra.mxu0 0.0
    %3157 = vmatprep.subr.mxu0 0.0
    %3158 = vmatpush1.msra.mxu0 0.0
    %3159 = vmatprep.subr.mxu0 0.0
    %3160 = vmatpush1.msra.mxu0 0.0
    %3161 = vmatprep.subr.mxu0 0.0
    %3162 = vmatpush1.msra.mxu0 0.0
    %3163 = vmatprep.subr.mxu0 0.0
    %3164 = vmatpush1.msra.mxu0 0.0
    %3165 = vmatprep.subr.mxu0 0.0
    %3166 = vmatpush1.msra.mxu0 0.0
    %3167 = vmatprep.subr.mxu0 0.0
    %3168 = vmatpush1.msra.mxu0 0.0
    %3169 = vmatprep.subr.mxu0 0.0
    %3170 = vmatpush1.msra.mxu0 0.0
    %3171 = vmatprep.subr.mxu0 0.0
    %3172 = vmatpush1.msra.mxu0 0.0
    %3173 = vmatprep.subr.mxu0 0.0
    %3174 = vmatpush1.msra.mxu0 0.0
    %3175 = vmatprep.subr.mxu0 0.0
    %3176 = vmatpush1.msra.mxu0 0.0
    %3177 = vmatprep.subr.mxu0 0.0
    %3178 = vmatpush1.msra.mxu0 0.0
    %3179 = vmatprep.subr.mxu0 0.0
    %3180 = vmatpush1.msra.mxu0 0.0
    %3181 = vmatprep.subr.mxu0 0.0
    %3182 = vmatpush1.msra.mxu0 0.0
    %3183 = vmatprep.mubr.f32.mxu0 0.0
    %3184 = vmatmul.mubr.f32.gmra.mrb[0].mxu0 %v2170
    %v3185 = vpop.f32.mrb[0].mxu0
    %v3186 = vadd.f32 %v1850, %v3185
    %v3187 = vpop.f32.mrb[0].mxu0
    %v3188 = vadd.f32 %v1852, %v3187
    %3189 = vmatprep.mubr.f32.mxu0 0.0
    %3190 = vmatmul.mubr.f32.gmra.mrb[0].mxu0 %v2173
    %v3191 = vpop.f32.mrb[0].mxu0
    %v3192 = vadd.f32 %v1856, %v3191
    %v3193 = vpop.f32.mrb[0].mxu0
    %v3194 = vadd.f32 %v1858, %v3193
    %3195 = vdwg.mxu0
    %3196 = vmatprep.subr.mxu0 %v689
    %3197 = vmatpush1.msra.mxu0 %v688
    %3198 = vmatprep.subr.mxu0 %v2252
    %3199 = vmatpush1.msra.mxu0 %v2249
    %3200 = vmatprep.subr.mxu0 0.0
    %3201 = vmatpush1.msra.mxu0 0.0
    %3202 = vmatprep.subr.mxu0 0.0
    %3203 = vmatpush1.msra.mxu0 0.0
    %3204 = vmatprep.subr.mxu0 0.0
    %3205 = vmatpush1.msra.mxu0 0.0
    %3206 = vmatprep.subr.mxu0 0.0
    %3207 = vmatpush1.msra.mxu0 0.0
    %3208 = vmatprep.subr.mxu0 0.0
    %3209 = vmatpush1.msra.mxu0 0.0
    %3210 = vmatprep.subr.mxu0 0.0
    %3211 = vmatpush1.msra.mxu0 0.0
    %3212 = vmatprep.subr.mxu0 0.0
    %3213 = vmatpush1.msra.mxu0 0.0
    %3214 = vmatprep.subr.mxu0 0.0
    %3215 = vmatpush1.msra.mxu0 0.0
    %3216 = vmatprep.subr.mxu0 0.0
    %3217 = vmatpush1.msra.mxu0 0.0
    %3218 = vmatprep.subr.mxu0 0.0
    %3219 = vmatpush1.msra.mxu0 0.0
    %3220 = vmatprep.subr.mxu0 0.0
    %3221 = vmatpush1.msra.mxu0 0.0
    %3222 = vmatprep.subr.mxu0 0.0
    %3223 = vmatpush1.msra.mxu0 0.0
    %3224 = vmatprep.subr.mxu0 0.0
    %3225 = vmatpush1.msra.mxu0 0.0
    %3226 = vmatprep.subr.mxu0 0.0
    %3227 = vmatpush1.msra.mxu0 0.0
    %3228 = vmatprep.subr.mxu0 0.0
    %3229 = vmatpush1.msra.mxu0 0.0
    %3230 = vmatprep.subr.mxu0 0.0
    %3231 = vmatpush1.msra.mxu0 0.0
    %3232 = vmatprep.subr.mxu0 0.0
    %3233 = vmatpush1.msra.mxu0 0.0
    %3234 = vmatprep.subr.mxu0 0.0
    %3235 = vmatpush1.msra.mxu0 0.0
    %3236 = vmatprep.subr.mxu0 0.0
    %3237 = vmatpush1.msra.mxu0 0.0
    %3238 = vmatprep.subr.mxu0 0.0
    %3239 = vmatpush1.msra.mxu0 0.0
    %3240 = vmatprep.subr.mxu0 0.0
    %3241 = vmatpush1.msra.mxu0 0.0
    %3242 = vmatprep.subr.mxu0 0.0
    %3243 = vmatpush1.msra.mxu0 0.0
    %3244 = vmatprep.subr.mxu0 0.0
    %3245 = vmatpush1.msra.mxu0 0.0
    %3246 = vmatprep.subr.mxu0 0.0
    %3247 = vmatpush1.msra.mxu0 0.0
    %3248 = vmatprep.subr.mxu0 0.0
    %3249 = vmatpush1.msra.mxu0 0.0
    %3250 = vmatprep.subr.mxu0 0.0
    %3251 = vmatpush1.msra.mxu0 0.0
    %3252 = vmatprep.subr.mxu0 0.0
    %3253 = vmatpush1.msra.mxu0 0.0
    %3254 = vmatprep.subr.mxu0 0.0
    %3255 = vmatpush1.msra.mxu0 0.0
    %3256 = vmatprep.subr.mxu0 0.0
    %3257 = vmatpush1.msra.mxu0 0.0
    %3258 = vmatprep.subr.mxu0 0.0
    %3259 = vmatpush1.msra.mxu0 0.0
    %3260 = vmatprep.mubr.f32.mxu0 0.0
    %3261 = vmatmul.mubr.f32.gmra.mrb[0].mxu0 %v2170
    %v3262 = vpop.f32.mrb[0].mxu0
    %v3263 = vadd.f32 %v1927, %v3262
    %v3264 = vpop.f32.mrb[0].mxu0
    %v3265 = vadd.f32 %v1929, %v3264
    %3266 = vmatprep.mubr.f32.mxu0 0.0
    %3267 = vmatmul.mubr.f32.gmra.mrb[0].mxu0 %v2173
    %v3268 = vpop.f32.mrb[0].mxu0
    %v3269 = vadd.f32 %v1933, %v3268
    %v3270 = vpop.f32.mrb[0].mxu0
    %v3271 = vadd.f32 %v1935, %v3270
    %3272 = vdwg.mxu0
    %3273 = vmatprep.subr.mxu0 %v691
    %3274 = vmatpush1.msra.mxu0 %v690
    %3275 = vmatprep.subr.mxu0 %v2258
    %3276 = vmatpush1.msra.mxu0 %v2255
    %3277 = vmatprep.subr.mxu0 0.0
    %3278 = vmatpush1.msra.mxu0 0.0
    %3279 = vmatprep.subr.mxu0 0.0
    %3280 = vmatpush1.msra.mxu0 0.0
    %3281 = vmatprep.subr.mxu0 0.0
    %3282 = vmatpush1.msra.mxu0 0.0
    %3283 = vmatprep.subr.mxu0 0.0
    %3284 = vmatpush1.msra.mxu0 0.0
    %3285 = vmatprep.subr.mxu0 0.0
    %3286 = vmatpush1.msra.mxu0 0.0
    %3287 = vmatprep.subr.mxu0 0.0
    %3288 = vmatpush1.msra.mxu0 0.0
    %3289 = vmatprep.subr.mxu0 0.0
    %3290 = vmatpush1.msra.mxu0 0.0
    %3291 = vmatprep.subr.mxu0 0.0
    %3292 = vmatpush1.msra.mxu0 0.0
    %3293 = vmatprep.subr.mxu0 0.0
    %3294 = vmatpush1.msra.mxu0 0.0
    %3295 = vmatprep.subr.mxu0 0.0
    %3296 = vmatpush1.msra.mxu0 0.0
    %3297 = vmatprep.subr.mxu0 0.0
    %3298 = vmatpush1.msra.mxu0 0.0
    %3299 = vmatprep.subr.mxu0 0.0
    %3300 = vmatpush1.msra.mxu0 0.0
    %3301 = vmatprep.subr.mxu0 0.0
    %3302 = vmatpush1.msra.mxu0 0.0
    %3303 = vmatprep.subr.mxu0 0.0
    %3304 = vmatpush1.msra.mxu0 0.0
    %3305 = vmatprep.subr.mxu0 0.0
    %3306 = vmatpush1.msra.mxu0 0.0
    %3307 = vmatprep.subr.mxu0 0.0
    %3308 = vmatpush1.msra.mxu0 0.0
    %3309 = vmatprep.subr.mxu0 0.0
    %3310 = vmatpush1.msra.mxu0 0.0
    %3311 = vmatprep.subr.mxu0 0.0
    %3312 = vmatpush1.msra.mxu0 0.0
    %3313 = vmatprep.subr.mxu0 0.0
    %3314 = vmatpush1.msra.mxu0 0.0
    %3315 = vmatprep.subr.mxu0 0.0
    %3316 = vmatpush1.msra.mxu0 0.0
    %3317 = vmatprep.subr.mxu0 0.0
    %3318 = vmatpush1.msra.mxu0 0.0
    %3319 = vmatprep.subr.mxu0 0.0
    %3320 = vmatpush1.msra.mxu0 0.0
    %3321 = vmatprep.subr.mxu0 0.0
    %3322 = vmatpush1.msra.mxu0 0.0
    %3323 = vmatprep.subr.mxu0 0.0
    %3324 = vmatpush1.msra.mxu0 0.0
    %3325 = vmatprep.subr.mxu0 0.0
    %3326 = vmatpush1.msra.mxu0 0.0
    %3327 = vmatprep.subr.mxu0 0.0
    %3328 = vmatpush1.msra.mxu0 0.0
    %3329 = vmatprep.subr.mxu0 0.0
    %3330 = vmatpush1.msra.mxu0 0.0
    %3331 = vmatprep.subr.mxu0 0.0
    %3332 = vmatpush1.msra.mxu0 0.0
    %3333 = vmatprep.subr.mxu0 0.0
    %3334 = vmatpush1.msra.mxu0 0.0
    %3335 = vmatprep.subr.mxu0 0.0
    %3336 = vmatpush1.msra.mxu0 0.0
    %3337 = vmatprep.mubr.f32.mxu0 0.0
    %3338 = vmatmul.mubr.f32.gmra.mrb[0].mxu0 %v2170
    %v3339 = vpop.f32.mrb[0].mxu0
    %v3340 = vadd.f32 %v2004, %v3339
    %v3341 = vpop.f32.mrb[0].mxu0
    %v3342 = vadd.f32 %v2006, %v3341
    %3343 = vmatprep.mubr.f32.mxu0 0.0
    %3344 = vmatmul.mubr.f32.gmra.mrb[0].mxu0 %v2173
    %v3345 = vpop.f32.mrb[0].mxu0
    %v3346 = vadd.f32 %v2010, %v3345
    %v3347 = vpop.f32.mrb[0].mxu0
    %v3348 = vadd.f32 %v2012, %v3347
    %3349 = vdwg.mxu0
    %3350 = vmatprep.subr.mxu0 %v693
    %3351 = vmatpush1.msra.mxu0 %v692
    %3352 = vmatprep.subr.mxu0 %v2264
    %3353 = vmatpush1.msra.mxu0 %v2261
    %3354 = vmatprep.subr.mxu0 0.0
    %3355 = vmatpush1.msra.mxu0 0.0
    %3356 = vmatprep.subr.mxu0 0.0
    %3357 = vmatpush1.msra.mxu0 0.0
    %3358 = vmatprep.subr.mxu0 0.0
    %3359 = vmatpush1.msra.mxu0 0.0
    %3360 = vmatprep.subr.mxu0 0.0
    %3361 = vmatpush1.msra.mxu0 0.0
    %3362 = vmatprep.subr.mxu0 0.0
    %3363 = vmatpush1.msra.mxu0 0.0
    %3364 = vmatprep.subr.mxu0 0.0
    %3365 = vmatpush1.msra.mxu0 0.0
    %3366 = vmatprep.subr.mxu0 0.0
    %3367 = vmatpush1.msra.mxu0 0.0
    %3368 = vmatprep.subr.mxu0 0.0
    %3369 = vmatpush1.msra.mxu0 0.0
    %3370 = vmatprep.subr.mxu0 0.0
    %3371 = vmatpush1.msra.mxu0 0.0
    %3372 = vmatprep.subr.mxu0 0.0
    %3373 = vmatpush1.msra.mxu0 0.0
    %3374 = vmatprep.subr.mxu0 0.0
    %3375 = vmatpush1.msra.mxu0 0.0
    %3376 = vmatprep.subr.mxu0 0.0
    %3377 = vmatpush1.msra.mxu0 0.0
    %3378 = vmatprep.subr.mxu0 0.0
    %3379 = vmatpush1.msra.mxu0 0.0
    %3380 = vmatprep.subr.mxu0 0.0
    %3381 = vmatpush1.msra.mxu0 0.0
    %3382 = vmatprep.subr.mxu0 0.0
    %3383 = vmatpush1.msra.mxu0 0.0
    %3384 = vmatprep.subr.mxu0 0.0
    %3385 = vmatpush1.msra.mxu0 0.0
    %3386 = vmatprep.subr.mxu0 0.0
    %3387 = vmatpush1.msra.mxu0 0.0
    %3388 = vmatprep.subr.mxu0 0.0
    %3389 = vmatpush1.msra.mxu0 0.0
    %3390 = vmatprep.subr.mxu0 0.0
    %3391 = vmatpush1.msra.mxu0 0.0
    %3392 = vmatprep.subr.mxu0 0.0
    %3393 = vmatpush1.msra.mxu0 0.0
    %3394 = vmatprep.subr.mxu0 0.0
    %3395 = vmatpush1.msra.mxu0 0.0
    %3396 = vmatprep.subr.mxu0 0.0
    %3397 = vmatpush1.msra.mxu0 0.0
    %3398 = vmatprep.subr.mxu0 0.0
    %3399 = vmatpush1.msra.mxu0 0.0
    %3400 = vmatprep.subr.mxu0 0.0
    %3401 = vmatpush1.msra.mxu0 0.0
    %3402 = vmatprep.subr.mxu0 0.0
    %3403 = vmatpush1.msra.mxu0 0.0
    %3404 = vmatprep.subr.mxu0 0.0
    %3405 = vmatpush1.msra.mxu0 0.0
    %3406 = vmatprep.subr.mxu0 0.0
    %3407 = vmatpush1.msra.mxu0 0.0
    %3408 = vmatprep.subr.mxu0 0.0
    %3409 = vmatpush1.msra.mxu0 0.0
    %3410 = vmatprep.subr.mxu0 0.0
    %3411 = vmatpush1.msra.mxu0 0.0
    %3412 = vmatprep.subr.mxu0 0.0
    %3413 = vmatpush1.msra.mxu0 0.0
    %3414 = vmatprep.mubr.f32.mxu0 0.0
    %3415 = vmatmul.mubr.f32.gmra.mrb[0].mxu0 %v2170
    %v3416 = vpop.f32.mrb[0].mxu0
    %v3417 = vadd.f32 %v2081, %v3416
    %v3418 = vpop.f32.mrb[0].mxu0
    %v3419 = vadd.f32 %v2083, %v3418
    %3420 = vmatprep.mubr.f32.mxu0 0.0
    %3421 = vmatmul.mubr.f32.gmra.mrb[0].mxu0 %v2173
    %v3422 = vpop.f32.mrb[0].mxu0
    %v3423 = vadd.f32 %v2087, %v3422
    %v3424 = vpop.f32.mrb[0].mxu0
    %v3425 = vadd.f32 %v2089, %v3424
    %3426 = vdwg.mxu0
    %3427 = vmatprep.subr.mxu0 %v695
    %3428 = vmatpush1.msra.mxu0 %v694
    %3429 = vmatprep.subr.mxu0 %v2270
    %3430 = vmatpush1.msra.mxu0 %v2267
    %3431 = vmatprep.subr.mxu0 0.0
    %3432 = vmatpush1.msra.mxu0 0.0
    %3433 = vmatprep.subr.mxu0 0.0
    %3434 = vmatpush1.msra.mxu0 0.0
    %3435 = vmatprep.subr.mxu0 0.0
    %3436 = vmatpush1.msra.mxu0 0.0
    %3437 = vmatprep.subr.mxu0 0.0
    %3438 = vmatpush1.msra.mxu0 0.0
    %3439 = vmatprep.subr.mxu0 0.0
    %3440 = vmatpush1.msra.mxu0 0.0
    %3441 = vmatprep.subr.mxu0 0.0
    %3442 = vmatpush1.msra.mxu0 0.0
    %3443 = vmatprep.subr.mxu0 0.0
    %3444 = vmatpush1.msra.mxu0 0.0
    %3445 = vmatprep.subr.mxu0 0.0
    %3446 = vmatpush1.msra.mxu0 0.0
    %3447 = vmatprep.subr.mxu0 0.0
    %3448 = vmatpush1.msra.mxu0 0.0
    %3449 = vmatprep.subr.mxu0 0.0
    %3450 = vmatpush1.msra.mxu0 0.0
    %3451 = vmatprep.subr.mxu0 0.0
    %3452 = vmatpush1.msra.mxu0 0.0
    %3453 = vmatprep.subr.mxu0 0.0
    %3454 = vmatpush1.msra.mxu0 0.0
    %3455 = vmatprep.subr.mxu0 0.0
    %3456 = vmatpush1.msra.mxu0 0.0
    %3457 = vmatprep.subr.mxu0 0.0
    %3458 = vmatpush1.msra.mxu0 0.0
    %3459 = vmatprep.subr.mxu0 0.0
    %3460 = vmatpush1.msra.mxu0 0.0
    %3461 = vmatprep.subr.mxu0 0.0
    %3462 = vmatpush1.msra.mxu0 0.0
    %3463 = vmatprep.subr.mxu0 0.0
    %3464 = vmatpush1.msra.mxu0 0.0
    %3465 = vmatprep.subr.mxu0 0.0
    %3466 = vmatpush1.msra.mxu0 0.0
    %3467 = vmatprep.subr.mxu0 0.0
    %3468 = vmatpush1.msra.mxu0 0.0
    %3469 = vmatprep.subr.mxu0 0.0
    %3470 = vmatpush1.msra.mxu0 0.0
    %3471 = vmatprep.subr.mxu0 0.0
    %3472 = vmatpush1.msra.mxu0 0.0
    %3473 = vmatprep.subr.mxu0 0.0
    %3474 = vmatpush1.msra.mxu0 0.0
    %3475 = vmatprep.subr.mxu0 0.0
    %3476 = vmatpush1.msra.mxu0 0.0
    %3477 = vmatprep.subr.mxu0 0.0
    %3478 = vmatpush1.msra.mxu0 0.0
    %3479 = vmatprep.subr.mxu0 0.0
    %3480 = vmatpush1.msra.mxu0 0.0
    %3481 = vmatprep.subr.mxu0 0.0
    %3482 = vmatpush1.msra.mxu0 0.0
    %3483 = vmatprep.subr.mxu0 0.0
    %3484 = vmatpush1.msra.mxu0 0.0
    %3485 = vmatprep.subr.mxu0 0.0
    %3486 = vmatpush1.msra.mxu0 0.0
    %3487 = vmatprep.subr.mxu0 0.0
    %3488 = vmatpush1.msra.mxu0 0.0
    %3489 = vmatprep.subr.mxu0 0.0
    %3490 = vmatpush1.msra.mxu0 0.0
    %3491 = vmatprep.mubr.f32.mxu0 0.0
    %3492 = vmatmul.mubr.f32.gmra.mrb[0].mxu0 %v2170
    %v3493 = vpop.f32.mrb[0].mxu0
    %v3494 = vadd.f32 %v2158, %v3493
    %v3495 = vpop.f32.mrb[0].mxu0
    %v3496 = vadd.f32 %v2160, %v3495
    %3497 = vmatprep.mubr.f32.mxu0 0.0
    %3498 = vmatmul.mubr.f32.gmra.mrb[0].mxu0 %v2173
    %v3499 = vpop.f32.mrb[0].mxu0
    %v3500 = vadd.f32 %v2164, %v3499
    %v3501 = vpop.f32.mrb[0].mxu0
    %v3502 = vadd.f32 %v2166, %v3501
    %3503 = vdwg.mxu0
    %v3504 = vld [vmem:[%s12] sm:$0xff]
    %v3505 = vld [vmem:[%s12 + $0x8] sm:$0xff]
    %v3506 = vld [vmem:[%s12 + $0x10] sm:$0xff]
    %v3507 = vld [vmem:[%s12 + $0x18] sm:$0xff]
    %v3512 = vlaneseq
    %v3513 = vshrl.u32 %v3512, 7
    %v3514 = vsub.s32 0, %v3513
    %v3515 = vrot.slane %v3504, %v3514
    %v3516 = vlaneseq
    %v3517 = vshrl.u32 %v3516, 7
    %v3518 = vsub.s32 1, %v3517
    %v3519 = vrot.slane %v3504, %v3518
    %v3520 = vlaneseq
    %v3521 = vshrl.u32 %v3520, 7
    %v3522 = vsub.s32 2, %v3521
    %v3523 = vrot.slane %v3504, %v3522
    %v3524 = vlaneseq
    %v3525 = vshrl.u32 %v3524, 7
    %v3526 = vsub.s32 3, %v3525
    %v3527 = vrot.slane %v3504, %v3526
    %v3528 = vlaneseq
    %v3529 = vshrl.u32 %v3528, 7
    %v3530 = vsub.s32 4, %v3529
    %v3531 = vrot.slane %v3504, %v3530
    %v3532 = vlaneseq
    %v3533 = vshrl.u32 %v3532, 7
    %v3534 = vsub.s32 5, %v3533
    %v3535 = vrot.slane %v3504, %v3534
    %v3536 = vlaneseq
    %v3537 = vshrl.u32 %v3536, 7
    %v3538 = vsub.s32 6, %v3537
    %v3539 = vrot.slane %v3504, %v3538
    %v3540 = vlaneseq
    %v3541 = vshrl.u32 %v3540, 7
    %v3542 = vsub.s32 7, %v3541
    %v3543 = vrot.slane %v3504, %v3542
    %v3544 = vlaneseq
    %v3545 = vshrl.u32 %v3544, 7
    %v3546 = vsub.s32 0, %v3545
    %v3547 = vrot.slane %v3505, %v3546
    %v3548 = vlaneseq
    %v3549 = vshrl.u32 %v3548, 7
    %v3550 = vsub.s32 1, %v3549
    %v3551 = vrot.slane %v3505, %v3550
    %v3552 = vlaneseq
    %v3553 = vshrl.u32 %v3552, 7
    %v3554 = vsub.s32 2, %v3553
    %v3555 = vrot.slane %v3505, %v3554
    %v3556 = vlaneseq
    %v3557 = vshrl.u32 %v3556, 7
    %v3558 = vsub.s32 3, %v3557
    %v3559 = vrot.slane %v3505, %v3558
    %v3560 = vlaneseq
    %v3561 = vshrl.u32 %v3560, 7
    %v3562 = vsub.s32 4, %v3561
    %v3563 = vrot.slane %v3505, %v3562
    %v3564 = vlaneseq
    %v3565 = vshrl.u32 %v3564, 7
    %v3566 = vsub.s32 5, %v3565
    %v3567 = vrot.slane %v3505, %v3566
    %v3568 = vlaneseq
    %v3569 = vshrl.u32 %v3568, 7
    %v3570 = vsub.s32 6, %v3569
    %v3571 = vrot.slane %v3505, %v3570
    %v3572 = vlaneseq
    %v3573 = vshrl.u32 %v3572, 7
    %v3574 = vsub.s32 7, %v3573
    %v3575 = vrot.slane %v3505, %v3574
    %v3576 = vlaneseq
    %v3577 = vshrl.u32 %v3576, 7
    %v3578 = vsub.s32 0, %v3577
    %v3579 = vrot.slane %v3506, %v3578
    %v3580 = vlaneseq
    %v3581 = vshrl.u32 %v3580, 7
    %v3582 = vsub.s32 1, %v3581
    %v3583 = vrot.slane %v3506, %v3582
    %v3584 = vlaneseq
    %v3585 = vshrl.u32 %v3584, 7
    %v3586 = vsub.s32 2, %v3585
    %v3587 = vrot.slane %v3506, %v3586
    %v3588 = vlaneseq
    %v3589 = vshrl.u32 %v3588, 7
    %v3590 = vsub.s32 3, %v3589
    %v3591 = vrot.slane %v3506, %v3590
    %v3592 = vlaneseq
    %v3593 = vshrl.u32 %v3592, 7
    %v3594 = vsub.s32 4, %v3593
    %v3595 = vrot.slane %v3506, %v3594
    %v3596 = vlaneseq
    %v3597 = vshrl.u32 %v3596, 7
    %v3598 = vsub.s32 5, %v3597
    %v3599 = vrot.slane %v3506, %v3598
    %v3600 = vlaneseq
    %v3601 = vshrl.u32 %v3600, 7
    %v3602 = vsub.s32 6, %v3601
    %v3603 = vrot.slane %v3506, %v3602
    %v3604 = vlaneseq
    %v3605 = vshrl.u32 %v3604, 7
    %v3606 = vsub.s32 7, %v3605
    %v3607 = vrot.slane %v3506, %v3606
    %v3608 = vlaneseq
    %v3609 = vshrl.u32 %v3608, 7
    %v3610 = vsub.s32 0, %v3609
    %v3611 = vrot.slane %v3507, %v3610
    %v3612 = vlaneseq
    %v3613 = vshrl.u32 %v3612, 7
    %v3614 = vsub.s32 1, %v3613
    %v3615 = vrot.slane %v3507, %v3614
    %v3616 = vlaneseq
    %v3617 = vshrl.u32 %v3616, 7
    %v3618 = vsub.s32 2, %v3617
    %v3619 = vrot.slane %v3507, %v3618
    %v3620 = vlaneseq
    %v3621 = vshrl.u32 %v3620, 7
    %v3622 = vsub.s32 3, %v3621
    %v3623 = vrot.slane %v3507, %v3622
    %v3624 = vlaneseq
    %v3625 = vshrl.u32 %v3624, 7
    %v3626 = vsub.s32 4, %v3625
    %v3627 = vrot.slane %v3507, %v3626
    %v3628 = vlaneseq
    %v3629 = vshrl.u32 %v3628, 7
    %v3630 = vsub.s32 5, %v3629
    %v3631 = vrot.slane %v3507, %v3630
    %v3632 = vlaneseq
    %v3633 = vshrl.u32 %v3632, 7
    %v3634 = vsub.s32 6, %v3633
    %v3635 = vrot.slane %v3507, %v3634
    %v3636 = vlaneseq
    %v3637 = vshrl.u32 %v3636, 7
    %v3638 = vsub.s32 7, %v3637
    %v3639 = vrot.slane %v3507, %v3638
    %v3672 = vadd.f32 %v2339, %v3515
    %v3673 = vadd.f32 %v2341, %v3519
    %v3674 = vadd.f32 %v2416, %v3523
    %v3675 = vadd.f32 %v2418, %v3527
    %v3676 = vadd.f32 %v2493, %v3531
    %v3677 = vadd.f32 %v2495, %v3535
    %v3678 = vadd.f32 %v2570, %v3539
    %v3679 = vadd.f32 %v2572, %v3543
    %v3680 = vadd.f32 %v2647, %v3547
    %v3681 = vadd.f32 %v2649, %v3551
    %v3682 = vadd.f32 %v2724, %v3555
    %v3683 = vadd.f32 %v2726, %v3559
    %v3684 = vadd.f32 %v2801, %v3563
    %v3685 = vadd.f32 %v2803, %v3567
    %v3686 = vadd.f32 %v2878, %v3571
    %v3687 = vadd.f32 %v2880, %v3575
    %v3688 = vadd.f32 %v2955, %v3579
    %v3689 = vadd.f32 %v2957, %v3583
    %v3690 = vadd.f32 %v3032, %v3587
    %v3691 = vadd.f32 %v3034, %v3591
    %v3692 = vadd.f32 %v3109, %v3595
    %v3693 = vadd.f32 %v3111, %v3599
    %v3694 = vadd.f32 %v3186, %v3603
    %v3695 = vadd.f32 %v3188, %v3607
    %v3696 = vadd.f32 %v3263, %v3611
    %v3697 = vadd.f32 %v3265, %v3615
    %v3698 = vadd.f32 %v3340, %v3619
    %v3699 = vadd.f32 %v3342, %v3623
    %v3700 = vadd.f32 %v3417, %v3627
    %v3701 = vadd.f32 %v3419, %v3631
    %v3702 = vadd.f32 %v3494, %v3635
    %v3703 = vadd.f32 %v3496, %v3639
    %v3704 = vadd.f32 %v2345, %v3515
    %v3705 = vadd.f32 %v2347, %v3519
    %v3706 = vadd.f32 %v2422, %v3523
    %v3707 = vadd.f32 %v2424, %v3527
    %v3708 = vadd.f32 %v2499, %v3531
    %v3709 = vadd.f32 %v2501, %v3535
    %v3710 = vadd.f32 %v2576, %v3539
    %v3711 = vadd.f32 %v2578, %v3543
    %v3712 = vadd.f32 %v2653, %v3547
    %v3713 = vadd.f32 %v2655, %v3551
    %v3714 = vadd.f32 %v2730, %v3555
    %v3715 = vadd.f32 %v2732, %v3559
    %v3716 = vadd.f32 %v2807, %v3563
    %v3717 = vadd.f32 %v2809, %v3567
    %v3718 = vadd.f32 %v2884, %v3571
    %v3719 = vadd.f32 %v2886, %v3575
    %v3720 = vadd.f32 %v2961, %v3579
    %v3721 = vadd.f32 %v2963, %v3583
    %v3722 = vadd.f32 %v3038, %v3587
    %v3723 = vadd.f32 %v3040, %v3591
    %v3724 = vadd.f32 %v3115, %v3595
    %v3725 = vadd.f32 %v3117, %v3599
    %v3726 = vadd.f32 %v3192, %v3603
    %v3727 = vadd.f32 %v3194, %v3607
    %v3728 = vadd.f32 %v3269, %v3611
    %v3729 = vadd.f32 %v3271, %v3615
    %v3730 = vadd.f32 %v3346, %v3619
    %v3731 = vadd.f32 %v3348, %v3623
    %v3732 = vadd.f32 %v3423, %v3627
    %v3733 = vadd.f32 %v3425, %v3631
    %v3734 = vadd.f32 %v3500, %v3635
    %v3735 = vadd.f32 %v3502, %v3639
    %3736 = vst [vmem:[%s14] sm:$0xff] %v3672
    %3737 = vst [vmem:[%s14 + $0x8] sm:$0xff] %v3673
    %3738 = vst [vmem:[%s14 + $0x10] sm:$0xff] %v3674
    %3739 = vst [vmem:[%s14 + $0x18] sm:$0xff] %v3675
    %3740 = vst [vmem:[%s14 + $0x20] sm:$0xff] %v3676
    %3741 = vst [vmem:[%s14 + $0x28] sm:$0xff] %v3677
    %3742 = vst [vmem:[%s14 + $0x30] sm:$0xff] %v3678
    %3743 = vst [vmem:[%s14 + $0x38] sm:$0xff] %v3679
    %3744 = vst [vmem:[%s14 + $0x40] sm:$0xff] %v3680
    %3745 = vst [vmem:[%s14 + $0x48] sm:$0xff] %v3681
    %3746 = vst [vmem:[%s14 + $0x50] sm:$0xff] %v3682
    %3747 = vst [vmem:[%s14 + $0x58] sm:$0xff] %v3683
    %3748 = vst [vmem:[%s14 + $0x60] sm:$0xff] %v3684
    %3749 = vst [vmem:[%s14 + $0x68] sm:$0xff] %v3685
    %3750 = vst [vmem:[%s14 + $0x70] sm:$0xff] %v3686
    %3751 = vst [vmem:[%s14 + $0x78] sm:$0xff] %v3687
    %3752 = vst [vmem:[%s14 + $0x80] sm:$0xff] %v3688
    %3753 = vst [vmem:[%s14 + $0x88] sm:$0xff] %v3689
    %3754 = vst [vmem:[%s14 + $0x90] sm:$0xff] %v3690
    %3755 = vst [vmem:[%s14 + $0x98] sm:$0xff] %v3691
    %3756 = vst [vmem:[%s14 + $0xa0] sm:$0xff] %v3692
    %3757 = vst [vmem:[%s14 + $0xa8] sm:$0xff] %v3693
    %3758 = vst [vmem:[%s14 + $0xb0] sm:$0xff] %v3694
    %3759 = vst [vmem:[%s14 + $0xb8] sm:$0xff] %v3695
    %3760 = vst [vmem:[%s14 + $0xc0] sm:$0xff] %v3696
    %3761 = vst [vmem:[%s14 + $0xc8] sm:$0xff] %v3697
    %3762 = vst [vmem:[%s14 + $0xd0] sm:$0xff] %v3698
    %3763 = vst [vmem:[%s14 + $0xd8] sm:$0xff] %v3699
    %3764 = vst [vmem:[%s14 + $0xe0] sm:$0xff] %v3700
    %3765 = vst [vmem:[%s14 + $0xe8] sm:$0xff] %v3701
    %3766 = vst [vmem:[%s14 + $0xf0] sm:$0xff] %v3702
    %3767 = vst [vmem:[%s14 + $0xf8] sm:$0xff] %v3703
    %3768 = vst [vmem:[%s14 + $0x100] sm:$0xff] %v3704
    %3769 = vst [vmem:[%s14 + $0x108] sm:$0xff] %v3705
    %3770 = vst [vmem:[%s14 + $0x110] sm:$0xff] %v3706
    %3771 = vst [vmem:[%s14 + $0x118] sm:$0xff] %v3707
    %3772 = vst [vmem:[%s14 + $0x120] sm:$0xff] %v3708
    %3773 = vst [vmem:[%s14 + $0x128] sm:$0xff] %v3709
    %3774 = vst [vmem:[%s14 + $0x130] sm:$0xff] %v3710
    %3775 = vst [vmem:[%s14 + $0x138] sm:$0xff] %v3711
    %3776 = vst [vmem:[%s14 + $0x140] sm:$0xff] %v3712
    %3777 = vst [vmem:[%s14 + $0x148] sm:$0xff] %v3713
    %3778 = vst [vmem:[%s14 + $0x150] sm:$0xff] %v3714
    %3779 = vst [vmem:[%s14 + $0x158] sm:$0xff] %v3715
    %3780 = vst [vmem:[%s14 + $0x160] sm:$0xff] %v3716
    %3781 = vst [vmem:[%s14 + $0x168] sm:$0xff] %v3717
    %3782 = vst [vmem:[%s14 + $0x170] sm:$0xff] %v3718
    %3783 = vst [vmem:[%s14 + $0x178] sm:$0xff] %v3719
    %3784 = vst [vmem:[%s14 + $0x180] sm:$0xff] %v3720
    %3785 = vst [vmem:[%s14 + $0x188] sm:$0xff] %v3721
    %3786 = vst [vmem:[%s14 + $0x190] sm:$0xff] %v3722
    %3787 = vst [vmem:[%s14 + $0x198] sm:$0xff] %v3723
    %3788 = vst [vmem:[%s14 + $0x1a0] sm:$0xff] %v3724
    %3789 = vst [vmem:[%s14 + $0x1a8] sm:$0xff] %v3725
    %3790 = vst [vmem:[%s14 + $0x1b0] sm:$0xff] %v3726
    %3791 = vst [vmem:[%s14 + $0x1b8] sm:$0xff] %v3727
    %3792 = vst [vmem:[%s14 + $0x1c0] sm:$0xff] %v3728
    %3793 = vst [vmem:[%s14 + $0x1c8] sm:$0xff] %v3729
    %3794 = vst [vmem:[%s14 + $0x1d0] sm:$0xff] %v3730
    %3795 = vst [vmem:[%s14 + $0x1d8] sm:$0xff] %v3731
    %3796 = vst [vmem:[%s14 + $0x1e0] sm:$0xff] %v3732
    %3797 = vst [vmem:[%s14 + $0x1e8] sm:$0xff] %v3733
    %3798 = vst [vmem:[%s14 + $0x1f0] sm:$0xff] %v3734
    %3799 = vst [vmem:[%s14 + $0x1f8] sm:$0xff] %v3735
    // Predicated region
    $region58: #{mpnn_forward.3} parent=1 // pred_check
      _
    $region59: #{mpnn_forward.3} parent=1 // pred_check_branch
      %3801 = sbr.rel (0) target = $region61
    $region60: #{mpnn_forward.3} parent=1 // pred_region
      _
    $region61: #{mpnn_forward.3} parent=1 // pred_fallthru
      _
    // Predicated region
    $region62: #{mpnn_forward.3} parent=1 // pred_check
      _
    $region63: #{mpnn_forward.3} parent=1 // pred_check_branch
      %3803 = sbr.rel (0) target = $region65
    $region64: #{mpnn_forward.3} parent=1 // pred_region
      _
    $region65: #{mpnn_forward.3} parent=1 // pred_fallthru
      _
    // Predicated region
    $region66: #{mpnn_forward.3} parent=1 // pred_check
      _
    $region67: #{mpnn_forward.3} parent=1 // pred_check_branch
      %3805 = sbr.rel (0) target = $region69
    $region68: #{mpnn_forward.3} parent=1 // pred_region
      _
    $region69: #{mpnn_forward.3} parent=1 // pred_fallthru
      _
    // Predicated region
    $region70: #{mpnn_forward.3} parent=1 // pred_check
      _
    $region71: #{mpnn_forward.3} parent=1 // pred_check_branch
      %3807 = sbr.rel (0) target = $region73
    $region72: #{mpnn_forward.3} parent=1 // pred_region
      _
    $region73: #{mpnn_forward.3} parent=1 // pred_fallthru
      _
    %3808 = vsyncpa [#allocation4], 1

// kernel: mpnn_forward.5
$region0: #{mpnn_forward.5}
  #allocation0 [shape = 'u32[]', space=smem, size = 0x4, offset = 0x4, fixed_abs, tag = 'smem constant byte address 0x4 - core index']
  #allocation1 [shape = 'u32[144,128]{1,0:T(1,128)}', space=vmem, size = 0x12000, scoped, tag = 'internal scratch']
  #allocation2 [shape = 'f32[1,1]{1,0:T(1,128)S(1)}', space=vmem, size = 0x200, scoped, tag = 'scoped memory for mpnn_forward.5']
  %s0 = inlined_call_operand.vmem [shape: f32[8,128], index: 0, kind: input, shape index: {}]
  %s1 = inlined_call_operand.vmem [shape: f32[128,512], index: 1, kind: input, shape index: {}]
  %s2 = inlined_call_operand.vmem [shape: f32[128,512], index: 2, kind: input, shape index: {}]
  %s3 = inlined_call_operand.vmem [shape: f32[128,512], index: 3, kind: input, shape index: {}]
  %s4 = inlined_call_operand.hbm [shape: f32[1,512], index: 4, kind: input, shape index: {}]
  %s5 = inlined_call_operand.vmem [shape: f32[128,1024], index: 5, kind: input, shape index: {}]
  %s6 = inlined_call_operand.vmem [shape: f32[128,1024], index: 6, kind: input, shape index: {}]
  %s7 = inlined_call_operand.hbm [shape: f32[1,1024], index: 7, kind: input, shape index: {}]
  %s8 = inlined_call_operand.<no memory space> [shape: f32[1,1], index: 8, kind: input, shape index: {}]
  %s9 = inlined_call_operand.hbm [shape: f32[1,1024], index: 9, kind: output, shape index: {}]
  %s10 = sld [smem:[#allocation0]]
  $region54: #{mpnn_forward.5} parent=0
    _
  %s12 = ssub.s32 1, %s10
  %s13 = scalar_select 0, %s12, %s10
  %v14 = vstv %s8
  %15 = vst [vmem:[#allocation2] sm:$0x1] %v14
  $region1: #{mpnn_forward.5} parent=0
    #allocation3 [shape = 'u8[2048]{0}', space=vmem, size = 0x800, scoped, tag = 'input window, operand 4, single buffered']
    #allocation4 [shape = 's32[1]{0}', space=sflag, size = 0x4, scoped, tag = 'scoped memory for mpnn_forward.5']
    #allocation5 [shape = 's32[1]{0}', space=sflag, size = 0x4, scoped, tag = 'scoped memory for mpnn_forward.5']
    #allocation6 [shape = 'u8[4096]{0}', space=vmem, size = 0x1000, scoped, tag = 'input window, operand 7, single buffered']
    #allocation7 [shape = 's32[1]{0}', space=sflag, size = 0x4, scoped, tag = 'scoped memory for mpnn_forward.5']
    #allocation8 [shape = 'u8[4096]{0}', space=vmem, size = 0x1000, scoped, tag = 'output window, operand 0, single buffered']
    %16 = vsyncpa [#allocation4], 0
    %17 = vsyncpa [#allocation7], 0
    %18 = vsyncpa [#allocation5], 0
    // Predicated region
    $region2: #{mpnn_forward.5} parent=1 // pred_check
      _
    $region3: #{mpnn_forward.5} parent=1 // pred_check_branch
      %20 = sbr.rel (0) target = $region5
    $region4: #{mpnn_forward.5} parent=1 // pred_region
      _
    $region5: #{mpnn_forward.5} parent=1 // pred_fallthru
      _
    // Predicated region
    $region6: #{mpnn_forward.5} parent=1 // pred_check
      _
    $region7: #{mpnn_forward.5} parent=1 // pred_check_branch
      %22 = sbr.rel (0) target = $region9
    $region8: #{mpnn_forward.5} parent=1 // pred_region
      _
    $region9: #{mpnn_forward.5} parent=1 // pred_fallthru
      _
    // Predicated region
    $region10: #{mpnn_forward.5} parent=1 // pred_check
      _
    $region11: #{mpnn_forward.5} parent=1 // pred_check_branch
      %24 = sbr.rel (0) target = $region13
    $region12: #{mpnn_forward.5} parent=1 // pred_region
      _
    $region13: #{mpnn_forward.5} parent=1 // pred_fallthru
      _
    // Predicated region
    $region14: #{mpnn_forward.5} parent=1 // pred_check
      _
    $region15: #{mpnn_forward.5} parent=1 // pred_check_branch
      %26 = sbr.rel (0) target = $region17
    $region16: #{mpnn_forward.5} parent=1 // pred_region
      _
    $region17: #{mpnn_forward.5} parent=1 // pred_fallthru
      _
    // Predicated region
    $region18: #{mpnn_forward.5} parent=1 // pred_check
      _
    $region19: #{mpnn_forward.5} parent=1 // pred_check_branch
      %28 = sbr.rel (0) target = $region21
    $region20: #{mpnn_forward.5} parent=1 // pred_region
      %s30 = ssub.s32 64, 64
      %31 = vsyncadd [#allocation4], %s30
      %s33 = sshll.u32 [#allocation3], 4
      %s34 = int_to_ptr.vmem [resolvable:$true] %s33
      %36 = dma.hbm_to_vmem [thread:$0]  %s4, 64, %s34, [#allocation4]
    $region21: #{mpnn_forward.5} parent=1 // pred_fallthru
      _
    // Predicated region
    $region22: #{mpnn_forward.5} parent=1 // pred_check
      _
    $region23: #{mpnn_forward.5} parent=1 // pred_check_branch
      %38 = sbr.rel (0) target = $region25
    $region24: #{mpnn_forward.5} parent=1 // pred_region
      _
    $region25: #{mpnn_forward.5} parent=1 // pred_fallthru
      _
    // Predicated region
    $region26: #{mpnn_forward.5} parent=1 // pred_check
      _
    $region27: #{mpnn_forward.5} parent=1 // pred_check_branch
      %40 = sbr.rel (0) target = $region29
    $region28: #{mpnn_forward.5} parent=1 // pred_region
      _
    $region29: #{mpnn_forward.5} parent=1 // pred_fallthru
      _
    // Predicated region
    $region30: #{mpnn_forward.5} parent=1 // pred_check
      _
    $region31: #{mpnn_forward.5} parent=1 // pred_check_branch
      %42 = sbr.rel (0) target = $region33
    $region32: #{mpnn_forward.5} parent=1 // pred_region
      %s44 = ssub.s32 128, 128
      %45 = vsyncadd [#allocation7], %s44
      %s47 = sshll.u32 [#allocation6], 4
      %s48 = int_to_ptr.vmem [resolvable:$true] %s47
      %50 = dma.hbm_to_vmem [thread:$0]  %s7, 128, %s48, [#allocation7]
    $region33: #{mpnn_forward.5} parent=1 // pred_fallthru
      _
    // Predicated region
    $region34: #{mpnn_forward.5} parent=1 // pred_check
      _
    $region35: #{mpnn_forward.5} parent=1 // pred_check_branch
      %52 = sbr.rel (0) target = $region37
    $region36: #{mpnn_forward.5} parent=1 // pred_region
      _
    $region37: #{mpnn_forward.5} parent=1 // pred_fallthru
      _
    // Predicated region
    $region38: #{mpnn_forward.5} parent=1 // pred_check
      _
    $region39: #{mpnn_forward.5} parent=1 // pred_check_branch
      %54 = sbr.rel (0) target = $region41
    $region40: #{mpnn_forward.5} parent=1 // pred_region
      %55 = dma.done [#allocation4], 64
    $region41: #{mpnn_forward.5} parent=1 // pred_fallthru
      _
    // Predicated region
    $region42: #{mpnn_forward.5} parent=1 // pred_check
      _
    $region43: #{mpnn_forward.5} parent=1 // pred_check_branch
      %57 = sbr.rel (0) target = $region45
    $region44: #{mpnn_forward.5} parent=1 // pred_region
      %58 = dma.done [#allocation7], 128
    $region45: #{mpnn_forward.5} parent=1 // pred_fallthru
      _
    %v59 = vld [vmem:[%s0] sm:$0xff]
    %v60 = vld [vmem:[%s1] sm:$0xff]
    %v61 = vld [vmem:[%s1 + $0x8] sm:$0xff]
    %v62 = vld [vmem:[%s1 + $0x10] sm:$0xff]
    %v63 = vld [vmem:[%s1 + $0x18] sm:$0xff]
    %v64 = vld [vmem:[%s1 + $0x20] sm:$0xff]
    %v65 = vld [vmem:[%s1 + $0x28] sm:$0xff]
    %v66 = vld [vmem:[%s1 + $0x30] sm:$0xff]
    %v67 = vld [vmem:[%s1 + $0x38] sm:$0xff]
    %v68 = vld [vmem:[%s1 + $0x40] sm:$0xff]
    %v69 = vld [vmem:[%s1 + $0x48] sm:$0xff]
    %v70 = vld [vmem:[%s1 + $0x50] sm:$0xff]
    %v71 = vld [vmem:[%s1 + $0x58] sm:$0xff]
    %v72 = vld [vmem:[%s1 + $0x60] sm:$0xff]
    %v73 = vld [vmem:[%s1 + $0x68] sm:$0xff]
    %v74 = vld [vmem:[%s1 + $0x70] sm:$0xff]
    %v75 = vld [vmem:[%s1 + $0x78] sm:$0xff]
    %v76 = vld [vmem:[%s1 + $0x80] sm:$0xff]
    %v77 = vld [vmem:[%s1 + $0x88] sm:$0xff]
    %v78 = vld [vmem:[%s1 + $0x90] sm:$0xff]
    %v79 = vld [vmem:[%s1 + $0x98] sm:$0xff]
    %v80 = vld [vmem:[%s1 + $0xa0] sm:$0xff]
    %v81 = vld [vmem:[%s1 + $0xa8] sm:$0xff]
    %v82 = vld [vmem:[%s1 + $0xb0] sm:$0xff]
    %v83 = vld [vmem:[%s1 + $0xb8] sm:$0xff]
    %v84 = vld [vmem:[%s1 + $0xc0] sm:$0xff]
    %v85 = vld [vmem:[%s1 + $0xc8] sm:$0xff]
    %v86 = vld [vmem:[%s1 + $0xd0] sm:$0xff]
    %v87 = vld [vmem:[%s1 + $0xd8] sm:$0xff]
    %v88 = vld [vmem:[%s1 + $0xe0] sm:$0xff]
    %v89 = vld [vmem:[%s1 + $0xe8] sm:$0xff]
    %v90 = vld [vmem:[%s1 + $0xf0] sm:$0xff]
    %v91 = vld [vmem:[%s1 + $0xf8] sm:$0xff]
    %v92 = vld [vmem:[%s1 + $0x100] sm:$0xff]
    %v93 = vld [vmem:[%s1 + $0x108] sm:$0xff]
    %v94 = vld [vmem:[%s1 + $0x110] sm:$0xff]
    %v95 = vld [vmem:[%s1 + $0x118] sm:$0xff]
    %v96 = vld [vmem:[%s1 + $0x120] sm:$0xff]
    %v97 = vld [vmem:[%s1 + $0x128] sm:$0xff]
    %v98 = vld [vmem:[%s1 + $0x130] sm:$0xff]
    %v99 = vld [vmem:[%s1 + $0x138] sm:$0xff]
    %v100 = vld [vmem:[%s1 + $0x140] sm:$0xff]
    %v101 = vld [vmem:[%s1 + $0x148] sm:$0xff]
    %v102 = vld [vmem:[%s1 + $0x150] sm:$0xff]
    %v103 = vld [vmem:[%s1 + $0x158] sm:$0xff]
    %v104 = vld [vmem:[%s1 + $0x160] sm:$0xff]
    %v105 = vld [vmem:[%s1 + $0x168] sm:$0xff]
    %v106 = vld [vmem:[%s1 + $0x170] sm:$0xff]
    %v107 = vld [vmem:[%s1 + $0x178] sm:$0xff]
    %v108 = vld [vmem:[%s1 + $0x180] sm:$0xff]
    %v109 = vld [vmem:[%s1 + $0x188] sm:$0xff]
    %v110 = vld [vmem:[%s1 + $0x190] sm:$0xff]
    %v111 = vld [vmem:[%s1 + $0x198] sm:$0xff]
    %v112 = vld [vmem:[%s1 + $0x1a0] sm:$0xff]
    %v113 = vld [vmem:[%s1 + $0x1a8] sm:$0xff]
    %v114 = vld [vmem:[%s1 + $0x1b0] sm:$0xff]
    %v115 = vld [vmem:[%s1 + $0x1b8] sm:$0xff]
    %v116 = vld [vmem:[%s1 + $0x1c0] sm:$0xff]
    %v117 = vld [vmem:[%s1 + $0x1c8] sm:$0xff]
    %v118 = vld [vmem:[%s1 + $0x1d0] sm:$0xff]
    %v119 = vld [vmem:[%s1 + $0x1d8] sm:$0xff]
    %v120 = vld [vmem:[%s1 + $0x1e0] sm:$0xff]
    %v121 = vld [vmem:[%s1 + $0x1e8] sm:$0xff]
    %v122 = vld [vmem:[%s1 + $0x1f0] sm:$0xff]
    %v123 = vld [vmem:[%s1 + $0x1f8] sm:$0xff]
    %v124 = vld [vmem:[%s2] sm:$0xff]
    %v125 = vld [vmem:[%s2 + $0x8] sm:$0xff]
    %v126 = vld [vmem:[%s2 + $0x10] sm:$0xff]
    %v127 = vld [vmem:[%s2 + $0x18] sm:$0xff]
    %v128 = vld [vmem:[%s2 + $0x20] sm:$0xff]
    %v129 = vld [vmem:[%s2 + $0x28] sm:$0xff]
    %v130 = vld [vmem:[%s2 + $0x30] sm:$0xff]
    %v131 = vld [vmem:[%s2 + $0x38] sm:$0xff]
    %v132 = vld [vmem:[%s2 + $0x40] sm:$0xff]
    %v133 = vld [vmem:[%s2 + $0x48] sm:$0xff]
    %v134 = vld [vmem:[%s2 + $0x50] sm:$0xff]
    %v135 = vld [vmem:[%s2 + $0x58] sm:$0xff]
    %v136 = vld [vmem:[%s2 + $0x60] sm:$0xff]
    %v137 = vld [vmem:[%s2 + $0x68] sm:$0xff]
    %v138 = vld [vmem:[%s2 + $0x70] sm:$0xff]
    %v139 = vld [vmem:[%s2 + $0x78] sm:$0xff]
    %v140 = vld [vmem:[%s2 + $0x80] sm:$0xff]
    %v141 = vld [vmem:[%s2 + $0x88] sm:$0xff]
    %v142 = vld [vmem:[%s2 + $0x90] sm:$0xff]
    %v143 = vld [vmem:[%s2 + $0x98] sm:$0xff]
    %v144 = vld [vmem:[%s2 + $0xa0] sm:$0xff]
    %v145 = vld [vmem:[%s2 + $0xa8] sm:$0xff]
    %v146 = vld [vmem:[%s2 + $0xb0] sm:$0xff]
    %v147 = vld [vmem:[%s2 + $0xb8] sm:$0xff]
    %v148 = vld [vmem:[%s2 + $0xc0] sm:$0xff]
    %v149 = vld [vmem:[%s2 + $0xc8] sm:$0xff]
    %v150 = vld [vmem:[%s2 + $0xd0] sm:$0xff]
    %v151 = vld [vmem:[%s2 + $0xd8] sm:$0xff]
    %v152 = vld [vmem:[%s2 + $0xe0] sm:$0xff]
    %v153 = vld [vmem:[%s2 + $0xe8] sm:$0xff]
    %v154 = vld [vmem:[%s2 + $0xf0] sm:$0xff]
    %v155 = vld [vmem:[%s2 + $0xf8] sm:$0xff]
    %v156 = vld [vmem:[%s2 + $0x100] sm:$0xff]
    %v157 = vld [vmem:[%s2 + $0x108] sm:$0xff]
    %v158 = vld [vmem:[%s2 + $0x110] sm:$0xff]
    %v159 = vld [vmem:[%s2 + $0x118] sm:$0xff]
    %v160 = vld [vmem:[%s2 + $0x120] sm:$0xff]
    %v161 = vld [vmem:[%s2 + $0x128] sm:$0xff]
    %v162 = vld [vmem:[%s2 + $0x130] sm:$0xff]
    %v163 = vld [vmem:[%s2 + $0x138] sm:$0xff]
    %v164 = vld [vmem:[%s2 + $0x140] sm:$0xff]
    %v165 = vld [vmem:[%s2 + $0x148] sm:$0xff]
    %v166 = vld [vmem:[%s2 + $0x150] sm:$0xff]
    %v167 = vld [vmem:[%s2 + $0x158] sm:$0xff]
    %v168 = vld [vmem:[%s2 + $0x160] sm:$0xff]
    %v169 = vld [vmem:[%s2 + $0x168] sm:$0xff]
    %v170 = vld [vmem:[%s2 + $0x170] sm:$0xff]
    %v171 = vld [vmem:[%s2 + $0x178] sm:$0xff]
    %v172 = vld [vmem:[%s2 + $0x180] sm:$0xff]
    %v173 = vld [vmem:[%s2 + $0x188] sm:$0xff]
    %v174 = vld [vmem:[%s2 + $0x190] sm:$0xff]
    %v175 = vld [vmem:[%s2 + $0x198] sm:$0xff]
    %v176 = vld [vmem:[%s2 + $0x1a0] sm:$0xff]
    %v177 = vld [vmem:[%s2 + $0x1a8] sm:$0xff]
    %v178 = vld [vmem:[%s2 + $0x1b0] sm:$0xff]
    %v179 = vld [vmem:[%s2 + $0x1b8] sm:$0xff]
    %v180 = vld [vmem:[%s2 + $0x1c0] sm:$0xff]
    %v181 = vld [vmem:[%s2 + $0x1c8] sm:$0xff]
    %v182 = vld [vmem:[%s2 + $0x1d0] sm:$0xff]
    %v183 = vld [vmem:[%s2 + $0x1d8] sm:$0xff]
    %v184 = vld [vmem:[%s2 + $0x1e0] sm:$0xff]
    %v185 = vld [vmem:[%s2 + $0x1e8] sm:$0xff]
    %v186 = vld [vmem:[%s2 + $0x1f0] sm:$0xff]
    %v187 = vld [vmem:[%s2 + $0x1f8] sm:$0xff]
    %188 = vmatprep.subr.mxu0 %v125
    %189 = vmatpush1.msra.mxu0 %v124
    %190 = vmatprep.subr.mxu0 %v129
    %191 = vmatpush1.msra.mxu0 %v128
    %192 = vmatprep.subr.mxu0 %v133
    %193 = vmatpush1.msra.mxu0 %v132
    %194 = vmatprep.subr.mxu0 %v137
    %195 = vmatpush1.msra.mxu0 %v136
    %196 = vmatprep.subr.mxu0 %v141
    %197 = vmatpush1.msra.mxu0 %v140
    %198 = vmatprep.subr.mxu0 %v145
    %199 = vmatpush1.msra.mxu0 %v144
    %200 = vmatprep.subr.mxu0 %v149
    %201 = vmatpush1.msra.mxu0 %v148
    %202 = vmatprep.subr.mxu0 %v153
    %203 = vmatpush1.msra.mxu0 %v152
    %204 = vmatprep.subr.mxu0 %v157
    %205 = vmatpush1.msra.mxu0 %v156
    %206 = vmatprep.subr.mxu0 %v161
    %207 = vmatpush1.msra.mxu0 %v160
    %208 = vmatprep.subr.mxu0 %v165
    %209 = vmatpush1.msra.mxu0 %v164
    %210 = vmatprep.subr.mxu0 %v169
    %211 = vmatpush1.msra.mxu0 %v168
    %212 = vmatprep.subr.mxu0 %v173
    %213 = vmatpush1.msra.mxu0 %v172
    %214 = vmatprep.subr.mxu0 %v177
    %215 = vmatpush1.msra.mxu0 %v176
    %216 = vmatprep.subr.mxu0 %v181
    %217 = vmatpush1.msra.mxu0 %v180
    %218 = vmatprep.subr.mxu0 %v185
    %219 = vmatpush1.msra.mxu0 %v184
    %220 = vmatprep.subr.mxu0 0.0
    %221 = vmatpush1.msra.mxu0 0.0
    %222 = vmatprep.subr.mxu0 0.0
    %223 = vmatpush1.msra.mxu0 0.0
    %224 = vmatprep.subr.mxu0 0.0
    %225 = vmatpush1.msra.mxu0 0.0
    %226 = vmatprep.subr.mxu0 0.0
    %227 = vmatpush1.msra.mxu0 0.0
    %228 = vmatprep.subr.mxu0 0.0
    %229 = vmatpush1.msra.mxu0 0.0
    %230 = vmatprep.subr.mxu0 0.0
    %231 = vmatpush1.msra.mxu0 0.0
    %232 = vmatprep.subr.mxu0 0.0
    %233 = vmatpush1.msra.mxu0 0.0
    %234 = vmatprep.subr.mxu0 0.0
    %235 = vmatpush1.msra.mxu0 0.0
    %236 = vmatprep.subr.mxu0 0.0
    %237 = vmatpush1.msra.mxu0 0.0
    %238 = vmatprep.subr.mxu0 0.0
    %239 = vmatpush1.msra.mxu0 0.0
    %240 = vmatprep.subr.mxu0 0.0
    %241 = vmatpush1.msra.mxu0 0.0
    %242 = vmatprep.subr.mxu0 0.0
    %243 = vmatpush1.msra.mxu0 0.0
    %244 = vmatprep.subr.mxu0 0.0
    %245 = vmatpush1.msra.mxu0 0.0
    %246 = vmatprep.subr.mxu0 0.0
    %247 = vmatpush1.msra.mxu0 0.0
    %248 = vmatprep.subr.mxu0 0.0
    %249 = vmatpush1.msra.mxu0 0.0
    %250 = vmatprep.subr.mxu0 0.0
    %251 = vmatpush1.msra.mxu0 0.0
    %252 = vmatprep.mubr.f32.mxu0 0.0
    %253 = vmatmul.mubr.f32.gmra.mrb[0].mxu0 0.0
    %v254 = vpop.f32.mrb[0].mxu0
    %v255 = vadd.f32 0.0, %v254
    %v256 = vpop.f32.mrb[0].mxu0
    %v257 = vadd.f32 0.0, %v256
    %258 = vdwg.mxu0
    %259 = vmatprep.subr.mxu0 %v127
    %260 = vmatpush1.msra.mxu0 %v126
    %261 = vmatprep.subr.mxu0 %v131
    %262 = vmatpush1.msra.mxu0 %v130
    %263 = vmatprep.subr.mxu0 %v135
    %264 = vmatpush1.msra.mxu0 %v134
    %265 = vmatprep.subr.mxu0 %v139
    %266 = vmatpush1.msra.mxu0 %v138
    %267 = vmatprep.subr.mxu0 %v143
    %268 = vmatpush1.msra.mxu0 %v142
    %269 = vmatprep.subr.mxu0 %v147
    %270 = vmatpush1.msra.mxu0 %v146
    %271 = vmatprep.subr.mxu0 %v151
    %272 = vmatpush1.msra.mxu0 %v150
    %273 = vmatprep.subr.mxu0 %v155
    %274 = vmatpush1.msra.mxu0 %v154
    %275 = vmatprep.subr.mxu0 %v159
    %276 = vmatpush1.msra.mxu0 %v158
    %277 = vmatprep.subr.mxu0 %v163
    %278 = vmatpush1.msra.mxu0 %v162
    %279 = vmatprep.subr.mxu0 %v167
    %280 = vmatpush1.msra.mxu0 %v166
    %281 = vmatprep.subr.mxu0 %v171
    %282 = vmatpush1.msra.mxu0 %v170
    %283 = vmatprep.subr.mxu0 %v175
    %284 = vmatpush1.msra.mxu0 %v174
    %285 = vmatprep.subr.mxu0 %v179
    %286 = vmatpush1.msra.mxu0 %v178
    %287 = vmatprep.subr.mxu0 %v183
    %288 = vmatpush1.msra.mxu0 %v182
    %289 = vmatprep.subr.mxu0 %v187
    %290 = vmatpush1.msra.mxu0 %v186
    %291 = vmatprep.subr.mxu0 0.0
    %292 = vmatpush1.msra.mxu0 0.0
    %293 = vmatprep.subr.mxu0 0.0
    %294 = vmatpush1.msra.mxu0 0.0
    %295 = vmatprep.subr.mxu0 0.0
    %296 = vmatpush1.msra.mxu0 0.0
    %297 = vmatprep.subr.mxu0 0.0
    %298 = vmatpush1.msra.mxu0 0.0
    %299 = vmatprep.subr.mxu0 0.0
    %300 = vmatpush1.msra.mxu0 0.0
    %301 = vmatprep.subr.mxu0 0.0
    %302 = vmatpush1.msra.mxu0 0.0
    %303 = vmatprep.subr.mxu0 0.0
    %304 = vmatpush1.msra.mxu0 0.0
    %305 = vmatprep.subr.mxu0 0.0
    %306 = vmatpush1.msra.mxu0 0.0
    %307 = vmatprep.subr.mxu0 0.0
    %308 = vmatpush1.msra.mxu0 0.0
    %309 = vmatprep.subr.mxu0 0.0
    %310 = vmatpush1.msra.mxu0 0.0
    %311 = vmatprep.subr.mxu0 0.0
    %312 = vmatpush1.msra.mxu0 0.0
    %313 = vmatprep.subr.mxu0 0.0
    %314 = vmatpush1.msra.mxu0 0.0
    %315 = vmatprep.subr.mxu0 0.0
    %316 = vmatpush1.msra.mxu0 0.0
    %317 = vmatprep.subr.mxu0 0.0
    %318 = vmatpush1.msra.mxu0 0.0
    %319 = vmatprep.subr.mxu0 0.0
    %320 = vmatpush1.msra.mxu0 0.0
    %321 = vmatprep.subr.mxu0 0.0
    %322 = vmatpush1.msra.mxu0 0.0
    %323 = vmatprep.mubr.f32.mxu0 0.0
    %324 = vmatmul.mubr.f32.gmra.mrb[0].mxu0 0.0
    %v325 = vpop.f32.mrb[0].mxu0
    %v326 = vadd.f32 0.0, %v325
    %v327 = vpop.f32.mrb[0].mxu0
    %v328 = vadd.f32 0.0, %v327
    %329 = vdwg.mxu0
    %330 = vmatprep.subr.mxu0 %v61
    %331 = vmatpush1.msra.mxu0 %v60
    %332 = vmatprep.subr.mxu0 %v65
    %333 = vmatpush1.msra.mxu0 %v64
    %334 = vmatprep.subr.mxu0 %v69
    %335 = vmatpush1.msra.mxu0 %v68
    %336 = vmatprep.subr.mxu0 %v73
    %337 = vmatpush1.msra.mxu0 %v72
    %338 = vmatprep.subr.mxu0 %v77
    %339 = vmatpush1.msra.mxu0 %v76
    %340 = vmatprep.subr.mxu0 %v81
    %341 = vmatpush1.msra.mxu0 %v80
    %342 = vmatprep.subr.mxu0 %v85
    %343 = vmatpush1.msra.mxu0 %v84
    %344 = vmatprep.subr.mxu0 %v89
    %345 = vmatpush1.msra.mxu0 %v88
    %346 = vmatprep.subr.mxu0 %v93
    %347 = vmatpush1.msra.mxu0 %v92
    %348 = vmatprep.subr.mxu0 %v97
    %349 = vmatpush1.msra.mxu0 %v96
    %350 = vmatprep.subr.mxu0 %v101
    %351 = vmatpush1.msra.mxu0 %v100
    %352 = vmatprep.subr.mxu0 %v105
    %353 = vmatpush1.msra.mxu0 %v104
    %354 = vmatprep.subr.mxu0 %v109
    %355 = vmatpush1.msra.mxu0 %v108
    %356 = vmatprep.subr.mxu0 %v113
    %357 = vmatpush1.msra.mxu0 %v112
    %358 = vmatprep.subr.mxu0 %v117
    %359 = vmatpush1.msra.mxu0 %v116
    %360 = vmatprep.subr.mxu0 %v121
    %361 = vmatpush1.msra.mxu0 %v120
    %362 = vmatprep.subr.mxu0 0.0
    %363 = vmatpush1.msra.mxu0 0.0
    %364 = vmatprep.subr.mxu0 0.0
    %365 = vmatpush1.msra.mxu0 0.0
    %366 = vmatprep.subr.mxu0 0.0
    %367 = vmatpush1.msra.mxu0 0.0
    %368 = vmatprep.subr.mxu0 0.0
    %369 = vmatpush1.msra.mxu0 0.0
    %370 = vmatprep.subr.mxu0 0.0
    %371 = vmatpush1.msra.mxu0 0.0
    %372 = vmatprep.subr.mxu0 0.0
    %373 = vmatpush1.msra.mxu0 0.0
    %374 = vmatprep.subr.mxu0 0.0
    %375 = vmatpush1.msra.mxu0 0.0
    %376 = vmatprep.subr.mxu0 0.0
    %377 = vmatpush1.msra.mxu0 0.0
    %378 = vmatprep.subr.mxu0 0.0
    %379 = vmatpush1.msra.mxu0 0.0
    %380 = vmatprep.subr.mxu0 0.0
    %381 = vmatpush1.msra.mxu0 0.0
    %382 = vmatprep.subr.mxu0 0.0
    %383 = vmatpush1.msra.mxu0 0.0
    %384 = vmatprep.subr.mxu0 0.0
    %385 = vmatpush1.msra.mxu0 0.0
    %386 = vmatprep.subr.mxu0 0.0
    %387 = vmatpush1.msra.mxu0 0.0
    %388 = vmatprep.subr.mxu0 0.0
    %389 = vmatpush1.msra.mxu0 0.0
    %390 = vmatprep.subr.mxu0 0.0
    %391 = vmatpush1.msra.mxu0 0.0
    %392 = vmatprep.subr.mxu0 0.0
    %393 = vmatpush1.msra.mxu0 0.0
    %394 = vmatprep.mubr.f32.mxu0 0.0
    %395 = vmatmul.mubr.f32.gmra.mrb[0].mxu0 0.0
    %v396 = vpop.f32.mrb[0].mxu0
    %v397 = vadd.f32 %v255, %v396
    %v398 = vpop.f32.mrb[0].mxu0
    %v399 = vadd.f32 %v257, %v398
    %400 = vdwg.mxu0
    %401 = vmatprep.subr.mxu0 %v63
    %402 = vmatpush1.msra.mxu0 %v62
    %403 = vmatprep.subr.mxu0 %v67
    %404 = vmatpush1.msra.mxu0 %v66
    %405 = vmatprep.subr.mxu0 %v71
    %406 = vmatpush1.msra.mxu0 %v70
    %407 = vmatprep.subr.mxu0 %v75
    %408 = vmatpush1.msra.mxu0 %v74
    %409 = vmatprep.subr.mxu0 %v79
    %410 = vmatpush1.msra.mxu0 %v78
    %411 = vmatprep.subr.mxu0 %v83
    %412 = vmatpush1.msra.mxu0 %v82
    %413 = vmatprep.subr.mxu0 %v87
    %414 = vmatpush1.msra.mxu0 %v86
    %415 = vmatprep.subr.mxu0 %v91
    %416 = vmatpush1.msra.mxu0 %v90
    %417 = vmatprep.subr.mxu0 %v95
    %418 = vmatpush1.msra.mxu0 %v94
    %419 = vmatprep.subr.mxu0 %v99
    %420 = vmatpush1.msra.mxu0 %v98
    %421 = vmatprep.subr.mxu0 %v103
    %422 = vmatpush1.msra.mxu0 %v102
    %423 = vmatprep.subr.mxu0 %v107
    %424 = vmatpush1.msra.mxu0 %v106
    %425 = vmatprep.subr.mxu0 %v111
    %426 = vmatpush1.msra.mxu0 %v110
    %427 = vmatprep.subr.mxu0 %v115
    %428 = vmatpush1.msra.mxu0 %v114
    %429 = vmatprep.subr.mxu0 %v119
    %430 = vmatpush1.msra.mxu0 %v118
    %431 = vmatprep.subr.mxu0 %v123
    %432 = vmatpush1.msra.mxu0 %v122
    %433 = vmatprep.subr.mxu0 0.0
    %434 = vmatpush1.msra.mxu0 0.0
    %435 = vmatprep.subr.mxu0 0.0
    %436 = vmatpush1.msra.mxu0 0.0
    %437 = vmatprep.subr.mxu0 0.0
    %438 = vmatpush1.msra.mxu0 0.0
    %439 = vmatprep.subr.mxu0 0.0
    %440 = vmatpush1.msra.mxu0 0.0
    %441 = vmatprep.subr.mxu0 0.0
    %442 = vmatpush1.msra.mxu0 0.0
    %443 = vmatprep.subr.mxu0 0.0
    %444 = vmatpush1.msra.mxu0 0.0
    %445 = vmatprep.subr.mxu0 0.0
    %446 = vmatpush1.msra.mxu0 0.0
    %447 = vmatprep.subr.mxu0 0.0
    %448 = vmatpush1.msra.mxu0 0.0
    %449 = vmatprep.subr.mxu0 0.0
    %450 = vmatpush1.msra.mxu0 0.0
    %451 = vmatprep.subr.mxu0 0.0
    %452 = vmatpush1.msra.mxu0 0.0
    %453 = vmatprep.subr.mxu0 0.0
    %454 = vmatpush1.msra.mxu0 0.0
    %455 = vmatprep.subr.mxu0 0.0
    %456 = vmatpush1.msra.mxu0 0.0
    %457 = vmatprep.subr.mxu0 0.0
    %458 = vmatpush1.msra.mxu0 0.0
    %459 = vmatprep.subr.mxu0 0.0
    %460 = vmatpush1.msra.mxu0 0.0
    %461 = vmatprep.subr.mxu0 0.0
    %462 = vmatpush1.msra.mxu0 0.0
    %463 = vmatprep.subr.mxu0 0.0
    %464 = vmatpush1.msra.mxu0 0.0
    %465 = vmatprep.mubr.f32.mxu0 0.0
    %466 = vmatmul.mubr.f32.gmra.mrb[0].mxu0 0.0
    %v467 = vpop.f32.mrb[0].mxu0
    %v468 = vadd.f32 %v326, %v467
    %v469 = vpop.f32.mrb[0].mxu0
    %v470 = vadd.f32 %v328, %v469
    %471 = vdwg.mxu0
    %v472 = vld [vmem:[%s3] sm:$0xff]
    %v473 = vld [vmem:[%s3 + $0x8] sm:$0xff]
    %v474 = vld [vmem:[%s3 + $0x10] sm:$0xff]
    %v475 = vld [vmem:[%s3 + $0x18] sm:$0xff]
    %v476 = vld [vmem:[%s3 + $0x20] sm:$0xff]
    %v477 = vld [vmem:[%s3 + $0x28] sm:$0xff]
    %v478 = vld [vmem:[%s3 + $0x30] sm:$0xff]
    %v479 = vld [vmem:[%s3 + $0x38] sm:$0xff]
    %v480 = vld [vmem:[%s3 + $0x40] sm:$0xff]
    %v481 = vld [vmem:[%s3 + $0x48] sm:$0xff]
    %v482 = vld [vmem:[%s3 + $0x50] sm:$0xff]
    %v483 = vld [vmem:[%s3 + $0x58] sm:$0xff]
    %v484 = vld [vmem:[%s3 + $0x60] sm:$0xff]
    %v485 = vld [vmem:[%s3 + $0x68] sm:$0xff]
    %v486 = vld [vmem:[%s3 + $0x70] sm:$0xff]
    %v487 = vld [vmem:[%s3 + $0x78] sm:$0xff]
    %v488 = vld [vmem:[%s3 + $0x80] sm:$0xff]
    %v489 = vld [vmem:[%s3 + $0x88] sm:$0xff]
    %v490 = vld [vmem:[%s3 + $0x90] sm:$0xff]
    %v491 = vld [vmem:[%s3 + $0x98] sm:$0xff]
    %v492 = vld [vmem:[%s3 + $0xa0] sm:$0xff]
    %v493 = vld [vmem:[%s3 + $0xa8] sm:$0xff]
    %v494 = vld [vmem:[%s3 + $0xb0] sm:$0xff]
    %v495 = vld [vmem:[%s3 + $0xb8] sm:$0xff]
    %v496 = vld [vmem:[%s3 + $0xc0] sm:$0xff]
    %v497 = vld [vmem:[%s3 + $0xc8] sm:$0xff]
    %v498 = vld [vmem:[%s3 + $0xd0] sm:$0xff]
    %v499 = vld [vmem:[%s3 + $0xd8] sm:$0xff]
    %v500 = vld [vmem:[%s3 + $0xe0] sm:$0xff]
    %v501 = vld [vmem:[%s3 + $0xe8] sm:$0xff]
    %v502 = vld [vmem:[%s3 + $0xf0] sm:$0xff]
    %v503 = vld [vmem:[%s3 + $0xf8] sm:$0xff]
    %v504 = vld [vmem:[%s3 + $0x100] sm:$0xff]
    %v505 = vld [vmem:[%s3 + $0x108] sm:$0xff]
    %v506 = vld [vmem:[%s3 + $0x110] sm:$0xff]
    %v507 = vld [vmem:[%s3 + $0x118] sm:$0xff]
    %v508 = vld [vmem:[%s3 + $0x120] sm:$0xff]
    %v509 = vld [vmem:[%s3 + $0x128] sm:$0xff]
    %v510 = vld [vmem:[%s3 + $0x130] sm:$0xff]
    %v511 = vld [vmem:[%s3 + $0x138] sm:$0xff]
    %v512 = vld [vmem:[%s3 + $0x140] sm:$0xff]
    %v513 = vld [vmem:[%s3 + $0x148] sm:$0xff]
    %v514 = vld [vmem:[%s3 + $0x150] sm:$0xff]
    %v515 = vld [vmem:[%s3 + $0x158] sm:$0xff]
    %v516 = vld [vmem:[%s3 + $0x160] sm:$0xff]
    %v517 = vld [vmem:[%s3 + $0x168] sm:$0xff]
    %v518 = vld [vmem:[%s3 + $0x170] sm:$0xff]
    %v519 = vld [vmem:[%s3 + $0x178] sm:$0xff]
    %v520 = vld [vmem:[%s3 + $0x180] sm:$0xff]
    %v521 = vld [vmem:[%s3 + $0x188] sm:$0xff]
    %v522 = vld [vmem:[%s3 + $0x190] sm:$0xff]
    %v523 = vld [vmem:[%s3 + $0x198] sm:$0xff]
    %v524 = vld [vmem:[%s3 + $0x1a0] sm:$0xff]
    %v525 = vld [vmem:[%s3 + $0x1a8] sm:$0xff]
    %v526 = vld [vmem:[%s3 + $0x1b0] sm:$0xff]
    %v527 = vld [vmem:[%s3 + $0x1b8] sm:$0xff]
    %v528 = vld [vmem:[%s3 + $0x1c0] sm:$0xff]
    %v529 = vld [vmem:[%s3 + $0x1c8] sm:$0xff]
    %v530 = vld [vmem:[%s3 + $0x1d0] sm:$0xff]
    %v531 = vld [vmem:[%s3 + $0x1d8] sm:$0xff]
    %v532 = vld [vmem:[%s3 + $0x1e0] sm:$0xff]
    %v533 = vld [vmem:[%s3 + $0x1e8] sm:$0xff]
    %v534 = vld [vmem:[%s3 + $0x1f0] sm:$0xff]
    %v535 = vld [vmem:[%s3 + $0x1f8] sm:$0xff]
    %536 = vmatprep.subr.mxu0 %v473
    %537 = vmatpush1.msra.mxu0 %v472
    %538 = vmatprep.subr.mxu0 %v477
    %539 = vmatpush1.msra.mxu0 %v476
    %540 = vmatprep.subr.mxu0 %v481
    %541 = vmatpush1.msra.mxu0 %v480
    %542 = vmatprep.subr.mxu0 %v485
    %543 = vmatpush1.msra.mxu0 %v484
    %544 = vmatprep.subr.mxu0 %v489
    %545 = vmatpush1.msra.mxu0 %v488
    %546 = vmatprep.subr.mxu0 %v493
    %547 = vmatpush1.msra.mxu0 %v492
    %548 = vmatprep.subr.mxu0 %v497
    %549 = vmatpush1.msra.mxu0 %v496
    %550 = vmatprep.subr.mxu0 %v501
    %551 = vmatpush1.msra.mxu0 %v500
    %552 = vmatprep.subr.mxu0 %v505
    %553 = vmatpush1.msra.mxu0 %v504
    %554 = vmatprep.subr.mxu0 %v509
    %555 = vmatpush1.msra.mxu0 %v508
    %556 = vmatprep.subr.mxu0 %v513
    %557 = vmatpush1.msra.mxu0 %v512
    %558 = vmatprep.subr.mxu0 %v517
    %559 = vmatpush1.msra.mxu0 %v516
    %560 = vmatprep.subr.mxu0 %v521
    %561 = vmatpush1.msra.mxu0 %v520
    %562 = vmatprep.subr.mxu0 %v525
    %563 = vmatpush1.msra.mxu0 %v524
    %564 = vmatprep.subr.mxu0 %v529
    %565 = vmatpush1.msra.mxu0 %v528
    %566 = vmatprep.subr.mxu0 %v533
    %567 = vmatpush1.msra.mxu0 %v532
    %568 = vmatprep.subr.mxu0 0.0
    %569 = vmatpush1.msra.mxu0 0.0
    %570 = vmatprep.subr.mxu0 0.0
    %571 = vmatpush1.msra.mxu0 0.0
    %572 = vmatprep.subr.mxu0 0.0
    %573 = vmatpush1.msra.mxu0 0.0
    %574 = vmatprep.subr.mxu0 0.0
    %575 = vmatpush1.msra.mxu0 0.0
    %576 = vmatprep.subr.mxu0 0.0
    %577 = vmatpush1.msra.mxu0 0.0
    %578 = vmatprep.subr.mxu0 0.0
    %579 = vmatpush1.msra.mxu0 0.0
    %580 = vmatprep.subr.mxu0 0.0
    %581 = vmatpush1.msra.mxu0 0.0
    %582 = vmatprep.subr.mxu0 0.0
    %583 = vmatpush1.msra.mxu0 0.0
    %584 = vmatprep.subr.mxu0 0.0
    %585 = vmatpush1.msra.mxu0 0.0
    %586 = vmatprep.subr.mxu0 0.0
    %587 = vmatpush1.msra.mxu0 0.0
    %588 = vmatprep.subr.mxu0 0.0
    %589 = vmatpush1.msra.mxu0 0.0
    %590 = vmatprep.subr.mxu0 0.0
    %591 = vmatpush1.msra.mxu0 0.0
    %592 = vmatprep.subr.mxu0 0.0
    %593 = vmatpush1.msra.mxu0 0.0
    %594 = vmatprep.subr.mxu0 0.0
    %595 = vmatpush1.msra.mxu0 0.0
    %596 = vmatprep.subr.mxu0 0.0
    %597 = vmatpush1.msra.mxu0 0.0
    %598 = vmatprep.subr.mxu0 0.0
    %599 = vmatpush1.msra.mxu0 0.0
    %600 = vmatprep.mubr.f32.mxu0 0.0
    %601 = vmatmul.mubr.f32.gmra.mrb[0].mxu0 0.0
    %v602 = vpop.f32.mrb[0].mxu0
    %v603 = vadd.f32 0.0, %v602
    %v604 = vpop.f32.mrb[0].mxu0
    %v605 = vadd.f32 0.0, %v604
    %606 = vdwg.mxu0
    %607 = vmatprep.subr.mxu0 %v475
    %608 = vmatpush1.msra.mxu0 %v474
    %609 = vmatprep.subr.mxu0 %v479
    %610 = vmatpush1.msra.mxu0 %v478
    %611 = vmatprep.subr.mxu0 %v483
    %612 = vmatpush1.msra.mxu0 %v482
    %613 = vmatprep.subr.mxu0 %v487
    %614 = vmatpush1.msra.mxu0 %v486
    %615 = vmatprep.subr.mxu0 %v491
    %616 = vmatpush1.msra.mxu0 %v490
    %617 = vmatprep.subr.mxu0 %v495
    %618 = vmatpush1.msra.mxu0 %v494
    %619 = vmatprep.subr.mxu0 %v499
    %620 = vmatpush1.msra.mxu0 %v498
    %621 = vmatprep.subr.mxu0 %v503
    %622 = vmatpush1.msra.mxu0 %v502
    %623 = vmatprep.subr.mxu0 %v507
    %624 = vmatpush1.msra.mxu0 %v506
    %625 = vmatprep.subr.mxu0 %v511
    %626 = vmatpush1.msra.mxu0 %v510
    %627 = vmatprep.subr.mxu0 %v515
    %628 = vmatpush1.msra.mxu0 %v514
    %629 = vmatprep.subr.mxu0 %v519
    %630 = vmatpush1.msra.mxu0 %v518
    %631 = vmatprep.subr.mxu0 %v523
    %632 = vmatpush1.msra.mxu0 %v522
    %633 = vmatprep.subr.mxu0 %v527
    %634 = vmatpush1.msra.mxu0 %v526
    %635 = vmatprep.subr.mxu0 %v531
    %636 = vmatpush1.msra.mxu0 %v530
    %637 = vmatprep.subr.mxu0 %v535
    %638 = vmatpush1.msra.mxu0 %v534
    %639 = vmatprep.subr.mxu0 0.0
    %640 = vmatpush1.msra.mxu0 0.0
    %641 = vmatprep.subr.mxu0 0.0
    %642 = vmatpush1.msra.mxu0 0.0
    %643 = vmatprep.subr.mxu0 0.0
    %644 = vmatpush1.msra.mxu0 0.0
    %645 = vmatprep.subr.mxu0 0.0
    %646 = vmatpush1.msra.mxu0 0.0
    %647 = vmatprep.subr.mxu0 0.0
    %648 = vmatpush1.msra.mxu0 0.0
    %649 = vmatprep.subr.mxu0 0.0
    %650 = vmatpush1.msra.mxu0 0.0
    %651 = vmatprep.subr.mxu0 0.0
    %652 = vmatpush1.msra.mxu0 0.0
    %653 = vmatprep.subr.mxu0 0.0
    %654 = vmatpush1.msra.mxu0 0.0
    %655 = vmatprep.subr.mxu0 0.0
    %656 = vmatpush1.msra.mxu0 0.0
    %657 = vmatprep.subr.mxu0 0.0
    %658 = vmatpush1.msra.mxu0 0.0
    %659 = vmatprep.subr.mxu0 0.0
    %660 = vmatpush1.msra.mxu0 0.0
    %661 = vmatprep.subr.mxu0 0.0
    %662 = vmatpush1.msra.mxu0 0.0
    %663 = vmatprep.subr.mxu0 0.0
    %664 = vmatpush1.msra.mxu0 0.0
    %665 = vmatprep.subr.mxu0 0.0
    %666 = vmatpush1.msra.mxu0 0.0
    %667 = vmatprep.subr.mxu0 0.0
    %668 = vmatpush1.msra.mxu0 0.0
    %669 = vmatprep.subr.mxu0 0.0
    %670 = vmatpush1.msra.mxu0 0.0
    %671 = vmatprep.mubr.f32.mxu0 0.0
    %672 = vmatmul.mubr.f32.gmra.mrb[0].mxu0 0.0
    %v673 = vpop.f32.mrb[0].mxu0
    %v674 = vadd.f32 0.0, %v673
    %v675 = vpop.f32.mrb[0].mxu0
    %v676 = vadd.f32 0.0, %v675
    %677 = vdwg.mxu0
    %v678 = vadd.f32 %v397, %v603
    %v679 = vadd.f32 %v399, %v605
    %v680 = vadd.f32 %v468, %v674
    %v681 = vadd.f32 %v470, %v676
    %v682 = vld [vmem:[#allocation3] sm:$0xf]
    %v684 = vlaneseq
    %v685 = vshrl.u32 %v684, 7
    %v686 = vsub.s32 0, %v685
    %v687 = vrot.slane %v682, %v686
    %v688 = vlaneseq
    %v689 = vshrl.u32 %v688, 7
    %v690 = vsub.s32 1, %v689
    %v691 = vrot.slane %v682, %v690
    %v692 = vlaneseq
    %v693 = vshrl.u32 %v692, 7
    %v694 = vsub.s32 2, %v693
    %v695 = vrot.slane %v682, %v694
    %v696 = vlaneseq
    %v697 = vshrl.u32 %v696, 7
    %v698 = vsub.s32 3, %v697
    %v699 = vrot.slane %v682, %v698
    %v704 = vadd.f32 %v678, %v687
    %v705 = vadd.f32 %v679, %v691
    %v706 = vadd.f32 %v680, %v695
    %v707 = vadd.f32 %v681, %v699
    %v708 = vsub.f32 0.0, %v704
    %v709 = vmul.f32 %v708, 1.442695
    %v710 = vpow.pop %v709
    %v711 = vadd.f32 %v710, 1.0
    %v712 = vrcp.pop %v711
    %v713 = vmul.f32 1.0, %v712
    %v714 = vsub.f32 0.0, %v705
    %v715 = vmul.f32 %v714, 1.442695
    %v716 = vpow.pop %v715
    %v717 = vadd.f32 %v716, 1.0
    %v718 = vrcp.pop %v717
    %v719 = vmul.f32 1.0, %v718
    %v720 = vtanh.pop %v706
    %v721 = vsub.f32 0.0, %v707
    %v722 = vmul.f32 %v721, 1.442695
    %v723 = vpow.pop %v722
    %v724 = vadd.f32 %v723, 1.0
    %v725 = vrcp.pop %v724
    %v726 = vmul.f32 1.0, %v725
    %v727 = vmul.f32 %v719, 0.0
    %v728 = vmul.f32 %v713, %v720
    %v729 = vadd.f32 %v727, %v728
    %v730 = vtanh.pop %v729
    %v731 = vmul.f32 %v726, %v730
    %v732 = vlaneseq
    %v733 = vshrl.u32 %v732, 7
    %v734 = vsub.s32 0, %v733
    %v735 = vrot.slane %v731, %v734
    %v736 = vmul.f32 %v59, %v735
    %737 = vadd.xlane.f32.xlu0 %v736
    %v738 = vpop.xlane.xlu0 %737
    %v739 = vrot.slane %v738, 4
    %v740 = vmax.f32 %v738, %v739
    %v741 = vrot.slane %v740, 2
    %v742 = vmax.f32 %v740, %v741
    %v743 = vrot.slane %v742, 1
    %v744 = vmax.f32 %v742, %v743
    %v745 = vsub.f32 %v738, %v744
    %v746 = vmul.f32 %v745, 1.442695
    %v747 = vpow.pop %v746
    %v748 = vrot.slane %v747, 4
    %v749 = vadd.f32 %v747, %v748
    %v750 = vrot.slane %v749, 2
    %v751 = vadd.f32 %v749, %v750
    %v752 = vrot.slane %v751, 1
    %v753 = vadd.f32 %v751, %v752
    %v754 = vrcp.pop %v753
    %v755 = vmul.f32 %v747, %v754
    %v756 = vmul.f32 %v755, %v59
    %v757 = vrot.slane %v756, 4
    %v758 = vadd.f32 %v756, %v757
    %v759 = vrot.slane %v758, 2
    %v760 = vadd.f32 %v758, %v759
    %v761 = vrot.slane %v760, 1
    %v762 = vadd.f32 %v760, %v761
    %763 = vmatprep.subr.mxu0 %v125
    %764 = vmatpush1.msra.mxu0 %v124
    %765 = vmatprep.subr.mxu0 %v129
    %766 = vmatpush1.msra.mxu0 %v128
    %767 = vmatprep.subr.mxu0 %v133
    %768 = vmatpush1.msra.mxu0 %v132
    %769 = vmatprep.subr.mxu0 %v137
    %770 = vmatpush1.msra.mxu0 %v136
    %771 = vmatprep.subr.mxu0 %v141
    %772 = vmatpush1.msra.mxu0 %v140
    %773 = vmatprep.subr.mxu0 %v145
    %774 = vmatpush1.msra.mxu0 %v144
    %775 = vmatprep.subr.mxu0 %v149
    %776 = vmatpush1.msra.mxu0 %v148
    %777 = vmatprep.subr.mxu0 %v153
    %778 = vmatpush1.msra.mxu0 %v152
    %779 = vmatprep.subr.mxu0 %v157
    %780 = vmatpush1.msra.mxu0 %v156
    %781 = vmatprep.subr.mxu0 %v161
    %782 = vmatpush1.msra.mxu0 %v160
    %783 = vmatprep.subr.mxu0 %v165
    %784 = vmatpush1.msra.mxu0 %v164
    %785 = vmatprep.subr.mxu0 %v169
    %786 = vmatpush1.msra.mxu0 %v168
    %787 = vmatprep.subr.mxu0 %v173
    %788 = vmatpush1.msra.mxu0 %v172
    %789 = vmatprep.subr.mxu0 %v177
    %790 = vmatpush1.msra.mxu0 %v176
    %791 = vmatprep.subr.mxu0 %v181
    %792 = vmatpush1.msra.mxu0 %v180
    %793 = vmatprep.subr.mxu0 %v185
    %794 = vmatpush1.msra.mxu0 %v184
    %795 = vmatprep.subr.mxu0 0.0
    %796 = vmatpush1.msra.mxu0 0.0
    %797 = vmatprep.subr.mxu0 0.0
    %798 = vmatpush1.msra.mxu0 0.0
    %799 = vmatprep.subr.mxu0 0.0
    %800 = vmatpush1.msra.mxu0 0.0
    %801 = vmatprep.subr.mxu0 0.0
    %802 = vmatpush1.msra.mxu0 0.0
    %803 = vmatprep.subr.mxu0 0.0
    %804 = vmatpush1.msra.mxu0 0.0
    %805 = vmatprep.subr.mxu0 0.0
    %806 = vmatpush1.msra.mxu0 0.0
    %807 = vmatprep.subr.mxu0 0.0
    %808 = vmatpush1.msra.mxu0 0.0
    %809 = vmatprep.subr.mxu0 0.0
    %810 = vmatpush1.msra.mxu0 0.0
    %811 = vmatprep.subr.mxu0 0.0
    %812 = vmatpush1.msra.mxu0 0.0
    %813 = vmatprep.subr.mxu0 0.0
    %814 = vmatpush1.msra.mxu0 0.0
    %815 = vmatprep.subr.mxu0 0.0
    %816 = vmatpush1.msra.mxu0 0.0
    %817 = vmatprep.subr.mxu0 0.0
    %818 = vmatpush1.msra.mxu0 0.0
    %819 = vmatprep.subr.mxu0 0.0
    %820 = vmatpush1.msra.mxu0 0.0
    %821 = vmatprep.subr.mxu0 0.0
    %822 = vmatpush1.msra.mxu0 0.0
    %823 = vmatprep.subr.mxu0 0.0
    %824 = vmatpush1.msra.mxu0 0.0
    %825 = vmatprep.subr.mxu0 0.0
    %826 = vmatpush1.msra.mxu0 0.0
    %827 = vmatprep.mubr.f32.mxu0 0.0
    %828 = vmatmul.mubr.f32.gmra.mrb[0].mxu0 %v762
    %v829 = vpop.f32.mrb[0].mxu0
    %v830 = vadd.f32 0.0, %v829
    %v831 = vpop.f32.mrb[0].mxu0
    %v832 = vadd.f32 0.0, %v831
    %833 = vdwg.mxu0
    %834 = vmatprep.subr.mxu0 %v127
    %835 = vmatpush1.msra.mxu0 %v126
    %836 = vmatprep.subr.mxu0 %v131
    %837 = vmatpush1.msra.mxu0 %v130
    %838 = vmatprep.subr.mxu0 %v135
    %839 = vmatpush1.msra.mxu0 %v134
    %840 = vmatprep.subr.mxu0 %v139
    %841 = vmatpush1.msra.mxu0 %v138
    %842 = vmatprep.subr.mxu0 %v143
    %843 = vmatpush1.msra.mxu0 %v142
    %844 = vmatprep.subr.mxu0 %v147
    %845 = vmatpush1.msra.mxu0 %v146
    %846 = vmatprep.subr.mxu0 %v151
    %847 = vmatpush1.msra.mxu0 %v150
    %848 = vmatprep.subr.mxu0 %v155
    %849 = vmatpush1.msra.mxu0 %v154
    %850 = vmatprep.subr.mxu0 %v159
    %851 = vmatpush1.msra.mxu0 %v158
    %852 = vmatprep.subr.mxu0 %v163
    %853 = vmatpush1.msra.mxu0 %v162
    %854 = vmatprep.subr.mxu0 %v167
    %855 = vmatpush1.msra.mxu0 %v166
    %856 = vmatprep.subr.mxu0 %v171
    %857 = vmatpush1.msra.mxu0 %v170
    %858 = vmatprep.subr.mxu0 %v175
    %859 = vmatpush1.msra.mxu0 %v174
    %860 = vmatprep.subr.mxu0 %v179
    %861 = vmatpush1.msra.mxu0 %v178
    %862 = vmatprep.subr.mxu0 %v183
    %863 = vmatpush1.msra.mxu0 %v182
    %864 = vmatprep.subr.mxu0 %v187
    %865 = vmatpush1.msra.mxu0 %v186
    %866 = vmatprep.subr.mxu0 0.0
    %867 = vmatpush1.msra.mxu0 0.0
    %868 = vmatprep.subr.mxu0 0.0
    %869 = vmatpush1.msra.mxu0 0.0
    %870 = vmatprep.subr.mxu0 0.0
    %871 = vmatpush1.msra.mxu0 0.0
    %872 = vmatprep.subr.mxu0 0.0
    %873 = vmatpush1.msra.mxu0 0.0
    %874 = vmatprep.subr.mxu0 0.0
    %875 = vmatpush1.msra.mxu0 0.0
    %876 = vmatprep.subr.mxu0 0.0
    %877 = vmatpush1.msra.mxu0 0.0
    %878 = vmatprep.subr.mxu0 0.0
    %879 = vmatpush1.msra.mxu0 0.0
    %880 = vmatprep.subr.mxu0 0.0
    %881 = vmatpush1.msra.mxu0 0.0
    %882 = vmatprep.subr.mxu0 0.0
    %883 = vmatpush1.msra.mxu0 0.0
    %884 = vmatprep.subr.mxu0 0.0
    %885 = vmatpush1.msra.mxu0 0.0
    %886 = vmatprep.subr.mxu0 0.0
    %887 = vmatpush1.msra.mxu0 0.0
    %888 = vmatprep.subr.mxu0 0.0
    %889 = vmatpush1.msra.mxu0 0.0
    %890 = vmatprep.subr.mxu0 0.0
    %891 = vmatpush1.msra.mxu0 0.0
    %892 = vmatprep.subr.mxu0 0.0
    %893 = vmatpush1.msra.mxu0 0.0
    %894 = vmatprep.subr.mxu0 0.0
    %895 = vmatpush1.msra.mxu0 0.0
    %896 = vmatprep.subr.mxu0 0.0
    %897 = vmatpush1.msra.mxu0 0.0
    %898 = vmatprep.mubr.f32.mxu0 0.0
    %899 = vmatmul.mubr.f32.gmra.mrb[0].mxu0 %v762
    %v900 = vpop.f32.mrb[0].mxu0
    %v901 = vadd.f32 0.0, %v900
    %v902 = vpop.f32.mrb[0].mxu0
    %v903 = vadd.f32 0.0, %v902
    %904 = vdwg.mxu0
    %905 = vmatprep.subr.mxu0 %v61
    %906 = vmatpush1.msra.mxu0 %v60
    %907 = vmatprep.subr.mxu0 %v65
    %908 = vmatpush1.msra.mxu0 %v64
    %909 = vmatprep.subr.mxu0 %v69
    %910 = vmatpush1.msra.mxu0 %v68
    %911 = vmatprep.subr.mxu0 %v73
    %912 = vmatpush1.msra.mxu0 %v72
    %913 = vmatprep.subr.mxu0 %v77
    %914 = vmatpush1.msra.mxu0 %v76
    %915 = vmatprep.subr.mxu0 %v81
    %916 = vmatpush1.msra.mxu0 %v80
    %917 = vmatprep.subr.mxu0 %v85
    %918 = vmatpush1.msra.mxu0 %v84
    %919 = vmatprep.subr.mxu0 %v89
    %920 = vmatpush1.msra.mxu0 %v88
    %921 = vmatprep.subr.mxu0 %v93
    %922 = vmatpush1.msra.mxu0 %v92
    %923 = vmatprep.subr.mxu0 %v97
    %924 = vmatpush1.msra.mxu0 %v96
    %925 = vmatprep.subr.mxu0 %v101
    %926 = vmatpush1.msra.mxu0 %v100
    %927 = vmatprep.subr.mxu0 %v105
    %928 = vmatpush1.msra.mxu0 %v104
    %929 = vmatprep.subr.mxu0 %v109
    %930 = vmatpush1.msra.mxu0 %v108
    %931 = vmatprep.subr.mxu0 %v113
    %932 = vmatpush1.msra.mxu0 %v112
    %933 = vmatprep.subr.mxu0 %v117
    %934 = vmatpush1.msra.mxu0 %v116
    %935 = vmatprep.subr.mxu0 %v121
    %936 = vmatpush1.msra.mxu0 %v120
    %937 = vmatprep.subr.mxu0 0.0
    %938 = vmatpush1.msra.mxu0 0.0
    %939 = vmatprep.subr.mxu0 0.0
    %940 = vmatpush1.msra.mxu0 0.0
    %941 = vmatprep.subr.mxu0 0.0
    %942 = vmatpush1.msra.mxu0 0.0
    %943 = vmatprep.subr.mxu0 0.0
    %944 = vmatpush1.msra.mxu0 0.0
    %945 = vmatprep.subr.mxu0 0.0
    %946 = vmatpush1.msra.mxu0 0.0
    %947 = vmatprep.subr.mxu0 0.0
    %948 = vmatpush1.msra.mxu0 0.0
    %949 = vmatprep.subr.mxu0 0.0
    %950 = vmatpush1.msra.mxu0 0.0
    %951 = vmatprep.subr.mxu0 0.0
    %952 = vmatpush1.msra.mxu0 0.0
    %953 = vmatprep.subr.mxu0 0.0
    %954 = vmatpush1.msra.mxu0 0.0
    %955 = vmatprep.subr.mxu0 0.0
    %956 = vmatpush1.msra.mxu0 0.0
    %957 = vmatprep.subr.mxu0 0.0
    %958 = vmatpush1.msra.mxu0 0.0
    %959 = vmatprep.subr.mxu0 0.0
    %960 = vmatpush1.msra.mxu0 0.0
    %961 = vmatprep.subr.mxu0 0.0
    %962 = vmatpush1.msra.mxu0 0.0
    %963 = vmatprep.subr.mxu0 0.0
    %964 = vmatpush1.msra.mxu0 0.0
    %965 = vmatprep.subr.mxu0 0.0
    %966 = vmatpush1.msra.mxu0 0.0
    %967 = vmatprep.subr.mxu0 0.0
    %968 = vmatpush1.msra.mxu0 0.0
    %969 = vmatprep.mubr.f32.mxu0 0.0
    %970 = vmatmul.mubr.f32.gmra.mrb[0].mxu0 %v731
    %v971 = vpop.f32.mrb[0].mxu0
    %v972 = vadd.f32 %v830, %v971
    %v973 = vpop.f32.mrb[0].mxu0
    %v974 = vadd.f32 %v832, %v973
    %975 = vdwg.mxu0
    %976 = vmatprep.subr.mxu0 %v63
    %977 = vmatpush1.msra.mxu0 %v62
    %978 = vmatprep.subr.mxu0 %v67
    %979 = vmatpush1.msra.mxu0 %v66
    %980 = vmatprep.subr.mxu0 %v71
    %981 = vmatpush1.msra.mxu0 %v70
    %982 = vmatprep.subr.mxu0 %v75
    %983 = vmatpush1.msra.mxu0 %v74
    %984 = vmatprep.subr.mxu0 %v79
    %985 = vmatpush1.msra.mxu0 %v78
    %986 = vmatprep.subr.mxu0 %v83
    %987 = vmatpush1.msra.mxu0 %v82
    %988 = vmatprep.subr.mxu0 %v87
    %989 = vmatpush1.msra.mxu0 %v86
    %990 = vmatprep.subr.mxu0 %v91
    %991 = vmatpush1.msra.mxu0 %v90
    %992 = vmatprep.subr.mxu0 %v95
    %993 = vmatpush1.msra.mxu0 %v94
    %994 = vmatprep.subr.mxu0 %v99
    %995 = vmatpush1.msra.mxu0 %v98
    %996 = vmatprep.subr.mxu0 %v103
    %997 = vmatpush1.msra.mxu0 %v102
    %998 = vmatprep.subr.mxu0 %v107
    %999 = vmatpush1.msra.mxu0 %v106
    %1000 = vmatprep.subr.mxu0 %v111
    %1001 = vmatpush1.msra.mxu0 %v110
    %1002 = vmatprep.subr.mxu0 %v115
    %1003 = vmatpush1.msra.mxu0 %v114
    %1004 = vmatprep.subr.mxu0 %v119
    %1005 = vmatpush1.msra.mxu0 %v118
    %1006 = vmatprep.subr.mxu0 %v123
    %1007 = vmatpush1.msra.mxu0 %v122
    %1008 = vmatprep.subr.mxu0 0.0
    %1009 = vmatpush1.msra.mxu0 0.0
    %1010 = vmatprep.subr.mxu0 0.0
    %1011 = vmatpush1.msra.mxu0 0.0
    %1012 = vmatprep.subr.mxu0 0.0
    %1013 = vmatpush1.msra.mxu0 0.0
    %1014 = vmatprep.subr.mxu0 0.0
    %1015 = vmatpush1.msra.mxu0 0.0
    %1016 = vmatprep.subr.mxu0 0.0
    %1017 = vmatpush1.msra.mxu0 0.0
    %1018 = vmatprep.subr.mxu0 0.0
    %1019 = vmatpush1.msra.mxu0 0.0
    %1020 = vmatprep.subr.mxu0 0.0
    %1021 = vmatpush1.msra.mxu0 0.0
    %1022 = vmatprep.subr.mxu0 0.0
    %1023 = vmatpush1.msra.mxu0 0.0
    %1024 = vmatprep.subr.mxu0 0.0
    %1025 = vmatpush1.msra.mxu0 0.0
    %1026 = vmatprep.subr.mxu0 0.0
    %1027 = vmatpush1.msra.mxu0 0.0
    %1028 = vmatprep.subr.mxu0 0.0
    %1029 = vmatpush1.msra.mxu0 0.0
    %1030 = vmatprep.subr.mxu0 0.0
    %1031 = vmatpush1.msra.mxu0 0.0
    %1032 = vmatprep.subr.mxu0 0.0
    %1033 = vmatpush1.msra.mxu0 0.0
    %1034 = vmatprep.subr.mxu0 0.0
    %1035 = vmatpush1.msra.mxu0 0.0
    %1036 = vmatprep.subr.mxu0 0.0
    %1037 = vmatpush1.msra.mxu0 0.0
    %1038 = vmatprep.subr.mxu0 0.0
    %1039 = vmatpush1.msra.mxu0 0.0
    %1040 = vmatprep.mubr.f32.mxu0 0.0
    %1041 = vmatmul.mubr.f32.gmra.mrb[0].mxu0 %v731
    %v1042 = vpop.f32.mrb[0].mxu0
    %v1043 = vadd.f32 %v901, %v1042
    %v1044 = vpop.f32.mrb[0].mxu0
    %v1045 = vadd.f32 %v903, %v1044
    %1046 = vdwg.mxu0
    %1047 = vmatprep.subr.mxu0 %v473
    %1048 = vmatpush1.msra.mxu0 %v472
    %1049 = vmatprep.subr.mxu0 %v477
    %1050 = vmatpush1.msra.mxu0 %v476
    %1051 = vmatprep.subr.mxu0 %v481
    %1052 = vmatpush1.msra.mxu0 %v480
    %1053 = vmatprep.subr.mxu0 %v485
    %1054 = vmatpush1.msra.mxu0 %v484
    %1055 = vmatprep.subr.mxu0 %v489
    %1056 = vmatpush1.msra.mxu0 %v488
    %1057 = vmatprep.subr.mxu0 %v493
    %1058 = vmatpush1.msra.mxu0 %v492
    %1059 = vmatprep.subr.mxu0 %v497
    %1060 = vmatpush1.msra.mxu0 %v496
    %1061 = vmatprep.subr.mxu0 %v501
    %1062 = vmatpush1.msra.mxu0 %v500
    %1063 = vmatprep.subr.mxu0 %v505
    %1064 = vmatpush1.msra.mxu0 %v504
    %1065 = vmatprep.subr.mxu0 %v509
    %1066 = vmatpush1.msra.mxu0 %v508
    %1067 = vmatprep.subr.mxu0 %v513
    %1068 = vmatpush1.msra.mxu0 %v512
    %1069 = vmatprep.subr.mxu0 %v517
    %1070 = vmatpush1.msra.mxu0 %v516
    %1071 = vmatprep.subr.mxu0 %v521
    %1072 = vmatpush1.msra.mxu0 %v520
    %1073 = vmatprep.subr.mxu0 %v525
    %1074 = vmatpush1.msra.mxu0 %v524
    %1075 = vmatprep.subr.mxu0 %v529
    %1076 = vmatpush1.msra.mxu0 %v528
    %1077 = vmatprep.subr.mxu0 %v533
    %1078 = vmatpush1.msra.mxu0 %v532
    %1079 = vmatprep.subr.mxu0 0.0
    %1080 = vmatpush1.msra.mxu0 0.0
    %1081 = vmatprep.subr.mxu0 0.0
    %1082 = vmatpush1.msra.mxu0 0.0
    %1083 = vmatprep.subr.mxu0 0.0
    %1084 = vmatpush1.msra.mxu0 0.0
    %1085 = vmatprep.subr.mxu0 0.0
    %1086 = vmatpush1.msra.mxu0 0.0
    %1087 = vmatprep.subr.mxu0 0.0
    %1088 = vmatpush1.msra.mxu0 0.0
    %1089 = vmatprep.subr.mxu0 0.0
    %1090 = vmatpush1.msra.mxu0 0.0
    %1091 = vmatprep.subr.mxu0 0.0
    %1092 = vmatpush1.msra.mxu0 0.0
    %1093 = vmatprep.subr.mxu0 0.0
    %1094 = vmatpush1.msra.mxu0 0.0
    %1095 = vmatprep.subr.mxu0 0.0
    %1096 = vmatpush1.msra.mxu0 0.0
    %1097 = vmatprep.subr.mxu0 0.0
    %1098 = vmatpush1.msra.mxu0 0.0
    %1099 = vmatprep.subr.mxu0 0.0
    %1100 = vmatpush1.msra.mxu0 0.0
    %1101 = vmatprep.subr.mxu0 0.0
    %1102 = vmatpush1.msra.mxu0 0.0
    %1103 = vmatprep.subr.mxu0 0.0
    %1104 = vmatpush1.msra.mxu0 0.0
    %1105 = vmatprep.subr.mxu0 0.0
    %1106 = vmatpush1.msra.mxu0 0.0
    %1107 = vmatprep.subr.mxu0 0.0
    %1108 = vmatpush1.msra.mxu0 0.0
    %1109 = vmatprep.subr.mxu0 0.0
    %1110 = vmatpush1.msra.mxu0 0.0
    %1111 = vmatprep.mubr.f32.mxu0 0.0
    %1112 = vmatmul.mubr.f32.gmra.mrb[0].mxu0 %v731
    %v1113 = vpop.f32.mrb[0].mxu0
    %v1114 = vadd.f32 0.0, %v1113
    %v1115 = vpop.f32.mrb[0].mxu0
    %v1116 = vadd.f32 0.0, %v1115
    %1117 = vdwg.mxu0
    %1118 = vmatprep.subr.mxu0 %v475
    %1119 = vmatpush1.msra.mxu0 %v474
    %1120 = vmatprep.subr.mxu0 %v479
    %1121 = vmatpush1.msra.mxu0 %v478
    %1122 = vmatprep.subr.mxu0 %v483
    %1123 = vmatpush1.msra.mxu0 %v482
    %1124 = vmatprep.subr.mxu0 %v487
    %1125 = vmatpush1.msra.mxu0 %v486
    %1126 = vmatprep.subr.mxu0 %v491
    %1127 = vmatpush1.msra.mxu0 %v490
    %1128 = vmatprep.subr.mxu0 %v495
    %1129 = vmatpush1.msra.mxu0 %v494
    %1130 = vmatprep.subr.mxu0 %v499
    %1131 = vmatpush1.msra.mxu0 %v498
    %1132 = vmatprep.subr.mxu0 %v503
    %1133 = vmatpush1.msra.mxu0 %v502
    %1134 = vmatprep.subr.mxu0 %v507
    %1135 = vmatpush1.msra.mxu0 %v506
    %1136 = vmatprep.subr.mxu0 %v511
    %1137 = vmatpush1.msra.mxu0 %v510
    %1138 = vmatprep.subr.mxu0 %v515
    %1139 = vmatpush1.msra.mxu0 %v514
    %1140 = vmatprep.subr.mxu0 %v519
    %1141 = vmatpush1.msra.mxu0 %v518
    %1142 = vmatprep.subr.mxu0 %v523
    %1143 = vmatpush1.msra.mxu0 %v522
    %1144 = vmatprep.subr.mxu0 %v527
    %1145 = vmatpush1.msra.mxu0 %v526
    %1146 = vmatprep.subr.mxu0 %v531
    %1147 = vmatpush1.msra.mxu0 %v530
    %1148 = vmatprep.subr.mxu0 %v535
    %1149 = vmatpush1.msra.mxu0 %v534
    %1150 = vmatprep.subr.mxu0 0.0
    %1151 = vmatpush1.msra.mxu0 0.0
    %1152 = vmatprep.subr.mxu0 0.0
    %1153 = vmatpush1.msra.mxu0 0.0
    %1154 = vmatprep.subr.mxu0 0.0
    %1155 = vmatpush1.msra.mxu0 0.0
    %1156 = vmatprep.subr.mxu0 0.0
    %1157 = vmatpush1.msra.mxu0 0.0
    %1158 = vmatprep.subr.mxu0 0.0
    %1159 = vmatpush1.msra.mxu0 0.0
    %1160 = vmatprep.subr.mxu0 0.0
    %1161 = vmatpush1.msra.mxu0 0.0
    %1162 = vmatprep.subr.mxu0 0.0
    %1163 = vmatpush1.msra.mxu0 0.0
    %1164 = vmatprep.subr.mxu0 0.0
    %1165 = vmatpush1.msra.mxu0 0.0
    %1166 = vmatprep.subr.mxu0 0.0
    %1167 = vmatpush1.msra.mxu0 0.0
    %1168 = vmatprep.subr.mxu0 0.0
    %1169 = vmatpush1.msra.mxu0 0.0
    %1170 = vmatprep.subr.mxu0 0.0
    %1171 = vmatpush1.msra.mxu0 0.0
    %1172 = vmatprep.subr.mxu0 0.0
    %1173 = vmatpush1.msra.mxu0 0.0
    %1174 = vmatprep.subr.mxu0 0.0
    %1175 = vmatpush1.msra.mxu0 0.0
    %1176 = vmatprep.subr.mxu0 0.0
    %1177 = vmatpush1.msra.mxu0 0.0
    %1178 = vmatprep.subr.mxu0 0.0
    %1179 = vmatpush1.msra.mxu0 0.0
    %1180 = vmatprep.subr.mxu0 0.0
    %1181 = vmatpush1.msra.mxu0 0.0
    %1182 = vmatprep.mubr.f32.mxu0 0.0
    %1183 = vmatmul.mubr.f32.gmra.mrb[0].mxu0 %v731
    %v1184 = vpop.f32.mrb[0].mxu0
    %v1185 = vadd.f32 0.0, %v1184
    %v1186 = vpop.f32.mrb[0].mxu0
    %v1187 = vadd.f32 0.0, %v1186
    %1188 = vdwg.mxu0
    %v1189 = vadd.f32 %v972, %v1114
    %v1190 = vadd.f32 %v974, %v1116
    %v1191 = vadd.f32 %v1043, %v1185
    %v1192 = vadd.f32 %v1045, %v1187
    %v1193 = vadd.f32 %v1189, %v687
    %v1194 = vadd.f32 %v1190, %v691
    %v1195 = vadd.f32 %v1191, %v695
    %v1196 = vadd.f32 %v1192, %v699
    %v1197 = vsub.f32 0.0, %v1193
    %v1198 = vmul.f32 %v1197, 1.442695
    %v1199 = vpow.pop %v1198
    %v1200 = vadd.f32 %v1199, 1.0
    %v1201 = vrcp.pop %v1200
    %v1202 = vmul.f32 1.0, %v1201
    %v1203 = vsub.f32 0.0, %v1194
    %v1204 = vmul.f32 %v1203, 1.442695
    %v1205 = vpow.pop %v1204
    %v1206 = vadd.f32 %v1205, 1.0
    %v1207 = vrcp.pop %v1206
    %v1208 = vmul.f32 1.0, %v1207
    %v1209 = vtanh.pop %v1195
    %v1210 = vsub.f32 0.0, %v1196
    %v1211 = vmul.f32 %v1210, 1.442695
    %v1212 = vpow.pop %v1211
    %v1213 = vadd.f32 %v1212, 1.0
    %v1214 = vrcp.pop %v1213
    %v1215 = vmul.f32 1.0, %v1214
    %v1216 = vmul.f32 %v1208, %v729
    %v1217 = vmul.f32 %v1202, %v1209
    %v1218 = vadd.f32 %v1216, %v1217
    %v1219 = vtanh.pop %v1218
    %v1220 = vmul.f32 %v1215, %v1219
    %v1221 = vlaneseq
    %v1222 = vshrl.u32 %v1221, 7
    %v1223 = vsub.s32 0, %v1222
    %v1224 = vrot.slane %v1220, %v1223
    %v1225 = vmul.f32 %v59, %v1224
    %1226 = vadd.xlane.f32.xlu0 %v1225
    %v1227 = vpop.xlane.xlu0 %1226
    %v1228 = vrot.slane %v1227, 4
    %v1229 = vmax.f32 %v1227, %v1228
    %v1230 = vrot.slane %v1229, 2
    %v1231 = vmax.f32 %v1229, %v1230
    %v1232 = vrot.slane %v1231, 1
    %v1233 = vmax.f32 %v1231, %v1232
    %v1234 = vsub.f32 %v1227, %v1233
    %v1235 = vmul.f32 %v1234, 1.442695
    %v1236 = vpow.pop %v1235
    %v1237 = vrot.slane %v1236, 4
    %v1238 = vadd.f32 %v1236, %v1237
    %v1239 = vrot.slane %v1238, 2
    %v1240 = vadd.f32 %v1238, %v1239
    %v1241 = vrot.slane %v1240, 1
    %v1242 = vadd.f32 %v1240, %v1241
    %v1243 = vrcp.pop %v1242
    %v1244 = vmul.f32 %v1236, %v1243
    %v1245 = vmul.f32 %v1244, %v59
    %v1246 = vrot.slane %v1245, 4
    %v1247 = vadd.f32 %v1245, %v1246
    %v1248 = vrot.slane %v1247, 2
    %v1249 = vadd.f32 %v1247, %v1248
    %v1250 = vrot.slane %v1249, 1
    %v1251 = vadd.f32 %v1249, %v1250
    %1252 = vmatprep.subr.mxu0 %v125
    %1253 = vmatpush1.msra.mxu0 %v124
    %1254 = vmatprep.subr.mxu0 %v129
    %1255 = vmatpush1.msra.mxu0 %v128
    %1256 = vmatprep.subr.mxu0 %v133
    %1257 = vmatpush1.msra.mxu0 %v132
    %1258 = vmatprep.subr.mxu0 %v137
    %1259 = vmatpush1.msra.mxu0 %v136
    %1260 = vmatprep.subr.mxu0 %v141
    %1261 = vmatpush1.msra.mxu0 %v140
    %1262 = vmatprep.subr.mxu0 %v145
    %1263 = vmatpush1.msra.mxu0 %v144
    %1264 = vmatprep.subr.mxu0 %v149
    %1265 = vmatpush1.msra.mxu0 %v148
    %1266 = vmatprep.subr.mxu0 %v153
    %1267 = vmatpush1.msra.mxu0 %v152
    %1268 = vmatprep.subr.mxu0 %v157
    %1269 = vmatpush1.msra.mxu0 %v156
    %1270 = vmatprep.subr.mxu0 %v161
    %1271 = vmatpush1.msra.mxu0 %v160
    %1272 = vmatprep.subr.mxu0 %v165
    %1273 = vmatpush1.msra.mxu0 %v164
    %1274 = vmatprep.subr.mxu0 %v169
    %1275 = vmatpush1.msra.mxu0 %v168
    %1276 = vmatprep.subr.mxu0 %v173
    %1277 = vmatpush1.msra.mxu0 %v172
    %1278 = vmatprep.subr.mxu0 %v177
    %1279 = vmatpush1.msra.mxu0 %v176
    %1280 = vmatprep.subr.mxu0 %v181
    %1281 = vmatpush1.msra.mxu0 %v180
    %1282 = vmatprep.subr.mxu0 %v185
    %1283 = vmatpush1.msra.mxu0 %v184
    %1284 = vmatprep.subr.mxu0 0.0
    %1285 = vmatpush1.msra.mxu0 0.0
    %1286 = vmatprep.subr.mxu0 0.0
    %1287 = vmatpush1.msra.mxu0 0.0
    %1288 = vmatprep.subr.mxu0 0.0
    %1289 = vmatpush1.msra.mxu0 0.0
    %1290 = vmatprep.subr.mxu0 0.0
    %1291 = vmatpush1.msra.mxu0 0.0
    %1292 = vmatprep.subr.mxu0 0.0
    %1293 = vmatpush1.msra.mxu0 0.0
    %1294 = vmatprep.subr.mxu0 0.0
    %1295 = vmatpush1.msra.mxu0 0.0
    %1296 = vmatprep.subr.mxu0 0.0
    %1297 = vmatpush1.msra.mxu0 0.0
    %1298 = vmatprep.subr.mxu0 0.0
    %1299 = vmatpush1.msra.mxu0 0.0
    %1300 = vmatprep.subr.mxu0 0.0
    %1301 = vmatpush1.msra.mxu0 0.0
    %1302 = vmatprep.subr.mxu0 0.0
    %1303 = vmatpush1.msra.mxu0 0.0
    %1304 = vmatprep.subr.mxu0 0.0
    %1305 = vmatpush1.msra.mxu0 0.0
    %1306 = vmatprep.subr.mxu0 0.0
    %1307 = vmatpush1.msra.mxu0 0.0
    %1308 = vmatprep.subr.mxu0 0.0
    %1309 = vmatpush1.msra.mxu0 0.0
    %1310 = vmatprep.subr.mxu0 0.0
    %1311 = vmatpush1.msra.mxu0 0.0
    %1312 = vmatprep.subr.mxu0 0.0
    %1313 = vmatpush1.msra.mxu0 0.0
    %1314 = vmatprep.subr.mxu0 0.0
    %1315 = vmatpush1.msra.mxu0 0.0
    %1316 = vmatprep.mubr.f32.mxu0 0.0
    %1317 = vmatmul.mubr.f32.gmra.mrb[0].mxu0 %v1251
    %v1318 = vpop.f32.mrb[0].mxu0
    %v1319 = vadd.f32 0.0, %v1318
    %v1320 = vpop.f32.mrb[0].mxu0
    %v1321 = vadd.f32 0.0, %v1320
    %1322 = vdwg.mxu0
    %1323 = vmatprep.subr.mxu0 %v127
    %1324 = vmatpush1.msra.mxu0 %v126
    %1325 = vmatprep.subr.mxu0 %v131
    %1326 = vmatpush1.msra.mxu0 %v130
    %1327 = vmatprep.subr.mxu0 %v135
    %1328 = vmatpush1.msra.mxu0 %v134
    %1329 = vmatprep.subr.mxu0 %v139
    %1330 = vmatpush1.msra.mxu0 %v138
    %1331 = vmatprep.subr.mxu0 %v143
    %1332 = vmatpush1.msra.mxu0 %v142
    %1333 = vmatprep.subr.mxu0 %v147
    %1334 = vmatpush1.msra.mxu0 %v146
    %1335 = vmatprep.subr.mxu0 %v151
    %1336 = vmatpush1.msra.mxu0 %v150
    %1337 = vmatprep.subr.mxu0 %v155
    %1338 = vmatpush1.msra.mxu0 %v154
    %1339 = vmatprep.subr.mxu0 %v159
    %1340 = vmatpush1.msra.mxu0 %v158
    %1341 = vmatprep.subr.mxu0 %v163
    %1342 = vmatpush1.msra.mxu0 %v162
    %1343 = vmatprep.subr.mxu0 %v167
    %1344 = vmatpush1.msra.mxu0 %v166
    %1345 = vmatprep.subr.mxu0 %v171
    %1346 = vmatpush1.msra.mxu0 %v170
    %1347 = vmatprep.subr.mxu0 %v175
    %1348 = vmatpush1.msra.mxu0 %v174
    %1349 = vmatprep.subr.mxu0 %v179
    %1350 = vmatpush1.msra.mxu0 %v178
    %1351 = vmatprep.subr.mxu0 %v183
    %1352 = vmatpush1.msra.mxu0 %v182
    %1353 = vmatprep.subr.mxu0 %v187
    %1354 = vmatpush1.msra.mxu0 %v186
    %1355 = vmatprep.subr.mxu0 0.0
    %1356 = vmatpush1.msra.mxu0 0.0
    %1357 = vmatprep.subr.mxu0 0.0
    %1358 = vmatpush1.msra.mxu0 0.0
    %1359 = vmatprep.subr.mxu0 0.0
    %1360 = vmatpush1.msra.mxu0 0.0
    %1361 = vmatprep.subr.mxu0 0.0
    %1362 = vmatpush1.msra.mxu0 0.0
    %1363 = vmatprep.subr.mxu0 0.0
    %1364 = vmatpush1.msra.mxu0 0.0
    %1365 = vmatprep.subr.mxu0 0.0
    %1366 = vmatpush1.msra.mxu0 0.0
    %1367 = vmatprep.subr.mxu0 0.0
    %1368 = vmatpush1.msra.mxu0 0.0
    %1369 = vmatprep.subr.mxu0 0.0
    %1370 = vmatpush1.msra.mxu0 0.0
    %1371 = vmatprep.subr.mxu0 0.0
    %1372 = vmatpush1.msra.mxu0 0.0
    %1373 = vmatprep.subr.mxu0 0.0
    %1374 = vmatpush1.msra.mxu0 0.0
    %1375 = vmatprep.subr.mxu0 0.0
    %1376 = vmatpush1.msra.mxu0 0.0
    %1377 = vmatprep.subr.mxu0 0.0
    %1378 = vmatpush1.msra.mxu0 0.0
    %1379 = vmatprep.subr.mxu0 0.0
    %1380 = vmatpush1.msra.mxu0 0.0
    %1381 = vmatprep.subr.mxu0 0.0
    %1382 = vmatpush1.msra.mxu0 0.0
    %1383 = vmatprep.subr.mxu0 0.0
    %1384 = vmatpush1.msra.mxu0 0.0
    %1385 = vmatprep.subr.mxu0 0.0
    %1386 = vmatpush1.msra.mxu0 0.0
    %1387 = vmatprep.mubr.f32.mxu0 0.0
    %1388 = vmatmul.mubr.f32.gmra.mrb[0].mxu0 %v1251
    %v1389 = vpop.f32.mrb[0].mxu0
    %v1390 = vadd.f32 0.0, %v1389
    %v1391 = vpop.f32.mrb[0].mxu0
    %v1392 = vadd.f32 0.0, %v1391
    %1393 = vdwg.mxu0
    %1394 = vmatprep.subr.mxu0 %v61
    %1395 = vmatpush1.msra.mxu0 %v60
    %1396 = vmatprep.subr.mxu0 %v65
    %1397 = vmatpush1.msra.mxu0 %v64
    %1398 = vmatprep.subr.mxu0 %v69
    %1399 = vmatpush1.msra.mxu0 %v68
    %1400 = vmatprep.subr.mxu0 %v73
    %1401 = vmatpush1.msra.mxu0 %v72
    %1402 = vmatprep.subr.mxu0 %v77
    %1403 = vmatpush1.msra.mxu0 %v76
    %1404 = vmatprep.subr.mxu0 %v81
    %1405 = vmatpush1.msra.mxu0 %v80
    %1406 = vmatprep.subr.mxu0 %v85
    %1407 = vmatpush1.msra.mxu0 %v84
    %1408 = vmatprep.subr.mxu0 %v89
    %1409 = vmatpush1.msra.mxu0 %v88
    %1410 = vmatprep.subr.mxu0 %v93
    %1411 = vmatpush1.msra.mxu0 %v92
    %1412 = vmatprep.subr.mxu0 %v97
    %1413 = vmatpush1.msra.mxu0 %v96
    %1414 = vmatprep.subr.mxu0 %v101
    %1415 = vmatpush1.msra.mxu0 %v100
    %1416 = vmatprep.subr.mxu0 %v105
    %1417 = vmatpush1.msra.mxu0 %v104
    %1418 = vmatprep.subr.mxu0 %v109
    %1419 = vmatpush1.msra.mxu0 %v108
    %1420 = vmatprep.subr.mxu0 %v113
    %1421 = vmatpush1.msra.mxu0 %v112
    %1422 = vmatprep.subr.mxu0 %v117
    %1423 = vmatpush1.msra.mxu0 %v116
    %1424 = vmatprep.subr.mxu0 %v121
    %1425 = vmatpush1.msra.mxu0 %v120
    %1426 = vmatprep.subr.mxu0 0.0
    %1427 = vmatpush1.msra.mxu0 0.0
    %1428 = vmatprep.subr.mxu0 0.0
    %1429 = vmatpush1.msra.mxu0 0.0
    %1430 = vmatprep.subr.mxu0 0.0
    %1431 = vmatpush1.msra.mxu0 0.0
    %1432 = vmatprep.subr.mxu0 0.0
    %1433 = vmatpush1.msra.mxu0 0.0
    %1434 = vmatprep.subr.mxu0 0.0
    %1435 = vmatpush1.msra.mxu0 0.0
    %1436 = vmatprep.subr.mxu0 0.0
    %1437 = vmatpush1.msra.mxu0 0.0
    %1438 = vmatprep.subr.mxu0 0.0
    %1439 = vmatpush1.msra.mxu0 0.0
    %1440 = vmatprep.subr.mxu0 0.0
    %1441 = vmatpush1.msra.mxu0 0.0
    %1442 = vmatprep.subr.mxu0 0.0
    %1443 = vmatpush1.msra.mxu0 0.0
    %1444 = vmatprep.subr.mxu0 0.0
    %1445 = vmatpush1.msra.mxu0 0.0
    %1446 = vmatprep.subr.mxu0 0.0
    %1447 = vmatpush1.msra.mxu0 0.0
    %1448 = vmatprep.subr.mxu0 0.0
    %1449 = vmatpush1.msra.mxu0 0.0
    %1450 = vmatprep.subr.mxu0 0.0
    %1451 = vmatpush1.msra.mxu0 0.0
    %1452 = vmatprep.subr.mxu0 0.0
    %1453 = vmatpush1.msra.mxu0 0.0
    %1454 = vmatprep.subr.mxu0 0.0
    %1455 = vmatpush1.msra.mxu0 0.0
    %1456 = vmatprep.subr.mxu0 0.0
    %1457 = vmatpush1.msra.mxu0 0.0
    %1458 = vmatprep.mubr.f32.mxu0 0.0
    %1459 = vmatmul.mubr.f32.gmra.mrb[0].mxu0 %v1220
    %v1460 = vpop.f32.mrb[0].mxu0
    %v1461 = vadd.f32 %v1319, %v1460
    %v1462 = vpop.f32.mrb[0].mxu0
    %v1463 = vadd.f32 %v1321, %v1462
    %1464 = vdwg.mxu0
    %1465 = vmatprep.subr.mxu0 %v63
    %1466 = vmatpush1.msra.mxu0 %v62
    %1467 = vmatprep.subr.mxu0 %v67
    %1468 = vmatpush1.msra.mxu0 %v66
    %1469 = vmatprep.subr.mxu0 %v71
    %1470 = vmatpush1.msra.mxu0 %v70
    %1471 = vmatprep.subr.mxu0 %v75
    %1472 = vmatpush1.msra.mxu0 %v74
    %1473 = vmatprep.subr.mxu0 %v79
    %1474 = vmatpush1.msra.mxu0 %v78
    %1475 = vmatprep.subr.mxu0 %v83
    %1476 = vmatpush1.msra.mxu0 %v82
    %1477 = vmatprep.subr.mxu0 %v87
    %1478 = vmatpush1.msra.mxu0 %v86
    %1479 = vmatprep.subr.mxu0 %v91
    %1480 = vmatpush1.msra.mxu0 %v90
    %1481 = vmatprep.subr.mxu0 %v95
    %1482 = vmatpush1.msra.mxu0 %v94
    %1483 = vmatprep.subr.mxu0 %v99
    %1484 = vmatpush1.msra.mxu0 %v98
    %1485 = vmatprep.subr.mxu0 %v103
    %1486 = vmatpush1.msra.mxu0 %v102
    %1487 = vmatprep.subr.mxu0 %v107
    %1488 = vmatpush1.msra.mxu0 %v106
    %1489 = vmatprep.subr.mxu0 %v111
    %1490 = vmatpush1.msra.mxu0 %v110
    %1491 = vmatprep.subr.mxu0 %v115
    %1492 = vmatpush1.msra.mxu0 %v114
    %1493 = vmatprep.subr.mxu0 %v119
    %1494 = vmatpush1.msra.mxu0 %v118
    %1495 = vmatprep.subr.mxu0 %v123
    %1496 = vmatpush1.msra.mxu0 %v122
    %1497 = vmatprep.subr.mxu0 0.0
    %1498 = vmatpush1.msra.mxu0 0.0
    %1499 = vmatprep.subr.mxu0 0.0
    %1500 = vmatpush1.msra.mxu0 0.0
    %1501 = vmatprep.subr.mxu0 0.0
    %1502 = vmatpush1.msra.mxu0 0.0
    %1503 = vmatprep.subr.mxu0 0.0
    %1504 = vmatpush1.msra.mxu0 0.0
    %1505 = vmatprep.subr.mxu0 0.0
    %1506 = vmatpush1.msra.mxu0 0.0
    %1507 = vmatprep.subr.mxu0 0.0
    %1508 = vmatpush1.msra.mxu0 0.0
    %1509 = vmatprep.subr.mxu0 0.0
    %1510 = vmatpush1.msra.mxu0 0.0
    %1511 = vmatprep.subr.mxu0 0.0
    %1512 = vmatpush1.msra.mxu0 0.0
    %1513 = vmatprep.subr.mxu0 0.0
    %1514 = vmatpush1.msra.mxu0 0.0
    %1515 = vmatprep.subr.mxu0 0.0
    %1516 = vmatpush1.msra.mxu0 0.0
    %1517 = vmatprep.subr.mxu0 0.0
    %1518 = vmatpush1.msra.mxu0 0.0
    %1519 = vmatprep.subr.mxu0 0.0
    %1520 = vmatpush1.msra.mxu0 0.0
    %1521 = vmatprep.subr.mxu0 0.0
    %1522 = vmatpush1.msra.mxu0 0.0
    %1523 = vmatprep.subr.mxu0 0.0
    %1524 = vmatpush1.msra.mxu0 0.0
    %1525 = vmatprep.subr.mxu0 0.0
    %1526 = vmatpush1.msra.mxu0 0.0
    %1527 = vmatprep.subr.mxu0 0.0
    %1528 = vmatpush1.msra.mxu0 0.0
    %1529 = vmatprep.mubr.f32.mxu0 0.0
    %1530 = vmatmul.mubr.f32.gmra.mrb[0].mxu0 %v1220
    %v1531 = vpop.f32.mrb[0].mxu0
    %v1532 = vadd.f32 %v1390, %v1531
    %v1533 = vpop.f32.mrb[0].mxu0
    %v1534 = vadd.f32 %v1392, %v1533
    %1535 = vdwg.mxu0
    %1536 = vmatprep.subr.mxu0 %v473
    %1537 = vmatpush1.msra.mxu0 %v472
    %1538 = vmatprep.subr.mxu0 %v477
    %1539 = vmatpush1.msra.mxu0 %v476
    %1540 = vmatprep.subr.mxu0 %v481
    %1541 = vmatpush1.msra.mxu0 %v480
    %1542 = vmatprep.subr.mxu0 %v485
    %1543 = vmatpush1.msra.mxu0 %v484
    %1544 = vmatprep.subr.mxu0 %v489
    %1545 = vmatpush1.msra.mxu0 %v488
    %1546 = vmatprep.subr.mxu0 %v493
    %1547 = vmatpush1.msra.mxu0 %v492
    %1548 = vmatprep.subr.mxu0 %v497
    %1549 = vmatpush1.msra.mxu0 %v496
    %1550 = vmatprep.subr.mxu0 %v501
    %1551 = vmatpush1.msra.mxu0 %v500
    %1552 = vmatprep.subr.mxu0 %v505
    %1553 = vmatpush1.msra.mxu0 %v504
    %1554 = vmatprep.subr.mxu0 %v509
    %1555 = vmatpush1.msra.mxu0 %v508
    %1556 = vmatprep.subr.mxu0 %v513
    %1557 = vmatpush1.msra.mxu0 %v512
    %1558 = vmatprep.subr.mxu0 %v517
    %1559 = vmatpush1.msra.mxu0 %v516
    %1560 = vmatprep.subr.mxu0 %v521
    %1561 = vmatpush1.msra.mxu0 %v520
    %1562 = vmatprep.subr.mxu0 %v525
    %1563 = vmatpush1.msra.mxu0 %v524
    %1564 = vmatprep.subr.mxu0 %v529
    %1565 = vmatpush1.msra.mxu0 %v528
    %1566 = vmatprep.subr.mxu0 %v533
    %1567 = vmatpush1.msra.mxu0 %v532
    %1568 = vmatprep.subr.mxu0 0.0
    %1569 = vmatpush1.msra.mxu0 0.0
    %1570 = vmatprep.subr.mxu0 0.0
    %1571 = vmatpush1.msra.mxu0 0.0
    %1572 = vmatprep.subr.mxu0 0.0
    %1573 = vmatpush1.msra.mxu0 0.0
    %1574 = vmatprep.subr.mxu0 0.0
    %1575 = vmatpush1.msra.mxu0 0.0
    %1576 = vmatprep.subr.mxu0 0.0
    %1577 = vmatpush1.msra.mxu0 0.0
    %1578 = vmatprep.subr.mxu0 0.0
    %1579 = vmatpush1.msra.mxu0 0.0
    %1580 = vmatprep.subr.mxu0 0.0
    %1581 = vmatpush1.msra.mxu0 0.0
    %1582 = vmatprep.subr.mxu0 0.0
    %1583 = vmatpush1.msra.mxu0 0.0
    %1584 = vmatprep.subr.mxu0 0.0
    %1585 = vmatpush1.msra.mxu0 0.0
    %1586 = vmatprep.subr.mxu0 0.0
    %1587 = vmatpush1.msra.mxu0 0.0
    %1588 = vmatprep.subr.mxu0 0.0
    %1589 = vmatpush1.msra.mxu0 0.0
    %1590 = vmatprep.subr.mxu0 0.0
    %1591 = vmatpush1.msra.mxu0 0.0
    %1592 = vmatprep.subr.mxu0 0.0
    %1593 = vmatpush1.msra.mxu0 0.0
    %1594 = vmatprep.subr.mxu0 0.0
    %1595 = vmatpush1.msra.mxu0 0.0
    %1596 = vmatprep.subr.mxu0 0.0
    %1597 = vmatpush1.msra.mxu0 0.0
    %1598 = vmatprep.subr.mxu0 0.0
    %1599 = vmatpush1.msra.mxu0 0.0
    %1600 = vmatprep.mubr.f32.mxu0 0.0
    %1601 = vmatmul.mubr.f32.gmra.mrb[0].mxu0 %v1220
    %v1602 = vpop.f32.mrb[0].mxu0
    %v1603 = vadd.f32 0.0, %v1602
    %v1604 = vpop.f32.mrb[0].mxu0
    %v1605 = vadd.f32 0.0, %v1604
    %1606 = vdwg.mxu0
    %1607 = vmatprep.subr.mxu0 %v475
    %1608 = vmatpush1.msra.mxu0 %v474
    %1609 = vmatprep.subr.mxu0 %v479
    %1610 = vmatpush1.msra.mxu0 %v478
    %1611 = vmatprep.subr.mxu0 %v483
    %1612 = vmatpush1.msra.mxu0 %v482
    %1613 = vmatprep.subr.mxu0 %v487
    %1614 = vmatpush1.msra.mxu0 %v486
    %1615 = vmatprep.subr.mxu0 %v491
    %1616 = vmatpush1.msra.mxu0 %v490
    %1617 = vmatprep.subr.mxu0 %v495
    %1618 = vmatpush1.msra.mxu0 %v494
    %1619 = vmatprep.subr.mxu0 %v499
    %1620 = vmatpush1.msra.mxu0 %v498
    %1621 = vmatprep.subr.mxu0 %v503
    %1622 = vmatpush1.msra.mxu0 %v502
    %1623 = vmatprep.subr.mxu0 %v507
    %1624 = vmatpush1.msra.mxu0 %v506
    %1625 = vmatprep.subr.mxu0 %v511
    %1626 = vmatpush1.msra.mxu0 %v510
    %1627 = vmatprep.subr.mxu0 %v515
    %1628 = vmatpush1.msra.mxu0 %v514
    %1629 = vmatprep.subr.mxu0 %v519
    %1630 = vmatpush1.msra.mxu0 %v518
    %1631 = vmatprep.subr.mxu0 %v523
    %1632 = vmatpush1.msra.mxu0 %v522
    %1633 = vmatprep.subr.mxu0 %v527
    %1634 = vmatpush1.msra.mxu0 %v526
    %1635 = vmatprep.subr.mxu0 %v531
    %1636 = vmatpush1.msra.mxu0 %v530
    %1637 = vmatprep.subr.mxu0 %v535
    %1638 = vmatpush1.msra.mxu0 %v534
    %1639 = vmatprep.subr.mxu0 0.0
    %1640 = vmatpush1.msra.mxu0 0.0
    %1641 = vmatprep.subr.mxu0 0.0
    %1642 = vmatpush1.msra.mxu0 0.0
    %1643 = vmatprep.subr.mxu0 0.0
    %1644 = vmatpush1.msra.mxu0 0.0
    %1645 = vmatprep.subr.mxu0 0.0
    %1646 = vmatpush1.msra.mxu0 0.0
    %1647 = vmatprep.subr.mxu0 0.0
    %1648 = vmatpush1.msra.mxu0 0.0
    %1649 = vmatprep.subr.mxu0 0.0
    %1650 = vmatpush1.msra.mxu0 0.0
    %1651 = vmatprep.subr.mxu0 0.0
    %1652 = vmatpush1.msra.mxu0 0.0
    %1653 = vmatprep.subr.mxu0 0.0
    %1654 = vmatpush1.msra.mxu0 0.0
    %1655 = vmatprep.subr.mxu0 0.0
    %1656 = vmatpush1.msra.mxu0 0.0
    %1657 = vmatprep.subr.mxu0 0.0
    %1658 = vmatpush1.msra.mxu0 0.0
    %1659 = vmatprep.subr.mxu0 0.0
    %1660 = vmatpush1.msra.mxu0 0.0
    %1661 = vmatprep.subr.mxu0 0.0
    %1662 = vmatpush1.msra.mxu0 0.0
    %1663 = vmatprep.subr.mxu0 0.0
    %1664 = vmatpush1.msra.mxu0 0.0
    %1665 = vmatprep.subr.mxu0 0.0
    %1666 = vmatpush1.msra.mxu0 0.0
    %1667 = vmatprep.subr.mxu0 0.0
    %1668 = vmatpush1.msra.mxu0 0.0
    %1669 = vmatprep.subr.mxu0 0.0
    %1670 = vmatpush1.msra.mxu0 0.0
    %1671 = vmatprep.mubr.f32.mxu0 0.0
    %1672 = vmatmul.mubr.f32.gmra.mrb[0].mxu0 %v1220
    %v1673 = vpop.f32.mrb[0].mxu0
    %v1674 = vadd.f32 0.0, %v1673
    %v1675 = vpop.f32.mrb[0].mxu0
    %v1676 = vadd.f32 0.0, %v1675
    %1677 = vdwg.mxu0
    %v1678 = vadd.f32 %v1461, %v1603
    %v1679 = vadd.f32 %v1463, %v1605
    %v1680 = vadd.f32 %v1532, %v1674
    %v1681 = vadd.f32 %v1534, %v1676
    %v1682 = vadd.f32 %v1678, %v687
    %v1683 = vadd.f32 %v1679, %v691
    %v1684 = vadd.f32 %v1680, %v695
    %v1685 = vadd.f32 %v1681, %v699
    %v1686 = vsub.f32 0.0, %v1682
    %v1687 = vmul.f32 %v1686, 1.442695
    %v1688 = vpow.pop %v1687
    %v1689 = vadd.f32 %v1688, 1.0
    %v1690 = vrcp.pop %v1689
    %v1691 = vmul.f32 1.0, %v1690
    %v1692 = vsub.f32 0.0, %v1683
    %v1693 = vmul.f32 %v1692, 1.442695
    %v1694 = vpow.pop %v1693
    %v1695 = vadd.f32 %v1694, 1.0
    %v1696 = vrcp.pop %v1695
    %v1697 = vmul.f32 1.0, %v1696
    %v1698 = vtanh.pop %v1684
    %v1699 = vsub.f32 0.0, %v1685
    %v1700 = vmul.f32 %v1699, 1.442695
    %v1701 = vpow.pop %v1700
    %v1702 = vadd.f32 %v1701, 1.0
    %v1703 = vrcp.pop %v1702
    %v1704 = vmul.f32 1.0, %v1703
    %v1705 = vmul.f32 %v1697, %v1218
    %v1706 = vmul.f32 %v1691, %v1698
    %v1707 = vadd.f32 %v1705, %v1706
    %v1708 = vtanh.pop %v1707
    %v1709 = vmul.f32 %v1704, %v1708
    %v1710 = vlaneseq
    %v1711 = vshrl.u32 %v1710, 7
    %v1712 = vsub.s32 0, %v1711
    %v1713 = vrot.slane %v1709, %v1712
    %v1714 = vmul.f32 %v59, %v1713
    %1715 = vadd.xlane.f32.xlu0 %v1714
    %v1716 = vpop.xlane.xlu0 %1715
    %v1717 = vrot.slane %v1716, 4
    %v1718 = vmax.f32 %v1716, %v1717
    %v1719 = vrot.slane %v1718, 2
    %v1720 = vmax.f32 %v1718, %v1719
    %v1721 = vrot.slane %v1720, 1
    %v1722 = vmax.f32 %v1720, %v1721
    %v1723 = vsub.f32 %v1716, %v1722
    %v1724 = vmul.f32 %v1723, 1.442695
    %v1725 = vpow.pop %v1724
    %v1726 = vrot.slane %v1725, 4
    %v1727 = vadd.f32 %v1725, %v1726
    %v1728 = vrot.slane %v1727, 2
    %v1729 = vadd.f32 %v1727, %v1728
    %v1730 = vrot.slane %v1729, 1
    %v1731 = vadd.f32 %v1729, %v1730
    %v1732 = vrcp.pop %v1731
    %v1733 = vmul.f32 %v1725, %v1732
    %v1734 = vmul.f32 %v1733, %v59
    %v1735 = vrot.slane %v1734, 4
    %v1736 = vadd.f32 %v1734, %v1735
    %v1737 = vrot.slane %v1736, 2
    %v1738 = vadd.f32 %v1736, %v1737
    %v1739 = vrot.slane %v1738, 1
    %v1740 = vadd.f32 %v1738, %v1739
    %v1741 = vld [vmem:[%s5] sm:$0xff]
    %v1742 = vld [vmem:[%s5 + $0x8] sm:$0xff]
    %v1743 = vld [vmem:[%s5 + $0x10] sm:$0xff]
    %v1744 = vld [vmem:[%s5 + $0x18] sm:$0xff]
    %v1745 = vld [vmem:[%s5 + $0x20] sm:$0xff]
    %v1746 = vld [vmem:[%s5 + $0x28] sm:$0xff]
    %v1747 = vld [vmem:[%s5 + $0x30] sm:$0xff]
    %v1748 = vld [vmem:[%s5 + $0x38] sm:$0xff]
    %v1749 = vld [vmem:[%s5 + $0x40] sm:$0xff]
    %v1750 = vld [vmem:[%s5 + $0x48] sm:$0xff]
    %v1751 = vld [vmem:[%s5 + $0x50] sm:$0xff]
    %v1752 = vld [vmem:[%s5 + $0x58] sm:$0xff]
    %v1753 = vld [vmem:[%s5 + $0x60] sm:$0xff]
    %v1754 = vld [vmem:[%s5 + $0x68] sm:$0xff]
    %v1755 = vld [vmem:[%s5 + $0x70] sm:$0xff]
    %v1756 = vld [vmem:[%s5 + $0x78] sm:$0xff]
    %v1757 = vld [vmem:[%s5 + $0x80] sm:$0xff]
    %v1758 = vld [vmem:[%s5 + $0x88] sm:$0xff]
    %v1759 = vld [vmem:[%s5 + $0x90] sm:$0xff]
    %v1760 = vld [vmem:[%s5 + $0x98] sm:$0xff]
    %v1761 = vld [vmem:[%s5 + $0xa0] sm:$0xff]
    %v1762 = vld [vmem:[%s5 + $0xa8] sm:$0xff]
    %v1763 = vld [vmem:[%s5 + $0xb0] sm:$0xff]
    %v1764 = vld [vmem:[%s5 + $0xb8] sm:$0xff]
    %v1765 = vld [vmem:[%s5 + $0xc0] sm:$0xff]
    %v1766 = vld [vmem:[%s5 + $0xc8] sm:$0xff]
    %v1767 = vld [vmem:[%s5 + $0xd0] sm:$0xff]
    %v1768 = vld [vmem:[%s5 + $0xd8] sm:$0xff]
    %v1769 = vld [vmem:[%s5 + $0xe0] sm:$0xff]
    %v1770 = vld [vmem:[%s5 + $0xe8] sm:$0xff]
    %v1771 = vld [vmem:[%s5 + $0xf0] sm:$0xff]
    %v1772 = vld [vmem:[%s5 + $0xf8] sm:$0xff]
    %v1773 = vld [vmem:[%s5 + $0x100] sm:$0xff]
    %v1774 = vld [vmem:[%s5 + $0x108] sm:$0xff]
    %v1775 = vld [vmem:[%s5 + $0x110] sm:$0xff]
    %v1776 = vld [vmem:[%s5 + $0x118] sm:$0xff]
    %v1777 = vld [vmem:[%s5 + $0x120] sm:$0xff]
    %v1778 = vld [vmem:[%s5 + $0x128] sm:$0xff]
    %v1779 = vld [vmem:[%s5 + $0x130] sm:$0xff]
    %v1780 = vld [vmem:[%s5 + $0x138] sm:$0xff]
    %v1781 = vld [vmem:[%s5 + $0x140] sm:$0xff]
    %v1782 = vld [vmem:[%s5 + $0x148] sm:$0xff]
    %v1783 = vld [vmem:[%s5 + $0x150] sm:$0xff]
    %v1784 = vld [vmem:[%s5 + $0x158] sm:$0xff]
    %v1785 = vld [vmem:[%s5 + $0x160] sm:$0xff]
    %v1786 = vld [vmem:[%s5 + $0x168] sm:$0xff]
    %v1787 = vld [vmem:[%s5 + $0x170] sm:$0xff]
    %v1788 = vld [vmem:[%s5 + $0x178] sm:$0xff]
    %v1789 = vld [vmem:[%s5 + $0x180] sm:$0xff]
    %v1790 = vld [vmem:[%s5 + $0x188] sm:$0xff]
    %v1791 = vld [vmem:[%s5 + $0x190] sm:$0xff]
    %v1792 = vld [vmem:[%s5 + $0x198] sm:$0xff]
    %v1793 = vld [vmem:[%s5 + $0x1a0] sm:$0xff]
    %v1794 = vld [vmem:[%s5 + $0x1a8] sm:$0xff]
    %v1795 = vld [vmem:[%s5 + $0x1b0] sm:$0xff]
    %v1796 = vld [vmem:[%s5 + $0x1b8] sm:$0xff]
    %v1797 = vld [vmem:[%s5 + $0x1c0] sm:$0xff]
    %v1798 = vld [vmem:[%s5 + $0x1c8] sm:$0xff]
    %v1799 = vld [vmem:[%s5 + $0x1d0] sm:$0xff]
    %v1800 = vld [vmem:[%s5 + $0x1d8] sm:$0xff]
    %v1801 = vld [vmem:[%s5 + $0x1e0] sm:$0xff]
    %v1802 = vld [vmem:[%s5 + $0x1e8] sm:$0xff]
    %v1803 = vld [vmem:[%s5 + $0x1f0] sm:$0xff]
    %v1804 = vld [vmem:[%s5 + $0x1f8] sm:$0xff]
    %v1805 = vld [vmem:[%s5 + $0x200] sm:$0xff]
    %v1806 = vld [vmem:[%s5 + $0x208] sm:$0xff]
    %v1807 = vld [vmem:[%s5 + $0x210] sm:$0xff]
    %v1808 = vld [vmem:[%s5 + $0x218] sm:$0xff]
    %v1809 = vld [vmem:[%s5 + $0x220] sm:$0xff]
    %v1810 = vld [vmem:[%s5 + $0x228] sm:$0xff]
    %v1811 = vld [vmem:[%s5 + $0x230] sm:$0xff]
    %v1812 = vld [vmem:[%s5 + $0x238] sm:$0xff]
    %v1813 = vld [vmem:[%s5 + $0x240] sm:$0xff]
    %v1814 = vld [vmem:[%s5 + $0x248] sm:$0xff]
    %v1815 = vld [vmem:[%s5 + $0x250] sm:$0xff]
    %v1816 = vld [vmem:[%s5 + $0x258] sm:$0xff]
    %v1817 = vld [vmem:[%s5 + $0x260] sm:$0xff]
    %v1818 = vld [vmem:[%s5 + $0x268] sm:$0xff]
    %v1819 = vld [vmem:[%s5 + $0x270] sm:$0xff]
    %v1820 = vld [vmem:[%s5 + $0x278] sm:$0xff]
    %v1821 = vld [vmem:[%s5 + $0x280] sm:$0xff]
    %v1822 = vld [vmem:[%s5 + $0x288] sm:$0xff]
    %v1823 = vld [vmem:[%s5 + $0x290] sm:$0xff]
    %v1824 = vld [vmem:[%s5 + $0x298] sm:$0xff]
    %v1825 = vld [vmem:[%s5 + $0x2a0] sm:$0xff]
    %v1826 = vld [vmem:[%s5 + $0x2a8] sm:$0xff]
    %v1827 = vld [vmem:[%s5 + $0x2b0] sm:$0xff]
    %v1828 = vld [vmem:[%s5 + $0x2b8] sm:$0xff]
    %v1829 = vld [vmem:[%s5 + $0x2c0] sm:$0xff]
    %v1830 = vld [vmem:[%s5 + $0x2c8] sm:$0xff]
    %v1831 = vld [vmem:[%s5 + $0x2d0] sm:$0xff]
    %v1832 = vld [vmem:[%s5 + $0x2d8] sm:$0xff]
    %v1833 = vld [vmem:[%s5 + $0x2e0] sm:$0xff]
    %v1834 = vld [vmem:[%s5 + $0x2e8] sm:$0xff]
    %v1835 = vld [vmem:[%s5 + $0x2f0] sm:$0xff]
    %v1836 = vld [vmem:[%s5 + $0x2f8] sm:$0xff]
    %v1837 = vld [vmem:[%s5 + $0x300] sm:$0xff]
    %v1838 = vld [vmem:[%s5 + $0x308] sm:$0xff]
    %v1839 = vld [vmem:[%s5 + $0x310] sm:$0xff]
    %v1840 = vld [vmem:[%s5 + $0x318] sm:$0xff]
    %v1841 = vld [vmem:[%s5 + $0x320] sm:$0xff]
    %v1842 = vld [vmem:[%s5 + $0x328] sm:$0xff]
    %v1843 = vld [vmem:[%s5 + $0x330] sm:$0xff]
    %v1844 = vld [vmem:[%s5 + $0x338] sm:$0xff]
    %v1845 = vld [vmem:[%s5 + $0x340] sm:$0xff]
    %v1846 = vld [vmem:[%s5 + $0x348] sm:$0xff]
    %v1847 = vld [vmem:[%s5 + $0x350] sm:$0xff]
    %v1848 = vld [vmem:[%s5 + $0x358] sm:$0xff]
    %v1849 = vld [vmem:[%s5 + $0x360] sm:$0xff]
    %v1850 = vld [vmem:[%s5 + $0x368] sm:$0xff]
    %v1851 = vld [vmem:[%s5 + $0x370] sm:$0xff]
    %v1852 = vld [vmem:[%s5 + $0x378] sm:$0xff]
    %v1853 = vld [vmem:[%s5 + $0x380] sm:$0xff]
    %v1854 = vld [vmem:[%s5 + $0x388] sm:$0xff]
    %v1855 = vld [vmem:[%s5 + $0x390] sm:$0xff]
    %v1856 = vld [vmem:[%s5 + $0x398] sm:$0xff]
    %v1857 = vld [vmem:[%s5 + $0x3a0] sm:$0xff]
    %v1858 = vld [vmem:[%s5 + $0x3a8] sm:$0xff]
    %v1859 = vld [vmem:[%s5 + $0x3b0] sm:$0xff]
    %v1860 = vld [vmem:[%s5 + $0x3b8] sm:$0xff]
    %v1861 = vld [vmem:[%s5 + $0x3c0] sm:$0xff]
    %v1862 = vld [vmem:[%s5 + $0x3c8] sm:$0xff]
    %v1863 = vld [vmem:[%s5 + $0x3d0] sm:$0xff]
    %v1864 = vld [vmem:[%s5 + $0x3d8] sm:$0xff]
    %v1865 = vld [vmem:[%s5 + $0x3e0] sm:$0xff]
    %v1866 = vld [vmem:[%s5 + $0x3e8] sm:$0xff]
    %v1867 = vld [vmem:[%s5 + $0x3f0] sm:$0xff]
    %v1868 = vld [vmem:[%s5 + $0x3f8] sm:$0xff]
    %v1869 = vld [vmem:[%s6] sm:$0xff]
    %v1870 = vld [vmem:[%s6 + $0x8] sm:$0xff]
    %v1871 = vld [vmem:[%s6 + $0x10] sm:$0xff]
    %v1872 = vld [vmem:[%s6 + $0x18] sm:$0xff]
    %v1873 = vld [vmem:[%s6 + $0x20] sm:$0xff]
    %v1874 = vld [vmem:[%s6 + $0x28] sm:$0xff]
    %v1875 = vld [vmem:[%s6 + $0x30] sm:$0xff]
    %v1876 = vld [vmem:[%s6 + $0x38] sm:$0xff]
    %v1877 = vld [vmem:[%s6 + $0x40] sm:$0xff]
    %v1878 = vld [vmem:[%s6 + $0x48] sm:$0xff]
    %v1879 = vld [vmem:[%s6 + $0x50] sm:$0xff]
    %v1880 = vld [vmem:[%s6 + $0x58] sm:$0xff]
    %v1881 = vld [vmem:[%s6 + $0x60] sm:$0xff]
    %v1882 = vld [vmem:[%s6 + $0x68] sm:$0xff]
    %v1883 = vld [vmem:[%s6 + $0x70] sm:$0xff]
    %v1884 = vld [vmem:[%s6 + $0x78] sm:$0xff]
    %v1885 = vld [vmem:[%s6 + $0x80] sm:$0xff]
    %v1886 = vld [vmem:[%s6 + $0x88] sm:$0xff]
    %v1887 = vld [vmem:[%s6 + $0x90] sm:$0xff]
    %v1888 = vld [vmem:[%s6 + $0x98] sm:$0xff]
    %v1889 = vld [vmem:[%s6 + $0xa0] sm:$0xff]
    %v1890 = vld [vmem:[%s6 + $0xa8] sm:$0xff]
    %v1891 = vld [vmem:[%s6 + $0xb0] sm:$0xff]
    %v1892 = vld [vmem:[%s6 + $0xb8] sm:$0xff]
    %v1893 = vld [vmem:[%s6 + $0xc0] sm:$0xff]
    %v1894 = vld [vmem:[%s6 + $0xc8] sm:$0xff]
    %v1895 = vld [vmem:[%s6 + $0xd0] sm:$0xff]
    %v1896 = vld [vmem:[%s6 + $0xd8] sm:$0xff]
    %v1897 = vld [vmem:[%s6 + $0xe0] sm:$0xff]
    %v1898 = vld [vmem:[%s6 + $0xe8] sm:$0xff]
    %v1899 = vld [vmem:[%s6 + $0xf0] sm:$0xff]
    %v1900 = vld [vmem:[%s6 + $0xf8] sm:$0xff]
    %v1901 = vld [vmem:[%s6 + $0x100] sm:$0xff]
    %v1902 = vld [vmem:[%s6 + $0x108] sm:$0xff]
    %v1903 = vld [vmem:[%s6 + $0x110] sm:$0xff]
    %v1904 = vld [vmem:[%s6 + $0x118] sm:$0xff]
    %v1905 = vld [vmem:[%s6 + $0x120] sm:$0xff]
    %v1906 = vld [vmem:[%s6 + $0x128] sm:$0xff]
    %v1907 = vld [vmem:[%s6 + $0x130] sm:$0xff]
    %v1908 = vld [vmem:[%s6 + $0x138] sm:$0xff]
    %v1909 = vld [vmem:[%s6 + $0x140] sm:$0xff]
    %v1910 = vld [vmem:[%s6 + $0x148] sm:$0xff]
    %v1911 = vld [vmem:[%s6 + $0x150] sm:$0xff]
    %v1912 = vld [vmem:[%s6 + $0x158] sm:$0xff]
    %v1913 = vld [vmem:[%s6 + $0x160] sm:$0xff]
    %v1914 = vld [vmem:[%s6 + $0x168] sm:$0xff]
    %v1915 = vld [vmem:[%s6 + $0x170] sm:$0xff]
    %v1916 = vld [vmem:[%s6 + $0x178] sm:$0xff]
    %v1917 = vld [vmem:[%s6 + $0x180] sm:$0xff]
    %v1918 = vld [vmem:[%s6 + $0x188] sm:$0xff]
    %v1919 = vld [vmem:[%s6 + $0x190] sm:$0xff]
    %v1920 = vld [vmem:[%s6 + $0x198] sm:$0xff]
    %v1921 = vld [vmem:[%s6 + $0x1a0] sm:$0xff]
    %v1922 = vld [vmem:[%s6 + $0x1a8] sm:$0xff]
    %v1923 = vld [vmem:[%s6 + $0x1b0] sm:$0xff]
    %v1924 = vld [vmem:[%s6 + $0x1b8] sm:$0xff]
    %v1925 = vld [vmem:[%s6 + $0x1c0] sm:$0xff]
    %v1926 = vld [vmem:[%s6 + $0x1c8] sm:$0xff]
    %v1927 = vld [vmem:[%s6 + $0x1d0] sm:$0xff]
    %v1928 = vld [vmem:[%s6 + $0x1d8] sm:$0xff]
    %v1929 = vld [vmem:[%s6 + $0x1e0] sm:$0xff]
    %v1930 = vld [vmem:[%s6 + $0x1e8] sm:$0xff]
    %v1931 = vld [vmem:[%s6 + $0x1f0] sm:$0xff]
    %v1932 = vld [vmem:[%s6 + $0x1f8] sm:$0xff]
    %v1933 = vld [vmem:[%s6 + $0x200] sm:$0xff]
    %v1934 = vld [vmem:[%s6 + $0x208] sm:$0xff]
    %v1935 = vld [vmem:[%s6 + $0x210] sm:$0xff]
    %v1936 = vld [vmem:[%s6 + $0x218] sm:$0xff]
    %v1937 = vld [vmem:[%s6 + $0x220] sm:$0xff]
    %v1938 = vld [vmem:[%s6 + $0x228] sm:$0xff]
    %v1939 = vld [vmem:[%s6 + $0x230] sm:$0xff]
    %v1940 = vld [vmem:[%s6 + $0x238] sm:$0xff]
    %v1941 = vld [vmem:[%s6 + $0x240] sm:$0xff]
    %v1942 = vld [vmem:[%s6 + $0x248] sm:$0xff]
    %v1943 = vld [vmem:[%s6 + $0x250] sm:$0xff]
    %v1944 = vld [vmem:[%s6 + $0x258] sm:$0xff]
    %v1945 = vld [vmem:[%s6 + $0x260] sm:$0xff]
    %v1946 = vld [vmem:[%s6 + $0x268] sm:$0xff]
    %v1947 = vld [vmem:[%s6 + $0x270] sm:$0xff]
    %v1948 = vld [vmem:[%s6 + $0x278] sm:$0xff]
    %v1949 = vld [vmem:[%s6 + $0x280] sm:$0xff]
    %v1950 = vld [vmem:[%s6 + $0x288] sm:$0xff]
    %v1951 = vld [vmem:[%s6 + $0x290] sm:$0xff]
    %v1952 = vld [vmem:[%s6 + $0x298] sm:$0xff]
    %v1953 = vld [vmem:[%s6 + $0x2a0] sm:$0xff]
    %v1954 = vld [vmem:[%s6 + $0x2a8] sm:$0xff]
    %v1955 = vld [vmem:[%s6 + $0x2b0] sm:$0xff]
    %v1956 = vld [vmem:[%s6 + $0x2b8] sm:$0xff]
    %v1957 = vld [vmem:[%s6 + $0x2c0] sm:$0xff]
    %v1958 = vld [vmem:[%s6 + $0x2c8] sm:$0xff]
    %v1959 = vld [vmem:[%s6 + $0x2d0] sm:$0xff]
    %v1960 = vld [vmem:[%s6 + $0x2d8] sm:$0xff]
    %v1961 = vld [vmem:[%s6 + $0x2e0] sm:$0xff]
    %v1962 = vld [vmem:[%s6 + $0x2e8] sm:$0xff]
    %v1963 = vld [vmem:[%s6 + $0x2f0] sm:$0xff]
    %v1964 = vld [vmem:[%s6 + $0x2f8] sm:$0xff]
    %v1965 = vld [vmem:[%s6 + $0x300] sm:$0xff]
    %v1966 = vld [vmem:[%s6 + $0x308] sm:$0xff]
    %v1967 = vld [vmem:[%s6 + $0x310] sm:$0xff]
    %v1968 = vld [vmem:[%s6 + $0x318] sm:$0xff]
    %v1969 = vld [vmem:[%s6 + $0x320] sm:$0xff]
    %v1970 = vld [vmem:[%s6 + $0x328] sm:$0xff]
    %v1971 = vld [vmem:[%s6 + $0x330] sm:$0xff]
    %v1972 = vld [vmem:[%s6 + $0x338] sm:$0xff]
    %v1973 = vld [vmem:[%s6 + $0x340] sm:$0xff]
    %v1974 = vld [vmem:[%s6 + $0x348] sm:$0xff]
    %v1975 = vld [vmem:[%s6 + $0x350] sm:$0xff]
    %v1976 = vld [vmem:[%s6 + $0x358] sm:$0xff]
    %v1977 = vld [vmem:[%s6 + $0x360] sm:$0xff]
    %v1978 = vld [vmem:[%s6 + $0x368] sm:$0xff]
    %v1979 = vld [vmem:[%s6 + $0x370] sm:$0xff]
    %v1980 = vld [vmem:[%s6 + $0x378] sm:$0xff]
    %v1981 = vld [vmem:[%s6 + $0x380] sm:$0xff]
    %v1982 = vld [vmem:[%s6 + $0x388] sm:$0xff]
    %v1983 = vld [vmem:[%s6 + $0x390] sm:$0xff]
    %v1984 = vld [vmem:[%s6 + $0x398] sm:$0xff]
    %v1985 = vld [vmem:[%s6 + $0x3a0] sm:$0xff]
    %v1986 = vld [vmem:[%s6 + $0x3a8] sm:$0xff]
    %v1987 = vld [vmem:[%s6 + $0x3b0] sm:$0xff]
    %v1988 = vld [vmem:[%s6 + $0x3b8] sm:$0xff]
    %v1989 = vld [vmem:[%s6 + $0x3c0] sm:$0xff]
    %v1990 = vld [vmem:[%s6 + $0x3c8] sm:$0xff]
    %v1991 = vld [vmem:[%s6 + $0x3d0] sm:$0xff]
    %v1992 = vld [vmem:[%s6 + $0x3d8] sm:$0xff]
    %v1993 = vld [vmem:[%s6 + $0x3e0] sm:$0xff]
    %v1994 = vld [vmem:[%s6 + $0x3e8] sm:$0xff]
    %v1995 = vld [vmem:[%s6 + $0x3f0] sm:$0xff]
    %v1996 = vld [vmem:[%s6 + $0x3f8] sm:$0xff]
    %1997 = vmatprep.subr.mxu0 %v1870
    %1998 = vmatpush1.msra.mxu0 %v1869
    %1999 = vmatprep.subr.mxu0 %v1878
    %2000 = vmatpush1.msra.mxu0 %v1877
    %2001 = vmatprep.subr.mxu0 %v1886
    %2002 = vmatpush1.msra.mxu0 %v1885
    %2003 = vmatprep.subr.mxu0 %v1894
    %2004 = vmatpush1.msra.mxu0 %v1893
    %2005 = vmatprep.subr.mxu0 %v1902
    %2006 = vmatpush1.msra.mxu0 %v1901
    %2007 = vmatprep.subr.mxu0 %v1910
    %2008 = vmatpush1.msra.mxu0 %v1909
    %2009 = vmatprep.subr.mxu0 %v1918
    %2010 = vmatpush1.msra.mxu0 %v1917
    %2011 = vmatprep.subr.mxu0 %v1926
    %2012 = vmatpush1.msra.mxu0 %v1925
    %2013 = vmatprep.subr.mxu0 %v1934
    %2014 = vmatpush1.msra.mxu0 %v1933
    %2015 = vmatprep.subr.mxu0 %v1942
    %2016 = vmatpush1.msra.mxu0 %v1941
    %2017 = vmatprep.subr.mxu0 %v1950
    %2018 = vmatpush1.msra.mxu0 %v1949
    %2019 = vmatprep.subr.mxu0 %v1958
    %2020 = vmatpush1.msra.mxu0 %v1957
    %2021 = vmatprep.subr.mxu0 %v1966
    %2022 = vmatpush1.msra.mxu0 %v1965
    %2023 = vmatprep.subr.mxu0 %v1974
    %2024 = vmatpush1.msra.mxu0 %v1973
    %2025 = vmatprep.subr.mxu0 %v1982
    %2026 = vmatpush1.msra.mxu0 %v1981
    %2027 = vmatprep.subr.mxu0 %v1990
    %2028 = vmatpush1.msra.mxu0 %v1989
    %2029 = vmatprep.subr.mxu0 0.0
    %2030 = vmatpush1.msra.mxu0 0.0
    %2031 = vmatprep.subr.mxu0 0.0
    %2032 = vmatpush1.msra.mxu0 0.0
    %2033 = vmatprep.subr.mxu0 0.0
    %2034 = vmatpush1.msra.mxu0 0.0
    %2035 = vmatprep.subr.mxu0 0.0
    %2036 = vmatpush1.msra.mxu0 0.0
    %2037 = vmatprep.subr.mxu0 0.0
    %2038 = vmatpush1.msra.mxu0 0.0
    %2039 = vmatprep.subr.mxu0 0.0
    %2040 = vmatpush1.msra.mxu0 0.0
    %2041 = vmatprep.subr.mxu0 0.0
    %2042 = vmatpush1.msra.mxu0 0.0
    %2043 = vmatprep.subr.mxu0 0.0
    %2044 = vmatpush1.msra.mxu0 0.0
    %2045 = vmatprep.subr.mxu0 0.0
    %2046 = vmatpush1.msra.mxu0 0.0
    %2047 = vmatprep.subr.mxu0 0.0
    %2048 = vmatpush1.msra.mxu0 0.0
    %2049 = vmatprep.subr.mxu0 0.0
    %2050 = vmatpush1.msra.mxu0 0.0
    %2051 = vmatprep.subr.mxu0 0.0
    %2052 = vmatpush1.msra.mxu0 0.0
    %2053 = vmatprep.subr.mxu0 0.0
    %2054 = vmatpush1.msra.mxu0 0.0
    %2055 = vmatprep.subr.mxu0 0.0
    %2056 = vmatpush1.msra.mxu0 0.0
    %2057 = vmatprep.subr.mxu0 0.0
    %2058 = vmatpush1.msra.mxu0 0.0
    %2059 = vmatprep.subr.mxu0 0.0
    %2060 = vmatpush1.msra.mxu0 0.0
    %2061 = vmatprep.mubr.f32.mxu0 0.0
    %2062 = vmatmul.mubr.f32.gmra.mrb[0].mxu0 %v1740
    %v2063 = vpop.f32.mrb[0].mxu0
    %v2064 = vadd.f32 0.0, %v2063
    %v2065 = vpop.f32.mrb[0].mxu0
    %v2066 = vadd.f32 0.0, %v2065
    %2067 = vdwg.mxu0
    %2068 = vmatprep.subr.mxu0 %v1872
    %2069 = vmatpush1.msra.mxu0 %v1871
    %2070 = vmatprep.subr.mxu0 %v1880
    %2071 = vmatpush1.msra.mxu0 %v1879
    %2072 = vmatprep.subr.mxu0 %v1888
    %2073 = vmatpush1.msra.mxu0 %v1887
    %2074 = vmatprep.subr.mxu0 %v1896
    %2075 = vmatpush1.msra.mxu0 %v1895
    %2076 = vmatprep.subr.mxu0 %v1904
    %2077 = vmatpush1.msra.mxu0 %v1903
    %2078 = vmatprep.subr.mxu0 %v1912
    %2079 = vmatpush1.msra.mxu0 %v1911
    %2080 = vmatprep.subr.mxu0 %v1920
    %2081 = vmatpush1.msra.mxu0 %v1919
    %2082 = vmatprep.subr.mxu0 %v1928
    %2083 = vmatpush1.msra.mxu0 %v1927
    %2084 = vmatprep.subr.mxu0 %v1936
    %2085 = vmatpush1.msra.mxu0 %v1935
    %2086 = vmatprep.subr.mxu0 %v1944
    %2087 = vmatpush1.msra.mxu0 %v1943
    %2088 = vmatprep.subr.mxu0 %v1952
    %2089 = vmatpush1.msra.mxu0 %v1951
    %2090 = vmatprep.subr.mxu0 %v1960
    %2091 = vmatpush1.msra.mxu0 %v1959
    %2092 = vmatprep.subr.mxu0 %v1968
    %2093 = vmatpush1.msra.mxu0 %v1967
    %2094 = vmatprep.subr.mxu0 %v1976
    %2095 = vmatpush1.msra.mxu0 %v1975
    %2096 = vmatprep.subr.mxu0 %v1984
    %2097 = vmatpush1.msra.mxu0 %v1983
    %2098 = vmatprep.subr.mxu0 %v1992
    %2099 = vmatpush1.msra.mxu0 %v1991
    %2100 = vmatprep.subr.mxu0 0.0
    %2101 = vmatpush1.msra.mxu0 0.0
    %2102 = vmatprep.subr.mxu0 0.0
    %2103 = vmatpush1.msra.mxu0 0.0
    %2104 = vmatprep.subr.mxu0 0.0
    %2105 = vmatpush1.msra.mxu0 0.0
    %2106 = vmatprep.subr.mxu0 0.0
    %2107 = vmatpush1.msra.mxu0 0.0
    %2108 = vmatprep.subr.mxu0 0.0
    %2109 = vmatpush1.msra.mxu0 0.0
    %2110 = vmatprep.subr.mxu0 0.0
    %2111 = vmatpush1.msra.mxu0 0.0
    %2112 = vmatprep.subr.mxu0 0.0
    %2113 = vmatpush1.msra.mxu0 0.0
    %2114 = vmatprep.subr.mxu0 0.0
    %2115 = vmatpush1.msra.mxu0 0.0
    %2116 = vmatprep.subr.mxu0 0.0
    %2117 = vmatpush1.msra.mxu0 0.0
    %2118 = vmatprep.subr.mxu0 0.0
    %2119 = vmatpush1.msra.mxu0 0.0
    %2120 = vmatprep.subr.mxu0 0.0
    %2121 = vmatpush1.msra.mxu0 0.0
    %2122 = vmatprep.subr.mxu0 0.0
    %2123 = vmatpush1.msra.mxu0 0.0
    %2124 = vmatprep.subr.mxu0 0.0
    %2125 = vmatpush1.msra.mxu0 0.0
    %2126 = vmatprep.subr.mxu0 0.0
    %2127 = vmatpush1.msra.mxu0 0.0
    %2128 = vmatprep.subr.mxu0 0.0
    %2129 = vmatpush1.msra.mxu0 0.0
    %2130 = vmatprep.subr.mxu0 0.0
    %2131 = vmatpush1.msra.mxu0 0.0
    %2132 = vmatprep.mubr.f32.mxu0 0.0
    %2133 = vmatmul.mubr.f32.gmra.mrb[0].mxu0 %v1740
    %v2134 = vpop.f32.mrb[0].mxu0
    %v2135 = vadd.f32 0.0, %v2134
    %v2136 = vpop.f32.mrb[0].mxu0
    %v2137 = vadd.f32 0.0, %v2136
    %2138 = vdwg.mxu0
    %2139 = vmatprep.subr.mxu0 %v1874
    %2140 = vmatpush1.msra.mxu0 %v1873
    %2141 = vmatprep.subr.mxu0 %v1882
    %2142 = vmatpush1.msra.mxu0 %v1881
    %2143 = vmatprep.subr.mxu0 %v1890
    %2144 = vmatpush1.msra.mxu0 %v1889
    %2145 = vmatprep.subr.mxu0 %v1898
    %2146 = vmatpush1.msra.mxu0 %v1897
    %2147 = vmatprep.subr.mxu0 %v1906
    %2148 = vmatpush1.msra.mxu0 %v1905
    %2149 = vmatprep.subr.mxu0 %v1914
    %2150 = vmatpush1.msra.mxu0 %v1913
    %2151 = vmatprep.subr.mxu0 %v1922
    %2152 = vmatpush1.msra.mxu0 %v1921
    %2153 = vmatprep.subr.mxu0 %v1930
    %2154 = vmatpush1.msra.mxu0 %v1929
    %2155 = vmatprep.subr.mxu0 %v1938
    %2156 = vmatpush1.msra.mxu0 %v1937
    %2157 = vmatprep.subr.mxu0 %v1946
    %2158 = vmatpush1.msra.mxu0 %v1945
    %2159 = vmatprep.subr.mxu0 %v1954
    %2160 = vmatpush1.msra.mxu0 %v1953
    %2161 = vmatprep.subr.mxu0 %v1962
    %2162 = vmatpush1.msra.mxu0 %v1961
    %2163 = vmatprep.subr.mxu0 %v1970
    %2164 = vmatpush1.msra.mxu0 %v1969
    %2165 = vmatprep.subr.mxu0 %v1978
    %2166 = vmatpush1.msra.mxu0 %v1977
    %2167 = vmatprep.subr.mxu0 %v1986
    %2168 = vmatpush1.msra.mxu0 %v1985
    %2169 = vmatprep.subr.mxu0 %v1994
    %2170 = vmatpush1.msra.mxu0 %v1993
    %2171 = vmatprep.subr.mxu0 0.0
    %2172 = vmatpush1.msra.mxu0 0.0
    %2173 = vmatprep.subr.mxu0 0.0
    %2174 = vmatpush1.msra.mxu0 0.0
    %2175 = vmatprep.subr.mxu0 0.0
    %2176 = vmatpush1.msra.mxu0 0.0
    %2177 = vmatprep.subr.mxu0 0.0
    %2178 = vmatpush1.msra.mxu0 0.0
    %2179 = vmatprep.subr.mxu0 0.0
    %2180 = vmatpush1.msra.mxu0 0.0
    %2181 = vmatprep.subr.mxu0 0.0
    %2182 = vmatpush1.msra.mxu0 0.0
    %2183 = vmatprep.subr.mxu0 0.0
    %2184 = vmatpush1.msra.mxu0 0.0
    %2185 = vmatprep.subr.mxu0 0.0
    %2186 = vmatpush1.msra.mxu0 0.0
    %2187 = vmatprep.subr.mxu0 0.0
    %2188 = vmatpush1.msra.mxu0 0.0
    %2189 = vmatprep.subr.mxu0 0.0
    %2190 = vmatpush1.msra.mxu0 0.0
    %2191 = vmatprep.subr.mxu0 0.0
    %2192 = vmatpush1.msra.mxu0 0.0
    %2193 = vmatprep.subr.mxu0 0.0
    %2194 = vmatpush1.msra.mxu0 0.0
    %2195 = vmatprep.subr.mxu0 0.0
    %2196 = vmatpush1.msra.mxu0 0.0
    %2197 = vmatprep.subr.mxu0 0.0
    %2198 = vmatpush1.msra.mxu0 0.0
    %2199 = vmatprep.subr.mxu0 0.0
    %2200 = vmatpush1.msra.mxu0 0.0
    %2201 = vmatprep.subr.mxu0 0.0
    %2202 = vmatpush1.msra.mxu0 0.0
    %2203 = vmatprep.mubr.f32.mxu0 0.0
    %2204 = vmatmul.mubr.f32.gmra.mrb[0].mxu0 %v1740
    %v2205 = vpop.f32.mrb[0].mxu0
    %v2206 = vadd.f32 0.0, %v2205
    %v2207 = vpop.f32.mrb[0].mxu0
    %v2208 = vadd.f32 0.0, %v2207
    %2209 = vdwg.mxu0
    %2210 = vmatprep.subr.mxu0 %v1876
    %2211 = vmatpush1.msra.mxu0 %v1875
    %2212 = vmatprep.subr.mxu0 %v1884
    %2213 = vmatpush1.msra.mxu0 %v1883
    %2214 = vmatprep.subr.mxu0 %v1892
    %2215 = vmatpush1.msra.mxu0 %v1891
    %2216 = vmatprep.subr.mxu0 %v1900
    %2217 = vmatpush1.msra.mxu0 %v1899
    %2218 = vmatprep.subr.mxu0 %v1908
    %2219 = vmatpush1.msra.mxu0 %v1907
    %2220 = vmatprep.subr.mxu0 %v1916
    %2221 = vmatpush1.msra.mxu0 %v1915
    %2222 = vmatprep.subr.mxu0 %v1924
    %2223 = vmatpush1.msra.mxu0 %v1923
    %2224 = vmatprep.subr.mxu0 %v1932
    %2225 = vmatpush1.msra.mxu0 %v1931
    %2226 = vmatprep.subr.mxu0 %v1940
    %2227 = vmatpush1.msra.mxu0 %v1939
    %2228 = vmatprep.subr.mxu0 %v1948
    %2229 = vmatpush1.msra.mxu0 %v1947
    %2230 = vmatprep.subr.mxu0 %v1956
    %2231 = vmatpush1.msra.mxu0 %v1955
    %2232 = vmatprep.subr.mxu0 %v1964
    %2233 = vmatpush1.msra.mxu0 %v1963
    %2234 = vmatprep.subr.mxu0 %v1972
    %2235 = vmatpush1.msra.mxu0 %v1971
    %2236 = vmatprep.subr.mxu0 %v1980
    %2237 = vmatpush1.msra.mxu0 %v1979
    %2238 = vmatprep.subr.mxu0 %v1988
    %2239 = vmatpush1.msra.mxu0 %v1987
    %2240 = vmatprep.subr.mxu0 %v1996
    %2241 = vmatpush1.msra.mxu0 %v1995
    %2242 = vmatprep.subr.mxu0 0.0
    %2243 = vmatpush1.msra.mxu0 0.0
    %2244 = vmatprep.subr.mxu0 0.0
    %2245 = vmatpush1.msra.mxu0 0.0
    %2246 = vmatprep.subr.mxu0 0.0
    %2247 = vmatpush1.msra.mxu0 0.0
    %2248 = vmatprep.subr.mxu0 0.0
    %2249 = vmatpush1.msra.mxu0 0.0
    %2250 = vmatprep.subr.mxu0 0.0
    %2251 = vmatpush1.msra.mxu0 0.0
    %2252 = vmatprep.subr.mxu0 0.0
    %2253 = vmatpush1.msra.mxu0 0.0
    %2254 = vmatprep.subr.mxu0 0.0
    %2255 = vmatpush1.msra.mxu0 0.0
    %2256 = vmatprep.subr.mxu0 0.0
    %2257 = vmatpush1.msra.mxu0 0.0
    %2258 = vmatprep.subr.mxu0 0.0
    %2259 = vmatpush1.msra.mxu0 0.0
    %2260 = vmatprep.subr.mxu0 0.0
    %2261 = vmatpush1.msra.mxu0 0.0
    %2262 = vmatprep.subr.mxu0 0.0
    %2263 = vmatpush1.msra.mxu0 0.0
    %2264 = vmatprep.subr.mxu0 0.0
    %2265 = vmatpush1.msra.mxu0 0.0
    %2266 = vmatprep.subr.mxu0 0.0
    %2267 = vmatpush1.msra.mxu0 0.0
    %2268 = vmatprep.subr.mxu0 0.0
    %2269 = vmatpush1.msra.mxu0 0.0
    %2270 = vmatprep.subr.mxu0 0.0
    %2271 = vmatpush1.msra.mxu0 0.0
    %2272 = vmatprep.subr.mxu0 0.0
    %2273 = vmatpush1.msra.mxu0 0.0
    %2274 = vmatprep.mubr.f32.mxu0 0.0
    %2275 = vmatmul.mubr.f32.gmra.mrb[0].mxu0 %v1740
    %v2276 = vpop.f32.mrb[0].mxu0
    %v2277 = vadd.f32 0.0, %v2276
    %v2278 = vpop.f32.mrb[0].mxu0
    %v2279 = vadd.f32 0.0, %v2278
    %2280 = vdwg.mxu0
    %2281 = vmatprep.subr.mxu0 %v1742
    %2282 = vmatpush1.msra.mxu0 %v1741
    %2283 = vmatprep.subr.mxu0 %v1750
    %2284 = vmatpush1.msra.mxu0 %v1749
    %2285 = vmatprep.subr.mxu0 %v1758
    %2286 = vmatpush1.msra.mxu0 %v1757
    %2287 = vmatprep.subr.mxu0 %v1766
    %2288 = vmatpush1.msra.mxu0 %v1765
    %2289 = vmatprep.subr.mxu0 %v1774
    %2290 = vmatpush1.msra.mxu0 %v1773
    %2291 = vmatprep.subr.mxu0 %v1782
    %2292 = vmatpush1.msra.mxu0 %v1781
    %2293 = vmatprep.subr.mxu0 %v1790
    %2294 = vmatpush1.msra.mxu0 %v1789
    %2295 = vmatprep.subr.mxu0 %v1798
    %2296 = vmatpush1.msra.mxu0 %v1797
    %2297 = vmatprep.subr.mxu0 %v1806
    %2298 = vmatpush1.msra.mxu0 %v1805
    %2299 = vmatprep.subr.mxu0 %v1814
    %2300 = vmatpush1.msra.mxu0 %v1813
    %2301 = vmatprep.subr.mxu0 %v1822
    %2302 = vmatpush1.msra.mxu0 %v1821
    %2303 = vmatprep.subr.mxu0 %v1830
    %2304 = vmatpush1.msra.mxu0 %v1829
    %2305 = vmatprep.subr.mxu0 %v1838
    %2306 = vmatpush1.msra.mxu0 %v1837
    %2307 = vmatprep.subr.mxu0 %v1846
    %2308 = vmatpush1.msra.mxu0 %v1845
    %2309 = vmatprep.subr.mxu0 %v1854
    %2310 = vmatpush1.msra.mxu0 %v1853
    %2311 = vmatprep.subr.mxu0 %v1862
    %2312 = vmatpush1.msra.mxu0 %v1861
    %2313 = vmatprep.subr.mxu0 0.0
    %2314 = vmatpush1.msra.mxu0 0.0
    %2315 = vmatprep.subr.mxu0 0.0
    %2316 = vmatpush1.msra.mxu0 0.0
    %2317 = vmatprep.subr.mxu0 0.0
    %2318 = vmatpush1.msra.mxu0 0.0
    %2319 = vmatprep.subr.mxu0 0.0
    %2320 = vmatpush1.msra.mxu0 0.0
    %2321 = vmatprep.subr.mxu0 0.0
    %2322 = vmatpush1.msra.mxu0 0.0
    %2323 = vmatprep.subr.mxu0 0.0
    %2324 = vmatpush1.msra.mxu0 0.0
    %2325 = vmatprep.subr.mxu0 0.0
    %2326 = vmatpush1.msra.mxu0 0.0
    %2327 = vmatprep.subr.mxu0 0.0
    %2328 = vmatpush1.msra.mxu0 0.0
    %2329 = vmatprep.subr.mxu0 0.0
    %2330 = vmatpush1.msra.mxu0 0.0
    %2331 = vmatprep.subr.mxu0 0.0
    %2332 = vmatpush1.msra.mxu0 0.0
    %2333 = vmatprep.subr.mxu0 0.0
    %2334 = vmatpush1.msra.mxu0 0.0
    %2335 = vmatprep.subr.mxu0 0.0
    %2336 = vmatpush1.msra.mxu0 0.0
    %2337 = vmatprep.subr.mxu0 0.0
    %2338 = vmatpush1.msra.mxu0 0.0
    %2339 = vmatprep.subr.mxu0 0.0
    %2340 = vmatpush1.msra.mxu0 0.0
    %2341 = vmatprep.subr.mxu0 0.0
    %2342 = vmatpush1.msra.mxu0 0.0
    %2343 = vmatprep.subr.mxu0 0.0
    %2344 = vmatpush1.msra.mxu0 0.0
    %2345 = vmatprep.mubr.f32.mxu0 0.0
    %2346 = vmatmul.mubr.f32.gmra.mrb[0].mxu0 %v1709
    %v2347 = vpop.f32.mrb[0].mxu0
    %v2348 = vadd.f32 %v2064, %v2347
    %v2349 = vpop.f32.mrb[0].mxu0
    %v2350 = vadd.f32 %v2066, %v2349
    %2351 = vdwg.mxu0
    %2352 = vmatprep.subr.mxu0 %v1744
    %2353 = vmatpush1.msra.mxu0 %v1743
    %2354 = vmatprep.subr.mxu0 %v1752
    %2355 = vmatpush1.msra.mxu0 %v1751
    %2356 = vmatprep.subr.mxu0 %v1760
    %2357 = vmatpush1.msra.mxu0 %v1759
    %2358 = vmatprep.subr.mxu0 %v1768
    %2359 = vmatpush1.msra.mxu0 %v1767
    %2360 = vmatprep.subr.mxu0 %v1776
    %2361 = vmatpush1.msra.mxu0 %v1775
    %2362 = vmatprep.subr.mxu0 %v1784
    %2363 = vmatpush1.msra.mxu0 %v1783
    %2364 = vmatprep.subr.mxu0 %v1792
    %2365 = vmatpush1.msra.mxu0 %v1791
    %2366 = vmatprep.subr.mxu0 %v1800
    %2367 = vmatpush1.msra.mxu0 %v1799
    %2368 = vmatprep.subr.mxu0 %v1808
    %2369 = vmatpush1.msra.mxu0 %v1807
    %2370 = vmatprep.subr.mxu0 %v1816
    %2371 = vmatpush1.msra.mxu0 %v1815
    %2372 = vmatprep.subr.mxu0 %v1824
    %2373 = vmatpush1.msra.mxu0 %v1823
    %2374 = vmatprep.subr.mxu0 %v1832
    %2375 = vmatpush1.msra.mxu0 %v1831
    %2376 = vmatprep.subr.mxu0 %v1840
    %2377 = vmatpush1.msra.mxu0 %v1839
    %2378 = vmatprep.subr.mxu0 %v1848
    %2379 = vmatpush1.msra.mxu0 %v1847
    %2380 = vmatprep.subr.mxu0 %v1856
    %2381 = vmatpush1.msra.mxu0 %v1855
    %2382 = vmatprep.subr.mxu0 %v1864
    %2383 = vmatpush1.msra.mxu0 %v1863
    %2384 = vmatprep.subr.mxu0 0.0
    %2385 = vmatpush1.msra.mxu0 0.0
    %2386 = vmatprep.subr.mxu0 0.0
    %2387 = vmatpush1.msra.mxu0 0.0
    %2388 = vmatprep.subr.mxu0 0.0
    %2389 = vmatpush1.msra.mxu0 0.0
    %2390 = vmatprep.subr.mxu0 0.0
    %2391 = vmatpush1.msra.mxu0 0.0
    %2392 = vmatprep.subr.mxu0 0.0
    %2393 = vmatpush1.msra.mxu0 0.0
    %2394 = vmatprep.subr.mxu0 0.0
    %2395 = vmatpush1.msra.mxu0 0.0
    %2396 = vmatprep.subr.mxu0 0.0
    %2397 = vmatpush1.msra.mxu0 0.0
    %2398 = vmatprep.subr.mxu0 0.0
    %2399 = vmatpush1.msra.mxu0 0.0
    %2400 = vmatprep.subr.mxu0 0.0
    %2401 = vmatpush1.msra.mxu0 0.0
    %2402 = vmatprep.subr.mxu0 0.0
    %2403 = vmatpush1.msra.mxu0 0.0
    %2404 = vmatprep.subr.mxu0 0.0
    %2405 = vmatpush1.msra.mxu0 0.0
    %2406 = vmatprep.subr.mxu0 0.0
    %2407 = vmatpush1.msra.mxu0 0.0
    %2408 = vmatprep.subr.mxu0 0.0
    %2409 = vmatpush1.msra.mxu0 0.0
    %2410 = vmatprep.subr.mxu0 0.0
    %2411 = vmatpush1.msra.mxu0 0.0
    %2412 = vmatprep.subr.mxu0 0.0
    %2413 = vmatpush1.msra.mxu0 0.0
    %2414 = vmatprep.subr.mxu0 0.0
    %2415 = vmatpush1.msra.mxu0 0.0
    %2416 = vmatprep.mubr.f32.mxu0 0.0
    %2417 = vmatmul.mubr.f32.gmra.mrb[0].mxu0 %v1709
    %v2418 = vpop.f32.mrb[0].mxu0
    %v2419 = vadd.f32 %v2135, %v2418
    %v2420 = vpop.f32.mrb[0].mxu0
    %v2421 = vadd.f32 %v2137, %v2420
    %2422 = vdwg.mxu0
    %2423 = vmatprep.subr.mxu0 %v1746
    %2424 = vmatpush1.msra.mxu0 %v1745
    %2425 = vmatprep.subr.mxu0 %v1754
    %2426 = vmatpush1.msra.mxu0 %v1753
    %2427 = vmatprep.subr.mxu0 %v1762
    %2428 = vmatpush1.msra.mxu0 %v1761
    %2429 = vmatprep.subr.mxu0 %v1770
    %2430 = vmatpush1.msra.mxu0 %v1769
    %2431 = vmatprep.subr.mxu0 %v1778
    %2432 = vmatpush1.msra.mxu0 %v1777
    %2433 = vmatprep.subr.mxu0 %v1786
    %2434 = vmatpush1.msra.mxu0 %v1785
    %2435 = vmatprep.subr.mxu0 %v1794
    %2436 = vmatpush1.msra.mxu0 %v1793
    %2437 = vmatprep.subr.mxu0 %v1802
    %2438 = vmatpush1.msra.mxu0 %v1801
    %2439 = vmatprep.subr.mxu0 %v1810
    %2440 = vmatpush1.msra.mxu0 %v1809
    %2441 = vmatprep.subr.mxu0 %v1818
    %2442 = vmatpush1.msra.mxu0 %v1817
    %2443 = vmatprep.subr.mxu0 %v1826
    %2444 = vmatpush1.msra.mxu0 %v1825
    %2445 = vmatprep.subr.mxu0 %v1834
    %2446 = vmatpush1.msra.mxu0 %v1833
    %2447 = vmatprep.subr.mxu0 %v1842
    %2448 = vmatpush1.msra.mxu0 %v1841
    %2449 = vmatprep.subr.mxu0 %v1850
    %2450 = vmatpush1.msra.mxu0 %v1849
    %2451 = vmatprep.subr.mxu0 %v1858
    %2452 = vmatpush1.msra.mxu0 %v1857
    %2453 = vmatprep.subr.mxu0 %v1866
    %2454 = vmatpush1.msra.mxu0 %v1865
    %2455 = vmatprep.subr.mxu0 0.0
    %2456 = vmatpush1.msra.mxu0 0.0
    %2457 = vmatprep.subr.mxu0 0.0
    %2458 = vmatpush1.msra.mxu0 0.0
    %2459 = vmatprep.subr.mxu0 0.0
    %2460 = vmatpush1.msra.mxu0 0.0
    %2461 = vmatprep.subr.mxu0 0.0
    %2462 = vmatpush1.msra.mxu0 0.0
    %2463 = vmatprep.subr.mxu0 0.0
    %2464 = vmatpush1.msra.mxu0 0.0
    %2465 = vmatprep.subr.mxu0 0.0
    %2466 = vmatpush1.msra.mxu0 0.0
    %2467 = vmatprep.subr.mxu0 0.0
    %2468 = vmatpush1.msra.mxu0 0.0
    %2469 = vmatprep.subr.mxu0 0.0
    %2470 = vmatpush1.msra.mxu0 0.0
    %2471 = vmatprep.subr.mxu0 0.0
    %2472 = vmatpush1.msra.mxu0 0.0
    %2473 = vmatprep.subr.mxu0 0.0
    %2474 = vmatpush1.msra.mxu0 0.0
    %2475 = vmatprep.subr.mxu0 0.0
    %2476 = vmatpush1.msra.mxu0 0.0
    %2477 = vmatprep.subr.mxu0 0.0
    %2478 = vmatpush1.msra.mxu0 0.0
    %2479 = vmatprep.subr.mxu0 0.0
    %2480 = vmatpush1.msra.mxu0 0.0
    %2481 = vmatprep.subr.mxu0 0.0
    %2482 = vmatpush1.msra.mxu0 0.0
    %2483 = vmatprep.subr.mxu0 0.0
    %2484 = vmatpush1.msra.mxu0 0.0
    %2485 = vmatprep.subr.mxu0 0.0
    %2486 = vmatpush1.msra.mxu0 0.0
    %2487 = vmatprep.mubr.f32.mxu0 0.0
    %2488 = vmatmul.mubr.f32.gmra.mrb[0].mxu0 %v1709
    %v2489 = vpop.f32.mrb[0].mxu0
    %v2490 = vadd.f32 %v2206, %v2489
    %v2491 = vpop.f32.mrb[0].mxu0
    %v2492 = vadd.f32 %v2208, %v2491
    %2493 = vdwg.mxu0
    %2494 = vmatprep.subr.mxu0 %v1748
    %2495 = vmatpush1.msra.mxu0 %v1747
    %2496 = vmatprep.subr.mxu0 %v1756
    %2497 = vmatpush1.msra.mxu0 %v1755
    %2498 = vmatprep.subr.mxu0 %v1764
    %2499 = vmatpush1.msra.mxu0 %v1763
    %2500 = vmatprep.subr.mxu0 %v1772
    %2501 = vmatpush1.msra.mxu0 %v1771
    %2502 = vmatprep.subr.mxu0 %v1780
    %2503 = vmatpush1.msra.mxu0 %v1779
    %2504 = vmatprep.subr.mxu0 %v1788
    %2505 = vmatpush1.msra.mxu0 %v1787
    %2506 = vmatprep.subr.mxu0 %v1796
    %2507 = vmatpush1.msra.mxu0 %v1795
    %2508 = vmatprep.subr.mxu0 %v1804
    %2509 = vmatpush1.msra.mxu0 %v1803
    %2510 = vmatprep.subr.mxu0 %v1812
    %2511 = vmatpush1.msra.mxu0 %v1811
    %2512 = vmatprep.subr.mxu0 %v1820
    %2513 = vmatpush1.msra.mxu0 %v1819
    %2514 = vmatprep.subr.mxu0 %v1828
    %2515 = vmatpush1.msra.mxu0 %v1827
    %2516 = vmatprep.subr.mxu0 %v1836
    %2517 = vmatpush1.msra.mxu0 %v1835
    %2518 = vmatprep.subr.mxu0 %v1844
    %2519 = vmatpush1.msra.mxu0 %v1843
    %2520 = vmatprep.subr.mxu0 %v1852
    %2521 = vmatpush1.msra.mxu0 %v1851
    %2522 = vmatprep.subr.mxu0 %v1860
    %2523 = vmatpush1.msra.mxu0 %v1859
    %2524 = vmatprep.subr.mxu0 %v1868
    %2525 = vmatpush1.msra.mxu0 %v1867
    %2526 = vmatprep.subr.mxu0 0.0
    %2527 = vmatpush1.msra.mxu0 0.0
    %2528 = vmatprep.subr.mxu0 0.0
    %2529 = vmatpush1.msra.mxu0 0.0
    %2530 = vmatprep.subr.mxu0 0.0
    %2531 = vmatpush1.msra.mxu0 0.0
    %2532 = vmatprep.subr.mxu0 0.0
    %2533 = vmatpush1.msra.mxu0 0.0
    %2534 = vmatprep.subr.mxu0 0.0
    %2535 = vmatpush1.msra.mxu0 0.0
    %2536 = vmatprep.subr.mxu0 0.0
    %2537 = vmatpush1.msra.mxu0 0.0
    %2538 = vmatprep.subr.mxu0 0.0
    %2539 = vmatpush1.msra.mxu0 0.0
    %2540 = vmatprep.subr.mxu0 0.0
    %2541 = vmatpush1.msra.mxu0 0.0
    %2542 = vmatprep.subr.mxu0 0.0
    %2543 = vmatpush1.msra.mxu0 0.0
    %2544 = vmatprep.subr.mxu0 0.0
    %2545 = vmatpush1.msra.mxu0 0.0
    %2546 = vmatprep.subr.mxu0 0.0
    %2547 = vmatpush1.msra.mxu0 0.0
    %2548 = vmatprep.subr.mxu0 0.0
    %2549 = vmatpush1.msra.mxu0 0.0
    %2550 = vmatprep.subr.mxu0 0.0
    %2551 = vmatpush1.msra.mxu0 0.0
    %2552 = vmatprep.subr.mxu0 0.0
    %2553 = vmatpush1.msra.mxu0 0.0
    %2554 = vmatprep.subr.mxu0 0.0
    %2555 = vmatpush1.msra.mxu0 0.0
    %2556 = vmatprep.subr.mxu0 0.0
    %2557 = vmatpush1.msra.mxu0 0.0
    %2558 = vmatprep.mubr.f32.mxu0 0.0
    %2559 = vmatmul.mubr.f32.gmra.mrb[0].mxu0 %v1709
    %v2560 = vpop.f32.mrb[0].mxu0
    %v2561 = vadd.f32 %v2277, %v2560
    %v2562 = vpop.f32.mrb[0].mxu0
    %v2563 = vadd.f32 %v2279, %v2562
    %2564 = vdwg.mxu0
    %v2565 = vld [vmem:[#allocation6] sm:$0xff]
    %v2567 = vlaneseq
    %v2568 = vshrl.u32 %v2567, 7
    %v2569 = vsub.s32 0, %v2568
    %v2570 = vrot.slane %v2565, %v2569
    %v2571 = vlaneseq
    %v2572 = vshrl.u32 %v2571, 7
    %v2573 = vsub.s32 1, %v2572
    %v2574 = vrot.slane %v2565, %v2573
    %v2575 = vlaneseq
    %v2576 = vshrl.u32 %v2575, 7
    %v2577 = vsub.s32 2, %v2576
    %v2578 = vrot.slane %v2565, %v2577
    %v2579 = vlaneseq
    %v2580 = vshrl.u32 %v2579, 7
    %v2581 = vsub.s32 3, %v2580
    %v2582 = vrot.slane %v2565, %v2581
    %v2583 = vlaneseq
    %v2584 = vshrl.u32 %v2583, 7
    %v2585 = vsub.s32 4, %v2584
    %v2586 = vrot.slane %v2565, %v2585
    %v2587 = vlaneseq
    %v2588 = vshrl.u32 %v2587, 7
    %v2589 = vsub.s32 5, %v2588
    %v2590 = vrot.slane %v2565, %v2589
    %v2591 = vlaneseq
    %v2592 = vshrl.u32 %v2591, 7
    %v2593 = vsub.s32 6, %v2592
    %v2594 = vrot.slane %v2565, %v2593
    %v2595 = vlaneseq
    %v2596 = vshrl.u32 %v2595, 7
    %v2597 = vsub.s32 7, %v2596
    %v2598 = vrot.slane %v2565, %v2597
    %v2607 = vadd.f32 %v2348, %v2570
    %v2608 = vadd.f32 %v2350, %v2574
    %v2609 = vadd.f32 %v2419, %v2578
    %v2610 = vadd.f32 %v2421, %v2582
    %v2611 = vadd.f32 %v2490, %v2586
    %v2612 = vadd.f32 %v2492, %v2590
    %v2613 = vadd.f32 %v2561, %v2594
    %v2614 = vadd.f32 %v2563, %v2598
    %vm2615 = vcmp.ge.f32.partialorder %v2607, 0.0
    %vm2616 = vcmp.ge.f32.partialorder %v2608, 0.0
    %vm2617 = vcmp.ge.f32.partialorder %v2609, 0.0
    %vm2618 = vcmp.ge.f32.partialorder %v2610, 0.0
    %vm2619 = vcmp.ge.f32.partialorder %v2611, 0.0
    %vm2620 = vcmp.ge.f32.partialorder %v2612, 0.0
    %vm2621 = vcmp.ge.f32.partialorder %v2613, 0.0
    %vm2622 = vcmp.ge.f32.partialorder %v2614, 0.0
    %v2623 = vld [vmem:[#allocation2] sm:$0x1]
    %2625 = vset.pattern.permute.xlu0 0
    %2626 = vperm.xlu0 %2625, %v2623
    %v2627 = vpop.permute.xlu0 %2626
    %v2629 = vlaneseq
    %v2630 = vshrl.u32 %v2629, 7
    %v2631 = vsub.s32 0, %v2630
    %v2632 = vrot.slane %v2627, %v2631
    %v2633 = vmul.f32 %v2632, %v2607
    %v2634 = vmul.f32 %v2632, %v2608
    %v2635 = vmul.f32 %v2632, %v2609
    %v2636 = vmul.f32 %v2632, %v2610
    %v2637 = vmul.f32 %v2632, %v2611
    %v2638 = vmul.f32 %v2632, %v2612
    %v2639 = vmul.f32 %v2632, %v2613
    %v2640 = vmul.f32 %v2632, %v2614
    %v2641 = vsel %vm2615, %v2607, %v2633
    %v2642 = vsel %vm2616, %v2608, %v2634
    %v2643 = vsel %vm2617, %v2609, %v2635
    %v2644 = vsel %vm2618, %v2610, %v2636
    %v2645 = vsel %vm2619, %v2611, %v2637
    %v2646 = vsel %vm2620, %v2612, %v2638
    %v2647 = vsel %vm2621, %v2613, %v2639
    %v2648 = vsel %vm2622, %v2614, %v2640
    %v2657 = vcombine.low %v2641, %v2642
    %v2658 = vcombine.low %v2643, %v2644
    %v2659 = vcombine.low %v2645, %v2646
    %v2660 = vcombine.low %v2647, %v2648
    %v2662 = vunpack.c.l.s4 1966171168
    %v2663 = vunpack.c.0.s8 %v2662
    %v2664 = vlaneseq
    %v2665 = vshrl.u32 %v2664, 7
    %v2666 = vsub.s32 %v2663, %v2665
    %v2667 = vrot.slane %v2657, %v2666
    %v2669 = vunpack.c.l.s4 1966171168
    %v2670 = vunpack.c.0.s8 %v2669
    %v2671 = vlaneseq
    %v2672 = vshrl.u32 %v2671, 7
    %v2673 = vsub.s32 %v2670, %v2672
    %v2674 = vrot.slane %v2658, %v2673
    %v2676 = vunpack.c.l.s4 1966171168
    %v2677 = vunpack.c.0.s8 %v2676
    %v2678 = vlaneseq
    %v2679 = vshrl.u32 %v2678, 7
    %v2680 = vsub.s32 %v2677, %v2679
    %v2681 = vrot.slane %v2659, %v2680
    %v2683 = vunpack.c.l.s4 1966171168
    %v2684 = vunpack.c.0.s8 %v2683
    %v2685 = vlaneseq
    %v2686 = vshrl.u32 %v2685, 7
    %v2687 = vsub.s32 %v2684, %v2686
    %v2688 = vrot.slane %v2660, %v2687
    %v2689 = vcombine.low %v2667, %v2674
    %v2690 = vcombine.low %v2681, %v2688
    %v2692 = vunpack.c.l.s4 1966171168
    %v2693 = vunpack.c.0.s8 %v2692
    %v2694 = vlaneseq
    %v2695 = vshrl.u32 %v2694, 7
    %v2696 = vsub.s32 %v2693, %v2695
    %v2697 = vrot.slane %v2689, %v2696
    %v2699 = vunpack.c.l.s4 1966171168
    %v2700 = vunpack.c.0.s8 %v2699
    %v2701 = vlaneseq
    %v2702 = vshrl.u32 %v2701, 7
    %v2703 = vsub.s32 %v2700, %v2702
    %v2704 = vrot.slane %v2690, %v2703
    %v2705 = vcombine.low %v2697, %v2704
    %2707 = vst [vmem:[#allocation8] sm:$0xff] %v2705
    // Predicated region
    $region46: #{mpnn_forward.5} parent=1 // pred_check
      _
    $region47: #{mpnn_forward.5} parent=1 // pred_check_branch
      %2709 = sbr.rel (0) target = $region49
    $region48: #{mpnn_forward.5} parent=1 // pred_region
      %s2711 = ssub.s32 128, 128
      %2712 = vsyncadd [#allocation5], %s2711
      %s2714 = sshll.u32 [#allocation8], 4
      %s2715 = int_to_ptr.vmem [resolvable:$true] %s2714
      %2717 = dma.vmem_to_hbm [thread:$0]  %s2715, 128, %s9, [#allocation5]
    $region49: #{mpnn_forward.5} parent=1 // pred_fallthru
      _
    // Predicated region
    $region50: #{mpnn_forward.5} parent=1 // pred_check
      _
    $region51: #{mpnn_forward.5} parent=1 // pred_check_branch
      %2719 = sbr.rel (0) target = $region53
    $region52: #{mpnn_forward.5} parent=1 // pred_region
      %2720 = dma.done [#allocation5], 128
    $region53: #{mpnn_forward.5} parent=1 // pred_fallthru
      _
    %2721 = vsyncpa [#allocation4], 1
    %2722 = vsyncpa [#allocation7], 1
    %2723 = vsyncpa [#allocation5], 1

</llo_original>
